<compile_context>
chip_gen: v7x
topology: tpu7x:2x2x1
jax: 0.10.0
libtpu: 0.0.40
codegen_flags: <defaults>
</compile_context>

<pallas_src>
import functools

import numpy as np
import jax
import jax.numpy as jnp
from jax import lax
from jax.experimental import pallas as pl
from jax.experimental.pallas import tpu as pltpu

DILATIONS = (1, 3, 5)
KSIZE = 3
NEG_SLOPE = 0.1   # LeakyReLU(negative_slope=0.1)
HALO = 128        # lane-aligned halo; block receptive field = 12 << 128


def _round_up(v, m):
    return ((v + m - 1) // m) * m


def _leaky(v):
    # LeakyReLU via max(v, slope*v): 1 mul + 1 max per element (no cmp/select).
    return jnp.maximum(v, NEG_SLOPE * v)


def _residual_block_kernel(xl_ref, xc_ref, xr_ref, w1_ref, b1_ref, w2_ref, b2_ref,
                           o_ref, x_scr, *, t_true, tile_t):
    # xl/xr: (1, C, HALO); xc: (1, C, tile_t); w*: (L, K, C, C) mxu dtype; b*: (L, C, 1) f32
    t = pl.program_id(1)
    W = tile_t + 2 * HALO
    t0 = t * tile_t - HALO                      # global column of window column 0

    # Assemble the haloed window into VMEM scratch (the running residual lives here,
    # in the input dtype).
    x_scr[:, :HALO] = xl_ref[0]
    x_scr[:, HALO:HALO + tile_t] = xc_ref[0]
    x_scr[:, HALO + tile_t:] = xr_ref[0]

    def conv(v, w_ref, b_ref, i, d):
        # Per-tap accumulating matmuls — no (3C, W) stacked operand materialization.
        vm = v.astype(w_ref.dtype)
        out = None
        for k in range(KSIZE):
            off = (k - 1) * d                   # static python offset
            vk = vm if off == 0 else pltpu.roll(vm, shift=(-off) % W, axis=1)
            p = jnp.dot(w_ref[i, k], vk, preferred_element_type=jnp.float32)
            out = p if out is None else out + p
        return out + b_ref[i]
        # (roll wraparound corrupts <= 12 columns at the window edges; only the
        #  interior [HALO, HALO+tile_t) is written out, so it stays exact.)

    def stages(mask):
        for i, d in enumerate(DILATIONS):
            xt = _leaky(x_scr[...])
            if mask is not None:
                xt = jnp.where(mask, xt, 0.0)
            xt = conv(xt, w1_ref, b1_ref, i, d)          # convs1[i], dilation d
            xt = _leaky(xt)
            if mask is not None:
                xt = jnp.where(mask, xt, 0.0)
            xt = conv(xt, w2_ref, b2_ref, i, 1)          # convs2[i], dilation 1
            x_scr[...] = (x_scr[...] + xt).astype(x_scr.dtype)

    # Interior tiles (whole window inside [0, T_true)): mask-free fast path.
    fully_inside = jnp.logical_and(t0 >= 0, t0 + W <= t_true)

    @pl.when(fully_inside)
    def _():
        stages(None)

    @pl.when(jnp.logical_not(fully_inside))
    def _():
        # Out-of-sequence columns are zeroed at every conv input == torch's
        # zero padding at the true sequence boundaries.
        g = t0 + lax.broadcasted_iota(jnp.int32, (1, W), 1)
        stages(jnp.logical_and(g >= 0, g < t_true))

    o_ref[0] = x_scr[:, HALO:HALO + tile_t].astype(o_ref.dtype)


def _tpu_vmem_capacity():
    try:
        return int(pltpu.get_tpu_info().vmem_capacity_bytes)
    except Exception:
        return 128 * 1024 * 1024


def residual_block(x, w1, b1, w2, b2, *, tile_t=None, mxu_dtype=None):
    """x: (N, C, T); w1/w2: (L, Cout, Cin, K) (torch Conv1d layout); b1/b2: (L, C)."""
    N, C, T = x.shape
    L = w1.shape[0]
    assert w1.shape == (L, C, C, KSIZE) and w2.shape == (L, C, C, KSIZE)

    # Halo must cover the whole block's receptive field (roll-wraparound argument).
    rf = sum(((KSIZE - 1) // 2) * d + (KSIZE - 1) // 2 for d in DILATIONS)   # = 12
    assert HALO >= rf, (HALO, rf)

    # bf16 MXU operands (f32 accumulation) when the input is bf16; f32 otherwise.
    # TODO(synk): HiFi-GAN tolerates forcing mxu_dtype=bf16 even for f32 inputs for
    # extra MXU throughput; left opt-in to keep bit-closeness to the f32 reference.
    if mxu_dtype is None:
        mxu_dtype = jnp.bfloat16 if x.dtype == jnp.bfloat16 else jnp.float32

    sub = 8 if (jnp.dtype(x.dtype).itemsize >= 4
                and jnp.dtype(mxu_dtype).itemsize >= 4) else 16
    C_pad = _round_up(max(C, sub), sub)

    vmem_cap = _tpu_vmem_capacity()
    if tile_t is None:
        # Big time tiles keep per-step overhead and the 2*HALO halo fraction low;
        # 64-MiB-VMEM parts (v7x) get 1024, 128-MiB parts (v5e/v6e) get 2048.
        tile_t = 1024 if vmem_cap <= 64 * 1024 * 1024 else 2048
    tile_t = max(HALO, (tile_t // 128) * 128)
    tile_t = min(tile_t, _round_up(T, 128))
    n_tiles = -(-T // tile_t)
    T_pad = n_tiles * tile_t
    R = tile_t // HALO
    n_hblk = T_pad // HALO
    W = tile_t + 2 * HALO

    xp = jnp.pad(x, ((0, 0), (0, C_pad - C), (0, T_pad - T)))

    def prep_w(w):
        # (L, Co, Ci, K) -> (L, K, Co_pad, Ci_pad), pre-cast to the MXU dtype
        # (no per-grid-step weight casts; bf16 halves weight DMA/VMEM).
        wp = jnp.pad(w, ((0, 0), (0, C_pad - C), (0, C_pad - C), (0, 0)))
        return jnp.transpose(wp, (0, 3, 1, 2)).astype(mxu_dtype)

    def prep_b(b):
        return jnp.pad(b, ((0, 0), (0, C_pad - C)))[..., None].astype(jnp.float32)

    w1f, w2f = prep_w(w1), prep_w(w2)
    b1p, b2p = prep_b(b1), prep_b(b2)

    # VMEM limit derived from the actual footprint (streaming operands double-
    # buffered, weights double-buffered, residual scratch) plus headroom.
    xb = jnp.dtype(x.dtype).itemsize
    wb = jnp.dtype(mxu_dtype).itemsize
    footprint = (2 * C_pad * W * xb                   # xl/xc/xr blocks (x2 buffers)
                 + 2 * C_pad * tile_t * xb            # output block   (x2 buffers)
                 + 2 * (w1f.size + w2f.size) * wb     # weights        (x2 buffers)
                 + 2 * (b1p.size + b2p.size) * 4      # biases         (x2 buffers)
                 + C_pad * W * xb)                    # x_scr
    vmem_limit = int(min(max(footprint * 3 // 2 + (16 << 20), 32 << 20),
                         vmem_cap * 9 // 10))

    kernel = functools.partial(_residual_block_kernel, t_true=T, tile_t=tile_t)

    # NOTE(synk): the four constant operand specs below would ideally be
    # single-buffered (pipeline_mode=pl.Buffered(1), index_map is constant); left at
    # the default for portability — the vmem_limit above accounts for both buffers.
    def const_spec(a):
        zeros = (0,) * a.ndim
        return pl.BlockSpec(a.shape, lambda n, t: zeros)

    out = pl.pallas_call(
        kernel,
        out_shape=jax.ShapeDtypeStruct((N, C_pad, T_pad), x.dtype),
        grid=(N, n_tiles),
        in_specs=[
            # left halo (clamped at t==0; masked in-kernel), center tile, right halo
            pl.BlockSpec((1, C_pad, HALO),
                         lambda n, t: (n, 0, jnp.maximum(t * R - 1, 0))),
            pl.BlockSpec((1, C_pad, tile_t), lambda n, t: (n, 0, t)),
            pl.BlockSpec((1, C_pad, HALO),
                         lambda n, t: (n, 0, jnp.minimum((t + 1) * R, n_hblk - 1))),
            const_spec(w1f), const_spec(b1p), const_spec(w2f), const_spec(b2p),
        ],
        out_specs=pl.BlockSpec((1, C_pad, tile_t), lambda n, t: (n, 0, t)),
        scratch_shapes=[pltpu.VMEM((C_pad, W), x.dtype)],
        compiler_params=pltpu.CompilerParams(
            dimension_semantics=("parallel", "parallel"),
            vmem_limit_bytes=vmem_limit),
    )(xp, xp, xp, w1f, b1p, w2f, b2p)

    return out[:, :C, :T]


# ---------------- pure-numpy float64 reference (correctness check) ----------------
def _leaky_np(v):
    return np.where(v > 0, v, NEG_SLOPE * v)


def _conv1d_np(x, w, b, d):
    # x: (N, C, T); w: (Co, Ci, K); b: (Co,)
    N, C, T = x.shape
    pad = ((KSIZE - 1) // 2) * d
    xp = np.pad(x, ((0, 0), (0, 0), (pad, pad)))
    out = np.zeros((N, w.shape[0], T), dtype=np.float64)
    for k in range(KSIZE):
        out += np.einsum("oi,nit->not", w[:, :, k], xp[:, :, k * d:k * d + T])
    return out + b[None, :, None]


def residual_block_np(x, w1, b1, w2, b2):
    x = x.astype(np.float64)
    for i, d in enumerate(DILATIONS):
        xt = _leaky_np(x)
        xt = _conv1d_np(xt, w1[i].astype(np.float64), b1[i].astype(np.float64), d)
        xt = _leaky_np(xt)
        xt = _conv1d_np(xt, w2[i].astype(np.float64), b2[i].astype(np.float64), 1)
        x = xt + x
    return x


if __name__ == "__main__":
    # Small shapes that still exercise: channel padding (12 -> 16), T padding,
    # multi-tile halos, the masked boundary path AND the mask-free interior path.
    N, C, T = 2, 12, 600
    L = len(DILATIONS)

    key = jax.random.PRNGKey(0)
    kx, k1, k2, k3, k4 = jax.random.split(key, 5)

    x = jax.random.normal(kx, (N, C, T), dtype=jnp.float32)
    # synthetic effective (post-weight_norm) parameters, torch Conv1d layout (Cout, Cin, K)
    w1 = 0.1 * jax.random.normal(k1, (L, C, C, KSIZE), dtype=jnp.float32)
    b1 = 0.1 * jax.random.normal(k2, (L, C), dtype=jnp.float32)
    w2 = 0.1 * jax.random.normal(k3, (L, C, C, KSIZE), dtype=jnp.float32)
    b2 = 0.1 * jax.random.normal(k4, (L, C), dtype=jnp.float32)

    ref = residual_block_np(np.asarray(x), np.asarray(w1), np.asarray(b1),
                            np.asarray(w2), np.asarray(b2))

    # Small tiles: 5 time tiles -> boundary path (t=0,3,4) and interior fast path (t=1,2).
    run_small = jax.jit(functools.partial(residual_block, tile_t=128))
    out_small = jax.block_until_ready(run_small(x, w1, b1, w2, b2))

    # Default (large, generation-aware) tiles: single boundary tile.
    run_big = jax.jit(residual_block)
    out_big = jax.block_until_ready(run_big(x, w1, b1, w2, b2))

    for out in (out_small, out_big):
        assert out.shape == (N, C, T) and out.dtype == x.dtype
        err = float(np.max(np.abs(np.asarray(out, dtype=np.float64) - ref)))
        # tolerance allows for possible reduced-precision MXU passes on f32 operands
        assert err < 3e-2, err

    print("KERNEL_OK")
</pallas_src>

<mosaic_0001>
module attributes {stable_mosaic.version = 11 : i64} {
  func.func @_residual_block_kernel(%arg0: i32, %arg1: i32, %arg2: memref<1x16x128xf32, #tpu.memory_space<vmem>>, %arg3: memref<1x16x128xf32, #tpu.memory_space<vmem>>, %arg4: memref<1x16x128xf32, #tpu.memory_space<vmem>>, %arg5: memref<3x3x16x16xf32, #tpu.memory_space<vmem>>, %arg6: memref<3x16x1xf32, #tpu.memory_space<vmem>>, %arg7: memref<3x3x16x16xf32, #tpu.memory_space<vmem>>, %arg8: memref<3x16x1xf32, #tpu.memory_space<vmem>>, %arg9: memref<1x16x128xf32, #tpu.memory_space<vmem>>, %arg10: memref<16x384xf32, #tpu.memory_space<vmem>>) attributes {dimension_semantics = [#tpu.dimension_semantics<parallel>, #tpu.dimension_semantics<parallel>], iteration_bounds = array<i64: 2, 5>, scalar_prefetch = 0 : i64, scratch_operands = 1 : i64, tpu.core_type = #tpu.core_type<tc>, window_params = [{transform_indices = @transform_0, window_bounds = array<i64: 1, 16, 128>}, {transform_indices = @transform_1, window_bounds = array<i64: 1, 16, 128>}, {transform_indices = @transform_2, window_bounds = array<i64: 1, 16, 128>}, {pipeline_mode = #tpu.pipeline_mode<synchronous>, transform_indices = @transform_3, window_bounds = array<i64: 3, 3, 16, 16>}, {pipeline_mode = #tpu.pipeline_mode<synchronous>, transform_indices = @transform_4, window_bounds = array<i64: 3, 16, 1>}, {pipeline_mode = #tpu.pipeline_mode<synchronous>, transform_indices = @transform_5, window_bounds = array<i64: 3, 3, 16, 16>}, {pipeline_mode = #tpu.pipeline_mode<synchronous>, transform_indices = @transform_6, window_bounds = array<i64: 3, 16, 1>}, {transform_indices = @transform_7, window_bounds = array<i64: 1, 16, 128>}]} {
    %c128_i32 = arith.constant 128 : i32
    %0 = arith.muli %arg1, %c128_i32 : i32
    %c128_i32_0 = arith.constant 128 : i32
    %1 = arith.subi %0, %c128_i32_0 : i32
    %c0 = arith.constant 0 : index
    %c0_1 = arith.constant 0 : index
    %c0_2 = arith.constant 0 : index
    %2 = vector.load %arg2[%c0, %c0_1, %c0_2] : memref<1x16x128xf32, #tpu.memory_space<vmem>>, vector<1x16x128xf32>
    %3 = vector.shape_cast %2 : vector<1x16x128xf32> to vector<16x128xf32>
    %c0_3 = arith.constant 0 : index
    %c0_4 = arith.constant 0 : index
    %4 = vector.load %arg10[%c0_3, %c0_4] : memref<16x384xf32, #tpu.memory_space<vmem>>, vector<16x128xf32>
    tpu.vector_store %arg10[%c0_3, %c0_4], %3 {strides = array<i32>} : memref<16x384xf32, #tpu.memory_space<vmem>>, vector<16x128xf32>,
    %c0_5 = arith.constant 0 : index
    %c0_6 = arith.constant 0 : index
    %c0_7 = arith.constant 0 : index
    %5 = vector.load %arg3[%c0_5, %c0_6, %c0_7] : memref<1x16x128xf32, #tpu.memory_space<vmem>>, vector<1x16x128xf32>
    %6 = vector.shape_cast %5 : vector<1x16x128xf32> to vector<16x128xf32>
    %c0_8 = arith.constant 0 : index
    %c128 = arith.constant 128 : index
    %7 = vector.load %arg10[%c0_8, %c128] : memref<16x384xf32, #tpu.memory_space<vmem>>, vector<16x128xf32>
    tpu.vector_store %arg10[%c0_8, %c128], %6 {strides = array<i32>} : memref<16x384xf32, #tpu.memory_space<vmem>>, vector<16x128xf32>,
    %c0_9 = arith.constant 0 : index
    %c0_10 = arith.constant 0 : index
    %c0_11 = arith.constant 0 : index
    %8 = vector.load %arg4[%c0_9, %c0_10, %c0_11] : memref<1x16x128xf32, #tpu.memory_space<vmem>>, vector<1x16x128xf32>
    %9 = vector.shape_cast %8 : vector<1x16x128xf32> to vector<16x128xf32>
    %c0_12 = arith.constant 0 : index
    %c256 = arith.constant 256 : index
    %10 = vector.load %arg10[%c0_12, %c256] : memref<16x384xf32, #tpu.memory_space<vmem>>, vector<16x128xf32>
    tpu.vector_store %arg10[%c0_12, %c256], %9 {strides = array<i32>} : memref<16x384xf32, #tpu.memory_space<vmem>>, vector<16x128xf32>,
    %c0_i32 = arith.constant 0 : i32
    %11 = arith.cmpi sge, %1, %c0_i32 : i32
    %c384_i32 = arith.constant 384 : i32
    %12 = arith.addi %1, %c384_i32 : i32
    %c600_i32 = arith.constant 600 : i32
    %13 = arith.cmpi sle, %12, %c600_i32 : i32
    %14 = arith.andi %11, %13 : i1
    %15 = arith.extui %14 : i1 to i32
    %c0_i32_13 = arith.constant 0 : i32
    %16 = arith.cmpi ne, %15, %c0_i32_13 : i32
    scf.if %16 {
      %c0_20 = arith.constant 0 : index
      %c0_21 = arith.constant 0 : index
      %24 = vector.load %arg10[%c0_20, %c0_21] : memref<16x384xf32, #tpu.memory_space<vmem>>, vector<16x384xf32>
      %cst = arith.constant 1.000000e-01 : f32
      %25 = vector.broadcast %cst : f32 to vector<16x384xf32>
      %26 = arith.mulf %25, %24 : vector<16x384xf32>
      %27 = arith.maximumf %24, %26 : vector<16x384xf32>
      %c1_i32 = arith.constant 1 : i32
      %28 = tpu.dynamic_rotate %27 by %c1_i32 dim 1 : vector<16x384xf32>, i32 -> vector<16x384xf32>
      %c0_22 = arith.constant 0 : index
      %c0_23 = arith.constant 0 : index
      %c0_24 = arith.constant 0 : index
      %c0_25 = arith.constant 0 : index
      %29 = vector.load %arg5[%c0_22, %c0_23, %c0_24, %c0_25] : memref<3x3x16x16xf32, #tpu.memory_space<vmem>>, vector<1x1x16x16xf32>
      %30 = vector.shape_cast %29 : vector<1x1x16x16xf32> to vector<16x16xf32>
      %cst_26 = arith.constant dense<0.000000e+00> : vector<16x384xf32>
      %31 = tpu.matmul %30, %28, %cst_26 {dimension_numbers = #tpu.dot_dimension_numbers<[1], [0], [0], [1], [0, 0, 1, 1], [], []>} : vector<16x16xf32>, vector<16x384xf32>, vector<16x384xf32> -> vector<16x384xf32>
      %c0_27 = arith.constant 0 : index
      %c1 = arith.constant 1 : index
      %c0_28 = arith.constant 0 : index
      %c0_29 = arith.constant 0 : index
      %32 = vector.load %arg5[%c0_27, %c1, %c0_28, %c0_29] : memref<3x3x16x16xf32, #tpu.memory_space<vmem>>, vector<1x1x16x16xf32>
      %33 = vector.shape_cast %32 : vector<1x1x16x16xf32> to vector<16x16xf32>
      %cst_30 = arith.constant dense<0.000000e+00> : vector<16x384xf32>
      %34 = tpu.matmul %33, %27, %cst_30 {dimension_numbers = #tpu.dot_dimension_numbers<[1], [0], [0], [1], [0, 0, 1, 1], [], []>} : vector<16x16xf32>, vector<16x384xf32>, vector<16x384xf32> -> vector<16x384xf32>
      %35 = arith.addf %31, %34 : vector<16x384xf32>
      %c383_i32 = arith.constant 383 : i32
      %36 = tpu.dynamic_rotate %27 by %c383_i32 dim 1 : vector<16x384xf32>, i32 -> vector<16x384xf32>
      %c0_31 = arith.constant 0 : index
      %c2 = arith.constant 2 : index
      %c0_32 = arith.constant 0 : index
      %c0_33 = arith.constant 0 : index
      %37 = vector.load %arg5[%c0_31, %c2, %c0_32, %c0_33] : memref<3x3x16x16xf32, #tpu.memory_space<vmem>>, vector<1x1x16x16xf32>
      %38 = vector.shape_cast %37 : vector<1x1x16x16xf32> to vector<16x16xf32>
      %cst_34 = arith.constant dense<0.000000e+00> : vector<16x384xf32>
      %39 = tpu.matmul %38, %36, %cst_34 {dimension_numbers = #tpu.dot_dimension_numbers<[1], [0], [0], [1], [0, 0, 1, 1], [], []>} : vector<16x16xf32>, vector<16x384xf32>, vector<16x384xf32> -> vector<16x384xf32>
      %40 = arith.addf %35, %39 : vector<16x384xf32>
      %c0_35 = arith.constant 0 : index
      %c0_36 = arith.constant 0 : index
      %c0_37 = arith.constant 0 : index
      %41 = vector.load %arg6[%c0_35, %c0_36, %c0_37] : memref<3x16x1xf32, #tpu.memory_space<vmem>>, vector<1x16x1xf32>
      %42 = vector.shape_cast %41 : vector<1x16x1xf32> to vector<16x1xf32>
      %43 = vector.broadcast %42 : vector<16x1xf32> to vector<16x384xf32>
      %44 = arith.addf %40, %43 : vector<16x384xf32>
      %cst_38 = arith.constant 1.000000e-01 : f32
      %45 = vector.broadcast %cst_38 : f32 to vector<16x384xf32>
      %46 = arith.mulf %45, %44 : vector<16x384xf32>
      %47 = arith.maximumf %44, %46 : vector<16x384xf32>
      %c1_i32_39 = arith.constant 1 : i32
      %48 = tpu.dynamic_rotate %47 by %c1_i32_39 dim 1 : vector<16x384xf32>, i32 -> vector<16x384xf32>
      %c0_40 = arith.constant 0 : index
      %c0_41 = arith.constant 0 : index
      %c0_42 = arith.constant 0 : index
      %c0_43 = arith.constant 0 : index
      %49 = vector.load %arg7[%c0_40, %c0_41, %c0_42, %c0_43] : memref<3x3x16x16xf32, #tpu.memory_space<vmem>>, vector<1x1x16x16xf32>
      %50 = vector.shape_cast %49 : vector<1x1x16x16xf32> to vector<16x16xf32>
      %cst_44 = arith.constant dense<0.000000e+00> : vector<16x384xf32>
      %51 = tpu.matmul %50, %48, %cst_44 {dimension_numbers = #tpu.dot_dimension_numbers<[1], [0], [0], [1], [0, 0, 1, 1], [], []>} : vector<16x16xf32>, vector<16x384xf32>, vector<16x384xf32> -> vector<16x384xf32>
      %c0_45 = arith.constant 0 : index
      %c1_46 = arith.constant 1 : index
      %c0_47 = arith.constant 0 : index
      %c0_48 = arith.constant 0 : index
      %52 = vector.load %arg7[%c0_45, %c1_46, %c0_47, %c0_48] : memref<3x3x16x16xf32, #tpu.memory_space<vmem>>, vector<1x1x16x16xf32>
      %53 = vector.shape_cast %52 : vector<1x1x16x16xf32> to vector<16x16xf32>
      %cst_49 = arith.constant dense<0.000000e+00> : vector<16x384xf32>
      %54 = tpu.matmul %53, %47, %cst_49 {dimension_numbers = #tpu.dot_dimension_numbers<[1], [0], [0], [1], [0, 0, 1, 1], [], []>} : vector<16x16xf32>, vector<16x384xf32>, vector<16x384xf32> -> vector<16x384xf32>
      %55 = arith.addf %51, %54 : vector<16x384xf32>
      %c383_i32_50 = arith.constant 383 : i32
      %56 = tpu.dynamic_rotate %47 by %c383_i32_50 dim 1 : vector<16x384xf32>, i32 -> vector<16x384xf32>
      %c0_51 = arith.constant 0 : index
      %c2_52 = arith.constant 2 : index
      %c0_53 = arith.constant 0 : index
      %c0_54 = arith.constant 0 : index
      %57 = vector.load %arg7[%c0_51, %c2_52, %c0_53, %c0_54] : memref<3x3x16x16xf32, #tpu.memory_space<vmem>>, vector<1x1x16x16xf32>
      %58 = vector.shape_cast %57 : vector<1x1x16x16xf32> to vector<16x16xf32>
      %cst_55 = arith.constant dense<0.000000e+00> : vector<16x384xf32>
      %59 = tpu.matmul %58, %56, %cst_55 {dimension_numbers = #tpu.dot_dimension_numbers<[1], [0], [0], [1], [0, 0, 1, 1], [], []>} : vector<16x16xf32>, vector<16x384xf32>, vector<16x384xf32> -> vector<16x384xf32>
      %60 = arith.addf %55, %59 : vector<16x384xf32>
      %c0_56 = arith.constant 0 : index
      %c0_57 = arith.constant 0 : index
      %c0_58 = arith.constant 0 : index
      %61 = vector.load %arg8[%c0_56, %c0_57, %c0_58] : memref<3x16x1xf32, #tpu.memory_space<vmem>>, vector<1x16x1xf32>
      %62 = vector.shape_cast %61 : vector<1x16x1xf32> to vector<16x1xf32>
      %63 = vector.broadcast %62 : vector<16x1xf32> to vector<16x384xf32>
      %64 = arith.addf %60, %63 : vector<16x384xf32>
      %c0_59 = arith.constant 0 : index
      %c0_60 = arith.constant 0 : index
      %65 = vector.load %arg10[%c0_59, %c0_60] : memref<16x384xf32, #tpu.memory_space<vmem>>, vector<16x384xf32>
      %66 = arith.addf %65, %64 : vector<16x384xf32>
      %c0_61 = arith.constant 0 : index
      %c0_62 = arith.constant 0 : index
      %67 = vector.load %arg10[%c0_61, %c0_62] : memref<16x384xf32, #tpu.memory_space<vmem>>, vector<16x384xf32>
      tpu.vector_store %arg10[%c0_61, %c0_62], %66 {strides = array<i32>} : memref<16x384xf32, #tpu.memory_space<vmem>>, vector<16x384xf32>,
      %c0_63 = arith.constant 0 : index
      %c0_64 = arith.constant 0 : index
      %68 = vector.load %arg10[%c0_63, %c0_64] : memref<16x384xf32, #tpu.memory_space<vmem>>, vector<16x384xf32>
      %cst_65 = arith.constant 1.000000e-01 : f32
      %69 = vector.broadcast %cst_65 : f32 to vector<16x384xf32>
      %70 = arith.mulf %69, %68 : vector<16x384xf32>
      %71 = arith.maximumf %68, %70 : vector<16x384xf32>
      %c3_i32 = arith.constant 3 : i32
      %72 = tpu.dynamic_rotate %71 by %c3_i32 dim 1 : vector<16x384xf32>, i32 -> vector<16x384xf32>
      %c1_66 = arith.constant 1 : index
      %c0_67 = arith.constant 0 : index
      %c0_68 = arith.constant 0 : index
      %c0_69 = arith.constant 0 : index
      %73 = vector.load %arg5[%c1_66, %c0_67, %c0_68, %c0_69] : memref<3x3x16x16xf32, #tpu.memory_space<vmem>>, vector<1x1x16x16xf32>
      %74 = vector.shape_cast %73 : vector<1x1x16x16xf32> to vector<16x16xf32>
      %cst_70 = arith.constant dense<0.000000e+00> : vector<16x384xf32>
      %75 = tpu.matmul %74, %72, %cst_70 {dimension_numbers = #tpu.dot_dimension_numbers<[1], [0], [0], [1], [0, 0, 1, 1], [], []>} : vector<16x16xf32>, vector<16x384xf32>, vector<16x384xf32> -> vector<16x384xf32>
      %c1_71 = arith.constant 1 : index
      %c1_72 = arith.constant 1 : index
      %c0_73 = arith.constant 0 : index
      %c0_74 = arith.constant 0 : index
      %76 = vector.load %arg5[%c1_71, %c1_72, %c0_73, %c0_74] : memref<3x3x16x16xf32, #tpu.memory_space<vmem>>, vector<1x1x16x16xf32>
      %77 = vector.shape_cast %76 : vector<1x1x16x16xf32> to vector<16x16xf32>
      %cst_75 = arith.constant dense<0.000000e+00> : vector<16x384xf32>
      %78 = tpu.matmul %77, %71, %cst_75 {dimension_numbers = #tpu.dot_dimension_numbers<[1], [0], [0], [1], [0, 0, 1, 1], [], []>} : vector<16x16xf32>, vector<16x384xf32>, vector<16x384xf32> -> vector<16x384xf32>
      %79 = arith.addf %75, %78 : vector<16x384xf32>
      %c381_i32 = arith.constant 381 : i32
      %80 = tpu.dynamic_rotate %71 by %c381_i32 dim 1 : vector<16x384xf32>, i32 -> vector<16x384xf32>
      %c1_76 = arith.constant 1 : index
      %c2_77 = arith.constant 2 : index
      %c0_78 = arith.constant 0 : index
      %c0_79 = arith.constant 0 : index
      %81 = vector.load %arg5[%c1_76, %c2_77, %c0_78, %c0_79] : memref<3x3x16x16xf32, #tpu.memory_space<vmem>>, vector<1x1x16x16xf32>
      %82 = vector.shape_cast %81 : vector<1x1x16x16xf32> to vector<16x16xf32>
      %cst_80 = arith.constant dense<0.000000e+00> : vector<16x384xf32>
      %83 = tpu.matmul %82, %80, %cst_80 {dimension_numbers = #tpu.dot_dimension_numbers<[1], [0], [0], [1], [0, 0, 1, 1], [], []>} : vector<16x16xf32>, vector<16x384xf32>, vector<16x384xf32> -> vector<16x384xf32>
      %84 = arith.addf %79, %83 : vector<16x384xf32>
      %c1_81 = arith.constant 1 : index
      %c0_82 = arith.constant 0 : index
      %c0_83 = arith.constant 0 : index
      %85 = vector.load %arg6[%c1_81, %c0_82, %c0_83] : memref<3x16x1xf32, #tpu.memory_space<vmem>>, vector<1x16x1xf32>
      %86 = vector.shape_cast %85 : vector<1x16x1xf32> to vector<16x1xf32>
      %87 = vector.broadcast %86 : vector<16x1xf32> to vector<16x384xf32>
      %88 = arith.addf %84, %87 : vector<16x384xf32>
      %cst_84 = arith.constant 1.000000e-01 : f32
      %89 = vector.broadcast %cst_84 : f32 to vector<16x384xf32>
      %90 = arith.mulf %89, %88 : vector<16x384xf32>
      %91 = arith.maximumf %88, %90 : vector<16x384xf32>
      %c1_i32_85 = arith.constant 1 : i32
      %92 = tpu.dynamic_rotate %91 by %c1_i32_85 dim 1 : vector<16x384xf32>, i32 -> vector<16x384xf32>
      %c1_86 = arith.constant 1 : index
      %c0_87 = arith.constant 0 : index
      %c0_88 = arith.constant 0 : index
      %c0_89 = arith.constant 0 : index
      %93 = vector.load %arg7[%c1_86, %c0_87, %c0_88, %c0_89] : memref<3x3x16x16xf32, #tpu.memory_space<vmem>>, vector<1x1x16x16xf32>
      %94 = vector.shape_cast %93 : vector<1x1x16x16xf32> to vector<16x16xf32>
      %cst_90 = arith.constant dense<0.000000e+00> : vector<16x384xf32>
      %95 = tpu.matmul %94, %92, %cst_90 {dimension_numbers = #tpu.dot_dimension_numbers<[1], [0], [0], [1], [0, 0, 1, 1], [], []>} : vector<16x16xf32>, vector<16x384xf32>, vector<16x384xf32> -> vector<16x384xf32>
      %c1_91 = arith.constant 1 : index
      %c1_92 = arith.constant 1 : index
      %c0_93 = arith.constant 0 : index
      %c0_94 = arith.constant 0 : index
      %96 = vector.load %arg7[%c1_91, %c1_92, %c0_93, %c0_94] : memref<3x3x16x16xf32, #tpu.memory_space<vmem>>, vector<1x1x16x16xf32>
      %97 = vector.shape_cast %96 : vector<1x1x16x16xf32> to vector<16x16xf32>
      %cst_95 = arith.constant dense<0.000000e+00> : vector<16x384xf32>
      %98 = tpu.matmul %97, %91, %cst_95 {dimension_numbers = #tpu.dot_dimension_numbers<[1], [0], [0], [1], [0, 0, 1, 1], [], []>} : vector<16x16xf32>, vector<16x384xf32>, vector<16x384xf32> -> vector<16x384xf32>
      %99 = arith.addf %95, %98 : vector<16x384xf32>
      %c383_i32_96 = arith.constant 383 : i32
      %100 = tpu.dynamic_rotate %91 by %c383_i32_96 dim 1 : vector<16x384xf32>, i32 -> vector<16x384xf32>
      %c1_97 = arith.constant 1 : index
      %c2_98 = arith.constant 2 : index
      %c0_99 = arith.constant 0 : index
      %c0_100 = arith.constant 0 : index
      %101 = vector.load %arg7[%c1_97, %c2_98, %c0_99, %c0_100] : memref<3x3x16x16xf32, #tpu.memory_space<vmem>>, vector<1x1x16x16xf32>
      %102 = vector.shape_cast %101 : vector<1x1x16x16xf32> to vector<16x16xf32>
      %cst_101 = arith.constant dense<0.000000e+00> : vector<16x384xf32>
      %103 = tpu.matmul %102, %100, %cst_101 {dimension_numbers = #tpu.dot_dimension_numbers<[1], [0], [0], [1], [0, 0, 1, 1], [], []>} : vector<16x16xf32>, vector<16x384xf32>, vector<16x384xf32> -> vector<16x384xf32>
      %104 = arith.addf %99, %103 : vector<16x384xf32>
      %c1_102 = arith.constant 1 : index
      %c0_103 = arith.constant 0 : index
      %c0_104 = arith.constant 0 : index
      %105 = vector.load %arg8[%c1_102, %c0_103, %c0_104] : memref<3x16x1xf32, #tpu.memory_space<vmem>>, vector<1x16x1xf32>
      %106 = vector.shape_cast %105 : vector<1x16x1xf32> to vector<16x1xf32>
      %107 = vector.broadcast %106 : vector<16x1xf32> to vector<16x384xf32>
      %108 = arith.addf %104, %107 : vector<16x384xf32>
      %c0_105 = arith.constant 0 : index
      %c0_106 = arith.constant 0 : index
      %109 = vector.load %arg10[%c0_105, %c0_106] : memref<16x384xf32, #tpu.memory_space<vmem>>, vector<16x384xf32>
      %110 = arith.addf %109, %108 : vector<16x384xf32>
      %c0_107 = arith.constant 0 : index
      %c0_108 = arith.constant 0 : index
      %111 = vector.load %arg10[%c0_107, %c0_108] : memref<16x384xf32, #tpu.memory_space<vmem>>, vector<16x384xf32>
      tpu.vector_store %arg10[%c0_107, %c0_108], %110 {strides = array<i32>} : memref<16x384xf32, #tpu.memory_space<vmem>>, vector<16x384xf32>,
      %c0_109 = arith.constant 0 : index
      %c0_110 = arith.constant 0 : index
      %112 = vector.load %arg10[%c0_109, %c0_110] : memref<16x384xf32, #tpu.memory_space<vmem>>, vector<16x384xf32>
      %cst_111 = arith.constant 1.000000e-01 : f32
      %113 = vector.broadcast %cst_111 : f32 to vector<16x384xf32>
      %114 = arith.mulf %113, %112 : vector<16x384xf32>
      %115 = arith.maximumf %112, %114 : vector<16x384xf32>
      %c5_i32 = arith.constant 5 : i32
      %116 = tpu.dynamic_rotate %115 by %c5_i32 dim 1 : vector<16x384xf32>, i32 -> vector<16x384xf32>
      %c2_112 = arith.constant 2 : index
      %c0_113 = arith.constant 0 : index
      %c0_114 = arith.constant 0 : index
      %c0_115 = arith.constant 0 : index
      %117 = vector.load %arg5[%c2_112, %c0_113, %c0_114, %c0_115] : memref<3x3x16x16xf32, #tpu.memory_space<vmem>>, vector<1x1x16x16xf32>
      %118 = vector.shape_cast %117 : vector<1x1x16x16xf32> to vector<16x16xf32>
      %cst_116 = arith.constant dense<0.000000e+00> : vector<16x384xf32>
      %119 = tpu.matmul %118, %116, %cst_116 {dimension_numbers = #tpu.dot_dimension_numbers<[1], [0], [0], [1], [0, 0, 1, 1], [], []>} : vector<16x16xf32>, vector<16x384xf32>, vector<16x384xf32> -> vector<16x384xf32>
      %c2_117 = arith.constant 2 : index
      %c1_118 = arith.constant 1 : index
      %c0_119 = arith.constant 0 : index
      %c0_120 = arith.constant 0 : index
      %120 = vector.load %arg5[%c2_117, %c1_118, %c0_119, %c0_120] : memref<3x3x16x16xf32, #tpu.memory_space<vmem>>, vector<1x1x16x16xf32>
      %121 = vector.shape_cast %120 : vector<1x1x16x16xf32> to vector<16x16xf32>
      %cst_121 = arith.constant dense<0.000000e+00> : vector<16x384xf32>
      %122 = tpu.matmul %121, %115, %cst_121 {dimension_numbers = #tpu.dot_dimension_numbers<[1], [0], [0], [1], [0, 0, 1, 1], [], []>} : vector<16x16xf32>, vector<16x384xf32>, vector<16x384xf32> -> vector<16x384xf32>
      %123 = arith.addf %119, %122 : vector<16x384xf32>
      %c379_i32 = arith.constant 379 : i32
      %124 = tpu.dynamic_rotate %115 by %c379_i32 dim 1 : vector<16x384xf32>, i32 -> vector<16x384xf32>
      %c2_122 = arith.constant 2 : index
      %c2_123 = arith.constant 2 : index
      %c0_124 = arith.constant 0 : index
      %c0_125 = arith.constant 0 : index
      %125 = vector.load %arg5[%c2_122, %c2_123, %c0_124, %c0_125] : memref<3x3x16x16xf32, #tpu.memory_space<vmem>>, vector<1x1x16x16xf32>
      %126 = vector.shape_cast %125 : vector<1x1x16x16xf32> to vector<16x16xf32>
      %cst_126 = arith.constant dense<0.000000e+00> : vector<16x384xf32>
      %127 = tpu.matmul %126, %124, %cst_126 {dimension_numbers = #tpu.dot_dimension_numbers<[1], [0], [0], [1], [0, 0, 1, 1], [], []>} : vector<16x16xf32>, vector<16x384xf32>, vector<16x384xf32> -> vector<16x384xf32>
      %128 = arith.addf %123, %127 : vector<16x384xf32>
      %c2_127 = arith.constant 2 : index
      %c0_128 = arith.constant 0 : index
      %c0_129 = arith.constant 0 : index
      %129 = vector.load %arg6[%c2_127, %c0_128, %c0_129] : memref<3x16x1xf32, #tpu.memory_space<vmem>>, vector<1x16x1xf32>
      %130 = vector.shape_cast %129 : vector<1x16x1xf32> to vector<16x1xf32>
      %131 = vector.broadcast %130 : vector<16x1xf32> to vector<16x384xf32>
      %132 = arith.addf %128, %131 : vector<16x384xf32>
      %cst_130 = arith.constant 1.000000e-01 : f32
      %133 = vector.broadcast %cst_130 : f32 to vector<16x384xf32>
      %134 = arith.mulf %133, %132 : vector<16x384xf32>
      %135 = arith.maximumf %132, %134 : vector<16x384xf32>
      %c1_i32_131 = arith.constant 1 : i32
      %136 = tpu.dynamic_rotate %135 by %c1_i32_131 dim 1 : vector<16x384xf32>, i32 -> vector<16x384xf32>
      %c2_132 = arith.constant 2 : index
      %c0_133 = arith.constant 0 : index
      %c0_134 = arith.constant 0 : index
      %c0_135 = arith.constant 0 : index
      %137 = vector.load %arg7[%c2_132, %c0_133, %c0_134, %c0_135] : memref<3x3x16x16xf32, #tpu.memory_space<vmem>>, vector<1x1x16x16xf32>
      %138 = vector.shape_cast %137 : vector<1x1x16x16xf32> to vector<16x16xf32>
      %cst_136 = arith.constant dense<0.000000e+00> : vector<16x384xf32>
      %139 = tpu.matmul %138, %136, %cst_136 {dimension_numbers = #tpu.dot_dimension_numbers<[1], [0], [0], [1], [0, 0, 1, 1], [], []>} : vector<16x16xf32>, vector<16x384xf32>, vector<16x384xf32> -> vector<16x384xf32>
      %c2_137 = arith.constant 2 : index
      %c1_138 = arith.constant 1 : index
      %c0_139 = arith.constant 0 : index
      %c0_140 = arith.constant 0 : index
      %140 = vector.load %arg7[%c2_137, %c1_138, %c0_139, %c0_140] : memref<3x3x16x16xf32, #tpu.memory_space<vmem>>, vector<1x1x16x16xf32>
      %141 = vector.shape_cast %140 : vector<1x1x16x16xf32> to vector<16x16xf32>
      %cst_141 = arith.constant dense<0.000000e+00> : vector<16x384xf32>
      %142 = tpu.matmul %141, %135, %cst_141 {dimension_numbers = #tpu.dot_dimension_numbers<[1], [0], [0], [1], [0, 0, 1, 1], [], []>} : vector<16x16xf32>, vector<16x384xf32>, vector<16x384xf32> -> vector<16x384xf32>
      %143 = arith.addf %139, %142 : vector<16x384xf32>
      %c383_i32_142 = arith.constant 383 : i32
      %144 = tpu.dynamic_rotate %135 by %c383_i32_142 dim 1 : vector<16x384xf32>, i32 -> vector<16x384xf32>
      %c2_143 = arith.constant 2 : index
      %c2_144 = arith.constant 2 : index
      %c0_145 = arith.constant 0 : index
      %c0_146 = arith.constant 0 : index
      %145 = vector.load %arg7[%c2_143, %c2_144, %c0_145, %c0_146] : memref<3x3x16x16xf32, #tpu.memory_space<vmem>>, vector<1x1x16x16xf32>
      %146 = vector.shape_cast %145 : vector<1x1x16x16xf32> to vector<16x16xf32>
      %cst_147 = arith.constant dense<0.000000e+00> : vector<16x384xf32>
      %147 = tpu.matmul %146, %144, %cst_147 {dimension_numbers = #tpu.dot_dimension_numbers<[1], [0], [0], [1], [0, 0, 1, 1], [], []>} : vector<16x16xf32>, vector<16x384xf32>, vector<16x384xf32> -> vector<16x384xf32>
      %148 = arith.addf %143, %147 : vector<16x384xf32>
      %c2_148 = arith.constant 2 : index
      %c0_149 = arith.constant 0 : index
      %c0_150 = arith.constant 0 : index
      %149 = vector.load %arg8[%c2_148, %c0_149, %c0_150] : memref<3x16x1xf32, #tpu.memory_space<vmem>>, vector<1x16x1xf32>
      %150 = vector.shape_cast %149 : vector<1x16x1xf32> to vector<16x1xf32>
      %151 = vector.broadcast %150 : vector<16x1xf32> to vector<16x384xf32>
      %152 = arith.addf %148, %151 : vector<16x384xf32>
      %c0_151 = arith.constant 0 : index
      %c0_152 = arith.constant 0 : index
      %153 = vector.load %arg10[%c0_151, %c0_152] : memref<16x384xf32, #tpu.memory_space<vmem>>, vector<16x384xf32>
      %154 = arith.addf %153, %152 : vector<16x384xf32>
      %c0_153 = arith.constant 0 : index
      %c0_154 = arith.constant 0 : index
      %155 = vector.load %arg10[%c0_153, %c0_154] : memref<16x384xf32, #tpu.memory_space<vmem>>, vector<16x384xf32>
      tpu.vector_store %arg10[%c0_153, %c0_154], %154 {strides = array<i32>} : memref<16x384xf32, #tpu.memory_space<vmem>>, vector<16x384xf32>,
    } else {
    }
    %true = arith.constant true
    %17 = arith.xori %14, %true : i1
    %18 = arith.extui %17 : i1 to i32
    %c0_i32_14 = arith.constant 0 : i32
    %19 = arith.cmpi ne, %18, %c0_i32_14 : i32
    scf.if %19 {
      %24 = tpu.iota {dimensions = array<i32: 1>} : vector<1x384xi32>
      %25 = vector.broadcast %1 : i32 to vector<1x384xi32>
      %26 = arith.addi %25, %24 : vector<1x384xi32>
      %c0_i32_20 = arith.constant 0 : i32
      %27 = vector.broadcast %c0_i32_20 : i32 to vector<1x384xi32>
      %28 = arith.cmpi sge, %26, %27 : vector<1x384xi32>
      %c600_i32_21 = arith.constant 600 : i32
      %29 = vector.broadcast %c600_i32_21 : i32 to vector<1x384xi32>
      %30 = arith.cmpi slt, %26, %29 : vector<1x384xi32>
      %31 = arith.andi %28, %30 : vector<1x384xi1>
      %c0_22 = arith.constant 0 : index
      %c0_23 = arith.constant 0 : index
      %32 = vector.load %arg10[%c0_22, %c0_23] : memref<16x384xf32, #tpu.memory_space<vmem>>, vector<16x384xf32>
      %cst = arith.constant 1.000000e-01 : f32
      %33 = vector.broadcast %cst : f32 to vector<16x384xf32>
      %34 = arith.mulf %33, %32 : vector<16x384xf32>
      %35 = arith.maximumf %32, %34 : vector<16x384xf32>
      %cst_24 = arith.constant 0.000000e+00 : f32
      %36 = vector.shape_cast %31 : vector<1x384xi1> to vector<1x384xi1>
      %37 = vector.broadcast %36 : vector<1x384xi1> to vector<16x384xi1>
      %38 = vector.broadcast %cst_24 : f32 to vector<16x384xf32>
      %39 = arith.select %37, %35, %38 : vector<16x384xi1>, vector<16x384xf32>
      %c1_i32 = arith.constant 1 : i32
      %40 = tpu.dynamic_rotate %39 by %c1_i32 dim 1 : vector<16x384xf32>, i32 -> vector<16x384xf32>
      %c0_25 = arith.constant 0 : index
      %c0_26 = arith.constant 0 : index
      %c0_27 = arith.constant 0 : index
      %c0_28 = arith.constant 0 : index
      %41 = vector.load %arg5[%c0_25, %c0_26, %c0_27, %c0_28] : memref<3x3x16x16xf32, #tpu.memory_space<vmem>>, vector<1x1x16x16xf32>
      %42 = vector.shape_cast %41 : vector<1x1x16x16xf32> to vector<16x16xf32>
      %cst_29 = arith.constant dense<0.000000e+00> : vector<16x384xf32>
      %43 = tpu.matmul %42, %40, %cst_29 {dimension_numbers = #tpu.dot_dimension_numbers<[1], [0], [0], [1], [0, 0, 1, 1], [], []>} : vector<16x16xf32>, vector<16x384xf32>, vector<16x384xf32> -> vector<16x384xf32>
      %c0_30 = arith.constant 0 : index
      %c1 = arith.constant 1 : index
      %c0_31 = arith.constant 0 : index
      %c0_32 = arith.constant 0 : index
      %44 = vector.load %arg5[%c0_30, %c1, %c0_31, %c0_32] : memref<3x3x16x16xf32, #tpu.memory_space<vmem>>, vector<1x1x16x16xf32>
      %45 = vector.shape_cast %44 : vector<1x1x16x16xf32> to vector<16x16xf32>
      %cst_33 = arith.constant dense<0.000000e+00> : vector<16x384xf32>
      %46 = tpu.matmul %45, %39, %cst_33 {dimension_numbers = #tpu.dot_dimension_numbers<[1], [0], [0], [1], [0, 0, 1, 1], [], []>} : vector<16x16xf32>, vector<16x384xf32>, vector<16x384xf32> -> vector<16x384xf32>
      %47 = arith.addf %43, %46 : vector<16x384xf32>
      %c383_i32 = arith.constant 383 : i32
      %48 = tpu.dynamic_rotate %39 by %c383_i32 dim 1 : vector<16x384xf32>, i32 -> vector<16x384xf32>
      %c0_34 = arith.constant 0 : index
      %c2 = arith.constant 2 : index
      %c0_35 = arith.constant 0 : index
      %c0_36 = arith.constant 0 : index
      %49 = vector.load %arg5[%c0_34, %c2, %c0_35, %c0_36] : memref<3x3x16x16xf32, #tpu.memory_space<vmem>>, vector<1x1x16x16xf32>
      %50 = vector.shape_cast %49 : vector<1x1x16x16xf32> to vector<16x16xf32>
      %cst_37 = arith.constant dense<0.000000e+00> : vector<16x384xf32>
      %51 = tpu.matmul %50, %48, %cst_37 {dimension_numbers = #tpu.dot_dimension_numbers<[1], [0], [0], [1], [0, 0, 1, 1], [], []>} : vector<16x16xf32>, vector<16x384xf32>, vector<16x384xf32> -> vector<16x384xf32>
      %52 = arith.addf %47, %51 : vector<16x384xf32>
      %c0_38 = arith.constant 0 : index
      %c0_39 = arith.constant 0 : index
      %c0_40 = arith.constant 0 : index
      %53 = vector.load %arg6[%c0_38, %c0_39, %c0_40] : memref<3x16x1xf32, #tpu.memory_space<vmem>>, vector<1x16x1xf32>
      %54 = vector.shape_cast %53 : vector<1x16x1xf32> to vector<16x1xf32>
      %55 = vector.broadcast %54 : vector<16x1xf32> to vector<16x384xf32>
      %56 = arith.addf %52, %55 : vector<16x384xf32>
      %cst_41 = arith.constant 1.000000e-01 : f32
      %57 = vector.broadcast %cst_41 : f32 to vector<16x384xf32>
      %58 = arith.mulf %57, %56 : vector<16x384xf32>
      %59 = arith.maximumf %56, %58 : vector<16x384xf32>
      %cst_42 = arith.constant 0.000000e+00 : f32
      %60 = vector.shape_cast %31 : vector<1x384xi1> to vector<1x384xi1>
      %61 = vector.broadcast %60 : vector<1x384xi1> to vector<16x384xi1>
      %62 = vector.broadcast %cst_42 : f32 to vector<16x384xf32>
      %63 = arith.select %61, %59, %62 : vector<16x384xi1>, vector<16x384xf32>
      %c1_i32_43 = arith.constant 1 : i32
      %64 = tpu.dynamic_rotate %63 by %c1_i32_43 dim 1 : vector<16x384xf32>, i32 -> vector<16x384xf32>
      %c0_44 = arith.constant 0 : index
      %c0_45 = arith.constant 0 : index
      %c0_46 = arith.constant 0 : index
      %c0_47 = arith.constant 0 : index
      %65 = vector.load %arg7[%c0_44, %c0_45, %c0_46, %c0_47] : memref<3x3x16x16xf32, #tpu.memory_space<vmem>>, vector<1x1x16x16xf32>
      %66 = vector.shape_cast %65 : vector<1x1x16x16xf32> to vector<16x16xf32>
      %cst_48 = arith.constant dense<0.000000e+00> : vector<16x384xf32>
      %67 = tpu.matmul %66, %64, %cst_48 {dimension_numbers = #tpu.dot_dimension_numbers<[1], [0], [0], [1], [0, 0, 1, 1], [], []>} : vector<16x16xf32>, vector<16x384xf32>, vector<16x384xf32> -> vector<16x384xf32>
      %c0_49 = arith.constant 0 : index
      %c1_50 = arith.constant 1 : index
      %c0_51 = arith.constant 0 : index
      %c0_52 = arith.constant 0 : index
      %68 = vector.load %arg7[%c0_49, %c1_50, %c0_51, %c0_52] : memref<3x3x16x16xf32, #tpu.memory_space<vmem>>, vector<1x1x16x16xf32>
      %69 = vector.shape_cast %68 : vector<1x1x16x16xf32> to vector<16x16xf32>
      %cst_53 = arith.constant dense<0.000000e+00> : vector<16x384xf32>
      %70 = tpu.matmul %69, %63, %cst_53 {dimension_numbers = #tpu.dot_dimension_numbers<[1], [0], [0], [1], [0, 0, 1, 1], [], []>} : vector<16x16xf32>, vector<16x384xf32>, vector<16x384xf32> -> vector<16x384xf32>
      %71 = arith.addf %67, %70 : vector<16x384xf32>
      %c383_i32_54 = arith.constant 383 : i32
      %72 = tpu.dynamic_rotate %63 by %c383_i32_54 dim 1 : vector<16x384xf32>, i32 -> vector<16x384xf32>
      %c0_55 = arith.constant 0 : index
      %c2_56 = arith.constant 2 : index
      %c0_57 = arith.constant 0 : index
      %c0_58 = arith.constant 0 : index
      %73 = vector.load %arg7[%c0_55, %c2_56, %c0_57, %c0_58] : memref<3x3x16x16xf32, #tpu.memory_space<vmem>>, vector<1x1x16x16xf32>
      %74 = vector.shape_cast %73 : vector<1x1x16x16xf32> to vector<16x16xf32>
      %cst_59 = arith.constant dense<0.000000e+00> : vector<16x384xf32>
      %75 = tpu.matmul %74, %72, %cst_59 {dimension_numbers = #tpu.dot_dimension_numbers<[1], [0], [0], [1], [0, 0, 1, 1], [], []>} : vector<16x16xf32>, vector<16x384xf32>, vector<16x384xf32> -> vector<16x384xf32>
      %76 = arith.addf %71, %75 : vector<16x384xf32>
      %c0_60 = arith.constant 0 : index
      %c0_61 = arith.constant 0 : index
      %c0_62 = arith.constant 0 : index
      %77 = vector.load %arg8[%c0_60, %c0_61, %c0_62] : memref<3x16x1xf32, #tpu.memory_space<vmem>>, vector<1x16x1xf32>
      %78 = vector.shape_cast %77 : vector<1x16x1xf32> to vector<16x1xf32>
      %79 = vector.broadcast %78 : vector<16x1xf32> to vector<16x384xf32>
      %80 = arith.addf %76, %79 : vector<16x384xf32>
      %c0_63 = arith.constant 0 : index
      %c0_64 = arith.constant 0 : index
      %81 = vector.load %arg10[%c0_63, %c0_64] : memref<16x384xf32, #tpu.memory_space<vmem>>, vector<16x384xf32>
      %82 = arith.addf %81, %80 : vector<16x384xf32>
      %c0_65 = arith.constant 0 : index
      %c0_66 = arith.constant 0 : index
      %83 = vector.load %arg10[%c0_65, %c0_66] : memref<16x384xf32, #tpu.memory_space<vmem>>, vector<16x384xf32>
      tpu.vector_store %arg10[%c0_65, %c0_66], %82 {strides = array<i32>} : memref<16x384xf32, #tpu.memory_space<vmem>>, vector<16x384xf32>,
      %c0_67 = arith.constant 0 : index
      %c0_68 = arith.constant 0 : index
      %84 = vector.load %arg10[%c0_67, %c0_68] : memref<16x384xf32, #tpu.memory_space<vmem>>, vector<16x384xf32>
      %cst_69 = arith.constant 1.000000e-01 : f32
      %85 = vector.broadcast %cst_69 : f32 to vector<16x384xf32>
      %86 = arith.mulf %85, %84 : vector<16x384xf32>
      %87 = arith.maximumf %84, %86 : vector<16x384xf32>
      %cst_70 = arith.constant 0.000000e+00 : f32
      %88 = vector.shape_cast %31 : vector<1x384xi1> to vector<1x384xi1>
      %89 = vector.broadcast %88 : vector<1x384xi1> to vector<16x384xi1>
      %90 = vector.broadcast %cst_70 : f32 to vector<16x384xf32>
      %91 = arith.select %89, %87, %90 : vector<16x384xi1>, vector<16x384xf32>
      %c3_i32 = arith.constant 3 : i32
      %92 = tpu.dynamic_rotate %91 by %c3_i32 dim 1 : vector<16x384xf32>, i32 -> vector<16x384xf32>
      %c1_71 = arith.constant 1 : index
      %c0_72 = arith.constant 0 : index
      %c0_73 = arith.constant 0 : index
      %c0_74 = arith.constant 0 : index
      %93 = vector.load %arg5[%c1_71, %c0_72, %c0_73, %c0_74] : memref<3x3x16x16xf32, #tpu.memory_space<vmem>>, vector<1x1x16x16xf32>
      %94 = vector.shape_cast %93 : vector<1x1x16x16xf32> to vector<16x16xf32>
      %cst_75 = arith.constant dense<0.000000e+00> : vector<16x384xf32>
      %95 = tpu.matmul %94, %92, %cst_75 {dimension_numbers = #tpu.dot_dimension_numbers<[1], [0], [0], [1], [0, 0, 1, 1], [], []>} : vector<16x16xf32>, vector<16x384xf32>, vector<16x384xf32> -> vector<16x384xf32>
      %c1_76 = arith.constant 1 : index
      %c1_77 = arith.constant 1 : index
      %c0_78 = arith.constant 0 : index
      %c0_79 = arith.constant 0 : index
      %96 = vector.load %arg5[%c1_76, %c1_77, %c0_78, %c0_79] : memref<3x3x16x16xf32, #tpu.memory_space<vmem>>, vector<1x1x16x16xf32>
      %97 = vector.shape_cast %96 : vector<1x1x16x16xf32> to vector<16x16xf32>
      %cst_80 = arith.constant dense<0.000000e+00> : vector<16x384xf32>
      %98 = tpu.matmul %97, %91, %cst_80 {dimension_numbers = #tpu.dot_dimension_numbers<[1], [0], [0], [1], [0, 0, 1, 1], [], []>} : vector<16x16xf32>, vector<16x384xf32>, vector<16x384xf32> -> vector<16x384xf32>
      %99 = arith.addf %95, %98 : vector<16x384xf32>
      %c381_i32 = arith.constant 381 : i32
      %100 = tpu.dynamic_rotate %91 by %c381_i32 dim 1 : vector<16x384xf32>, i32 -> vector<16x384xf32>
      %c1_81 = arith.constant 1 : index
      %c2_82 = arith.constant 2 : index
      %c0_83 = arith.constant 0 : index
      %c0_84 = arith.constant 0 : index
      %101 = vector.load %arg5[%c1_81, %c2_82, %c0_83, %c0_84] : memref<3x3x16x16xf32, #tpu.memory_space<vmem>>, vector<1x1x16x16xf32>
      %102 = vector.shape_cast %101 : vector<1x1x16x16xf32> to vector<16x16xf32>
      %cst_85 = arith.constant dense<0.000000e+00> : vector<16x384xf32>
      %103 = tpu.matmul %102, %100, %cst_85 {dimension_numbers = #tpu.dot_dimension_numbers<[1], [0], [0], [1], [0, 0, 1, 1], [], []>} : vector<16x16xf32>, vector<16x384xf32>, vector<16x384xf32> -> vector<16x384xf32>
      %104 = arith.addf %99, %103 : vector<16x384xf32>
      %c1_86 = arith.constant 1 : index
      %c0_87 = arith.constant 0 : index
      %c0_88 = arith.constant 0 : index
      %105 = vector.load %arg6[%c1_86, %c0_87, %c0_88] : memref<3x16x1xf32, #tpu.memory_space<vmem>>, vector<1x16x1xf32>
      %106 = vector.shape_cast %105 : vector<1x16x1xf32> to vector<16x1xf32>
      %107 = vector.broadcast %106 : vector<16x1xf32> to vector<16x384xf32>
      %108 = arith.addf %104, %107 : vector<16x384xf32>
      %cst_89 = arith.constant 1.000000e-01 : f32
      %109 = vector.broadcast %cst_89 : f32 to vector<16x384xf32>
      %110 = arith.mulf %109, %108 : vector<16x384xf32>
      %111 = arith.maximumf %108, %110 : vector<16x384xf32>
      %cst_90 = arith.constant 0.000000e+00 : f32
      %112 = vector.shape_cast %31 : vector<1x384xi1> to vector<1x384xi1>
      %113 = vector.broadcast %112 : vector<1x384xi1> to vector<16x384xi1>
      %114 = vector.broadcast %cst_90 : f32 to vector<16x384xf32>
      %115 = arith.select %113, %111, %114 : vector<16x384xi1>, vector<16x384xf32>
      %c1_i32_91 = arith.constant 1 : i32
      %116 = tpu.dynamic_rotate %115 by %c1_i32_91 dim 1 : vector<16x384xf32>, i32 -> vector<16x384xf32>
      %c1_92 = arith.constant 1 : index
      %c0_93 = arith.constant 0 : index
      %c0_94 = arith.constant 0 : index
      %c0_95 = arith.constant 0 : index
      %117 = vector.load %arg7[%c1_92, %c0_93, %c0_94, %c0_95] : memref<3x3x16x16xf32, #tpu.memory_space<vmem>>, vector<1x1x16x16xf32>
      %118 = vector.shape_cast %117 : vector<1x1x16x16xf32> to vector<16x16xf32>
      %cst_96 = arith.constant dense<0.000000e+00> : vector<16x384xf32>
      %119 = tpu.matmul %118, %116, %cst_96 {dimension_numbers = #tpu.dot_dimension_numbers<[1], [0], [0], [1], [0, 0, 1, 1], [], []>} : vector<16x16xf32>, vector<16x384xf32>, vector<16x384xf32> -> vector<16x384xf32>
      %c1_97 = arith.constant 1 : index
      %c1_98 = arith.constant 1 : index
      %c0_99 = arith.constant 0 : index
      %c0_100 = arith.constant 0 : index
      %120 = vector.load %arg7[%c1_97, %c1_98, %c0_99, %c0_100] : memref<3x3x16x16xf32, #tpu.memory_space<vmem>>, vector<1x1x16x16xf32>
      %121 = vector.shape_cast %120 : vector<1x1x16x16xf32> to vector<16x16xf32>
      %cst_101 = arith.constant dense<0.000000e+00> : vector<16x384xf32>
      %122 = tpu.matmul %121, %115, %cst_101 {dimension_numbers = #tpu.dot_dimension_numbers<[1], [0], [0], [1], [0, 0, 1, 1], [], []>} : vector<16x16xf32>, vector<16x384xf32>, vector<16x384xf32> -> vector<16x384xf32>
      %123 = arith.addf %119, %122 : vector<16x384xf32>
      %c383_i32_102 = arith.constant 383 : i32
      %124 = tpu.dynamic_rotate %115 by %c383_i32_102 dim 1 : vector<16x384xf32>, i32 -> vector<16x384xf32>
      %c1_103 = arith.constant 1 : index
      %c2_104 = arith.constant 2 : index
      %c0_105 = arith.constant 0 : index
      %c0_106 = arith.constant 0 : index
      %125 = vector.load %arg7[%c1_103, %c2_104, %c0_105, %c0_106] : memref<3x3x16x16xf32, #tpu.memory_space<vmem>>, vector<1x1x16x16xf32>
      %126 = vector.shape_cast %125 : vector<1x1x16x16xf32> to vector<16x16xf32>
      %cst_107 = arith.constant dense<0.000000e+00> : vector<16x384xf32>
      %127 = tpu.matmul %126, %124, %cst_107 {dimension_numbers = #tpu.dot_dimension_numbers<[1], [0], [0], [1], [0, 0, 1, 1], [], []>} : vector<16x16xf32>, vector<16x384xf32>, vector<16x384xf32> -> vector<16x384xf32>
      %128 = arith.addf %123, %127 : vector<16x384xf32>
      %c1_108 = arith.constant 1 : index
      %c0_109 = arith.constant 0 : index
      %c0_110 = arith.constant 0 : index
      %129 = vector.load %arg8[%c1_108, %c0_109, %c0_110] : memref<3x16x1xf32, #tpu.memory_space<vmem>>, vector<1x16x1xf32>
      %130 = vector.shape_cast %129 : vector<1x16x1xf32> to vector<16x1xf32>
      %131 = vector.broadcast %130 : vector<16x1xf32> to vector<16x384xf32>
      %132 = arith.addf %128, %131 : vector<16x384xf32>
      %c0_111 = arith.constant 0 : index
      %c0_112 = arith.constant 0 : index
      %133 = vector.load %arg10[%c0_111, %c0_112] : memref<16x384xf32, #tpu.memory_space<vmem>>, vector<16x384xf32>
      %134 = arith.addf %133, %132 : vector<16x384xf32>
      %c0_113 = arith.constant 0 : index
      %c0_114 = arith.constant 0 : index
      %135 = vector.load %arg10[%c0_113, %c0_114] : memref<16x384xf32, #tpu.memory_space<vmem>>, vector<16x384xf32>
      tpu.vector_store %arg10[%c0_113, %c0_114], %134 {strides = array<i32>} : memref<16x384xf32, #tpu.memory_space<vmem>>, vector<16x384xf32>,
      %c0_115 = arith.constant 0 : index
      %c0_116 = arith.constant 0 : index
      %136 = vector.load %arg10[%c0_115, %c0_116] : memref<16x384xf32, #tpu.memory_space<vmem>>, vector<16x384xf32>
      %cst_117 = arith.constant 1.000000e-01 : f32
      %137 = vector.broadcast %cst_117 : f32 to vector<16x384xf32>
      %138 = arith.mulf %137, %136 : vector<16x384xf32>
      %139 = arith.maximumf %136, %138 : vector<16x384xf32>
      %cst_118 = arith.constant 0.000000e+00 : f32
      %140 = vector.shape_cast %31 : vector<1x384xi1> to vector<1x384xi1>
      %141 = vector.broadcast %140 : vector<1x384xi1> to vector<16x384xi1>
      %142 = vector.broadcast %cst_118 : f32 to vector<16x384xf32>
      %143 = arith.select %141, %139, %142 : vector<16x384xi1>, vector<16x384xf32>
      %c5_i32 = arith.constant 5 : i32
      %144 = tpu.dynamic_rotate %143 by %c5_i32 dim 1 : vector<16x384xf32>, i32 -> vector<16x384xf32>
      %c2_119 = arith.constant 2 : index
      %c0_120 = arith.constant 0 : index
      %c0_121 = arith.constant 0 : index
      %c0_122 = arith.constant 0 : index
      %145 = vector.load %arg5[%c2_119, %c0_120, %c0_121, %c0_122] : memref<3x3x16x16xf32, #tpu.memory_space<vmem>>, vector<1x1x16x16xf32>
      %146 = vector.shape_cast %145 : vector<1x1x16x16xf32> to vector<16x16xf32>
      %cst_123 = arith.constant dense<0.000000e+00> : vector<16x384xf32>
      %147 = tpu.matmul %146, %144, %cst_123 {dimension_numbers = #tpu.dot_dimension_numbers<[1], [0], [0], [1], [0, 0, 1, 1], [], []>} : vector<16x16xf32>, vector<16x384xf32>, vector<16x384xf32> -> vector<16x384xf32>
      %c2_124 = arith.constant 2 : index
      %c1_125 = arith.constant 1 : index
      %c0_126 = arith.constant 0 : index
      %c0_127 = arith.constant 0 : index
      %148 = vector.load %arg5[%c2_124, %c1_125, %c0_126, %c0_127] : memref<3x3x16x16xf32, #tpu.memory_space<vmem>>, vector<1x1x16x16xf32>
      %149 = vector.shape_cast %148 : vector<1x1x16x16xf32> to vector<16x16xf32>
      %cst_128 = arith.constant dense<0.000000e+00> : vector<16x384xf32>
      %150 = tpu.matmul %149, %143, %cst_128 {dimension_numbers = #tpu.dot_dimension_numbers<[1], [0], [0], [1], [0, 0, 1, 1], [], []>} : vector<16x16xf32>, vector<16x384xf32>, vector<16x384xf32> -> vector<16x384xf32>
      %151 = arith.addf %147, %150 : vector<16x384xf32>
      %c379_i32 = arith.constant 379 : i32
      %152 = tpu.dynamic_rotate %143 by %c379_i32 dim 1 : vector<16x384xf32>, i32 -> vector<16x384xf32>
      %c2_129 = arith.constant 2 : index
      %c2_130 = arith.constant 2 : index
      %c0_131 = arith.constant 0 : index
      %c0_132 = arith.constant 0 : index
      %153 = vector.load %arg5[%c2_129, %c2_130, %c0_131, %c0_132] : memref<3x3x16x16xf32, #tpu.memory_space<vmem>>, vector<1x1x16x16xf32>
      %154 = vector.shape_cast %153 : vector<1x1x16x16xf32> to vector<16x16xf32>
      %cst_133 = arith.constant dense<0.000000e+00> : vector<16x384xf32>
      %155 = tpu.matmul %154, %152, %cst_133 {dimension_numbers = #tpu.dot_dimension_numbers<[1], [0], [0], [1], [0, 0, 1, 1], [], []>} : vector<16x16xf32>, vector<16x384xf32>, vector<16x384xf32> -> vector<16x384xf32>
      %156 = arith.addf %151, %155 : vector<16x384xf32>
      %c2_134 = arith.constant 2 : index
      %c0_135 = arith.constant 0 : index
      %c0_136 = arith.constant 0 : index
      %157 = vector.load %arg6[%c2_134, %c0_135, %c0_136] : memref<3x16x1xf32, #tpu.memory_space<vmem>>, vector<1x16x1xf32>
      %158 = vector.shape_cast %157 : vector<1x16x1xf32> to vector<16x1xf32>
      %159 = vector.broadcast %158 : vector<16x1xf32> to vector<16x384xf32>
      %160 = arith.addf %156, %159 : vector<16x384xf32>
      %cst_137 = arith.constant 1.000000e-01 : f32
      %161 = vector.broadcast %cst_137 : f32 to vector<16x384xf32>
      %162 = arith.mulf %161, %160 : vector<16x384xf32>
      %163 = arith.maximumf %160, %162 : vector<16x384xf32>
      %cst_138 = arith.constant 0.000000e+00 : f32
      %164 = vector.shape_cast %31 : vector<1x384xi1> to vector<1x384xi1>
      %165 = vector.broadcast %164 : vector<1x384xi1> to vector<16x384xi1>
      %166 = vector.broadcast %cst_138 : f32 to vector<16x384xf32>
      %167 = arith.select %165, %163, %166 : vector<16x384xi1>, vector<16x384xf32>
      %c1_i32_139 = arith.constant 1 : i32
      %168 = tpu.dynamic_rotate %167 by %c1_i32_139 dim 1 : vector<16x384xf32>, i32 -> vector<16x384xf32>
      %c2_140 = arith.constant 2 : index
      %c0_141 = arith.constant 0 : index
      %c0_142 = arith.constant 0 : index
      %c0_143 = arith.constant 0 : index
      %169 = vector.load %arg7[%c2_140, %c0_141, %c0_142, %c0_143] : memref<3x3x16x16xf32, #tpu.memory_space<vmem>>, vector<1x1x16x16xf32>
      %170 = vector.shape_cast %169 : vector<1x1x16x16xf32> to vector<16x16xf32>
      %cst_144 = arith.constant dense<0.000000e+00> : vector<16x384xf32>
      %171 = tpu.matmul %170, %168, %cst_144 {dimension_numbers = #tpu.dot_dimension_numbers<[1], [0], [0], [1], [0, 0, 1, 1], [], []>} : vector<16x16xf32>, vector<16x384xf32>, vector<16x384xf32> -> vector<16x384xf32>
      %c2_145 = arith.constant 2 : index
      %c1_146 = arith.constant 1 : index
      %c0_147 = arith.constant 0 : index
      %c0_148 = arith.constant 0 : index
      %172 = vector.load %arg7[%c2_145, %c1_146, %c0_147, %c0_148] : memref<3x3x16x16xf32, #tpu.memory_space<vmem>>, vector<1x1x16x16xf32>
      %173 = vector.shape_cast %172 : vector<1x1x16x16xf32> to vector<16x16xf32>
      %cst_149 = arith.constant dense<0.000000e+00> : vector<16x384xf32>
      %174 = tpu.matmul %173, %167, %cst_149 {dimension_numbers = #tpu.dot_dimension_numbers<[1], [0], [0], [1], [0, 0, 1, 1], [], []>} : vector<16x16xf32>, vector<16x384xf32>, vector<16x384xf32> -> vector<16x384xf32>
      %175 = arith.addf %171, %174 : vector<16x384xf32>
      %c383_i32_150 = arith.constant 383 : i32
      %176 = tpu.dynamic_rotate %167 by %c383_i32_150 dim 1 : vector<16x384xf32>, i32 -> vector<16x384xf32>
      %c2_151 = arith.constant 2 : index
      %c2_152 = arith.constant 2 : index
      %c0_153 = arith.constant 0 : index
      %c0_154 = arith.constant 0 : index
      %177 = vector.load %arg7[%c2_151, %c2_152, %c0_153, %c0_154] : memref<3x3x16x16xf32, #tpu.memory_space<vmem>>, vector<1x1x16x16xf32>
      %178 = vector.shape_cast %177 : vector<1x1x16x16xf32> to vector<16x16xf32>
      %cst_155 = arith.constant dense<0.000000e+00> : vector<16x384xf32>
      %179 = tpu.matmul %178, %176, %cst_155 {dimension_numbers = #tpu.dot_dimension_numbers<[1], [0], [0], [1], [0, 0, 1, 1], [], []>} : vector<16x16xf32>, vector<16x384xf32>, vector<16x384xf32> -> vector<16x384xf32>
      %180 = arith.addf %175, %179 : vector<16x384xf32>
      %c2_156 = arith.constant 2 : index
      %c0_157 = arith.constant 0 : index
      %c0_158 = arith.constant 0 : index
      %181 = vector.load %arg8[%c2_156, %c0_157, %c0_158] : memref<3x16x1xf32, #tpu.memory_space<vmem>>, vector<1x16x1xf32>
      %182 = vector.shape_cast %181 : vector<1x16x1xf32> to vector<16x1xf32>
      %183 = vector.broadcast %182 : vector<16x1xf32> to vector<16x384xf32>
      %184 = arith.addf %180, %183 : vector<16x384xf32>
      %c0_159 = arith.constant 0 : index
      %c0_160 = arith.constant 0 : index
      %185 = vector.load %arg10[%c0_159, %c0_160] : memref<16x384xf32, #tpu.memory_space<vmem>>, vector<16x384xf32>
      %186 = arith.addf %185, %184 : vector<16x384xf32>
      %c0_161 = arith.constant 0 : index
      %c0_162 = arith.constant 0 : index
      %187 = vector.load %arg10[%c0_161, %c0_162] : memref<16x384xf32, #tpu.memory_space<vmem>>, vector<16x384xf32>
      tpu.vector_store %arg10[%c0_161, %c0_162], %186 {strides = array<i32>} : memref<16x384xf32, #tpu.memory_space<vmem>>, vector<16x384xf32>,
    } else {
    }
    %c0_15 = arith.constant 0 : index
    %c128_16 = arith.constant 128 : index
    %20 = vector.load %arg10[%c0_15, %c128_16] : memref<16x384xf32, #tpu.memory_space<vmem>>, vector<16x128xf32>
    %c0_17 = arith.constant 0 : index
    %c0_18 = arith.constant 0 : index
    %c0_19 = arith.constant 0 : index
    %21 = vector.load %arg9[%c0_17, %c0_18, %c0_19] : memref<1x16x128xf32, #tpu.memory_space<vmem>>, vector<1x16x128xf32>
    %22 = vector.shape_cast %21 : vector<1x16x128xf32> to vector<16x128xf32>
    %23 = vector.shape_cast %20 : vector<16x128xf32> to vector<1x16x128xf32>
    tpu.vector_store %arg9[%c0_17, %c0_18, %c0_19], %23 {strides = array<i32>} : memref<1x16x128xf32, #tpu.memory_space<vmem>>, vector<1x16x128xf32>,
    return
  }
  func.func @transform_0(%arg0: i32, %arg1: i32) -> (i32, i32, i32) {
    %c1_i32 = arith.constant 1 : i32
    %0 = arith.muli %arg1, %c1_i32 : i32
    %c1_i32_0 = arith.constant 1 : i32
    %1 = arith.subi %0, %c1_i32_0 : i32
    %c0_i32 = arith.constant 0 : i32
    %2 = arith.maxsi %1, %c0_i32 : i32
    %c0_i32_1 = arith.constant 0 : i32
    %c0_i32_2 = arith.constant 0 : i32
    return %arg0, %c0_i32_1, %2 : i32, i32, i32
  }
  func.func @transform_1(%arg0: i32, %arg1: i32) -> (i32, i32, i32) {
    %c0_i32 = arith.constant 0 : i32
    %c0_i32_0 = arith.constant 0 : i32
    return %arg0, %c0_i32, %arg1 : i32, i32, i32
  }
  func.func @transform_2(%arg0: i32, %arg1: i32) -> (i32, i32, i32) {
    %c1_i32 = arith.constant 1 : i32
    %0 = arith.addi %arg1, %c1_i32 : i32
    %c1_i32_0 = arith.constant 1 : i32
    %1 = arith.muli %0, %c1_i32_0 : i32
    %c4_i32 = arith.constant 4 : i32
    %2 = arith.minsi %1, %c4_i32 : i32
    %c0_i32 = arith.constant 0 : i32
    %c0_i32_1 = arith.constant 0 : i32
    return %arg0, %c0_i32, %2 : i32, i32, i32
  }
  func.func @transform_3(%arg0: i32, %arg1: i32) -> (i32, i32, i32, i32) {
    %c0_i32 = arith.constant 0 : i32
    %c0_i32_0 = arith.constant 0 : i32
    %c0_i32_1 = arith.constant 0 : i32
    %c0_i32_2 = arith.constant 0 : i32
    %c0_i32_3 = arith.constant 0 : i32
    return %c0_i32, %c0_i32_0, %c0_i32_1, %c0_i32_2 : i32, i32, i32, i32
  }
  func.func @transform_4(%arg0: i32, %arg1: i32) -> (i32, i32, i32) {
    %c0_i32 = arith.constant 0 : i32
    %c0_i32_0 = arith.constant 0 : i32
    %c0_i32_1 = arith.constant 0 : i32
    %c0_i32_2 = arith.constant 0 : i32
    return %c0_i32, %c0_i32_0, %c0_i32_1 : i32, i32, i32
  }
  func.func @transform_5(%arg0: i32, %arg1: i32) -> (i32, i32, i32, i32) {
    %c0_i32 = arith.constant 0 : i32
    %c0_i32_0 = arith.constant 0 : i32
    %c0_i32_1 = arith.constant 0 : i32
    %c0_i32_2 = arith.constant 0 : i32
    %c0_i32_3 = arith.constant 0 : i32
    return %c0_i32, %c0_i32_0, %c0_i32_1, %c0_i32_2 : i32, i32, i32, i32
  }
  func.func @transform_6(%arg0: i32, %arg1: i32) -> (i32, i32, i32) {
    %c0_i32 = arith.constant 0 : i32
    %c0_i32_0 = arith.constant 0 : i32
    %c0_i32_1 = arith.constant 0 : i32
    %c0_i32_2 = arith.constant 0 : i32
    return %c0_i32, %c0_i32_0, %c0_i32_1 : i32, i32, i32
  }
  func.func @transform_7(%arg0: i32, %arg1: i32) -> (i32, i32, i32) {
    %c0_i32 = arith.constant 0 : i32
    %c0_i32_0 = arith.constant 0 : i32
    return %arg0, %c0_i32, %arg1 : i32, i32, i32
  }
}

</mosaic_0001>

<llo_original>
// kernel: residual_block.1
$region0: #{residual_block.1}
  #allocation0 [shape = 'u32[]', space=smem, size = 0x4, offset = 0x4, fixed_abs, tag = 'smem constant byte address 0x4 - core index']
  #allocation1 [shape = 'u32[144,128]{1,0:T(1,128)}', space=vmem, size = 0x12000, scoped, tag = 'internal scratch']
  #allocation2 [shape = 'f32[16,384]{1,0:T(8,128)}', space=vmem, size = 0x6000, scoped, tag = 'scratch operand']
  %s0 = inlined_call_operand.vmem [shape: f32[2,16,640], index: 0, kind: input, shape index: {}, may-alias: {0,1,2}]
  %s1 = inlined_call_operand.vmem [shape: f32[2,16,640], index: 1, kind: input, shape index: {}, may-alias: {0,1,2}]
  %s2 = inlined_call_operand.vmem [shape: f32[2,16,640], index: 2, kind: input, shape index: {}, may-alias: {0,1,2}]
  %s3 = inlined_call_operand.vmem [shape: f32[3,3,16,16], index: 3, kind: input, shape index: {}]
  %s4 = inlined_call_operand.vmem [shape: f32[3,16,1], index: 4, kind: input, shape index: {}]
  %s5 = inlined_call_operand.vmem [shape: f32[3,3,16,16], index: 5, kind: input, shape index: {}]
  %s6 = inlined_call_operand.vmem [shape: f32[3,16,1], index: 6, kind: input, shape index: {}]
  %s7 = inlined_call_operand.vmem [shape: f32[2,16,640], index: 7, kind: output, shape index: {}]
  %s8 = sld [smem:[#allocation0]]
  $region217: #{residual_block.1} parent=0
    _
  %s10 = ssub.s32 1, %s8
  %s11 = scalar_select 0, %s10, %s8
  $region1: #{residual_block.1} parent=0
    #allocation3 [shape = 'u8[16384]{0}', space=vmem, size = 0x4000, scoped, tag = 'input window, operand 0']
    #allocation4 [shape = 'u8[16384]{0}', space=vmem, size = 0x4000, scoped, tag = 'input window, operand 1']
    #allocation5 [shape = 'u8[16384]{0}', space=vmem, size = 0x4000, scoped, tag = 'input window, operand 2']
    #allocation6 [shape = 'u8[16384]{0}', space=vmem, size = 0x4000, scoped, tag = 'output window, operand 0']
    loop: start=0, step=1, limit=12
    $region2: #{residual_block.1} parent=1 // loop_pre_header
      _
    $region3: #{residual_block.1} parent=1 // loop_header
      %s13 = sphi 0, %s17
      %p14 = scmp.ge.s32.totalorder %s13, 12
      %s20 = sphi 0, %s32
      %s21 = sphi 0, %s28
      %s22 = sphi 0, %s20
      %s23 = sphi 0, %s21
      %s24 = sphi 0, %s22
      %s25 = sphi 0, %s23
      %s43 = sphi 0, %s45
      %s46 = sphi 0, %s43
      %s47 = sphi 0, %s46
      %s63 = sphi 0, %s47
      %s71 = sphi 0, %s73
      %s74 = sphi 0, %s71
      %s75 = sphi 0, %s74
      %s91 = sphi 0, %s75
      %s105 = sphi 0, %s107
      %s108 = sphi 0, %s105
      %s109 = sphi 0, %s108
      %s125 = sphi 0, %s109
      %s129 = sphi 0, %s129
      %s131 = sphi 0, %s129
      %s132 = sphi 0, %s131
      %s146 = sphi 0, %s132
      %s150 = sphi 0, %s150
      %s152 = sphi 0, %s150
      %s153 = sphi 0, %s152
      %s167 = sphi 0, %s153
      %s171 = sphi 0, %s171
      %s173 = sphi 0, %s171
      %s174 = sphi 0, %s173
      %s188 = sphi 0, %s174
      %s192 = sphi 0, %s192
      %s194 = sphi 0, %s192
      %s195 = sphi 0, %s194
      %s209 = sphi 0, %s195
      %s217 = sphi 0, %s219
      %s220 = sphi 0, %s217
      %s221 = sphi 0, %s220
      %s237 = sphi 0, %s221
    $region4: #{residual_block.1} parent=1 // loop_header_branch
      %16 = sbr.rel (%p14) target = $region8
    $region5: #{residual_block.1} parent=1 // loop_body
      %s18 = ssub.s32 %s13, 1
      %s19 = ssub.s32 %s13, 2
      %s26 = sadd.s32 1, %s21
      %p27 = scmp.ge.s32.totalorder %s26, 5
      %s28 = scalar_select %p27, 0, %s26
      %s29 = sadd.s32 1, %s20
      %s30 = scalar_select %p27, %s29, %s20
      %p31 = scmp.ge.s32.totalorder %s30, 2
      %s32 = scalar_select %p31, 0, %s30
      %s33 = ssub.s32 %s21, 1
      %p34 = scmp.gt.s32.totalorder %s33, 0
      %s35 = scalar_select %p34, %s33, 0
      %s36 = ssub.s32 %s28, 1
      %p37 = scmp.gt.s32.totalorder %s36, 0
      %s38 = scalar_select %p37, %s36, 0
      %s39 = ssub.s32 %s20, %s32
      %s40 = ssub.s32 %s35, %s38
      %s41 = sor.u32 %s39, %s40
      %p42 = scmp.eq.s32.totalorder %s41, 0
      %s44 = sadd.s32 %s43, 1
      %s45 = scalar_select %p42, %s43, %s44
      %p48 = pneg %p42
      %p49 = scmp.eq.s32.totalorder %s13, 9
      %p50 = por %p48, %p49
      %p51 = scmp.ne.s32.totalorder %s43, %s46
      %p52 = scmp.eq.s32.totalorder %s13, 0
      %p53 = por %p51, %p52
      %p54 = scmp.ne.s32.totalorder %s43, %s46
      %p55 = scmp.eq.s32.totalorder %s18, 9
      %p56 = por %p54, %p55
      %p57 = scmp.ne.s32.totalorder %s46, %s47
      %p58 = scmp.eq.s32.totalorder %s18, 0
      %p59 = por %p57, %p58
      %p60 = scmp.ne.s32.totalorder %s46, %s47
      %p61 = scmp.eq.s32.totalorder %s19, 9
      %p62 = por %p60, %p61
      %p64 = scmp.ne.s32.totalorder %s47, %s63
      %p65 = scmp.eq.s32.totalorder %s19, 0
      %p66 = por %p64, %p65
      %s67 = ssub.s32 %s20, %s32
      %s68 = ssub.s32 %s21, %s28
      %s69 = sor.u32 %s67, %s68
      %p70 = scmp.eq.s32.totalorder %s69, 0
      %s72 = sadd.s32 %s71, 1
      %s73 = scalar_select %p70, %s71, %s72
      %p76 = pneg %p70
      %p77 = scmp.eq.s32.totalorder %s13, 9
      %p78 = por %p76, %p77
      %p79 = scmp.ne.s32.totalorder %s71, %s74
      %p80 = scmp.eq.s32.totalorder %s13, 0
      %p81 = por %p79, %p80
      %p82 = scmp.ne.s32.totalorder %s71, %s74
      %p83 = scmp.eq.s32.totalorder %s18, 9
      %p84 = por %p82, %p83
      %p85 = scmp.ne.s32.totalorder %s74, %s75
      %p86 = scmp.eq.s32.totalorder %s18, 0
      %p87 = por %p85, %p86
      %p88 = scmp.ne.s32.totalorder %s74, %s75
      %p89 = scmp.eq.s32.totalorder %s19, 9
      %p90 = por %p88, %p89
      %p92 = scmp.ne.s32.totalorder %s75, %s91
      %p93 = scmp.eq.s32.totalorder %s19, 0
      %p94 = por %p92, %p93
      %s95 = sadd.s32 %s21, 1
      %p96 = scmp.lt.s32.totalorder %s95, 4
      %s97 = scalar_select %p96, %s95, 4
      %s98 = sadd.s32 %s28, 1
      %p99 = scmp.lt.s32.totalorder %s98, 4
      %s100 = scalar_select %p99, %s98, 4
      %s101 = ssub.s32 %s20, %s32
      %s102 = ssub.s32 %s97, %s100
      %s103 = sor.u32 %s101, %s102
      %p104 = scmp.eq.s32.totalorder %s103, 0
      %s106 = sadd.s32 %s105, 1
      %s107 = scalar_select %p104, %s105, %s106
      %p110 = pneg %p104
      %p111 = scmp.eq.s32.totalorder %s13, 9
      %p112 = por %p110, %p111
      %p113 = scmp.ne.s32.totalorder %s105, %s108
      %p114 = scmp.eq.s32.totalorder %s13, 0
      %p115 = por %p113, %p114
      %p116 = scmp.ne.s32.totalorder %s105, %s108
      %p117 = scmp.eq.s32.totalorder %s18, 9
      %p118 = por %p116, %p117
      %p119 = scmp.ne.s32.totalorder %s108, %s109
      %p120 = scmp.eq.s32.totalorder %s18, 0
      %p121 = por %p119, %p120
      %p122 = scmp.ne.s32.totalorder %s108, %s109
      %p123 = scmp.eq.s32.totalorder %s19, 9
      %p124 = por %p122, %p123
      %p126 = scmp.ne.s32.totalorder %s109, %s125
      %p127 = scmp.eq.s32.totalorder %s19, 0
      %p128 = por %p126, %p127
      %s130 = sadd.s32 %s129, 1
      %p133 = scmp.eq.s32.totalorder %s13, 9
      %p134 = scmp.ne.s32.totalorder %s129, %s131
      %p135 = scmp.eq.s32.totalorder %s13, 0
      %p136 = por %p134, %p135
      %p137 = scmp.ne.s32.totalorder %s129, %s131
      %p138 = scmp.eq.s32.totalorder %s18, 9
      %p139 = por %p137, %p138
      %p140 = scmp.ne.s32.totalorder %s131, %s132
      %p141 = scmp.eq.s32.totalorder %s18, 0
      %p142 = por %p140, %p141
      %p143 = scmp.ne.s32.totalorder %s131, %s132
      %p144 = scmp.eq.s32.totalorder %s19, 9
      %p145 = por %p143, %p144
      %p147 = scmp.ne.s32.totalorder %s132, %s146
      %p148 = scmp.eq.s32.totalorder %s19, 0
      %p149 = por %p147, %p148
      %s151 = sadd.s32 %s150, 1
      %p154 = scmp.eq.s32.totalorder %s13, 9
      %p155 = scmp.ne.s32.totalorder %s150, %s152
      %p156 = scmp.eq.s32.totalorder %s13, 0
      %p157 = por %p155, %p156
      %p158 = scmp.ne.s32.totalorder %s150, %s152
      %p159 = scmp.eq.s32.totalorder %s18, 9
      %p160 = por %p158, %p159
      %p161 = scmp.ne.s32.totalorder %s152, %s153
      %p162 = scmp.eq.s32.totalorder %s18, 0
      %p163 = por %p161, %p162
      %p164 = scmp.ne.s32.totalorder %s152, %s153
      %p165 = scmp.eq.s32.totalorder %s19, 9
      %p166 = por %p164, %p165
      %p168 = scmp.ne.s32.totalorder %s153, %s167
      %p169 = scmp.eq.s32.totalorder %s19, 0
      %p170 = por %p168, %p169
      %s172 = sadd.s32 %s171, 1
      %p175 = scmp.eq.s32.totalorder %s13, 9
      %p176 = scmp.ne.s32.totalorder %s171, %s173
      %p177 = scmp.eq.s32.totalorder %s13, 0
      %p178 = por %p176, %p177
      %p179 = scmp.ne.s32.totalorder %s171, %s173
      %p180 = scmp.eq.s32.totalorder %s18, 9
      %p181 = por %p179, %p180
      %p182 = scmp.ne.s32.totalorder %s173, %s174
      %p183 = scmp.eq.s32.totalorder %s18, 0
      %p184 = por %p182, %p183
      %p185 = scmp.ne.s32.totalorder %s173, %s174
      %p186 = scmp.eq.s32.totalorder %s19, 9
      %p187 = por %p185, %p186
      %p189 = scmp.ne.s32.totalorder %s174, %s188
      %p190 = scmp.eq.s32.totalorder %s19, 0
      %p191 = por %p189, %p190
      %s193 = sadd.s32 %s192, 1
      %p196 = scmp.eq.s32.totalorder %s13, 9
      %p197 = scmp.ne.s32.totalorder %s192, %s194
      %p198 = scmp.eq.s32.totalorder %s13, 0
      %p199 = por %p197, %p198
      %p200 = scmp.ne.s32.totalorder %s192, %s194
      %p201 = scmp.eq.s32.totalorder %s18, 9
      %p202 = por %p200, %p201
      %p203 = scmp.ne.s32.totalorder %s194, %s195
      %p204 = scmp.eq.s32.totalorder %s18, 0
      %p205 = por %p203, %p204
      %p206 = scmp.ne.s32.totalorder %s194, %s195
      %p207 = scmp.eq.s32.totalorder %s19, 9
      %p208 = por %p206, %p207
      %p210 = scmp.ne.s32.totalorder %s195, %s209
      %p211 = scmp.eq.s32.totalorder %s19, 0
      %p212 = por %p210, %p211
      %s213 = ssub.s32 %s20, %s32
      %s214 = ssub.s32 %s21, %s28
      %s215 = sor.u32 %s213, %s214
      %p216 = scmp.eq.s32.totalorder %s215, 0
      %s218 = sadd.s32 %s217, 1
      %s219 = scalar_select %p216, %s217, %s218
      %p222 = pneg %p216
      %p223 = scmp.eq.s32.totalorder %s13, 9
      %p224 = por %p222, %p223
      %p225 = scmp.ne.s32.totalorder %s217, %s220
      %p226 = scmp.eq.s32.totalorder %s13, 0
      %p227 = por %p225, %p226
      %p228 = scmp.ne.s32.totalorder %s217, %s220
      %p229 = scmp.eq.s32.totalorder %s18, 9
      %p230 = por %p228, %p229
      %p231 = scmp.ne.s32.totalorder %s220, %s221
      %p232 = scmp.eq.s32.totalorder %s18, 0
      %p233 = por %p231, %p232
      %p234 = scmp.ne.s32.totalorder %s220, %s221
      %p235 = scmp.eq.s32.totalorder %s19, 9
      %p236 = por %p234, %p235
      %p238 = scmp.ne.s32.totalorder %s221, %s237
      %p239 = scmp.eq.s32.totalorder %s19, 0
      %p240 = por %p238, %p239
      %p241 = scmp.le.s32.totalorder 1, %s13
      %p242 = scmp.lt.s32.totalorder %s13, 11
      %p243 = pnand %p241, %p242
      %p244 = pneg %p243
      // Predicated region
      $region9: #{residual_block.1} parent=5 // pred_check
        _
      $region10: #{residual_block.1} parent=5 // pred_check_branch
        %246 = sbr.rel (%p243) target = $region12
      $region11: #{residual_block.1} parent=5 // pred_region
        %s247 = ssub.s32 %s13, 1
        // Predicated region
        $region13: #{residual_block.1} parent=11 // pred_check
          %p248 = pneg %p142
        $region14: #{residual_block.1} parent=11 // pred_check_branch
          %250 = sbr.rel (%p248) target = $region16
        $region15: #{residual_block.1} parent=11 // pred_region
          _
        $region16: #{residual_block.1} parent=11 // pred_fallthru
          _
        // Predicated region
        $region17: #{residual_block.1} parent=11 // pred_check
          %p251 = pneg %p163
        $region18: #{residual_block.1} parent=11 // pred_check_branch
          %253 = sbr.rel (%p251) target = $region20
        $region19: #{residual_block.1} parent=11 // pred_region
          _
        $region20: #{residual_block.1} parent=11 // pred_fallthru
          _
        // Predicated region
        $region21: #{residual_block.1} parent=11 // pred_check
          %p254 = pneg %p184
        $region22: #{residual_block.1} parent=11 // pred_check_branch
          %256 = sbr.rel (%p254) target = $region24
        $region23: #{residual_block.1} parent=11 // pred_region
          _
        $region24: #{residual_block.1} parent=11 // pred_fallthru
          _
        // Predicated region
        $region25: #{residual_block.1} parent=11 // pred_check
          %p257 = pneg %p205
        $region26: #{residual_block.1} parent=11 // pred_check_branch
          %259 = sbr.rel (%p257) target = $region28
        $region27: #{residual_block.1} parent=11 // pred_region
          _
        $region28: #{residual_block.1} parent=11 // pred_fallthru
          _
      $region12: #{residual_block.1} parent=5 // pred_fallthru
        _
      %p260 = scmp.lt.s32.totalorder %s13, 10
      // Predicated region
      $region29: #{residual_block.1} parent=5 // pred_check
        %p261 = pneg %p260
      $region30: #{residual_block.1} parent=5 // pred_check_branch
        %263 = sbr.rel (%p261) target = $region32
      $region31: #{residual_block.1} parent=5 // pred_region
        // Predicated region
        $region33: #{residual_block.1} parent=31 // pred_check
          %p264 = pneg %p53
        $region34: #{residual_block.1} parent=31 // pred_check_branch
          %266 = sbr.rel (%p264) target = $region36
        $region35: #{residual_block.1} parent=31 // pred_region
          %s267 = sand.u32 %s43, 1
          %s268 = sand.u32 %s43, 1
          %s269 = smul.addr %s268, 16
          %s270 = scalar_lea.vmem [#allocation3], %s269
          %s271 = ssub.s32 %s21, 1
          %p272 = scmp.gt.s32.totalorder %s271, 0
          %s273 = scalar_select %p272, %s271, 0
          %s274 = smul.addr %s20, 10
          %s275 = sadd.s32 %s273, %s274
          %s276 = smul.addr %s275, 8
          %s277 = scalar_lea.vmem %s0, %s276
          // Predicated region
          $region37: #{residual_block.1} parent=35 // pred_check
            _
          $region38: #{residual_block.1} parent=35 // pred_check_branch
            %279 = sbr.rel (0) target = $region40
          $region39: #{residual_block.1} parent=35 // pred_region
            // Predicated region
            $region41: #{residual_block.1} parent=39 // pred_check
              _
            $region42: #{residual_block.1} parent=39 // pred_check_branch
              %281 = sbr.rel (0) target = $region44
            $region43: #{residual_block.1} parent=39 // pred_region
              // Predicated region
              $region56: #{residual_block.1} parent=43 // pred_check
                _
              $region57: #{residual_block.1} parent=43 // pred_check_branch
                %298 = sbr.rel (0) target = $region59
              $region58: #{residual_block.1} parent=43 // pred_region
                loop: start=0, step=1, limit=1
                $region60: #{residual_block.1} parent=58 // loop_pre_header
                  _
                $region61: #{residual_block.1} parent=58 // loop_header
                  %s300 = sphi 0, %s304
                  %p301 = scmp.ge.s32.totalorder %s300, 1
                  %s305 = sphi %s277, %s277
                  %s306 = sphi %s270, %s270
                $region62: #{residual_block.1} parent=58 // loop_header_branch
                  %303 = sbr.rel (%p301) target = $region66
                $region63: #{residual_block.1} parent=58 // loop_body
                  %v307 = vld [vmem:[%s305] sm:$0xff]
                  %308 = vst [vmem:[%s306] sm:$0xff] %v307
                  %v309 = vld [vmem:[%s305 + $0x28] sm:$0xff]
                  %310 = vst [vmem:[%s306 + $0x8] sm:$0xff] %v309
                $region64: #{residual_block.1} parent=58 // loop_footer
                  %s304 = sadd.s32 1, %s300
                $region65: #{residual_block.1} parent=58 // loop_footer_branch
                  %299 = sbr.rel target = $region61
                $region66: #{residual_block.1} parent=58 // loop_exit
                  _
              $region59: #{residual_block.1} parent=43 // pred_fallthru
                _
              // Predicated region
              $region67: #{residual_block.1} parent=43 // pred_check
                _
              $region68: #{residual_block.1} parent=43 // pred_check_branch
                %312 = sbr.rel target = $region70
              $region69: #{residual_block.1} parent=43 // pred_region
                _
              $region70: #{residual_block.1} parent=43 // pred_fallthru
                _
            $region44: #{residual_block.1} parent=39 // pred_fallthru
              _
            // Predicated region
            $region45: #{residual_block.1} parent=39 // pred_check
              _
            $region46: #{residual_block.1} parent=39 // pred_check_branch
              %283 = sbr.rel target = $region48
            $region47: #{residual_block.1} parent=39 // pred_region
              loop: start=0, step=1, limit=1
              $region49: #{residual_block.1} parent=47 // loop_pre_header
                _
              $region50: #{residual_block.1} parent=47 // loop_header
                %s286 = sphi 0, %s290
                %p287 = scmp.ge.s32.totalorder %s286, 1
                %s291 = sphi %s277, %s277
                %s292 = sphi %s270, %s270
              $region51: #{residual_block.1} parent=47 // loop_header_branch
                %289 = sbr.rel (%p287) target = $region55
              $region52: #{residual_block.1} parent=47 // loop_body
                %v293 = vld [vmem:[%s291] sm:$0xff]
                %294 = vst [vmem:[%s292] sm:$0xff] %v293
                %v295 = vld [vmem:[%s291 + $0x28] sm:$0xff]
                %296 = vst [vmem:[%s292 + $0x8] sm:$0xff] %v295
              $region53: #{residual_block.1} parent=47 // loop_footer
                %s290 = sadd.s32 1, %s286
              $region54: #{residual_block.1} parent=47 // loop_footer_branch
                %285 = sbr.rel target = $region50
              $region55: #{residual_block.1} parent=47 // loop_exit
                _
            $region48: #{residual_block.1} parent=39 // pred_fallthru
              _
          $region40: #{residual_block.1} parent=35 // pred_fallthru
            _
          %313 = vnop
        $region36: #{residual_block.1} parent=31 // pred_fallthru
          _
        // Predicated region
        $region71: #{residual_block.1} parent=31 // pred_check
          %p314 = pneg %p81
        $region72: #{residual_block.1} parent=31 // pred_check_branch
          %316 = sbr.rel (%p314) target = $region74
        $region73: #{residual_block.1} parent=31 // pred_region
          %s317 = sand.u32 %s71, 1
          %s318 = sand.u32 %s71, 1
          %s319 = smul.addr %s318, 16
          %s320 = scalar_lea.vmem [#allocation4], %s319
          %s321 = smul.addr %s20, 10
          %s322 = sadd.s32 %s21, %s321
          %s323 = smul.addr %s322, 8
          %s324 = scalar_lea.vmem %s1, %s323
          // Predicated region
          $region75: #{residual_block.1} parent=73 // pred_check
            _
          $region76: #{residual_block.1} parent=73 // pred_check_branch
            %326 = sbr.rel (0) target = $region78
          $region77: #{residual_block.1} parent=73 // pred_region
            // Predicated region
            $region79: #{residual_block.1} parent=77 // pred_check
              _
            $region80: #{residual_block.1} parent=77 // pred_check_branch
              %328 = sbr.rel (0) target = $region82
            $region81: #{residual_block.1} parent=77 // pred_region
              // Predicated region
              $region94: #{residual_block.1} parent=81 // pred_check
                _
              $region95: #{residual_block.1} parent=81 // pred_check_branch
                %345 = sbr.rel (0) target = $region97
              $region96: #{residual_block.1} parent=81 // pred_region
                loop: start=0, step=1, limit=1
                $region98: #{residual_block.1} parent=96 // loop_pre_header
                  _
                $region99: #{residual_block.1} parent=96 // loop_header
                  %s347 = sphi 0, %s351
                  %p348 = scmp.ge.s32.totalorder %s347, 1
                  %s352 = sphi %s324, %s324
                  %s353 = sphi %s320, %s320
                $region100: #{residual_block.1} parent=96 // loop_header_branch
                  %350 = sbr.rel (%p348) target = $region104
                $region101: #{residual_block.1} parent=96 // loop_body
                  %v354 = vld [vmem:[%s352] sm:$0xff]
                  %355 = vst [vmem:[%s353] sm:$0xff] %v354
                  %v356 = vld [vmem:[%s352 + $0x28] sm:$0xff]
                  %357 = vst [vmem:[%s353 + $0x8] sm:$0xff] %v356
                $region102: #{residual_block.1} parent=96 // loop_footer
                  %s351 = sadd.s32 1, %s347
                $region103: #{residual_block.1} parent=96 // loop_footer_branch
                  %346 = sbr.rel target = $region99
                $region104: #{residual_block.1} parent=96 // loop_exit
                  _
              $region97: #{residual_block.1} parent=81 // pred_fallthru
                _
              // Predicated region
              $region105: #{residual_block.1} parent=81 // pred_check
                _
              $region106: #{residual_block.1} parent=81 // pred_check_branch
                %359 = sbr.rel target = $region108
              $region107: #{residual_block.1} parent=81 // pred_region
                _
              $region108: #{residual_block.1} parent=81 // pred_fallthru
                _
            $region82: #{residual_block.1} parent=77 // pred_fallthru
              _
            // Predicated region
            $region83: #{residual_block.1} parent=77 // pred_check
              _
            $region84: #{residual_block.1} parent=77 // pred_check_branch
              %330 = sbr.rel target = $region86
            $region85: #{residual_block.1} parent=77 // pred_region
              loop: start=0, step=1, limit=1
              $region87: #{residual_block.1} parent=85 // loop_pre_header
                _
              $region88: #{residual_block.1} parent=85 // loop_header
                %s333 = sphi 0, %s337
                %p334 = scmp.ge.s32.totalorder %s333, 1
                %s338 = sphi %s324, %s324
                %s339 = sphi %s320, %s320
              $region89: #{residual_block.1} parent=85 // loop_header_branch
                %336 = sbr.rel (%p334) target = $region93
              $region90: #{residual_block.1} parent=85 // loop_body
                %v340 = vld [vmem:[%s338] sm:$0xff]
                %341 = vst [vmem:[%s339] sm:$0xff] %v340
                %v342 = vld [vmem:[%s338 + $0x28] sm:$0xff]
                %343 = vst [vmem:[%s339 + $0x8] sm:$0xff] %v342
              $region91: #{residual_block.1} parent=85 // loop_footer
                %s337 = sadd.s32 1, %s333
              $region92: #{residual_block.1} parent=85 // loop_footer_branch
                %332 = sbr.rel target = $region88
              $region93: #{residual_block.1} parent=85 // loop_exit
                _
            $region86: #{residual_block.1} parent=77 // pred_fallthru
              _
          $region78: #{residual_block.1} parent=73 // pred_fallthru
            _
          %360 = vnop
        $region74: #{residual_block.1} parent=31 // pred_fallthru
          _
        // Predicated region
        $region109: #{residual_block.1} parent=31 // pred_check
          %p361 = pneg %p115
        $region110: #{residual_block.1} parent=31 // pred_check_branch
          %363 = sbr.rel (%p361) target = $region112
        $region111: #{residual_block.1} parent=31 // pred_region
          %s364 = sand.u32 %s105, 1
          %s365 = sand.u32 %s105, 1
          %s366 = smul.addr %s365, 16
          %s367 = scalar_lea.vmem [#allocation5], %s366
          %s368 = sadd.s32 %s21, 1
          %p369 = scmp.lt.s32.totalorder %s368, 4
          %s370 = scalar_select %p369, %s368, 4
          %s371 = smul.addr %s20, 10
          %s372 = sadd.s32 %s370, %s371
          %s373 = smul.addr %s372, 8
          %s374 = scalar_lea.vmem %s2, %s373
          // Predicated region
          $region113: #{residual_block.1} parent=111 // pred_check
            _
          $region114: #{residual_block.1} parent=111 // pred_check_branch
            %376 = sbr.rel (0) target = $region116
          $region115: #{residual_block.1} parent=111 // pred_region
            // Predicated region
            $region117: #{residual_block.1} parent=115 // pred_check
              _
            $region118: #{residual_block.1} parent=115 // pred_check_branch
              %378 = sbr.rel (0) target = $region120
            $region119: #{residual_block.1} parent=115 // pred_region
              // Predicated region
              $region132: #{residual_block.1} parent=119 // pred_check
                _
              $region133: #{residual_block.1} parent=119 // pred_check_branch
                %395 = sbr.rel (0) target = $region135
              $region134: #{residual_block.1} parent=119 // pred_region
                loop: start=0, step=1, limit=1
                $region136: #{residual_block.1} parent=134 // loop_pre_header
                  _
                $region137: #{residual_block.1} parent=134 // loop_header
                  %s397 = sphi 0, %s401
                  %p398 = scmp.ge.s32.totalorder %s397, 1
                  %s402 = sphi %s374, %s374
                  %s403 = sphi %s367, %s367
                $region138: #{residual_block.1} parent=134 // loop_header_branch
                  %400 = sbr.rel (%p398) target = $region142
                $region139: #{residual_block.1} parent=134 // loop_body
                  %v404 = vld [vmem:[%s402] sm:$0xff]
                  %405 = vst [vmem:[%s403] sm:$0xff] %v404
                  %v406 = vld [vmem:[%s402 + $0x28] sm:$0xff]
                  %407 = vst [vmem:[%s403 + $0x8] sm:$0xff] %v406
                $region140: #{residual_block.1} parent=134 // loop_footer
                  %s401 = sadd.s32 1, %s397
                $region141: #{residual_block.1} parent=134 // loop_footer_branch
                  %396 = sbr.rel target = $region137
                $region142: #{residual_block.1} parent=134 // loop_exit
                  _
              $region135: #{residual_block.1} parent=119 // pred_fallthru
                _
              // Predicated region
              $region143: #{residual_block.1} parent=119 // pred_check
                _
              $region144: #{residual_block.1} parent=119 // pred_check_branch
                %409 = sbr.rel target = $region146
              $region145: #{residual_block.1} parent=119 // pred_region
                _
              $region146: #{residual_block.1} parent=119 // pred_fallthru
                _
            $region120: #{residual_block.1} parent=115 // pred_fallthru
              _
            // Predicated region
            $region121: #{residual_block.1} parent=115 // pred_check
              _
            $region122: #{residual_block.1} parent=115 // pred_check_branch
              %380 = sbr.rel target = $region124
            $region123: #{residual_block.1} parent=115 // pred_region
              loop: start=0, step=1, limit=1
              $region125: #{residual_block.1} parent=123 // loop_pre_header
                _
              $region126: #{residual_block.1} parent=123 // loop_header
                %s383 = sphi 0, %s387
                %p384 = scmp.ge.s32.totalorder %s383, 1
                %s388 = sphi %s374, %s374
                %s389 = sphi %s367, %s367
              $region127: #{residual_block.1} parent=123 // loop_header_branch
                %386 = sbr.rel (%p384) target = $region131
              $region128: #{residual_block.1} parent=123 // loop_body
                %v390 = vld [vmem:[%s388] sm:$0xff]
                %391 = vst [vmem:[%s389] sm:$0xff] %v390
                %v392 = vld [vmem:[%s388 + $0x28] sm:$0xff]
                %393 = vst [vmem:[%s389 + $0x8] sm:$0xff] %v392
              $region129: #{residual_block.1} parent=123 // loop_footer
                %s387 = sadd.s32 1, %s383
              $region130: #{residual_block.1} parent=123 // loop_footer_branch
                %382 = sbr.rel target = $region126
              $region131: #{residual_block.1} parent=123 // loop_exit
                _
            $region124: #{residual_block.1} parent=115 // pred_fallthru
              _
          $region116: #{residual_block.1} parent=111 // pred_fallthru
            _
          %410 = vnop
        $region112: #{residual_block.1} parent=31 // pred_fallthru
          _
      $region32: #{residual_block.1} parent=5 // pred_fallthru
        _
      %p411 = scmp.le.s32.totalorder 1, %s13
      %p412 = scmp.lt.s32.totalorder %s13, 11
      %p413 = pnand %p411, %p412
      %p414 = pneg %p413
      // Predicated region
      $region147: #{residual_block.1} parent=5 // pred_check
        _
      $region148: #{residual_block.1} parent=5 // pred_check_branch
        %416 = sbr.rel (%p413) target = $region150
      $region149: #{residual_block.1} parent=5 // pred_region
        %s417 = ssub.s32 %s13, 1
        %s418 = sand.u32 %s46, 1
        %s419 = sand.u32 %s46, 1
        %s420 = smul.addr %s419, 16
        %s421 = scalar_lea.vmem [#allocation3], %s420
        // Predicated region
        $region151: #{residual_block.1} parent=149 // pred_check
          %p422 = pneg %p59
        $region152: #{residual_block.1} parent=149 // pred_check_branch
          %424 = sbr.rel (%p422) target = $region154
        $region153: #{residual_block.1} parent=149 // pred_region
          _
        $region154: #{residual_block.1} parent=149 // pred_fallthru
          _
        %s425 = sand.u32 %s74, 1
        %s426 = sand.u32 %s74, 1
        %s427 = smul.addr %s426, 16
        %s428 = scalar_lea.vmem [#allocation4], %s427
        // Predicated region
        $region155: #{residual_block.1} parent=149 // pred_check
          %p429 = pneg %p87
        $region156: #{residual_block.1} parent=149 // pred_check_branch
          %431 = sbr.rel (%p429) target = $region158
        $region157: #{residual_block.1} parent=149 // pred_region
          _
        $region158: #{residual_block.1} parent=149 // pred_fallthru
          _
        %s432 = sand.u32 %s108, 1
        %s433 = sand.u32 %s108, 1
        %s434 = smul.addr %s433, 16
        %s435 = scalar_lea.vmem [#allocation5], %s434
        // Predicated region
        $region159: #{residual_block.1} parent=149 // pred_check
          %p436 = pneg %p121
        $region160: #{residual_block.1} parent=149 // pred_check_branch
          %438 = sbr.rel (%p436) target = $region162
        $region161: #{residual_block.1} parent=149 // pred_region
          _
        $region162: #{residual_block.1} parent=149 // pred_fallthru
          _
        %s439 = sand.u32 %s46, 1
        %s440 = sand.u32 %s46, 1
        %s441 = smul.addr %s440, 16
        %s442 = scalar_lea.vmem [#allocation3], %s441
        %p443 = pneg %p59
        %p444 = pneg %p56
        %s445 = sand.u32 %s74, 1
        %s446 = sand.u32 %s74, 1
        %s447 = smul.addr %s446, 16
        %s448 = scalar_lea.vmem [#allocation4], %s447
        %p449 = pneg %p87
        %p450 = pneg %p84
        %s451 = sand.u32 %s108, 1
        %s452 = sand.u32 %s108, 1
        %s453 = smul.addr %s452, 16
        %s454 = scalar_lea.vmem [#allocation5], %s453
        %p455 = pneg %p121
        %p456 = pneg %p118
        %p457 = pneg %p142
        %p458 = pneg %p139
        %p459 = pneg %p163
        %p460 = pneg %p160
        %p461 = pneg %p184
        %p462 = pneg %p181
        %p463 = pneg %p205
        %p464 = pneg %p202
        %p465 = pneg %p233
        %p466 = pneg %p230
        %s467 = sand.u32 %s220, 1
        %s468 = sand.u32 %s220, 1
        %s469 = smul.addr %s468, 16
        %s470 = scalar_lea.vmem [#allocation6], %s469
        %s471 = ssub.s32 %s23, 1
        %p472 = scmp.gt.s32.totalorder %s471, 0
        %s473 = scalar_select %p472, %s471, 0
        %s474 = sadd.s32 %s23, 1
        %p475 = scmp.lt.s32.totalorder %s474, 4
        %s476 = scalar_select %p475, %s474, 4
        %s477 = smul.u32 %s23, 128
        %s478 = ssub.s32 %s477, 128
        %v479 = vld [vmem:[%s421] sm:$0xff]
        %v480 = vld [vmem:[%s421 + $0x8] sm:$0xff]
        %481 = vst [vmem:[#allocation2] sm:$0xff] %v479
        %482 = vst [vmem:[#allocation2 + $0x18] sm:$0xff] %v480
        %v483 = vld [vmem:[%s428] sm:$0xff]
        %v484 = vld [vmem:[%s428 + $0x8] sm:$0xff]
        %485 = vst [vmem:[#allocation2 + $0x8] sm:$0xff] %v483
        %486 = vst [vmem:[#allocation2 + $0x20] sm:$0xff] %v484
        %v487 = vld [vmem:[%s435] sm:$0xff]
        %v488 = vld [vmem:[%s435 + $0x8] sm:$0xff]
        %489 = vst [vmem:[#allocation2 + $0x10] sm:$0xff] %v487
        %490 = vst [vmem:[#allocation2 + $0x28] sm:$0xff] %v488
        %p491 = scmp.ge.s32.totalorder %s478, 0
        %s492 = sadd.s32 %s477, 256
        %p493 = scmp.le.s32.totalorder %s492, 600
        %p494 = pnand %p491, %p493
        %p495 = pneg %p494
        // Predicated region
        $region163: #{residual_block.1} parent=149 // pred_check
          _
        $region164: #{residual_block.1} parent=149 // pred_check_branch
          %497 = sbr.rel (%p494) target = $region166
        $region165: #{residual_block.1} parent=149 // pred_region
          %v498 = vld [vmem:[#allocation2] sm:$0xff]
          %v499 = vld [vmem:[#allocation2 + $0x8] sm:$0xff]
          %v500 = vld [vmem:[#allocation2 + $0x10] sm:$0xff]
          %v501 = vld [vmem:[#allocation2 + $0x18] sm:$0xff]
          %v502 = vld [vmem:[#allocation2 + $0x20] sm:$0xff]
          %v503 = vld [vmem:[#allocation2 + $0x28] sm:$0xff]
          %v504 = vmul.f32 %v498, 0.1
          %v505 = vmul.f32 %v499, 0.1
          %v506 = vmul.f32 %v500, 0.1
          %v507 = vmul.f32 %v501, 0.1
          %v508 = vmul.f32 %v502, 0.1
          %v509 = vmul.f32 %v503, 0.1
          %v510 = vmax.f32 %v498, %v504
          %v511 = vmax.f32 %v499, %v505
          %v512 = vmax.f32 %v500, %v506
          %v513 = vmax.f32 %v501, %v507
          %v514 = vmax.f32 %v502, %v508
          %v515 = vmax.f32 %v503, %v509
          %516 = vrot.lane.b32.xlu0 %v510, 1
          %v517 = vpop.permute.xlu0 %516
          %518 = vrot.lane.b32.xlu0 %v513, 1
          %v519 = vpop.permute.xlu0 %518
          %520 = vrot.lane.b32.xlu0 %v511, 1
          %v521 = vpop.permute.xlu0 %520
          %522 = vrot.lane.b32.xlu0 %v514, 1
          %v523 = vpop.permute.xlu0 %522
          %524 = vrot.lane.b32.xlu0 %v512, 1
          %v525 = vpop.permute.xlu0 %524
          %526 = vrot.lane.b32.xlu0 %v515, 1
          %v527 = vpop.permute.xlu0 %526
          %v528 = vlaneseq
          %v529 = vand.u32 %v528, 127
          %vm530 = vcmp.lt.s32.totalorder %v529, 1
          %v531 = vsel %vm530, %v521, %v525
          %v532 = vsel %vm530, %v523, %v527
          %v533 = vsel %vm530, %v517, %v521
          %v534 = vsel %vm530, %v519, %v523
          %v535 = vsel %vm530, %v525, %v517
          %v536 = vsel %vm530, %v527, %v519
          %v537 = vld [vmem:[%s3] sm:$0xff]
          %v538 = vld [vmem:[%s3 + $0x8] sm:$0xff]
          %s539 = scalar_lea.vmem %s3, 16
          %v540 = vld [vmem:[%s539] sm:$0xff]
          %v541 = vld [vmem:[%s539 + $0x8] sm:$0xff]
          %vm542 = vcmask 130048
          %v544 = vsel %vm542, %v540, 0
          %v547 = vsel %vm542, %v541, 0
          %549 = vmatprep.subr.mxu0 %v511
          %550 = vmatpush1.msra.mxu0 %v510
          %551 = vmatprep.subr.mxu0 %v514
          %552 = vmatpush1.msra.mxu0 %v513
          %553 = vmatprep.subr.mxu0 0.0
          %554 = vmatpush1.msra.mxu0 0.0
          %555 = vmatprep.subr.mxu0 0.0
          %556 = vmatpush1.msra.mxu0 0.0
          %557 = vmatprep.subr.mxu0 0.0
          %558 = vmatpush1.msra.mxu0 0.0
          %559 = vmatprep.subr.mxu0 0.0
          %560 = vmatpush1.msra.mxu0 0.0
          %561 = vmatprep.subr.mxu0 0.0
          %562 = vmatpush1.msra.mxu0 0.0
          %563 = vmatprep.subr.mxu0 0.0
          %564 = vmatpush1.msra.mxu0 0.0
          %565 = vmatprep.subr.mxu0 0.0
          %566 = vmatpush1.msra.mxu0 0.0
          %567 = vmatprep.subr.mxu0 0.0
          %568 = vmatpush1.msra.mxu0 0.0
          %569 = vmatprep.subr.mxu0 0.0
          %570 = vmatpush1.msra.mxu0 0.0
          %571 = vmatprep.subr.mxu0 0.0
          %572 = vmatpush1.msra.mxu0 0.0
          %573 = vmatprep.subr.mxu0 0.0
          %574 = vmatpush1.msra.mxu0 0.0
          %575 = vmatprep.subr.mxu0 0.0
          %576 = vmatpush1.msra.mxu0 0.0
          %577 = vmatprep.subr.mxu0 0.0
          %578 = vmatpush1.msra.mxu0 0.0
          %579 = vmatprep.subr.mxu0 0.0
          %580 = vmatpush1.msra.mxu0 0.0
          %581 = vmatprep.subr.mxu0 0.0
          %582 = vmatpush1.msra.mxu0 0.0
          %583 = vmatprep.subr.mxu0 0.0
          %584 = vmatpush1.msra.mxu0 0.0
          %585 = vmatprep.subr.mxu0 0.0
          %586 = vmatpush1.msra.mxu0 0.0
          %587 = vmatprep.subr.mxu0 0.0
          %588 = vmatpush1.msra.mxu0 0.0
          %589 = vmatprep.subr.mxu0 0.0
          %590 = vmatpush1.msra.mxu0 0.0
          %591 = vmatprep.subr.mxu0 0.0
          %592 = vmatpush1.msra.mxu0 0.0
          %593 = vmatprep.subr.mxu0 0.0
          %594 = vmatpush1.msra.mxu0 0.0
          %595 = vmatprep.subr.mxu0 0.0
          %596 = vmatpush1.msra.mxu0 0.0
          %597 = vmatprep.subr.mxu0 0.0
          %598 = vmatpush1.msra.mxu0 0.0
          %599 = vmatprep.subr.mxu0 0.0
          %600 = vmatpush1.msra.mxu0 0.0
          %601 = vmatprep.subr.mxu0 0.0
          %602 = vmatpush1.msra.mxu0 0.0
          %603 = vmatprep.subr.mxu0 0.0
          %604 = vmatpush1.msra.mxu0 0.0
          %605 = vmatprep.subr.mxu0 0.0
          %606 = vmatpush1.msra.mxu0 0.0
          %607 = vmatprep.subr.mxu0 0.0
          %608 = vmatpush1.msra.mxu0 0.0
          %609 = vmatprep.subr.mxu0 0.0
          %610 = vmatpush1.msra.mxu0 0.0
          %611 = vmatprep.subr.mxu0 0.0
          %612 = vmatpush1.msra.mxu0 0.0
          %613 = vmatprep.mubr.f32.mxu0 0.0
          %614 = vmatmul.mubr.f32.gmra.mrb[0].mxu0 %v544
          %v615 = vpop.f32.mrb[0].mxu0
          %v616 = vadd.f32 0.0, %v615
          %v617 = vpop.f32.mrb[0].mxu0
          %v618 = vadd.f32 0.0, %v617
          %619 = vmatprep.mubr.f32.mxu0 0.0
          %620 = vmatmul.mubr.f32.gmra.mrb[0].mxu0 %v547
          %v621 = vpop.f32.mrb[0].mxu0
          %v622 = vadd.f32 0.0, %v621
          %v623 = vpop.f32.mrb[0].mxu0
          %v624 = vadd.f32 0.0, %v623
          %625 = vdwg.mxu0
          %626 = vmatprep.subr.mxu0 0.0
          %627 = vmatpush1.msra.mxu0 %v512
          %628 = vmatprep.subr.mxu0 0.0
          %629 = vmatpush1.msra.mxu0 %v515
          %630 = vmatprep.subr.mxu0 0.0
          %631 = vmatpush1.msra.mxu0 0.0
          %632 = vmatprep.subr.mxu0 0.0
          %633 = vmatpush1.msra.mxu0 0.0
          %634 = vmatprep.subr.mxu0 0.0
          %635 = vmatpush1.msra.mxu0 0.0
          %636 = vmatprep.subr.mxu0 0.0
          %637 = vmatpush1.msra.mxu0 0.0
          %638 = vmatprep.subr.mxu0 0.0
          %639 = vmatpush1.msra.mxu0 0.0
          %640 = vmatprep.subr.mxu0 0.0
          %641 = vmatpush1.msra.mxu0 0.0
          %642 = vmatprep.subr.mxu0 0.0
          %643 = vmatpush1.msra.mxu0 0.0
          %644 = vmatprep.subr.mxu0 0.0
          %645 = vmatpush1.msra.mxu0 0.0
          %646 = vmatprep.subr.mxu0 0.0
          %647 = vmatpush1.msra.mxu0 0.0
          %648 = vmatprep.subr.mxu0 0.0
          %649 = vmatpush1.msra.mxu0 0.0
          %650 = vmatprep.subr.mxu0 0.0
          %651 = vmatpush1.msra.mxu0 0.0
          %652 = vmatprep.subr.mxu0 0.0
          %653 = vmatpush1.msra.mxu0 0.0
          %654 = vmatprep.subr.mxu0 0.0
          %655 = vmatpush1.msra.mxu0 0.0
          %656 = vmatprep.subr.mxu0 0.0
          %657 = vmatpush1.msra.mxu0 0.0
          %658 = vmatprep.subr.mxu0 0.0
          %659 = vmatpush1.msra.mxu0 0.0
          %660 = vmatprep.subr.mxu0 0.0
          %661 = vmatpush1.msra.mxu0 0.0
          %662 = vmatprep.subr.mxu0 0.0
          %663 = vmatpush1.msra.mxu0 0.0
          %664 = vmatprep.subr.mxu0 0.0
          %665 = vmatpush1.msra.mxu0 0.0
          %666 = vmatprep.subr.mxu0 0.0
          %667 = vmatpush1.msra.mxu0 0.0
          %668 = vmatprep.subr.mxu0 0.0
          %669 = vmatpush1.msra.mxu0 0.0
          %670 = vmatprep.subr.mxu0 0.0
          %671 = vmatpush1.msra.mxu0 0.0
          %672 = vmatprep.subr.mxu0 0.0
          %673 = vmatpush1.msra.mxu0 0.0
          %674 = vmatprep.subr.mxu0 0.0
          %675 = vmatpush1.msra.mxu0 0.0
          %676 = vmatprep.subr.mxu0 0.0
          %677 = vmatpush1.msra.mxu0 0.0
          %678 = vmatprep.subr.mxu0 0.0
          %679 = vmatpush1.msra.mxu0 0.0
          %680 = vmatprep.subr.mxu0 0.0
          %681 = vmatpush1.msra.mxu0 0.0
          %682 = vmatprep.subr.mxu0 0.0
          %683 = vmatpush1.msra.mxu0 0.0
          %684 = vmatprep.subr.mxu0 0.0
          %685 = vmatpush1.msra.mxu0 0.0
          %686 = vmatprep.subr.mxu0 0.0
          %687 = vmatpush1.msra.mxu0 0.0
          %688 = vmatprep.subr.mxu0 0.0
          %689 = vmatpush1.msra.mxu0 0.0
          %690 = vmatprep.mubr.f32.mxu0 0.0
          %691 = vmatmul.mubr.f32.gmra.mrb[0].mxu0 %v544
          %v692 = vpop.f32.mrb[0].mxu0
          %v693 = vadd.f32 0.0, %v692
          %v694 = vpop.f32.mrb[0].mxu0
          %695 = vmatprep.mubr.f32.mxu0 0.0
          %696 = vmatmul.mubr.f32.gmra.mrb[0].mxu0 %v547
          %v697 = vpop.f32.mrb[0].mxu0
          %v698 = vadd.f32 0.0, %v697
          %v699 = vpop.f32.mrb[0].mxu0
          %700 = vdwg.mxu0
          %v702 = vsel %vm542, %v537, 0
          %v705 = vsel %vm542, %v538, 0
          %707 = vmatprep.subr.mxu0 %v533
          %708 = vmatpush1.msra.mxu0 %v535
          %709 = vmatprep.subr.mxu0 %v534
          %710 = vmatpush1.msra.mxu0 %v536
          %711 = vmatprep.subr.mxu0 0.0
          %712 = vmatpush1.msra.mxu0 0.0
          %713 = vmatprep.subr.mxu0 0.0
          %714 = vmatpush1.msra.mxu0 0.0
          %715 = vmatprep.subr.mxu0 0.0
          %716 = vmatpush1.msra.mxu0 0.0
          %717 = vmatprep.subr.mxu0 0.0
          %718 = vmatpush1.msra.mxu0 0.0
          %719 = vmatprep.subr.mxu0 0.0
          %720 = vmatpush1.msra.mxu0 0.0
          %721 = vmatprep.subr.mxu0 0.0
          %722 = vmatpush1.msra.mxu0 0.0
          %723 = vmatprep.subr.mxu0 0.0
          %724 = vmatpush1.msra.mxu0 0.0
          %725 = vmatprep.subr.mxu0 0.0
          %726 = vmatpush1.msra.mxu0 0.0
          %727 = vmatprep.subr.mxu0 0.0
          %728 = vmatpush1.msra.mxu0 0.0
          %729 = vmatprep.subr.mxu0 0.0
          %730 = vmatpush1.msra.mxu0 0.0
          %731 = vmatprep.subr.mxu0 0.0
          %732 = vmatpush1.msra.mxu0 0.0
          %733 = vmatprep.subr.mxu0 0.0
          %734 = vmatpush1.msra.mxu0 0.0
          %735 = vmatprep.subr.mxu0 0.0
          %736 = vmatpush1.msra.mxu0 0.0
          %737 = vmatprep.subr.mxu0 0.0
          %738 = vmatpush1.msra.mxu0 0.0
          %739 = vmatprep.subr.mxu0 0.0
          %740 = vmatpush1.msra.mxu0 0.0
          %741 = vmatprep.subr.mxu0 0.0
          %742 = vmatpush1.msra.mxu0 0.0
          %743 = vmatprep.subr.mxu0 0.0
          %744 = vmatpush1.msra.mxu0 0.0
          %745 = vmatprep.subr.mxu0 0.0
          %746 = vmatpush1.msra.mxu0 0.0
          %747 = vmatprep.subr.mxu0 0.0
          %748 = vmatpush1.msra.mxu0 0.0
          %749 = vmatprep.subr.mxu0 0.0
          %750 = vmatpush1.msra.mxu0 0.0
          %751 = vmatprep.subr.mxu0 0.0
          %752 = vmatpush1.msra.mxu0 0.0
          %753 = vmatprep.subr.mxu0 0.0
          %754 = vmatpush1.msra.mxu0 0.0
          %755 = vmatprep.subr.mxu0 0.0
          %756 = vmatpush1.msra.mxu0 0.0
          %757 = vmatprep.subr.mxu0 0.0
          %758 = vmatpush1.msra.mxu0 0.0
          %759 = vmatprep.subr.mxu0 0.0
          %760 = vmatpush1.msra.mxu0 0.0
          %761 = vmatprep.subr.mxu0 0.0
          %762 = vmatpush1.msra.mxu0 0.0
          %763 = vmatprep.subr.mxu0 0.0
          %764 = vmatpush1.msra.mxu0 0.0
          %765 = vmatprep.subr.mxu0 0.0
          %766 = vmatpush1.msra.mxu0 0.0
          %767 = vmatprep.subr.mxu0 0.0
          %768 = vmatpush1.msra.mxu0 0.0
          %769 = vmatprep.subr.mxu0 0.0
          %770 = vmatpush1.msra.mxu0 0.0
          %771 = vmatprep.mubr.f32.mxu0 0.0
          %772 = vmatmul.mubr.f32.gmra.mrb[0].mxu0 %v702
          %v773 = vpop.f32.mrb[0].mxu0
          %v774 = vadd.f32 %v616, %v773
          %v775 = vpop.f32.mrb[0].mxu0
          %v776 = vadd.f32 %v618, %v775
          %777 = vmatprep.mubr.f32.mxu0 0.0
          %778 = vmatmul.mubr.f32.gmra.mrb[0].mxu0 %v705
          %v779 = vpop.f32.mrb[0].mxu0
          %v780 = vadd.f32 %v622, %v779
          %v781 = vpop.f32.mrb[0].mxu0
          %v782 = vadd.f32 %v624, %v781
          %783 = vdwg.mxu0
          %784 = vmatprep.subr.mxu0 0.0
          %785 = vmatpush1.msra.mxu0 %v531
          %786 = vmatprep.subr.mxu0 0.0
          %787 = vmatpush1.msra.mxu0 %v532
          %788 = vmatprep.subr.mxu0 0.0
          %789 = vmatpush1.msra.mxu0 0.0
          %790 = vmatprep.subr.mxu0 0.0
          %791 = vmatpush1.msra.mxu0 0.0
          %792 = vmatprep.subr.mxu0 0.0
          %793 = vmatpush1.msra.mxu0 0.0
          %794 = vmatprep.subr.mxu0 0.0
          %795 = vmatpush1.msra.mxu0 0.0
          %796 = vmatprep.subr.mxu0 0.0
          %797 = vmatpush1.msra.mxu0 0.0
          %798 = vmatprep.subr.mxu0 0.0
          %799 = vmatpush1.msra.mxu0 0.0
          %800 = vmatprep.subr.mxu0 0.0
          %801 = vmatpush1.msra.mxu0 0.0
          %802 = vmatprep.subr.mxu0 0.0
          %803 = vmatpush1.msra.mxu0 0.0
          %804 = vmatprep.subr.mxu0 0.0
          %805 = vmatpush1.msra.mxu0 0.0
          %806 = vmatprep.subr.mxu0 0.0
          %807 = vmatpush1.msra.mxu0 0.0
          %808 = vmatprep.subr.mxu0 0.0
          %809 = vmatpush1.msra.mxu0 0.0
          %810 = vmatprep.subr.mxu0 0.0
          %811 = vmatpush1.msra.mxu0 0.0
          %812 = vmatprep.subr.mxu0 0.0
          %813 = vmatpush1.msra.mxu0 0.0
          %814 = vmatprep.subr.mxu0 0.0
          %815 = vmatpush1.msra.mxu0 0.0
          %816 = vmatprep.subr.mxu0 0.0
          %817 = vmatpush1.msra.mxu0 0.0
          %818 = vmatprep.subr.mxu0 0.0
          %819 = vmatpush1.msra.mxu0 0.0
          %820 = vmatprep.subr.mxu0 0.0
          %821 = vmatpush1.msra.mxu0 0.0
          %822 = vmatprep.subr.mxu0 0.0
          %823 = vmatpush1.msra.mxu0 0.0
          %824 = vmatprep.subr.mxu0 0.0
          %825 = vmatpush1.msra.mxu0 0.0
          %826 = vmatprep.subr.mxu0 0.0
          %827 = vmatpush1.msra.mxu0 0.0
          %828 = vmatprep.subr.mxu0 0.0
          %829 = vmatpush1.msra.mxu0 0.0
          %830 = vmatprep.subr.mxu0 0.0
          %831 = vmatpush1.msra.mxu0 0.0
          %832 = vmatprep.subr.mxu0 0.0
          %833 = vmatpush1.msra.mxu0 0.0
          %834 = vmatprep.subr.mxu0 0.0
          %835 = vmatpush1.msra.mxu0 0.0
          %836 = vmatprep.subr.mxu0 0.0
          %837 = vmatpush1.msra.mxu0 0.0
          %838 = vmatprep.subr.mxu0 0.0
          %839 = vmatpush1.msra.mxu0 0.0
          %840 = vmatprep.subr.mxu0 0.0
          %841 = vmatpush1.msra.mxu0 0.0
          %842 = vmatprep.subr.mxu0 0.0
          %843 = vmatpush1.msra.mxu0 0.0
          %844 = vmatprep.subr.mxu0 0.0
          %845 = vmatpush1.msra.mxu0 0.0
          %846 = vmatprep.subr.mxu0 0.0
          %847 = vmatpush1.msra.mxu0 0.0
          %848 = vmatprep.mubr.f32.mxu0 0.0
          %849 = vmatmul.mubr.f32.gmra.mrb[0].mxu0 %v702
          %v850 = vpop.f32.mrb[0].mxu0
          %v851 = vadd.f32 %v693, %v850
          %v852 = vpop.f32.mrb[0].mxu0
          %853 = vmatprep.mubr.f32.mxu0 0.0
          %854 = vmatmul.mubr.f32.gmra.mrb[0].mxu0 %v705
          %v855 = vpop.f32.mrb[0].mxu0
          %v856 = vadd.f32 %v698, %v855
          %v857 = vpop.f32.mrb[0].mxu0
          %858 = vdwg.mxu0
          %859 = vrot.lane.b32.xlu0 %v510, 127
          %v860 = vpop.permute.xlu0 %859
          %861 = vrot.lane.b32.xlu0 %v513, 127
          %v862 = vpop.permute.xlu0 %861
          %863 = vrot.lane.b32.xlu0 %v511, 127
          %v864 = vpop.permute.xlu0 %863
          %865 = vrot.lane.b32.xlu0 %v514, 127
          %v866 = vpop.permute.xlu0 %865
          %867 = vrot.lane.b32.xlu0 %v512, 127
          %v868 = vpop.permute.xlu0 %867
          %869 = vrot.lane.b32.xlu0 %v515, 127
          %v870 = vpop.permute.xlu0 %869
          %vm871 = vcmp.lt.s32.totalorder %v529, 127
          %v872 = vsel %vm871, %v864, %v868
          %v873 = vsel %vm871, %v866, %v870
          %v874 = vsel %vm871, %v860, %v864
          %v875 = vsel %vm871, %v862, %v866
          %v876 = vsel %vm871, %v868, %v860
          %v877 = vsel %vm871, %v870, %v862
          %s878 = scalar_lea.vmem %s3, 32
          %v879 = vld [vmem:[%s878] sm:$0xff]
          %v880 = vld [vmem:[%s878 + $0x8] sm:$0xff]
          %v882 = vsel %vm542, %v879, 0
          %v885 = vsel %vm542, %v880, 0
          %887 = vmatprep.subr.mxu0 %v872
          %888 = vmatpush1.msra.mxu0 %v874
          %889 = vmatprep.subr.mxu0 %v873
          %890 = vmatpush1.msra.mxu0 %v875
          %891 = vmatprep.subr.mxu0 0.0
          %892 = vmatpush1.msra.mxu0 0.0
          %893 = vmatprep.subr.mxu0 0.0
          %894 = vmatpush1.msra.mxu0 0.0
          %895 = vmatprep.subr.mxu0 0.0
          %896 = vmatpush1.msra.mxu0 0.0
          %897 = vmatprep.subr.mxu0 0.0
          %898 = vmatpush1.msra.mxu0 0.0
          %899 = vmatprep.subr.mxu0 0.0
          %900 = vmatpush1.msra.mxu0 0.0
          %901 = vmatprep.subr.mxu0 0.0
          %902 = vmatpush1.msra.mxu0 0.0
          %903 = vmatprep.subr.mxu0 0.0
          %904 = vmatpush1.msra.mxu0 0.0
          %905 = vmatprep.subr.mxu0 0.0
          %906 = vmatpush1.msra.mxu0 0.0
          %907 = vmatprep.subr.mxu0 0.0
          %908 = vmatpush1.msra.mxu0 0.0
          %909 = vmatprep.subr.mxu0 0.0
          %910 = vmatpush1.msra.mxu0 0.0
          %911 = vmatprep.subr.mxu0 0.0
          %912 = vmatpush1.msra.mxu0 0.0
          %913 = vmatprep.subr.mxu0 0.0
          %914 = vmatpush1.msra.mxu0 0.0
          %915 = vmatprep.subr.mxu0 0.0
          %916 = vmatpush1.msra.mxu0 0.0
          %917 = vmatprep.subr.mxu0 0.0
          %918 = vmatpush1.msra.mxu0 0.0
          %919 = vmatprep.subr.mxu0 0.0
          %920 = vmatpush1.msra.mxu0 0.0
          %921 = vmatprep.subr.mxu0 0.0
          %922 = vmatpush1.msra.mxu0 0.0
          %923 = vmatprep.subr.mxu0 0.0
          %924 = vmatpush1.msra.mxu0 0.0
          %925 = vmatprep.subr.mxu0 0.0
          %926 = vmatpush1.msra.mxu0 0.0
          %927 = vmatprep.subr.mxu0 0.0
          %928 = vmatpush1.msra.mxu0 0.0
          %929 = vmatprep.subr.mxu0 0.0
          %930 = vmatpush1.msra.mxu0 0.0
          %931 = vmatprep.subr.mxu0 0.0
          %932 = vmatpush1.msra.mxu0 0.0
          %933 = vmatprep.subr.mxu0 0.0
          %934 = vmatpush1.msra.mxu0 0.0
          %935 = vmatprep.subr.mxu0 0.0
          %936 = vmatpush1.msra.mxu0 0.0
          %937 = vmatprep.subr.mxu0 0.0
          %938 = vmatpush1.msra.mxu0 0.0
          %939 = vmatprep.subr.mxu0 0.0
          %940 = vmatpush1.msra.mxu0 0.0
          %941 = vmatprep.subr.mxu0 0.0
          %942 = vmatpush1.msra.mxu0 0.0
          %943 = vmatprep.subr.mxu0 0.0
          %944 = vmatpush1.msra.mxu0 0.0
          %945 = vmatprep.subr.mxu0 0.0
          %946 = vmatpush1.msra.mxu0 0.0
          %947 = vmatprep.subr.mxu0 0.0
          %948 = vmatpush1.msra.mxu0 0.0
          %949 = vmatprep.subr.mxu0 0.0
          %950 = vmatpush1.msra.mxu0 0.0
          %951 = vmatprep.mubr.f32.mxu0 0.0
          %952 = vmatmul.mubr.f32.gmra.mrb[0].mxu0 %v882
          %v953 = vpop.f32.mrb[0].mxu0
          %v954 = vadd.f32 0.0, %v953
          %v955 = vpop.f32.mrb[0].mxu0
          %v956 = vadd.f32 0.0, %v955
          %957 = vmatprep.mubr.f32.mxu0 0.0
          %958 = vmatmul.mubr.f32.gmra.mrb[0].mxu0 %v885
          %v959 = vpop.f32.mrb[0].mxu0
          %v960 = vadd.f32 0.0, %v959
          %v961 = vpop.f32.mrb[0].mxu0
          %v962 = vadd.f32 0.0, %v961
          %963 = vdwg.mxu0
          %964 = vmatprep.subr.mxu0 0.0
          %965 = vmatpush1.msra.mxu0 %v876
          %966 = vmatprep.subr.mxu0 0.0
          %967 = vmatpush1.msra.mxu0 %v877
          %968 = vmatprep.subr.mxu0 0.0
          %969 = vmatpush1.msra.mxu0 0.0
          %970 = vmatprep.subr.mxu0 0.0
          %971 = vmatpush1.msra.mxu0 0.0
          %972 = vmatprep.subr.mxu0 0.0
          %973 = vmatpush1.msra.mxu0 0.0
          %974 = vmatprep.subr.mxu0 0.0
          %975 = vmatpush1.msra.mxu0 0.0
          %976 = vmatprep.subr.mxu0 0.0
          %977 = vmatpush1.msra.mxu0 0.0
          %978 = vmatprep.subr.mxu0 0.0
          %979 = vmatpush1.msra.mxu0 0.0
          %980 = vmatprep.subr.mxu0 0.0
          %981 = vmatpush1.msra.mxu0 0.0
          %982 = vmatprep.subr.mxu0 0.0
          %983 = vmatpush1.msra.mxu0 0.0
          %984 = vmatprep.subr.mxu0 0.0
          %985 = vmatpush1.msra.mxu0 0.0
          %986 = vmatprep.subr.mxu0 0.0
          %987 = vmatpush1.msra.mxu0 0.0
          %988 = vmatprep.subr.mxu0 0.0
          %989 = vmatpush1.msra.mxu0 0.0
          %990 = vmatprep.subr.mxu0 0.0
          %991 = vmatpush1.msra.mxu0 0.0
          %992 = vmatprep.subr.mxu0 0.0
          %993 = vmatpush1.msra.mxu0 0.0
          %994 = vmatprep.subr.mxu0 0.0
          %995 = vmatpush1.msra.mxu0 0.0
          %996 = vmatprep.subr.mxu0 0.0
          %997 = vmatpush1.msra.mxu0 0.0
          %998 = vmatprep.subr.mxu0 0.0
          %999 = vmatpush1.msra.mxu0 0.0
          %1000 = vmatprep.subr.mxu0 0.0
          %1001 = vmatpush1.msra.mxu0 0.0
          %1002 = vmatprep.subr.mxu0 0.0
          %1003 = vmatpush1.msra.mxu0 0.0
          %1004 = vmatprep.subr.mxu0 0.0
          %1005 = vmatpush1.msra.mxu0 0.0
          %1006 = vmatprep.subr.mxu0 0.0
          %1007 = vmatpush1.msra.mxu0 0.0
          %1008 = vmatprep.subr.mxu0 0.0
          %1009 = vmatpush1.msra.mxu0 0.0
          %1010 = vmatprep.subr.mxu0 0.0
          %1011 = vmatpush1.msra.mxu0 0.0
          %1012 = vmatprep.subr.mxu0 0.0
          %1013 = vmatpush1.msra.mxu0 0.0
          %1014 = vmatprep.subr.mxu0 0.0
          %1015 = vmatpush1.msra.mxu0 0.0
          %1016 = vmatprep.subr.mxu0 0.0
          %1017 = vmatpush1.msra.mxu0 0.0
          %1018 = vmatprep.subr.mxu0 0.0
          %1019 = vmatpush1.msra.mxu0 0.0
          %1020 = vmatprep.subr.mxu0 0.0
          %1021 = vmatpush1.msra.mxu0 0.0
          %1022 = vmatprep.subr.mxu0 0.0
          %1023 = vmatpush1.msra.mxu0 0.0
          %1024 = vmatprep.subr.mxu0 0.0
          %1025 = vmatpush1.msra.mxu0 0.0
          %1026 = vmatprep.subr.mxu0 0.0
          %1027 = vmatpush1.msra.mxu0 0.0
          %1028 = vmatprep.mubr.f32.mxu0 0.0
          %1029 = vmatmul.mubr.f32.gmra.mrb[0].mxu0 %v882
          %v1030 = vpop.f32.mrb[0].mxu0
          %v1031 = vadd.f32 0.0, %v1030
          %v1032 = vpop.f32.mrb[0].mxu0
          %1033 = vmatprep.mubr.f32.mxu0 0.0
          %1034 = vmatmul.mubr.f32.gmra.mrb[0].mxu0 %v885
          %v1035 = vpop.f32.mrb[0].mxu0
          %v1036 = vadd.f32 0.0, %v1035
          %v1037 = vpop.f32.mrb[0].mxu0
          %1038 = vdwg.mxu0
          %v1039 = vadd.f32 %v774, %v954
          %v1040 = vadd.f32 %v776, %v956
          %v1041 = vadd.f32 %v851, %v1031
          %v1042 = vadd.f32 %v780, %v960
          %v1043 = vadd.f32 %v782, %v962
          %v1044 = vadd.f32 %v856, %v1036
          %v1045 = vld [vmem:[%s4] sm:$0xff]
          %v1046 = vld [vmem:[%s4 + $0x8] sm:$0xff]
          %1048 = vset.pattern.permute.xlu0 0
          %1049 = vperm.xlu0 %1048, %v1045
          %v1050 = vpop.permute.xlu0 %1049
          %1053 = vset.pattern.permute.xlu0 0
          %1054 = vperm.xlu0 %1053, %v1046
          %v1055 = vpop.permute.xlu0 %1054
          %v1057 = vadd.f32 %v1039, %v1050
          %v1058 = vadd.f32 %v1040, %v1050
          %v1059 = vadd.f32 %v1041, %v1050
          %v1060 = vadd.f32 %v1042, %v1055
          %v1061 = vadd.f32 %v1043, %v1055
          %v1062 = vadd.f32 %v1044, %v1055
          %v1063 = vmul.f32 %v1057, 0.1
          %v1064 = vmul.f32 %v1058, 0.1
          %v1065 = vmul.f32 %v1059, 0.1
          %v1066 = vmul.f32 %v1060, 0.1
          %v1067 = vmul.f32 %v1061, 0.1
          %v1068 = vmul.f32 %v1062, 0.1
          %v1069 = vmax.f32 %v1057, %v1063
          %v1070 = vmax.f32 %v1058, %v1064
          %v1071 = vmax.f32 %v1059, %v1065
          %v1072 = vmax.f32 %v1060, %v1066
          %v1073 = vmax.f32 %v1061, %v1067
          %v1074 = vmax.f32 %v1062, %v1068
          %1075 = vrot.lane.b32.xlu0 %v1069, 1
          %v1076 = vpop.permute.xlu0 %1075
          %1077 = vrot.lane.b32.xlu0 %v1072, 1
          %v1078 = vpop.permute.xlu0 %1077
          %1079 = vrot.lane.b32.xlu0 %v1070, 1
          %v1080 = vpop.permute.xlu0 %1079
          %1081 = vrot.lane.b32.xlu0 %v1073, 1
          %v1082 = vpop.permute.xlu0 %1081
          %1083 = vrot.lane.b32.xlu0 %v1071, 1
          %v1084 = vpop.permute.xlu0 %1083
          %1085 = vrot.lane.b32.xlu0 %v1074, 1
          %v1086 = vpop.permute.xlu0 %1085
          %v1087 = vsel %vm530, %v1080, %v1084
          %v1088 = vsel %vm530, %v1082, %v1086
          %v1089 = vsel %vm530, %v1076, %v1080
          %v1090 = vsel %vm530, %v1078, %v1082
          %v1091 = vsel %vm530, %v1084, %v1076
          %v1092 = vsel %vm530, %v1086, %v1078
          %v1093 = vld [vmem:[%s5] sm:$0xff]
          %v1094 = vld [vmem:[%s5 + $0x8] sm:$0xff]
          %s1095 = scalar_lea.vmem %s5, 16
          %v1096 = vld [vmem:[%s1095] sm:$0xff]
          %v1097 = vld [vmem:[%s1095 + $0x8] sm:$0xff]
          %v1099 = vsel %vm542, %v1096, 0
          %v1102 = vsel %vm542, %v1097, 0
          %1104 = vmatprep.subr.mxu0 %v1070
          %1105 = vmatpush1.msra.mxu0 %v1069
          %1106 = vmatprep.subr.mxu0 %v1073
          %1107 = vmatpush1.msra.mxu0 %v1072
          %1108 = vmatprep.subr.mxu0 0.0
          %1109 = vmatpush1.msra.mxu0 0.0
          %1110 = vmatprep.subr.mxu0 0.0
          %1111 = vmatpush1.msra.mxu0 0.0
          %1112 = vmatprep.subr.mxu0 0.0
          %1113 = vmatpush1.msra.mxu0 0.0
          %1114 = vmatprep.subr.mxu0 0.0
          %1115 = vmatpush1.msra.mxu0 0.0
          %1116 = vmatprep.subr.mxu0 0.0
          %1117 = vmatpush1.msra.mxu0 0.0
          %1118 = vmatprep.subr.mxu0 0.0
          %1119 = vmatpush1.msra.mxu0 0.0
          %1120 = vmatprep.subr.mxu0 0.0
          %1121 = vmatpush1.msra.mxu0 0.0
          %1122 = vmatprep.subr.mxu0 0.0
          %1123 = vmatpush1.msra.mxu0 0.0
          %1124 = vmatprep.subr.mxu0 0.0
          %1125 = vmatpush1.msra.mxu0 0.0
          %1126 = vmatprep.subr.mxu0 0.0
          %1127 = vmatpush1.msra.mxu0 0.0
          %1128 = vmatprep.subr.mxu0 0.0
          %1129 = vmatpush1.msra.mxu0 0.0
          %1130 = vmatprep.subr.mxu0 0.0
          %1131 = vmatpush1.msra.mxu0 0.0
          %1132 = vmatprep.subr.mxu0 0.0
          %1133 = vmatpush1.msra.mxu0 0.0
          %1134 = vmatprep.subr.mxu0 0.0
          %1135 = vmatpush1.msra.mxu0 0.0
          %1136 = vmatprep.subr.mxu0 0.0
          %1137 = vmatpush1.msra.mxu0 0.0
          %1138 = vmatprep.subr.mxu0 0.0
          %1139 = vmatpush1.msra.mxu0 0.0
          %1140 = vmatprep.subr.mxu0 0.0
          %1141 = vmatpush1.msra.mxu0 0.0
          %1142 = vmatprep.subr.mxu0 0.0
          %1143 = vmatpush1.msra.mxu0 0.0
          %1144 = vmatprep.subr.mxu0 0.0
          %1145 = vmatpush1.msra.mxu0 0.0
          %1146 = vmatprep.subr.mxu0 0.0
          %1147 = vmatpush1.msra.mxu0 0.0
          %1148 = vmatprep.subr.mxu0 0.0
          %1149 = vmatpush1.msra.mxu0 0.0
          %1150 = vmatprep.subr.mxu0 0.0
          %1151 = vmatpush1.msra.mxu0 0.0
          %1152 = vmatprep.subr.mxu0 0.0
          %1153 = vmatpush1.msra.mxu0 0.0
          %1154 = vmatprep.subr.mxu0 0.0
          %1155 = vmatpush1.msra.mxu0 0.0
          %1156 = vmatprep.subr.mxu0 0.0
          %1157 = vmatpush1.msra.mxu0 0.0
          %1158 = vmatprep.subr.mxu0 0.0
          %1159 = vmatpush1.msra.mxu0 0.0
          %1160 = vmatprep.subr.mxu0 0.0
          %1161 = vmatpush1.msra.mxu0 0.0
          %1162 = vmatprep.subr.mxu0 0.0
          %1163 = vmatpush1.msra.mxu0 0.0
          %1164 = vmatprep.subr.mxu0 0.0
          %1165 = vmatpush1.msra.mxu0 0.0
          %1166 = vmatprep.subr.mxu0 0.0
          %1167 = vmatpush1.msra.mxu0 0.0
          %1168 = vmatprep.mubr.f32.mxu0 0.0
          %1169 = vmatmul.mubr.f32.gmra.mrb[0].mxu0 %v1099
          %v1170 = vpop.f32.mrb[0].mxu0
          %v1171 = vadd.f32 0.0, %v1170
          %v1172 = vpop.f32.mrb[0].mxu0
          %v1173 = vadd.f32 0.0, %v1172
          %1174 = vmatprep.mubr.f32.mxu0 0.0
          %1175 = vmatmul.mubr.f32.gmra.mrb[0].mxu0 %v1102
          %v1176 = vpop.f32.mrb[0].mxu0
          %v1177 = vadd.f32 0.0, %v1176
          %v1178 = vpop.f32.mrb[0].mxu0
          %v1179 = vadd.f32 0.0, %v1178
          %1180 = vdwg.mxu0
          %1181 = vmatprep.subr.mxu0 0.0
          %1182 = vmatpush1.msra.mxu0 %v1071
          %1183 = vmatprep.subr.mxu0 0.0
          %1184 = vmatpush1.msra.mxu0 %v1074
          %1185 = vmatprep.subr.mxu0 0.0
          %1186 = vmatpush1.msra.mxu0 0.0
          %1187 = vmatprep.subr.mxu0 0.0
          %1188 = vmatpush1.msra.mxu0 0.0
          %1189 = vmatprep.subr.mxu0 0.0
          %1190 = vmatpush1.msra.mxu0 0.0
          %1191 = vmatprep.subr.mxu0 0.0
          %1192 = vmatpush1.msra.mxu0 0.0
          %1193 = vmatprep.subr.mxu0 0.0
          %1194 = vmatpush1.msra.mxu0 0.0
          %1195 = vmatprep.subr.mxu0 0.0
          %1196 = vmatpush1.msra.mxu0 0.0
          %1197 = vmatprep.subr.mxu0 0.0
          %1198 = vmatpush1.msra.mxu0 0.0
          %1199 = vmatprep.subr.mxu0 0.0
          %1200 = vmatpush1.msra.mxu0 0.0
          %1201 = vmatprep.subr.mxu0 0.0
          %1202 = vmatpush1.msra.mxu0 0.0
          %1203 = vmatprep.subr.mxu0 0.0
          %1204 = vmatpush1.msra.mxu0 0.0
          %1205 = vmatprep.subr.mxu0 0.0
          %1206 = vmatpush1.msra.mxu0 0.0
          %1207 = vmatprep.subr.mxu0 0.0
          %1208 = vmatpush1.msra.mxu0 0.0
          %1209 = vmatprep.subr.mxu0 0.0
          %1210 = vmatpush1.msra.mxu0 0.0
          %1211 = vmatprep.subr.mxu0 0.0
          %1212 = vmatpush1.msra.mxu0 0.0
          %1213 = vmatprep.subr.mxu0 0.0
          %1214 = vmatpush1.msra.mxu0 0.0
          %1215 = vmatprep.subr.mxu0 0.0
          %1216 = vmatpush1.msra.mxu0 0.0
          %1217 = vmatprep.subr.mxu0 0.0
          %1218 = vmatpush1.msra.mxu0 0.0
          %1219 = vmatprep.subr.mxu0 0.0
          %1220 = vmatpush1.msra.mxu0 0.0
          %1221 = vmatprep.subr.mxu0 0.0
          %1222 = vmatpush1.msra.mxu0 0.0
          %1223 = vmatprep.subr.mxu0 0.0
          %1224 = vmatpush1.msra.mxu0 0.0
          %1225 = vmatprep.subr.mxu0 0.0
          %1226 = vmatpush1.msra.mxu0 0.0
          %1227 = vmatprep.subr.mxu0 0.0
          %1228 = vmatpush1.msra.mxu0 0.0
          %1229 = vmatprep.subr.mxu0 0.0
          %1230 = vmatpush1.msra.mxu0 0.0
          %1231 = vmatprep.subr.mxu0 0.0
          %1232 = vmatpush1.msra.mxu0 0.0
          %1233 = vmatprep.subr.mxu0 0.0
          %1234 = vmatpush1.msra.mxu0 0.0
          %1235 = vmatprep.subr.mxu0 0.0
          %1236 = vmatpush1.msra.mxu0 0.0
          %1237 = vmatprep.subr.mxu0 0.0
          %1238 = vmatpush1.msra.mxu0 0.0
          %1239 = vmatprep.subr.mxu0 0.0
          %1240 = vmatpush1.msra.mxu0 0.0
          %1241 = vmatprep.subr.mxu0 0.0
          %1242 = vmatpush1.msra.mxu0 0.0
          %1243 = vmatprep.subr.mxu0 0.0
          %1244 = vmatpush1.msra.mxu0 0.0
          %1245 = vmatprep.mubr.f32.mxu0 0.0
          %1246 = vmatmul.mubr.f32.gmra.mrb[0].mxu0 %v1099
          %v1247 = vpop.f32.mrb[0].mxu0
          %v1248 = vadd.f32 0.0, %v1247
          %v1249 = vpop.f32.mrb[0].mxu0
          %1250 = vmatprep.mubr.f32.mxu0 0.0
          %1251 = vmatmul.mubr.f32.gmra.mrb[0].mxu0 %v1102
          %v1252 = vpop.f32.mrb[0].mxu0
          %v1253 = vadd.f32 0.0, %v1252
          %v1254 = vpop.f32.mrb[0].mxu0
          %1255 = vdwg.mxu0
          %v1257 = vsel %vm542, %v1093, 0
          %v1260 = vsel %vm542, %v1094, 0
          %1262 = vmatprep.subr.mxu0 %v1089
          %1263 = vmatpush1.msra.mxu0 %v1091
          %1264 = vmatprep.subr.mxu0 %v1090
          %1265 = vmatpush1.msra.mxu0 %v1092
          %1266 = vmatprep.subr.mxu0 0.0
          %1267 = vmatpush1.msra.mxu0 0.0
          %1268 = vmatprep.subr.mxu0 0.0
          %1269 = vmatpush1.msra.mxu0 0.0
          %1270 = vmatprep.subr.mxu0 0.0
          %1271 = vmatpush1.msra.mxu0 0.0
          %1272 = vmatprep.subr.mxu0 0.0
          %1273 = vmatpush1.msra.mxu0 0.0
          %1274 = vmatprep.subr.mxu0 0.0
          %1275 = vmatpush1.msra.mxu0 0.0
          %1276 = vmatprep.subr.mxu0 0.0
          %1277 = vmatpush1.msra.mxu0 0.0
          %1278 = vmatprep.subr.mxu0 0.0
          %1279 = vmatpush1.msra.mxu0 0.0
          %1280 = vmatprep.subr.mxu0 0.0
          %1281 = vmatpush1.msra.mxu0 0.0
          %1282 = vmatprep.subr.mxu0 0.0
          %1283 = vmatpush1.msra.mxu0 0.0
          %1284 = vmatprep.subr.mxu0 0.0
          %1285 = vmatpush1.msra.mxu0 0.0
          %1286 = vmatprep.subr.mxu0 0.0
          %1287 = vmatpush1.msra.mxu0 0.0
          %1288 = vmatprep.subr.mxu0 0.0
          %1289 = vmatpush1.msra.mxu0 0.0
          %1290 = vmatprep.subr.mxu0 0.0
          %1291 = vmatpush1.msra.mxu0 0.0
          %1292 = vmatprep.subr.mxu0 0.0
          %1293 = vmatpush1.msra.mxu0 0.0
          %1294 = vmatprep.subr.mxu0 0.0
          %1295 = vmatpush1.msra.mxu0 0.0
          %1296 = vmatprep.subr.mxu0 0.0
          %1297 = vmatpush1.msra.mxu0 0.0
          %1298 = vmatprep.subr.mxu0 0.0
          %1299 = vmatpush1.msra.mxu0 0.0
          %1300 = vmatprep.subr.mxu0 0.0
          %1301 = vmatpush1.msra.mxu0 0.0
          %1302 = vmatprep.subr.mxu0 0.0
          %1303 = vmatpush1.msra.mxu0 0.0
          %1304 = vmatprep.subr.mxu0 0.0
          %1305 = vmatpush1.msra.mxu0 0.0
          %1306 = vmatprep.subr.mxu0 0.0
          %1307 = vmatpush1.msra.mxu0 0.0
          %1308 = vmatprep.subr.mxu0 0.0
          %1309 = vmatpush1.msra.mxu0 0.0
          %1310 = vmatprep.subr.mxu0 0.0
          %1311 = vmatpush1.msra.mxu0 0.0
          %1312 = vmatprep.subr.mxu0 0.0
          %1313 = vmatpush1.msra.mxu0 0.0
          %1314 = vmatprep.subr.mxu0 0.0
          %1315 = vmatpush1.msra.mxu0 0.0
          %1316 = vmatprep.subr.mxu0 0.0
          %1317 = vmatpush1.msra.mxu0 0.0
          %1318 = vmatprep.subr.mxu0 0.0
          %1319 = vmatpush1.msra.mxu0 0.0
          %1320 = vmatprep.subr.mxu0 0.0
          %1321 = vmatpush1.msra.mxu0 0.0
          %1322 = vmatprep.subr.mxu0 0.0
          %1323 = vmatpush1.msra.mxu0 0.0
          %1324 = vmatprep.subr.mxu0 0.0
          %1325 = vmatpush1.msra.mxu0 0.0
          %1326 = vmatprep.mubr.f32.mxu0 0.0
          %1327 = vmatmul.mubr.f32.gmra.mrb[0].mxu0 %v1257
          %v1328 = vpop.f32.mrb[0].mxu0
          %v1329 = vadd.f32 %v1171, %v1328
          %v1330 = vpop.f32.mrb[0].mxu0
          %v1331 = vadd.f32 %v1173, %v1330
          %1332 = vmatprep.mubr.f32.mxu0 0.0
          %1333 = vmatmul.mubr.f32.gmra.mrb[0].mxu0 %v1260
          %v1334 = vpop.f32.mrb[0].mxu0
          %v1335 = vadd.f32 %v1177, %v1334
          %v1336 = vpop.f32.mrb[0].mxu0
          %v1337 = vadd.f32 %v1179, %v1336
          %1338 = vdwg.mxu0
          %1339 = vmatprep.subr.mxu0 0.0
          %1340 = vmatpush1.msra.mxu0 %v1087
          %1341 = vmatprep.subr.mxu0 0.0
          %1342 = vmatpush1.msra.mxu0 %v1088
          %1343 = vmatprep.subr.mxu0 0.0
          %1344 = vmatpush1.msra.mxu0 0.0
          %1345 = vmatprep.subr.mxu0 0.0
          %1346 = vmatpush1.msra.mxu0 0.0
          %1347 = vmatprep.subr.mxu0 0.0
          %1348 = vmatpush1.msra.mxu0 0.0
          %1349 = vmatprep.subr.mxu0 0.0
          %1350 = vmatpush1.msra.mxu0 0.0
          %1351 = vmatprep.subr.mxu0 0.0
          %1352 = vmatpush1.msra.mxu0 0.0
          %1353 = vmatprep.subr.mxu0 0.0
          %1354 = vmatpush1.msra.mxu0 0.0
          %1355 = vmatprep.subr.mxu0 0.0
          %1356 = vmatpush1.msra.mxu0 0.0
          %1357 = vmatprep.subr.mxu0 0.0
          %1358 = vmatpush1.msra.mxu0 0.0
          %1359 = vmatprep.subr.mxu0 0.0
          %1360 = vmatpush1.msra.mxu0 0.0
          %1361 = vmatprep.subr.mxu0 0.0
          %1362 = vmatpush1.msra.mxu0 0.0
          %1363 = vmatprep.subr.mxu0 0.0
          %1364 = vmatpush1.msra.mxu0 0.0
          %1365 = vmatprep.subr.mxu0 0.0
          %1366 = vmatpush1.msra.mxu0 0.0
          %1367 = vmatprep.subr.mxu0 0.0
          %1368 = vmatpush1.msra.mxu0 0.0
          %1369 = vmatprep.subr.mxu0 0.0
          %1370 = vmatpush1.msra.mxu0 0.0
          %1371 = vmatprep.subr.mxu0 0.0
          %1372 = vmatpush1.msra.mxu0 0.0
          %1373 = vmatprep.subr.mxu0 0.0
          %1374 = vmatpush1.msra.mxu0 0.0
          %1375 = vmatprep.subr.mxu0 0.0
          %1376 = vmatpush1.msra.mxu0 0.0
          %1377 = vmatprep.subr.mxu0 0.0
          %1378 = vmatpush1.msra.mxu0 0.0
          %1379 = vmatprep.subr.mxu0 0.0
          %1380 = vmatpush1.msra.mxu0 0.0
          %1381 = vmatprep.subr.mxu0 0.0
          %1382 = vmatpush1.msra.mxu0 0.0
          %1383 = vmatprep.subr.mxu0 0.0
          %1384 = vmatpush1.msra.mxu0 0.0
          %1385 = vmatprep.subr.mxu0 0.0
          %1386 = vmatpush1.msra.mxu0 0.0
          %1387 = vmatprep.subr.mxu0 0.0
          %1388 = vmatpush1.msra.mxu0 0.0
          %1389 = vmatprep.subr.mxu0 0.0
          %1390 = vmatpush1.msra.mxu0 0.0
          %1391 = vmatprep.subr.mxu0 0.0
          %1392 = vmatpush1.msra.mxu0 0.0
          %1393 = vmatprep.subr.mxu0 0.0
          %1394 = vmatpush1.msra.mxu0 0.0
          %1395 = vmatprep.subr.mxu0 0.0
          %1396 = vmatpush1.msra.mxu0 0.0
          %1397 = vmatprep.subr.mxu0 0.0
          %1398 = vmatpush1.msra.mxu0 0.0
          %1399 = vmatprep.subr.mxu0 0.0
          %1400 = vmatpush1.msra.mxu0 0.0
          %1401 = vmatprep.subr.mxu0 0.0
          %1402 = vmatpush1.msra.mxu0 0.0
          %1403 = vmatprep.mubr.f32.mxu0 0.0
          %1404 = vmatmul.mubr.f32.gmra.mrb[0].mxu0 %v1257
          %v1405 = vpop.f32.mrb[0].mxu0
          %v1406 = vadd.f32 %v1248, %v1405
          %v1407 = vpop.f32.mrb[0].mxu0
          %1408 = vmatprep.mubr.f32.mxu0 0.0
          %1409 = vmatmul.mubr.f32.gmra.mrb[0].mxu0 %v1260
          %v1410 = vpop.f32.mrb[0].mxu0
          %v1411 = vadd.f32 %v1253, %v1410
          %v1412 = vpop.f32.mrb[0].mxu0
          %1413 = vdwg.mxu0
          %1414 = vrot.lane.b32.xlu0 %v1069, 127
          %v1415 = vpop.permute.xlu0 %1414
          %1416 = vrot.lane.b32.xlu0 %v1072, 127
          %v1417 = vpop.permute.xlu0 %1416
          %1418 = vrot.lane.b32.xlu0 %v1070, 127
          %v1419 = vpop.permute.xlu0 %1418
          %1420 = vrot.lane.b32.xlu0 %v1073, 127
          %v1421 = vpop.permute.xlu0 %1420
          %1422 = vrot.lane.b32.xlu0 %v1071, 127
          %v1423 = vpop.permute.xlu0 %1422
          %1424 = vrot.lane.b32.xlu0 %v1074, 127
          %v1425 = vpop.permute.xlu0 %1424
          %v1426 = vsel %vm871, %v1419, %v1423
          %v1427 = vsel %vm871, %v1421, %v1425
          %v1428 = vsel %vm871, %v1415, %v1419
          %v1429 = vsel %vm871, %v1417, %v1421
          %v1430 = vsel %vm871, %v1423, %v1415
          %v1431 = vsel %vm871, %v1425, %v1417
          %s1432 = scalar_lea.vmem %s5, 32
          %v1433 = vld [vmem:[%s1432] sm:$0xff]
          %v1434 = vld [vmem:[%s1432 + $0x8] sm:$0xff]
          %v1436 = vsel %vm542, %v1433, 0
          %v1439 = vsel %vm542, %v1434, 0
          %1441 = vmatprep.subr.mxu0 %v1426
          %1442 = vmatpush1.msra.mxu0 %v1428
          %1443 = vmatprep.subr.mxu0 %v1427
          %1444 = vmatpush1.msra.mxu0 %v1429
          %1445 = vmatprep.subr.mxu0 0.0
          %1446 = vmatpush1.msra.mxu0 0.0
          %1447 = vmatprep.subr.mxu0 0.0
          %1448 = vmatpush1.msra.mxu0 0.0
          %1449 = vmatprep.subr.mxu0 0.0
          %1450 = vmatpush1.msra.mxu0 0.0
          %1451 = vmatprep.subr.mxu0 0.0
          %1452 = vmatpush1.msra.mxu0 0.0
          %1453 = vmatprep.subr.mxu0 0.0
          %1454 = vmatpush1.msra.mxu0 0.0
          %1455 = vmatprep.subr.mxu0 0.0
          %1456 = vmatpush1.msra.mxu0 0.0
          %1457 = vmatprep.subr.mxu0 0.0
          %1458 = vmatpush1.msra.mxu0 0.0
          %1459 = vmatprep.subr.mxu0 0.0
          %1460 = vmatpush1.msra.mxu0 0.0
          %1461 = vmatprep.subr.mxu0 0.0
          %1462 = vmatpush1.msra.mxu0 0.0
          %1463 = vmatprep.subr.mxu0 0.0
          %1464 = vmatpush1.msra.mxu0 0.0
          %1465 = vmatprep.subr.mxu0 0.0
          %1466 = vmatpush1.msra.mxu0 0.0
          %1467 = vmatprep.subr.mxu0 0.0
          %1468 = vmatpush1.msra.mxu0 0.0
          %1469 = vmatprep.subr.mxu0 0.0
          %1470 = vmatpush1.msra.mxu0 0.0
          %1471 = vmatprep.subr.mxu0 0.0
          %1472 = vmatpush1.msra.mxu0 0.0
          %1473 = vmatprep.subr.mxu0 0.0
          %1474 = vmatpush1.msra.mxu0 0.0
          %1475 = vmatprep.subr.mxu0 0.0
          %1476 = vmatpush1.msra.mxu0 0.0
          %1477 = vmatprep.subr.mxu0 0.0
          %1478 = vmatpush1.msra.mxu0 0.0
          %1479 = vmatprep.subr.mxu0 0.0
          %1480 = vmatpush1.msra.mxu0 0.0
          %1481 = vmatprep.subr.mxu0 0.0
          %1482 = vmatpush1.msra.mxu0 0.0
          %1483 = vmatprep.subr.mxu0 0.0
          %1484 = vmatpush1.msra.mxu0 0.0
          %1485 = vmatprep.subr.mxu0 0.0
          %1486 = vmatpush1.msra.mxu0 0.0
          %1487 = vmatprep.subr.mxu0 0.0
          %1488 = vmatpush1.msra.mxu0 0.0
          %1489 = vmatprep.subr.mxu0 0.0
          %1490 = vmatpush1.msra.mxu0 0.0
          %1491 = vmatprep.subr.mxu0 0.0
          %1492 = vmatpush1.msra.mxu0 0.0
          %1493 = vmatprep.subr.mxu0 0.0
          %1494 = vmatpush1.msra.mxu0 0.0
          %1495 = vmatprep.subr.mxu0 0.0
          %1496 = vmatpush1.msra.mxu0 0.0
          %1497 = vmatprep.subr.mxu0 0.0
          %1498 = vmatpush1.msra.mxu0 0.0
          %1499 = vmatprep.subr.mxu0 0.0
          %1500 = vmatpush1.msra.mxu0 0.0
          %1501 = vmatprep.subr.mxu0 0.0
          %1502 = vmatpush1.msra.mxu0 0.0
          %1503 = vmatprep.subr.mxu0 0.0
          %1504 = vmatpush1.msra.mxu0 0.0
          %1505 = vmatprep.mubr.f32.mxu0 0.0
          %1506 = vmatmul.mubr.f32.gmra.mrb[0].mxu0 %v1436
          %v1507 = vpop.f32.mrb[0].mxu0
          %v1508 = vadd.f32 0.0, %v1507
          %v1509 = vpop.f32.mrb[0].mxu0
          %v1510 = vadd.f32 0.0, %v1509
          %1511 = vmatprep.mubr.f32.mxu0 0.0
          %1512 = vmatmul.mubr.f32.gmra.mrb[0].mxu0 %v1439
          %v1513 = vpop.f32.mrb[0].mxu0
          %v1514 = vadd.f32 0.0, %v1513
          %v1515 = vpop.f32.mrb[0].mxu0
          %v1516 = vadd.f32 0.0, %v1515
          %1517 = vdwg.mxu0
          %1518 = vmatprep.subr.mxu0 0.0
          %1519 = vmatpush1.msra.mxu0 %v1430
          %1520 = vmatprep.subr.mxu0 0.0
          %1521 = vmatpush1.msra.mxu0 %v1431
          %1522 = vmatprep.subr.mxu0 0.0
          %1523 = vmatpush1.msra.mxu0 0.0
          %1524 = vmatprep.subr.mxu0 0.0
          %1525 = vmatpush1.msra.mxu0 0.0
          %1526 = vmatprep.subr.mxu0 0.0
          %1527 = vmatpush1.msra.mxu0 0.0
          %1528 = vmatprep.subr.mxu0 0.0
          %1529 = vmatpush1.msra.mxu0 0.0
          %1530 = vmatprep.subr.mxu0 0.0
          %1531 = vmatpush1.msra.mxu0 0.0
          %1532 = vmatprep.subr.mxu0 0.0
          %1533 = vmatpush1.msra.mxu0 0.0
          %1534 = vmatprep.subr.mxu0 0.0
          %1535 = vmatpush1.msra.mxu0 0.0
          %1536 = vmatprep.subr.mxu0 0.0
          %1537 = vmatpush1.msra.mxu0 0.0
          %1538 = vmatprep.subr.mxu0 0.0
          %1539 = vmatpush1.msra.mxu0 0.0
          %1540 = vmatprep.subr.mxu0 0.0
          %1541 = vmatpush1.msra.mxu0 0.0
          %1542 = vmatprep.subr.mxu0 0.0
          %1543 = vmatpush1.msra.mxu0 0.0
          %1544 = vmatprep.subr.mxu0 0.0
          %1545 = vmatpush1.msra.mxu0 0.0
          %1546 = vmatprep.subr.mxu0 0.0
          %1547 = vmatpush1.msra.mxu0 0.0
          %1548 = vmatprep.subr.mxu0 0.0
          %1549 = vmatpush1.msra.mxu0 0.0
          %1550 = vmatprep.subr.mxu0 0.0
          %1551 = vmatpush1.msra.mxu0 0.0
          %1552 = vmatprep.subr.mxu0 0.0
          %1553 = vmatpush1.msra.mxu0 0.0
          %1554 = vmatprep.subr.mxu0 0.0
          %1555 = vmatpush1.msra.mxu0 0.0
          %1556 = vmatprep.subr.mxu0 0.0
          %1557 = vmatpush1.msra.mxu0 0.0
          %1558 = vmatprep.subr.mxu0 0.0
          %1559 = vmatpush1.msra.mxu0 0.0
          %1560 = vmatprep.subr.mxu0 0.0
          %1561 = vmatpush1.msra.mxu0 0.0
          %1562 = vmatprep.subr.mxu0 0.0
          %1563 = vmatpush1.msra.mxu0 0.0
          %1564 = vmatprep.subr.mxu0 0.0
          %1565 = vmatpush1.msra.mxu0 0.0
          %1566 = vmatprep.subr.mxu0 0.0
          %1567 = vmatpush1.msra.mxu0 0.0
          %1568 = vmatprep.subr.mxu0 0.0
          %1569 = vmatpush1.msra.mxu0 0.0
          %1570 = vmatprep.subr.mxu0 0.0
          %1571 = vmatpush1.msra.mxu0 0.0
          %1572 = vmatprep.subr.mxu0 0.0
          %1573 = vmatpush1.msra.mxu0 0.0
          %1574 = vmatprep.subr.mxu0 0.0
          %1575 = vmatpush1.msra.mxu0 0.0
          %1576 = vmatprep.subr.mxu0 0.0
          %1577 = vmatpush1.msra.mxu0 0.0
          %1578 = vmatprep.subr.mxu0 0.0
          %1579 = vmatpush1.msra.mxu0 0.0
          %1580 = vmatprep.subr.mxu0 0.0
          %1581 = vmatpush1.msra.mxu0 0.0
          %1582 = vmatprep.mubr.f32.mxu0 0.0
          %1583 = vmatmul.mubr.f32.gmra.mrb[0].mxu0 %v1436
          %v1584 = vpop.f32.mrb[0].mxu0
          %v1585 = vadd.f32 0.0, %v1584
          %v1586 = vpop.f32.mrb[0].mxu0
          %1587 = vmatprep.mubr.f32.mxu0 0.0
          %1588 = vmatmul.mubr.f32.gmra.mrb[0].mxu0 %v1439
          %v1589 = vpop.f32.mrb[0].mxu0
          %v1590 = vadd.f32 0.0, %v1589
          %v1591 = vpop.f32.mrb[0].mxu0
          %1592 = vdwg.mxu0
          %v1593 = vadd.f32 %v1329, %v1508
          %v1594 = vadd.f32 %v1331, %v1510
          %v1595 = vadd.f32 %v1406, %v1585
          %v1596 = vadd.f32 %v1335, %v1514
          %v1597 = vadd.f32 %v1337, %v1516
          %v1598 = vadd.f32 %v1411, %v1590
          %v1599 = vld [vmem:[%s6] sm:$0xff]
          %v1600 = vld [vmem:[%s6 + $0x8] sm:$0xff]
          %1602 = vset.pattern.permute.xlu0 0
          %1603 = vperm.xlu0 %1602, %v1599
          %v1604 = vpop.permute.xlu0 %1603
          %1607 = vset.pattern.permute.xlu0 0
          %1608 = vperm.xlu0 %1607, %v1600
          %v1609 = vpop.permute.xlu0 %1608
          %v1611 = vadd.f32 %v1593, %v1604
          %v1612 = vadd.f32 %v1594, %v1604
          %v1613 = vadd.f32 %v1595, %v1604
          %v1614 = vadd.f32 %v1596, %v1609
          %v1615 = vadd.f32 %v1597, %v1609
          %v1616 = vadd.f32 %v1598, %v1609
          %v1617 = vadd.f32 %v498, %v1611
          %v1618 = vadd.f32 %v499, %v1612
          %v1619 = vadd.f32 %v500, %v1613
          %v1620 = vadd.f32 %v501, %v1614
          %v1621 = vadd.f32 %v502, %v1615
          %v1622 = vadd.f32 %v503, %v1616
          %1623 = vst [vmem:[#allocation2] sm:$0xff] %v1617
          %1624 = vst [vmem:[#allocation2 + $0x8] sm:$0xff] %v1618
          %1625 = vst [vmem:[#allocation2 + $0x10] sm:$0xff] %v1619
          %1626 = vst [vmem:[#allocation2 + $0x18] sm:$0xff] %v1620
          %1627 = vst [vmem:[#allocation2 + $0x20] sm:$0xff] %v1621
          %1628 = vst [vmem:[#allocation2 + $0x28] sm:$0xff] %v1622
          %v1629 = vld [vmem:[#allocation2] sm:$0xff]
          %v1630 = vld [vmem:[#allocation2 + $0x8] sm:$0xff]
          %v1631 = vld [vmem:[#allocation2 + $0x10] sm:$0xff]
          %v1632 = vld [vmem:[#allocation2 + $0x18] sm:$0xff]
          %v1633 = vld [vmem:[#allocation2 + $0x20] sm:$0xff]
          %v1634 = vld [vmem:[#allocation2 + $0x28] sm:$0xff]
          %v1635 = vmul.f32 %v1629, 0.1
          %v1636 = vmul.f32 %v1630, 0.1
          %v1637 = vmul.f32 %v1631, 0.1
          %v1638 = vmul.f32 %v1632, 0.1
          %v1639 = vmul.f32 %v1633, 0.1
          %v1640 = vmul.f32 %v1634, 0.1
          %v1641 = vmax.f32 %v1629, %v1635
          %v1642 = vmax.f32 %v1630, %v1636
          %v1643 = vmax.f32 %v1631, %v1637
          %v1644 = vmax.f32 %v1632, %v1638
          %v1645 = vmax.f32 %v1633, %v1639
          %v1646 = vmax.f32 %v1634, %v1640
          %1647 = vrot.lane.b32.xlu0 %v1641, 3
          %v1648 = vpop.permute.xlu0 %1647
          %1649 = vrot.lane.b32.xlu0 %v1644, 3
          %v1650 = vpop.permute.xlu0 %1649
          %1651 = vrot.lane.b32.xlu0 %v1642, 3
          %v1652 = vpop.permute.xlu0 %1651
          %1653 = vrot.lane.b32.xlu0 %v1645, 3
          %v1654 = vpop.permute.xlu0 %1653
          %1655 = vrot.lane.b32.xlu0 %v1643, 3
          %v1656 = vpop.permute.xlu0 %1655
          %1657 = vrot.lane.b32.xlu0 %v1646, 3
          %v1658 = vpop.permute.xlu0 %1657
          %vm1659 = vcmp.lt.s32.totalorder %v529, 3
          %v1660 = vsel %vm1659, %v1652, %v1656
          %v1661 = vsel %vm1659, %v1654, %v1658
          %v1662 = vsel %vm1659, %v1648, %v1652
          %v1663 = vsel %vm1659, %v1650, %v1654
          %v1664 = vsel %vm1659, %v1656, %v1648
          %v1665 = vsel %vm1659, %v1658, %v1650
          %s1666 = scalar_lea.vmem %s3, 48
          %v1667 = vld [vmem:[%s1666] sm:$0xff]
          %v1668 = vld [vmem:[%s1666 + $0x8] sm:$0xff]
          %s1669 = scalar_lea.vmem %s3, 64
          %v1670 = vld [vmem:[%s1669] sm:$0xff]
          %v1671 = vld [vmem:[%s1669 + $0x8] sm:$0xff]
          %v1673 = vsel %vm542, %v1670, 0
          %v1676 = vsel %vm542, %v1671, 0
          %1678 = vmatprep.subr.mxu0 %v1642
          %1679 = vmatpush1.msra.mxu0 %v1641
          %1680 = vmatprep.subr.mxu0 %v1645
          %1681 = vmatpush1.msra.mxu0 %v1644
          %1682 = vmatprep.subr.mxu0 0.0
          %1683 = vmatpush1.msra.mxu0 0.0
          %1684 = vmatprep.subr.mxu0 0.0
          %1685 = vmatpush1.msra.mxu0 0.0
          %1686 = vmatprep.subr.mxu0 0.0
          %1687 = vmatpush1.msra.mxu0 0.0
          %1688 = vmatprep.subr.mxu0 0.0
          %1689 = vmatpush1.msra.mxu0 0.0
          %1690 = vmatprep.subr.mxu0 0.0
          %1691 = vmatpush1.msra.mxu0 0.0
          %1692 = vmatprep.subr.mxu0 0.0
          %1693 = vmatpush1.msra.mxu0 0.0
          %1694 = vmatprep.subr.mxu0 0.0
          %1695 = vmatpush1.msra.mxu0 0.0
          %1696 = vmatprep.subr.mxu0 0.0
          %1697 = vmatpush1.msra.mxu0 0.0
          %1698 = vmatprep.subr.mxu0 0.0
          %1699 = vmatpush1.msra.mxu0 0.0
          %1700 = vmatprep.subr.mxu0 0.0
          %1701 = vmatpush1.msra.mxu0 0.0
          %1702 = vmatprep.subr.mxu0 0.0
          %1703 = vmatpush1.msra.mxu0 0.0
          %1704 = vmatprep.subr.mxu0 0.0
          %1705 = vmatpush1.msra.mxu0 0.0
          %1706 = vmatprep.subr.mxu0 0.0
          %1707 = vmatpush1.msra.mxu0 0.0
          %1708 = vmatprep.subr.mxu0 0.0
          %1709 = vmatpush1.msra.mxu0 0.0
          %1710 = vmatprep.subr.mxu0 0.0
          %1711 = vmatpush1.msra.mxu0 0.0
          %1712 = vmatprep.subr.mxu0 0.0
          %1713 = vmatpush1.msra.mxu0 0.0
          %1714 = vmatprep.subr.mxu0 0.0
          %1715 = vmatpush1.msra.mxu0 0.0
          %1716 = vmatprep.subr.mxu0 0.0
          %1717 = vmatpush1.msra.mxu0 0.0
          %1718 = vmatprep.subr.mxu0 0.0
          %1719 = vmatpush1.msra.mxu0 0.0
          %1720 = vmatprep.subr.mxu0 0.0
          %1721 = vmatpush1.msra.mxu0 0.0
          %1722 = vmatprep.subr.mxu0 0.0
          %1723 = vmatpush1.msra.mxu0 0.0
          %1724 = vmatprep.subr.mxu0 0.0
          %1725 = vmatpush1.msra.mxu0 0.0
          %1726 = vmatprep.subr.mxu0 0.0
          %1727 = vmatpush1.msra.mxu0 0.0
          %1728 = vmatprep.subr.mxu0 0.0
          %1729 = vmatpush1.msra.mxu0 0.0
          %1730 = vmatprep.subr.mxu0 0.0
          %1731 = vmatpush1.msra.mxu0 0.0
          %1732 = vmatprep.subr.mxu0 0.0
          %1733 = vmatpush1.msra.mxu0 0.0
          %1734 = vmatprep.subr.mxu0 0.0
          %1735 = vmatpush1.msra.mxu0 0.0
          %1736 = vmatprep.subr.mxu0 0.0
          %1737 = vmatpush1.msra.mxu0 0.0
          %1738 = vmatprep.subr.mxu0 0.0
          %1739 = vmatpush1.msra.mxu0 0.0
          %1740 = vmatprep.subr.mxu0 0.0
          %1741 = vmatpush1.msra.mxu0 0.0
          %1742 = vmatprep.mubr.f32.mxu0 0.0
          %1743 = vmatmul.mubr.f32.gmra.mrb[0].mxu0 %v1673
          %v1744 = vpop.f32.mrb[0].mxu0
          %v1745 = vadd.f32 0.0, %v1744
          %v1746 = vpop.f32.mrb[0].mxu0
          %v1747 = vadd.f32 0.0, %v1746
          %1748 = vmatprep.mubr.f32.mxu0 0.0
          %1749 = vmatmul.mubr.f32.gmra.mrb[0].mxu0 %v1676
          %v1750 = vpop.f32.mrb[0].mxu0
          %v1751 = vadd.f32 0.0, %v1750
          %v1752 = vpop.f32.mrb[0].mxu0
          %v1753 = vadd.f32 0.0, %v1752
          %1754 = vdwg.mxu0
          %1755 = vmatprep.subr.mxu0 0.0
          %1756 = vmatpush1.msra.mxu0 %v1643
          %1757 = vmatprep.subr.mxu0 0.0
          %1758 = vmatpush1.msra.mxu0 %v1646
          %1759 = vmatprep.subr.mxu0 0.0
          %1760 = vmatpush1.msra.mxu0 0.0
          %1761 = vmatprep.subr.mxu0 0.0
          %1762 = vmatpush1.msra.mxu0 0.0
          %1763 = vmatprep.subr.mxu0 0.0
          %1764 = vmatpush1.msra.mxu0 0.0
          %1765 = vmatprep.subr.mxu0 0.0
          %1766 = vmatpush1.msra.mxu0 0.0
          %1767 = vmatprep.subr.mxu0 0.0
          %1768 = vmatpush1.msra.mxu0 0.0
          %1769 = vmatprep.subr.mxu0 0.0
          %1770 = vmatpush1.msra.mxu0 0.0
          %1771 = vmatprep.subr.mxu0 0.0
          %1772 = vmatpush1.msra.mxu0 0.0
          %1773 = vmatprep.subr.mxu0 0.0
          %1774 = vmatpush1.msra.mxu0 0.0
          %1775 = vmatprep.subr.mxu0 0.0
          %1776 = vmatpush1.msra.mxu0 0.0
          %1777 = vmatprep.subr.mxu0 0.0
          %1778 = vmatpush1.msra.mxu0 0.0
          %1779 = vmatprep.subr.mxu0 0.0
          %1780 = vmatpush1.msra.mxu0 0.0
          %1781 = vmatprep.subr.mxu0 0.0
          %1782 = vmatpush1.msra.mxu0 0.0
          %1783 = vmatprep.subr.mxu0 0.0
          %1784 = vmatpush1.msra.mxu0 0.0
          %1785 = vmatprep.subr.mxu0 0.0
          %1786 = vmatpush1.msra.mxu0 0.0
          %1787 = vmatprep.subr.mxu0 0.0
          %1788 = vmatpush1.msra.mxu0 0.0
          %1789 = vmatprep.subr.mxu0 0.0
          %1790 = vmatpush1.msra.mxu0 0.0
          %1791 = vmatprep.subr.mxu0 0.0
          %1792 = vmatpush1.msra.mxu0 0.0
          %1793 = vmatprep.subr.mxu0 0.0
          %1794 = vmatpush1.msra.mxu0 0.0
          %1795 = vmatprep.subr.mxu0 0.0
          %1796 = vmatpush1.msra.mxu0 0.0
          %1797 = vmatprep.subr.mxu0 0.0
          %1798 = vmatpush1.msra.mxu0 0.0
          %1799 = vmatprep.subr.mxu0 0.0
          %1800 = vmatpush1.msra.mxu0 0.0
          %1801 = vmatprep.subr.mxu0 0.0
          %1802 = vmatpush1.msra.mxu0 0.0
          %1803 = vmatprep.subr.mxu0 0.0
          %1804 = vmatpush1.msra.mxu0 0.0
          %1805 = vmatprep.subr.mxu0 0.0
          %1806 = vmatpush1.msra.mxu0 0.0
          %1807 = vmatprep.subr.mxu0 0.0
          %1808 = vmatpush1.msra.mxu0 0.0
          %1809 = vmatprep.subr.mxu0 0.0
          %1810 = vmatpush1.msra.mxu0 0.0
          %1811 = vmatprep.subr.mxu0 0.0
          %1812 = vmatpush1.msra.mxu0 0.0
          %1813 = vmatprep.subr.mxu0 0.0
          %1814 = vmatpush1.msra.mxu0 0.0
          %1815 = vmatprep.subr.mxu0 0.0
          %1816 = vmatpush1.msra.mxu0 0.0
          %1817 = vmatprep.subr.mxu0 0.0
          %1818 = vmatpush1.msra.mxu0 0.0
          %1819 = vmatprep.mubr.f32.mxu0 0.0
          %1820 = vmatmul.mubr.f32.gmra.mrb[0].mxu0 %v1673
          %v1821 = vpop.f32.mrb[0].mxu0
          %v1822 = vadd.f32 0.0, %v1821
          %v1823 = vpop.f32.mrb[0].mxu0
          %1824 = vmatprep.mubr.f32.mxu0 0.0
          %1825 = vmatmul.mubr.f32.gmra.mrb[0].mxu0 %v1676
          %v1826 = vpop.f32.mrb[0].mxu0
          %v1827 = vadd.f32 0.0, %v1826
          %v1828 = vpop.f32.mrb[0].mxu0
          %1829 = vdwg.mxu0
          %v1831 = vsel %vm542, %v1667, 0
          %v1834 = vsel %vm542, %v1668, 0
          %1836 = vmatprep.subr.mxu0 %v1662
          %1837 = vmatpush1.msra.mxu0 %v1664
          %1838 = vmatprep.subr.mxu0 %v1663
          %1839 = vmatpush1.msra.mxu0 %v1665
          %1840 = vmatprep.subr.mxu0 0.0
          %1841 = vmatpush1.msra.mxu0 0.0
          %1842 = vmatprep.subr.mxu0 0.0
          %1843 = vmatpush1.msra.mxu0 0.0
          %1844 = vmatprep.subr.mxu0 0.0
          %1845 = vmatpush1.msra.mxu0 0.0
          %1846 = vmatprep.subr.mxu0 0.0
          %1847 = vmatpush1.msra.mxu0 0.0
          %1848 = vmatprep.subr.mxu0 0.0
          %1849 = vmatpush1.msra.mxu0 0.0
          %1850 = vmatprep.subr.mxu0 0.0
          %1851 = vmatpush1.msra.mxu0 0.0
          %1852 = vmatprep.subr.mxu0 0.0
          %1853 = vmatpush1.msra.mxu0 0.0
          %1854 = vmatprep.subr.mxu0 0.0
          %1855 = vmatpush1.msra.mxu0 0.0
          %1856 = vmatprep.subr.mxu0 0.0
          %1857 = vmatpush1.msra.mxu0 0.0
          %1858 = vmatprep.subr.mxu0 0.0
          %1859 = vmatpush1.msra.mxu0 0.0
          %1860 = vmatprep.subr.mxu0 0.0
          %1861 = vmatpush1.msra.mxu0 0.0
          %1862 = vmatprep.subr.mxu0 0.0
          %1863 = vmatpush1.msra.mxu0 0.0
          %1864 = vmatprep.subr.mxu0 0.0
          %1865 = vmatpush1.msra.mxu0 0.0
          %1866 = vmatprep.subr.mxu0 0.0
          %1867 = vmatpush1.msra.mxu0 0.0
          %1868 = vmatprep.subr.mxu0 0.0
          %1869 = vmatpush1.msra.mxu0 0.0
          %1870 = vmatprep.subr.mxu0 0.0
          %1871 = vmatpush1.msra.mxu0 0.0
          %1872 = vmatprep.subr.mxu0 0.0
          %1873 = vmatpush1.msra.mxu0 0.0
          %1874 = vmatprep.subr.mxu0 0.0
          %1875 = vmatpush1.msra.mxu0 0.0
          %1876 = vmatprep.subr.mxu0 0.0
          %1877 = vmatpush1.msra.mxu0 0.0
          %1878 = vmatprep.subr.mxu0 0.0
          %1879 = vmatpush1.msra.mxu0 0.0
          %1880 = vmatprep.subr.mxu0 0.0
          %1881 = vmatpush1.msra.mxu0 0.0
          %1882 = vmatprep.subr.mxu0 0.0
          %1883 = vmatpush1.msra.mxu0 0.0
          %1884 = vmatprep.subr.mxu0 0.0
          %1885 = vmatpush1.msra.mxu0 0.0
          %1886 = vmatprep.subr.mxu0 0.0
          %1887 = vmatpush1.msra.mxu0 0.0
          %1888 = vmatprep.subr.mxu0 0.0
          %1889 = vmatpush1.msra.mxu0 0.0
          %1890 = vmatprep.subr.mxu0 0.0
          %1891 = vmatpush1.msra.mxu0 0.0
          %1892 = vmatprep.subr.mxu0 0.0
          %1893 = vmatpush1.msra.mxu0 0.0
          %1894 = vmatprep.subr.mxu0 0.0
          %1895 = vmatpush1.msra.mxu0 0.0
          %1896 = vmatprep.subr.mxu0 0.0
          %1897 = vmatpush1.msra.mxu0 0.0
          %1898 = vmatprep.subr.mxu0 0.0
          %1899 = vmatpush1.msra.mxu0 0.0
          %1900 = vmatprep.mubr.f32.mxu0 0.0
          %1901 = vmatmul.mubr.f32.gmra.mrb[0].mxu0 %v1831
          %v1902 = vpop.f32.mrb[0].mxu0
          %v1903 = vadd.f32 %v1745, %v1902
          %v1904 = vpop.f32.mrb[0].mxu0
          %v1905 = vadd.f32 %v1747, %v1904
          %1906 = vmatprep.mubr.f32.mxu0 0.0
          %1907 = vmatmul.mubr.f32.gmra.mrb[0].mxu0 %v1834
          %v1908 = vpop.f32.mrb[0].mxu0
          %v1909 = vadd.f32 %v1751, %v1908
          %v1910 = vpop.f32.mrb[0].mxu0
          %v1911 = vadd.f32 %v1753, %v1910
          %1912 = vdwg.mxu0
          %1913 = vmatprep.subr.mxu0 0.0
          %1914 = vmatpush1.msra.mxu0 %v1660
          %1915 = vmatprep.subr.mxu0 0.0
          %1916 = vmatpush1.msra.mxu0 %v1661
          %1917 = vmatprep.subr.mxu0 0.0
          %1918 = vmatpush1.msra.mxu0 0.0
          %1919 = vmatprep.subr.mxu0 0.0
          %1920 = vmatpush1.msra.mxu0 0.0
          %1921 = vmatprep.subr.mxu0 0.0
          %1922 = vmatpush1.msra.mxu0 0.0
          %1923 = vmatprep.subr.mxu0 0.0
          %1924 = vmatpush1.msra.mxu0 0.0
          %1925 = vmatprep.subr.mxu0 0.0
          %1926 = vmatpush1.msra.mxu0 0.0
          %1927 = vmatprep.subr.mxu0 0.0
          %1928 = vmatpush1.msra.mxu0 0.0
          %1929 = vmatprep.subr.mxu0 0.0
          %1930 = vmatpush1.msra.mxu0 0.0
          %1931 = vmatprep.subr.mxu0 0.0
          %1932 = vmatpush1.msra.mxu0 0.0
          %1933 = vmatprep.subr.mxu0 0.0
          %1934 = vmatpush1.msra.mxu0 0.0
          %1935 = vmatprep.subr.mxu0 0.0
          %1936 = vmatpush1.msra.mxu0 0.0
          %1937 = vmatprep.subr.mxu0 0.0
          %1938 = vmatpush1.msra.mxu0 0.0
          %1939 = vmatprep.subr.mxu0 0.0
          %1940 = vmatpush1.msra.mxu0 0.0
          %1941 = vmatprep.subr.mxu0 0.0
          %1942 = vmatpush1.msra.mxu0 0.0
          %1943 = vmatprep.subr.mxu0 0.0
          %1944 = vmatpush1.msra.mxu0 0.0
          %1945 = vmatprep.subr.mxu0 0.0
          %1946 = vmatpush1.msra.mxu0 0.0
          %1947 = vmatprep.subr.mxu0 0.0
          %1948 = vmatpush1.msra.mxu0 0.0
          %1949 = vmatprep.subr.mxu0 0.0
          %1950 = vmatpush1.msra.mxu0 0.0
          %1951 = vmatprep.subr.mxu0 0.0
          %1952 = vmatpush1.msra.mxu0 0.0
          %1953 = vmatprep.subr.mxu0 0.0
          %1954 = vmatpush1.msra.mxu0 0.0
          %1955 = vmatprep.subr.mxu0 0.0
          %1956 = vmatpush1.msra.mxu0 0.0
          %1957 = vmatprep.subr.mxu0 0.0
          %1958 = vmatpush1.msra.mxu0 0.0
          %1959 = vmatprep.subr.mxu0 0.0
          %1960 = vmatpush1.msra.mxu0 0.0
          %1961 = vmatprep.subr.mxu0 0.0
          %1962 = vmatpush1.msra.mxu0 0.0
          %1963 = vmatprep.subr.mxu0 0.0
          %1964 = vmatpush1.msra.mxu0 0.0
          %1965 = vmatprep.subr.mxu0 0.0
          %1966 = vmatpush1.msra.mxu0 0.0
          %1967 = vmatprep.subr.mxu0 0.0
          %1968 = vmatpush1.msra.mxu0 0.0
          %1969 = vmatprep.subr.mxu0 0.0
          %1970 = vmatpush1.msra.mxu0 0.0
          %1971 = vmatprep.subr.mxu0 0.0
          %1972 = vmatpush1.msra.mxu0 0.0
          %1973 = vmatprep.subr.mxu0 0.0
          %1974 = vmatpush1.msra.mxu0 0.0
          %1975 = vmatprep.subr.mxu0 0.0
          %1976 = vmatpush1.msra.mxu0 0.0
          %1977 = vmatprep.mubr.f32.mxu0 0.0
          %1978 = vmatmul.mubr.f32.gmra.mrb[0].mxu0 %v1831
          %v1979 = vpop.f32.mrb[0].mxu0
          %v1980 = vadd.f32 %v1822, %v1979
          %v1981 = vpop.f32.mrb[0].mxu0
          %1982 = vmatprep.mubr.f32.mxu0 0.0
          %1983 = vmatmul.mubr.f32.gmra.mrb[0].mxu0 %v1834
          %v1984 = vpop.f32.mrb[0].mxu0
          %v1985 = vadd.f32 %v1827, %v1984
          %v1986 = vpop.f32.mrb[0].mxu0
          %1987 = vdwg.mxu0
          %1988 = vrot.lane.b32.xlu0 %v1641, 125
          %v1989 = vpop.permute.xlu0 %1988
          %1990 = vrot.lane.b32.xlu0 %v1644, 125
          %v1991 = vpop.permute.xlu0 %1990
          %1992 = vrot.lane.b32.xlu0 %v1642, 125
          %v1993 = vpop.permute.xlu0 %1992
          %1994 = vrot.lane.b32.xlu0 %v1645, 125
          %v1995 = vpop.permute.xlu0 %1994
          %1996 = vrot.lane.b32.xlu0 %v1643, 125
          %v1997 = vpop.permute.xlu0 %1996
          %1998 = vrot.lane.b32.xlu0 %v1646, 125
          %v1999 = vpop.permute.xlu0 %1998
          %vm2000 = vcmp.lt.s32.totalorder %v529, 125
          %v2001 = vsel %vm2000, %v1993, %v1997
          %v2002 = vsel %vm2000, %v1995, %v1999
          %v2003 = vsel %vm2000, %v1989, %v1993
          %v2004 = vsel %vm2000, %v1991, %v1995
          %v2005 = vsel %vm2000, %v1997, %v1989
          %v2006 = vsel %vm2000, %v1999, %v1991
          %s2007 = scalar_lea.vmem %s3, 80
          %v2008 = vld [vmem:[%s2007] sm:$0xff]
          %v2009 = vld [vmem:[%s2007 + $0x8] sm:$0xff]
          %v2011 = vsel %vm542, %v2008, 0
          %v2014 = vsel %vm542, %v2009, 0
          %2016 = vmatprep.subr.mxu0 %v2001
          %2017 = vmatpush1.msra.mxu0 %v2003
          %2018 = vmatprep.subr.mxu0 %v2002
          %2019 = vmatpush1.msra.mxu0 %v2004
          %2020 = vmatprep.subr.mxu0 0.0
          %2021 = vmatpush1.msra.mxu0 0.0
          %2022 = vmatprep.subr.mxu0 0.0
          %2023 = vmatpush1.msra.mxu0 0.0
          %2024 = vmatprep.subr.mxu0 0.0
          %2025 = vmatpush1.msra.mxu0 0.0
          %2026 = vmatprep.subr.mxu0 0.0
          %2027 = vmatpush1.msra.mxu0 0.0
          %2028 = vmatprep.subr.mxu0 0.0
          %2029 = vmatpush1.msra.mxu0 0.0
          %2030 = vmatprep.subr.mxu0 0.0
          %2031 = vmatpush1.msra.mxu0 0.0
          %2032 = vmatprep.subr.mxu0 0.0
          %2033 = vmatpush1.msra.mxu0 0.0
          %2034 = vmatprep.subr.mxu0 0.0
          %2035 = vmatpush1.msra.mxu0 0.0
          %2036 = vmatprep.subr.mxu0 0.0
          %2037 = vmatpush1.msra.mxu0 0.0
          %2038 = vmatprep.subr.mxu0 0.0
          %2039 = vmatpush1.msra.mxu0 0.0
          %2040 = vmatprep.subr.mxu0 0.0
          %2041 = vmatpush1.msra.mxu0 0.0
          %2042 = vmatprep.subr.mxu0 0.0
          %2043 = vmatpush1.msra.mxu0 0.0
          %2044 = vmatprep.subr.mxu0 0.0
          %2045 = vmatpush1.msra.mxu0 0.0
          %2046 = vmatprep.subr.mxu0 0.0
          %2047 = vmatpush1.msra.mxu0 0.0
          %2048 = vmatprep.subr.mxu0 0.0
          %2049 = vmatpush1.msra.mxu0 0.0
          %2050 = vmatprep.subr.mxu0 0.0
          %2051 = vmatpush1.msra.mxu0 0.0
          %2052 = vmatprep.subr.mxu0 0.0
          %2053 = vmatpush1.msra.mxu0 0.0
          %2054 = vmatprep.subr.mxu0 0.0
          %2055 = vmatpush1.msra.mxu0 0.0
          %2056 = vmatprep.subr.mxu0 0.0
          %2057 = vmatpush1.msra.mxu0 0.0
          %2058 = vmatprep.subr.mxu0 0.0
          %2059 = vmatpush1.msra.mxu0 0.0
          %2060 = vmatprep.subr.mxu0 0.0
          %2061 = vmatpush1.msra.mxu0 0.0
          %2062 = vmatprep.subr.mxu0 0.0
          %2063 = vmatpush1.msra.mxu0 0.0
          %2064 = vmatprep.subr.mxu0 0.0
          %2065 = vmatpush1.msra.mxu0 0.0
          %2066 = vmatprep.subr.mxu0 0.0
          %2067 = vmatpush1.msra.mxu0 0.0
          %2068 = vmatprep.subr.mxu0 0.0
          %2069 = vmatpush1.msra.mxu0 0.0
          %2070 = vmatprep.subr.mxu0 0.0
          %2071 = vmatpush1.msra.mxu0 0.0
          %2072 = vmatprep.subr.mxu0 0.0
          %2073 = vmatpush1.msra.mxu0 0.0
          %2074 = vmatprep.subr.mxu0 0.0
          %2075 = vmatpush1.msra.mxu0 0.0
          %2076 = vmatprep.subr.mxu0 0.0
          %2077 = vmatpush1.msra.mxu0 0.0
          %2078 = vmatprep.subr.mxu0 0.0
          %2079 = vmatpush1.msra.mxu0 0.0
          %2080 = vmatprep.mubr.f32.mxu0 0.0
          %2081 = vmatmul.mubr.f32.gmra.mrb[0].mxu0 %v2011
          %v2082 = vpop.f32.mrb[0].mxu0
          %v2083 = vadd.f32 0.0, %v2082
          %v2084 = vpop.f32.mrb[0].mxu0
          %v2085 = vadd.f32 0.0, %v2084
          %2086 = vmatprep.mubr.f32.mxu0 0.0
          %2087 = vmatmul.mubr.f32.gmra.mrb[0].mxu0 %v2014
          %v2088 = vpop.f32.mrb[0].mxu0
          %v2089 = vadd.f32 0.0, %v2088
          %v2090 = vpop.f32.mrb[0].mxu0
          %v2091 = vadd.f32 0.0, %v2090
          %2092 = vdwg.mxu0
          %2093 = vmatprep.subr.mxu0 0.0
          %2094 = vmatpush1.msra.mxu0 %v2005
          %2095 = vmatprep.subr.mxu0 0.0
          %2096 = vmatpush1.msra.mxu0 %v2006
          %2097 = vmatprep.subr.mxu0 0.0
          %2098 = vmatpush1.msra.mxu0 0.0
          %2099 = vmatprep.subr.mxu0 0.0
          %2100 = vmatpush1.msra.mxu0 0.0
          %2101 = vmatprep.subr.mxu0 0.0
          %2102 = vmatpush1.msra.mxu0 0.0
          %2103 = vmatprep.subr.mxu0 0.0
          %2104 = vmatpush1.msra.mxu0 0.0
          %2105 = vmatprep.subr.mxu0 0.0
          %2106 = vmatpush1.msra.mxu0 0.0
          %2107 = vmatprep.subr.mxu0 0.0
          %2108 = vmatpush1.msra.mxu0 0.0
          %2109 = vmatprep.subr.mxu0 0.0
          %2110 = vmatpush1.msra.mxu0 0.0
          %2111 = vmatprep.subr.mxu0 0.0
          %2112 = vmatpush1.msra.mxu0 0.0
          %2113 = vmatprep.subr.mxu0 0.0
          %2114 = vmatpush1.msra.mxu0 0.0
          %2115 = vmatprep.subr.mxu0 0.0
          %2116 = vmatpush1.msra.mxu0 0.0
          %2117 = vmatprep.subr.mxu0 0.0
          %2118 = vmatpush1.msra.mxu0 0.0
          %2119 = vmatprep.subr.mxu0 0.0
          %2120 = vmatpush1.msra.mxu0 0.0
          %2121 = vmatprep.subr.mxu0 0.0
          %2122 = vmatpush1.msra.mxu0 0.0
          %2123 = vmatprep.subr.mxu0 0.0
          %2124 = vmatpush1.msra.mxu0 0.0
          %2125 = vmatprep.subr.mxu0 0.0
          %2126 = vmatpush1.msra.mxu0 0.0
          %2127 = vmatprep.subr.mxu0 0.0
          %2128 = vmatpush1.msra.mxu0 0.0
          %2129 = vmatprep.subr.mxu0 0.0
          %2130 = vmatpush1.msra.mxu0 0.0
          %2131 = vmatprep.subr.mxu0 0.0
          %2132 = vmatpush1.msra.mxu0 0.0
          %2133 = vmatprep.subr.mxu0 0.0
          %2134 = vmatpush1.msra.mxu0 0.0
          %2135 = vmatprep.subr.mxu0 0.0
          %2136 = vmatpush1.msra.mxu0 0.0
          %2137 = vmatprep.subr.mxu0 0.0
          %2138 = vmatpush1.msra.mxu0 0.0
          %2139 = vmatprep.subr.mxu0 0.0
          %2140 = vmatpush1.msra.mxu0 0.0
          %2141 = vmatprep.subr.mxu0 0.0
          %2142 = vmatpush1.msra.mxu0 0.0
          %2143 = vmatprep.subr.mxu0 0.0
          %2144 = vmatpush1.msra.mxu0 0.0
          %2145 = vmatprep.subr.mxu0 0.0
          %2146 = vmatpush1.msra.mxu0 0.0
          %2147 = vmatprep.subr.mxu0 0.0
          %2148 = vmatpush1.msra.mxu0 0.0
          %2149 = vmatprep.subr.mxu0 0.0
          %2150 = vmatpush1.msra.mxu0 0.0
          %2151 = vmatprep.subr.mxu0 0.0
          %2152 = vmatpush1.msra.mxu0 0.0
          %2153 = vmatprep.subr.mxu0 0.0
          %2154 = vmatpush1.msra.mxu0 0.0
          %2155 = vmatprep.subr.mxu0 0.0
          %2156 = vmatpush1.msra.mxu0 0.0
          %2157 = vmatprep.mubr.f32.mxu0 0.0
          %2158 = vmatmul.mubr.f32.gmra.mrb[0].mxu0 %v2011
          %v2159 = vpop.f32.mrb[0].mxu0
          %v2160 = vadd.f32 0.0, %v2159
          %v2161 = vpop.f32.mrb[0].mxu0
          %2162 = vmatprep.mubr.f32.mxu0 0.0
          %2163 = vmatmul.mubr.f32.gmra.mrb[0].mxu0 %v2014
          %v2164 = vpop.f32.mrb[0].mxu0
          %v2165 = vadd.f32 0.0, %v2164
          %v2166 = vpop.f32.mrb[0].mxu0
          %2167 = vdwg.mxu0
          %v2168 = vadd.f32 %v1903, %v2083
          %v2169 = vadd.f32 %v1905, %v2085
          %v2170 = vadd.f32 %v1980, %v2160
          %v2171 = vadd.f32 %v1909, %v2089
          %v2172 = vadd.f32 %v1911, %v2091
          %v2173 = vadd.f32 %v1985, %v2165
          %s2174 = scalar_lea.vmem %s4, 16
          %v2175 = vld [vmem:[%s2174] sm:$0xff]
          %v2176 = vld [vmem:[%s2174 + $0x8] sm:$0xff]
          %2178 = vset.pattern.permute.xlu0 0
          %2179 = vperm.xlu0 %2178, %v2175
          %v2180 = vpop.permute.xlu0 %2179
          %2183 = vset.pattern.permute.xlu0 0
          %2184 = vperm.xlu0 %2183, %v2176
          %v2185 = vpop.permute.xlu0 %2184
          %v2187 = vadd.f32 %v2168, %v2180
          %v2188 = vadd.f32 %v2169, %v2180
          %v2189 = vadd.f32 %v2170, %v2180
          %v2190 = vadd.f32 %v2171, %v2185
          %v2191 = vadd.f32 %v2172, %v2185
          %v2192 = vadd.f32 %v2173, %v2185
          %v2193 = vmul.f32 %v2187, 0.1
          %v2194 = vmul.f32 %v2188, 0.1
          %v2195 = vmul.f32 %v2189, 0.1
          %v2196 = vmul.f32 %v2190, 0.1
          %v2197 = vmul.f32 %v2191, 0.1
          %v2198 = vmul.f32 %v2192, 0.1
          %v2199 = vmax.f32 %v2187, %v2193
          %v2200 = vmax.f32 %v2188, %v2194
          %v2201 = vmax.f32 %v2189, %v2195
          %v2202 = vmax.f32 %v2190, %v2196
          %v2203 = vmax.f32 %v2191, %v2197
          %v2204 = vmax.f32 %v2192, %v2198
          %2205 = vrot.lane.b32.xlu0 %v2199, 1
          %v2206 = vpop.permute.xlu0 %2205
          %2207 = vrot.lane.b32.xlu0 %v2202, 1
          %v2208 = vpop.permute.xlu0 %2207
          %2209 = vrot.lane.b32.xlu0 %v2200, 1
          %v2210 = vpop.permute.xlu0 %2209
          %2211 = vrot.lane.b32.xlu0 %v2203, 1
          %v2212 = vpop.permute.xlu0 %2211
          %2213 = vrot.lane.b32.xlu0 %v2201, 1
          %v2214 = vpop.permute.xlu0 %2213
          %2215 = vrot.lane.b32.xlu0 %v2204, 1
          %v2216 = vpop.permute.xlu0 %2215
          %v2217 = vsel %vm530, %v2210, %v2214
          %v2218 = vsel %vm530, %v2212, %v2216
          %v2219 = vsel %vm530, %v2206, %v2210
          %v2220 = vsel %vm530, %v2208, %v2212
          %v2221 = vsel %vm530, %v2214, %v2206
          %v2222 = vsel %vm530, %v2216, %v2208
          %s2223 = scalar_lea.vmem %s5, 48
          %v2224 = vld [vmem:[%s2223] sm:$0xff]
          %v2225 = vld [vmem:[%s2223 + $0x8] sm:$0xff]
          %s2226 = scalar_lea.vmem %s5, 64
          %v2227 = vld [vmem:[%s2226] sm:$0xff]
          %v2228 = vld [vmem:[%s2226 + $0x8] sm:$0xff]
          %v2230 = vsel %vm542, %v2227, 0
          %v2233 = vsel %vm542, %v2228, 0
          %2235 = vmatprep.subr.mxu0 %v2200
          %2236 = vmatpush1.msra.mxu0 %v2199
          %2237 = vmatprep.subr.mxu0 %v2203
          %2238 = vmatpush1.msra.mxu0 %v2202
          %2239 = vmatprep.subr.mxu0 0.0
          %2240 = vmatpush1.msra.mxu0 0.0
          %2241 = vmatprep.subr.mxu0 0.0
          %2242 = vmatpush1.msra.mxu0 0.0
          %2243 = vmatprep.subr.mxu0 0.0
          %2244 = vmatpush1.msra.mxu0 0.0
          %2245 = vmatprep.subr.mxu0 0.0
          %2246 = vmatpush1.msra.mxu0 0.0
          %2247 = vmatprep.subr.mxu0 0.0
          %2248 = vmatpush1.msra.mxu0 0.0
          %2249 = vmatprep.subr.mxu0 0.0
          %2250 = vmatpush1.msra.mxu0 0.0
          %2251 = vmatprep.subr.mxu0 0.0
          %2252 = vmatpush1.msra.mxu0 0.0
          %2253 = vmatprep.subr.mxu0 0.0
          %2254 = vmatpush1.msra.mxu0 0.0
          %2255 = vmatprep.subr.mxu0 0.0
          %2256 = vmatpush1.msra.mxu0 0.0
          %2257 = vmatprep.subr.mxu0 0.0
          %2258 = vmatpush1.msra.mxu0 0.0
          %2259 = vmatprep.subr.mxu0 0.0
          %2260 = vmatpush1.msra.mxu0 0.0
          %2261 = vmatprep.subr.mxu0 0.0
          %2262 = vmatpush1.msra.mxu0 0.0
          %2263 = vmatprep.subr.mxu0 0.0
          %2264 = vmatpush1.msra.mxu0 0.0
          %2265 = vmatprep.subr.mxu0 0.0
          %2266 = vmatpush1.msra.mxu0 0.0
          %2267 = vmatprep.subr.mxu0 0.0
          %2268 = vmatpush1.msra.mxu0 0.0
          %2269 = vmatprep.subr.mxu0 0.0
          %2270 = vmatpush1.msra.mxu0 0.0
          %2271 = vmatprep.subr.mxu0 0.0
          %2272 = vmatpush1.msra.mxu0 0.0
          %2273 = vmatprep.subr.mxu0 0.0
          %2274 = vmatpush1.msra.mxu0 0.0
          %2275 = vmatprep.subr.mxu0 0.0
          %2276 = vmatpush1.msra.mxu0 0.0
          %2277 = vmatprep.subr.mxu0 0.0
          %2278 = vmatpush1.msra.mxu0 0.0
          %2279 = vmatprep.subr.mxu0 0.0
          %2280 = vmatpush1.msra.mxu0 0.0
          %2281 = vmatprep.subr.mxu0 0.0
          %2282 = vmatpush1.msra.mxu0 0.0
          %2283 = vmatprep.subr.mxu0 0.0
          %2284 = vmatpush1.msra.mxu0 0.0
          %2285 = vmatprep.subr.mxu0 0.0
          %2286 = vmatpush1.msra.mxu0 0.0
          %2287 = vmatprep.subr.mxu0 0.0
          %2288 = vmatpush1.msra.mxu0 0.0
          %2289 = vmatprep.subr.mxu0 0.0
          %2290 = vmatpush1.msra.mxu0 0.0
          %2291 = vmatprep.subr.mxu0 0.0
          %2292 = vmatpush1.msra.mxu0 0.0
          %2293 = vmatprep.subr.mxu0 0.0
          %2294 = vmatpush1.msra.mxu0 0.0
          %2295 = vmatprep.subr.mxu0 0.0
          %2296 = vmatpush1.msra.mxu0 0.0
          %2297 = vmatprep.subr.mxu0 0.0
          %2298 = vmatpush1.msra.mxu0 0.0
          %2299 = vmatprep.mubr.f32.mxu0 0.0
          %2300 = vmatmul.mubr.f32.gmra.mrb[0].mxu0 %v2230
          %v2301 = vpop.f32.mrb[0].mxu0
          %v2302 = vadd.f32 0.0, %v2301
          %v2303 = vpop.f32.mrb[0].mxu0
          %v2304 = vadd.f32 0.0, %v2303
          %2305 = vmatprep.mubr.f32.mxu0 0.0
          %2306 = vmatmul.mubr.f32.gmra.mrb[0].mxu0 %v2233
          %v2307 = vpop.f32.mrb[0].mxu0
          %v2308 = vadd.f32 0.0, %v2307
          %v2309 = vpop.f32.mrb[0].mxu0
          %v2310 = vadd.f32 0.0, %v2309
          %2311 = vdwg.mxu0
          %2312 = vmatprep.subr.mxu0 0.0
          %2313 = vmatpush1.msra.mxu0 %v2201
          %2314 = vmatprep.subr.mxu0 0.0
          %2315 = vmatpush1.msra.mxu0 %v2204
          %2316 = vmatprep.subr.mxu0 0.0
          %2317 = vmatpush1.msra.mxu0 0.0
          %2318 = vmatprep.subr.mxu0 0.0
          %2319 = vmatpush1.msra.mxu0 0.0
          %2320 = vmatprep.subr.mxu0 0.0
          %2321 = vmatpush1.msra.mxu0 0.0
          %2322 = vmatprep.subr.mxu0 0.0
          %2323 = vmatpush1.msra.mxu0 0.0
          %2324 = vmatprep.subr.mxu0 0.0
          %2325 = vmatpush1.msra.mxu0 0.0
          %2326 = vmatprep.subr.mxu0 0.0
          %2327 = vmatpush1.msra.mxu0 0.0
          %2328 = vmatprep.subr.mxu0 0.0
          %2329 = vmatpush1.msra.mxu0 0.0
          %2330 = vmatprep.subr.mxu0 0.0
          %2331 = vmatpush1.msra.mxu0 0.0
          %2332 = vmatprep.subr.mxu0 0.0
          %2333 = vmatpush1.msra.mxu0 0.0
          %2334 = vmatprep.subr.mxu0 0.0
          %2335 = vmatpush1.msra.mxu0 0.0
          %2336 = vmatprep.subr.mxu0 0.0
          %2337 = vmatpush1.msra.mxu0 0.0
          %2338 = vmatprep.subr.mxu0 0.0
          %2339 = vmatpush1.msra.mxu0 0.0
          %2340 = vmatprep.subr.mxu0 0.0
          %2341 = vmatpush1.msra.mxu0 0.0
          %2342 = vmatprep.subr.mxu0 0.0
          %2343 = vmatpush1.msra.mxu0 0.0
          %2344 = vmatprep.subr.mxu0 0.0
          %2345 = vmatpush1.msra.mxu0 0.0
          %2346 = vmatprep.subr.mxu0 0.0
          %2347 = vmatpush1.msra.mxu0 0.0
          %2348 = vmatprep.subr.mxu0 0.0
          %2349 = vmatpush1.msra.mxu0 0.0
          %2350 = vmatprep.subr.mxu0 0.0
          %2351 = vmatpush1.msra.mxu0 0.0
          %2352 = vmatprep.subr.mxu0 0.0
          %2353 = vmatpush1.msra.mxu0 0.0
          %2354 = vmatprep.subr.mxu0 0.0
          %2355 = vmatpush1.msra.mxu0 0.0
          %2356 = vmatprep.subr.mxu0 0.0
          %2357 = vmatpush1.msra.mxu0 0.0
          %2358 = vmatprep.subr.mxu0 0.0
          %2359 = vmatpush1.msra.mxu0 0.0
          %2360 = vmatprep.subr.mxu0 0.0
          %2361 = vmatpush1.msra.mxu0 0.0
          %2362 = vmatprep.subr.mxu0 0.0
          %2363 = vmatpush1.msra.mxu0 0.0
          %2364 = vmatprep.subr.mxu0 0.0
          %2365 = vmatpush1.msra.mxu0 0.0
          %2366 = vmatprep.subr.mxu0 0.0
          %2367 = vmatpush1.msra.mxu0 0.0
          %2368 = vmatprep.subr.mxu0 0.0
          %2369 = vmatpush1.msra.mxu0 0.0
          %2370 = vmatprep.subr.mxu0 0.0
          %2371 = vmatpush1.msra.mxu0 0.0
          %2372 = vmatprep.subr.mxu0 0.0
          %2373 = vmatpush1.msra.mxu0 0.0
          %2374 = vmatprep.subr.mxu0 0.0
          %2375 = vmatpush1.msra.mxu0 0.0
          %2376 = vmatprep.mubr.f32.mxu0 0.0
          %2377 = vmatmul.mubr.f32.gmra.mrb[0].mxu0 %v2230
          %v2378 = vpop.f32.mrb[0].mxu0
          %v2379 = vadd.f32 0.0, %v2378
          %v2380 = vpop.f32.mrb[0].mxu0
          %2381 = vmatprep.mubr.f32.mxu0 0.0
          %2382 = vmatmul.mubr.f32.gmra.mrb[0].mxu0 %v2233
          %v2383 = vpop.f32.mrb[0].mxu0
          %v2384 = vadd.f32 0.0, %v2383
          %v2385 = vpop.f32.mrb[0].mxu0
          %2386 = vdwg.mxu0
          %v2388 = vsel %vm542, %v2224, 0
          %v2391 = vsel %vm542, %v2225, 0
          %2393 = vmatprep.subr.mxu0 %v2219
          %2394 = vmatpush1.msra.mxu0 %v2221
          %2395 = vmatprep.subr.mxu0 %v2220
          %2396 = vmatpush1.msra.mxu0 %v2222
          %2397 = vmatprep.subr.mxu0 0.0
          %2398 = vmatpush1.msra.mxu0 0.0
          %2399 = vmatprep.subr.mxu0 0.0
          %2400 = vmatpush1.msra.mxu0 0.0
          %2401 = vmatprep.subr.mxu0 0.0
          %2402 = vmatpush1.msra.mxu0 0.0
          %2403 = vmatprep.subr.mxu0 0.0
          %2404 = vmatpush1.msra.mxu0 0.0
          %2405 = vmatprep.subr.mxu0 0.0
          %2406 = vmatpush1.msra.mxu0 0.0
          %2407 = vmatprep.subr.mxu0 0.0
          %2408 = vmatpush1.msra.mxu0 0.0
          %2409 = vmatprep.subr.mxu0 0.0
          %2410 = vmatpush1.msra.mxu0 0.0
          %2411 = vmatprep.subr.mxu0 0.0
          %2412 = vmatpush1.msra.mxu0 0.0
          %2413 = vmatprep.subr.mxu0 0.0
          %2414 = vmatpush1.msra.mxu0 0.0
          %2415 = vmatprep.subr.mxu0 0.0
          %2416 = vmatpush1.msra.mxu0 0.0
          %2417 = vmatprep.subr.mxu0 0.0
          %2418 = vmatpush1.msra.mxu0 0.0
          %2419 = vmatprep.subr.mxu0 0.0
          %2420 = vmatpush1.msra.mxu0 0.0
          %2421 = vmatprep.subr.mxu0 0.0
          %2422 = vmatpush1.msra.mxu0 0.0
          %2423 = vmatprep.subr.mxu0 0.0
          %2424 = vmatpush1.msra.mxu0 0.0
          %2425 = vmatprep.subr.mxu0 0.0
          %2426 = vmatpush1.msra.mxu0 0.0
          %2427 = vmatprep.subr.mxu0 0.0
          %2428 = vmatpush1.msra.mxu0 0.0
          %2429 = vmatprep.subr.mxu0 0.0
          %2430 = vmatpush1.msra.mxu0 0.0
          %2431 = vmatprep.subr.mxu0 0.0
          %2432 = vmatpush1.msra.mxu0 0.0
          %2433 = vmatprep.subr.mxu0 0.0
          %2434 = vmatpush1.msra.mxu0 0.0
          %2435 = vmatprep.subr.mxu0 0.0
          %2436 = vmatpush1.msra.mxu0 0.0
          %2437 = vmatprep.subr.mxu0 0.0
          %2438 = vmatpush1.msra.mxu0 0.0
          %2439 = vmatprep.subr.mxu0 0.0
          %2440 = vmatpush1.msra.mxu0 0.0
          %2441 = vmatprep.subr.mxu0 0.0
          %2442 = vmatpush1.msra.mxu0 0.0
          %2443 = vmatprep.subr.mxu0 0.0
          %2444 = vmatpush1.msra.mxu0 0.0
          %2445 = vmatprep.subr.mxu0 0.0
          %2446 = vmatpush1.msra.mxu0 0.0
          %2447 = vmatprep.subr.mxu0 0.0
          %2448 = vmatpush1.msra.mxu0 0.0
          %2449 = vmatprep.subr.mxu0 0.0
          %2450 = vmatpush1.msra.mxu0 0.0
          %2451 = vmatprep.subr.mxu0 0.0
          %2452 = vmatpush1.msra.mxu0 0.0
          %2453 = vmatprep.subr.mxu0 0.0
          %2454 = vmatpush1.msra.mxu0 0.0
          %2455 = vmatprep.subr.mxu0 0.0
          %2456 = vmatpush1.msra.mxu0 0.0
          %2457 = vmatprep.mubr.f32.mxu0 0.0
          %2458 = vmatmul.mubr.f32.gmra.mrb[0].mxu0 %v2388
          %v2459 = vpop.f32.mrb[0].mxu0
          %v2460 = vadd.f32 %v2302, %v2459
          %v2461 = vpop.f32.mrb[0].mxu0
          %v2462 = vadd.f32 %v2304, %v2461
          %2463 = vmatprep.mubr.f32.mxu0 0.0
          %2464 = vmatmul.mubr.f32.gmra.mrb[0].mxu0 %v2391
          %v2465 = vpop.f32.mrb[0].mxu0
          %v2466 = vadd.f32 %v2308, %v2465
          %v2467 = vpop.f32.mrb[0].mxu0
          %v2468 = vadd.f32 %v2310, %v2467
          %2469 = vdwg.mxu0
          %2470 = vmatprep.subr.mxu0 0.0
          %2471 = vmatpush1.msra.mxu0 %v2217
          %2472 = vmatprep.subr.mxu0 0.0
          %2473 = vmatpush1.msra.mxu0 %v2218
          %2474 = vmatprep.subr.mxu0 0.0
          %2475 = vmatpush1.msra.mxu0 0.0
          %2476 = vmatprep.subr.mxu0 0.0
          %2477 = vmatpush1.msra.mxu0 0.0
          %2478 = vmatprep.subr.mxu0 0.0
          %2479 = vmatpush1.msra.mxu0 0.0
          %2480 = vmatprep.subr.mxu0 0.0
          %2481 = vmatpush1.msra.mxu0 0.0
          %2482 = vmatprep.subr.mxu0 0.0
          %2483 = vmatpush1.msra.mxu0 0.0
          %2484 = vmatprep.subr.mxu0 0.0
          %2485 = vmatpush1.msra.mxu0 0.0
          %2486 = vmatprep.subr.mxu0 0.0
          %2487 = vmatpush1.msra.mxu0 0.0
          %2488 = vmatprep.subr.mxu0 0.0
          %2489 = vmatpush1.msra.mxu0 0.0
          %2490 = vmatprep.subr.mxu0 0.0
          %2491 = vmatpush1.msra.mxu0 0.0
          %2492 = vmatprep.subr.mxu0 0.0
          %2493 = vmatpush1.msra.mxu0 0.0
          %2494 = vmatprep.subr.mxu0 0.0
          %2495 = vmatpush1.msra.mxu0 0.0
          %2496 = vmatprep.subr.mxu0 0.0
          %2497 = vmatpush1.msra.mxu0 0.0
          %2498 = vmatprep.subr.mxu0 0.0
          %2499 = vmatpush1.msra.mxu0 0.0
          %2500 = vmatprep.subr.mxu0 0.0
          %2501 = vmatpush1.msra.mxu0 0.0
          %2502 = vmatprep.subr.mxu0 0.0
          %2503 = vmatpush1.msra.mxu0 0.0
          %2504 = vmatprep.subr.mxu0 0.0
          %2505 = vmatpush1.msra.mxu0 0.0
          %2506 = vmatprep.subr.mxu0 0.0
          %2507 = vmatpush1.msra.mxu0 0.0
          %2508 = vmatprep.subr.mxu0 0.0
          %2509 = vmatpush1.msra.mxu0 0.0
          %2510 = vmatprep.subr.mxu0 0.0
          %2511 = vmatpush1.msra.mxu0 0.0
          %2512 = vmatprep.subr.mxu0 0.0
          %2513 = vmatpush1.msra.mxu0 0.0
          %2514 = vmatprep.subr.mxu0 0.0
          %2515 = vmatpush1.msra.mxu0 0.0
          %2516 = vmatprep.subr.mxu0 0.0
          %2517 = vmatpush1.msra.mxu0 0.0
          %2518 = vmatprep.subr.mxu0 0.0
          %2519 = vmatpush1.msra.mxu0 0.0
          %2520 = vmatprep.subr.mxu0 0.0
          %2521 = vmatpush1.msra.mxu0 0.0
          %2522 = vmatprep.subr.mxu0 0.0
          %2523 = vmatpush1.msra.mxu0 0.0
          %2524 = vmatprep.subr.mxu0 0.0
          %2525 = vmatpush1.msra.mxu0 0.0
          %2526 = vmatprep.subr.mxu0 0.0
          %2527 = vmatpush1.msra.mxu0 0.0
          %2528 = vmatprep.subr.mxu0 0.0
          %2529 = vmatpush1.msra.mxu0 0.0
          %2530 = vmatprep.subr.mxu0 0.0
          %2531 = vmatpush1.msra.mxu0 0.0
          %2532 = vmatprep.subr.mxu0 0.0
          %2533 = vmatpush1.msra.mxu0 0.0
          %2534 = vmatprep.mubr.f32.mxu0 0.0
          %2535 = vmatmul.mubr.f32.gmra.mrb[0].mxu0 %v2388
          %v2536 = vpop.f32.mrb[0].mxu0
          %v2537 = vadd.f32 %v2379, %v2536
          %v2538 = vpop.f32.mrb[0].mxu0
          %2539 = vmatprep.mubr.f32.mxu0 0.0
          %2540 = vmatmul.mubr.f32.gmra.mrb[0].mxu0 %v2391
          %v2541 = vpop.f32.mrb[0].mxu0
          %v2542 = vadd.f32 %v2384, %v2541
          %v2543 = vpop.f32.mrb[0].mxu0
          %2544 = vdwg.mxu0
          %2545 = vrot.lane.b32.xlu0 %v2199, 127
          %v2546 = vpop.permute.xlu0 %2545
          %2547 = vrot.lane.b32.xlu0 %v2202, 127
          %v2548 = vpop.permute.xlu0 %2547
          %2549 = vrot.lane.b32.xlu0 %v2200, 127
          %v2550 = vpop.permute.xlu0 %2549
          %2551 = vrot.lane.b32.xlu0 %v2203, 127
          %v2552 = vpop.permute.xlu0 %2551
          %2553 = vrot.lane.b32.xlu0 %v2201, 127
          %v2554 = vpop.permute.xlu0 %2553
          %2555 = vrot.lane.b32.xlu0 %v2204, 127
          %v2556 = vpop.permute.xlu0 %2555
          %v2557 = vsel %vm871, %v2550, %v2554
          %v2558 = vsel %vm871, %v2552, %v2556
          %v2559 = vsel %vm871, %v2546, %v2550
          %v2560 = vsel %vm871, %v2548, %v2552
          %v2561 = vsel %vm871, %v2554, %v2546
          %v2562 = vsel %vm871, %v2556, %v2548
          %s2563 = scalar_lea.vmem %s5, 80
          %v2564 = vld [vmem:[%s2563] sm:$0xff]
          %v2565 = vld [vmem:[%s2563 + $0x8] sm:$0xff]
          %v2567 = vsel %vm542, %v2564, 0
          %v2570 = vsel %vm542, %v2565, 0
          %2572 = vmatprep.subr.mxu0 %v2557
          %2573 = vmatpush1.msra.mxu0 %v2559
          %2574 = vmatprep.subr.mxu0 %v2558
          %2575 = vmatpush1.msra.mxu0 %v2560
          %2576 = vmatprep.subr.mxu0 0.0
          %2577 = vmatpush1.msra.mxu0 0.0
          %2578 = vmatprep.subr.mxu0 0.0
          %2579 = vmatpush1.msra.mxu0 0.0
          %2580 = vmatprep.subr.mxu0 0.0
          %2581 = vmatpush1.msra.mxu0 0.0
          %2582 = vmatprep.subr.mxu0 0.0
          %2583 = vmatpush1.msra.mxu0 0.0
          %2584 = vmatprep.subr.mxu0 0.0
          %2585 = vmatpush1.msra.mxu0 0.0
          %2586 = vmatprep.subr.mxu0 0.0
          %2587 = vmatpush1.msra.mxu0 0.0
          %2588 = vmatprep.subr.mxu0 0.0
          %2589 = vmatpush1.msra.mxu0 0.0
          %2590 = vmatprep.subr.mxu0 0.0
          %2591 = vmatpush1.msra.mxu0 0.0
          %2592 = vmatprep.subr.mxu0 0.0
          %2593 = vmatpush1.msra.mxu0 0.0
          %2594 = vmatprep.subr.mxu0 0.0
          %2595 = vmatpush1.msra.mxu0 0.0
          %2596 = vmatprep.subr.mxu0 0.0
          %2597 = vmatpush1.msra.mxu0 0.0
          %2598 = vmatprep.subr.mxu0 0.0
          %2599 = vmatpush1.msra.mxu0 0.0
          %2600 = vmatprep.subr.mxu0 0.0
          %2601 = vmatpush1.msra.mxu0 0.0
          %2602 = vmatprep.subr.mxu0 0.0
          %2603 = vmatpush1.msra.mxu0 0.0
          %2604 = vmatprep.subr.mxu0 0.0
          %2605 = vmatpush1.msra.mxu0 0.0
          %2606 = vmatprep.subr.mxu0 0.0
          %2607 = vmatpush1.msra.mxu0 0.0
          %2608 = vmatprep.subr.mxu0 0.0
          %2609 = vmatpush1.msra.mxu0 0.0
          %2610 = vmatprep.subr.mxu0 0.0
          %2611 = vmatpush1.msra.mxu0 0.0
          %2612 = vmatprep.subr.mxu0 0.0
          %2613 = vmatpush1.msra.mxu0 0.0
          %2614 = vmatprep.subr.mxu0 0.0
          %2615 = vmatpush1.msra.mxu0 0.0
          %2616 = vmatprep.subr.mxu0 0.0
          %2617 = vmatpush1.msra.mxu0 0.0
          %2618 = vmatprep.subr.mxu0 0.0
          %2619 = vmatpush1.msra.mxu0 0.0
          %2620 = vmatprep.subr.mxu0 0.0
          %2621 = vmatpush1.msra.mxu0 0.0
          %2622 = vmatprep.subr.mxu0 0.0
          %2623 = vmatpush1.msra.mxu0 0.0
          %2624 = vmatprep.subr.mxu0 0.0
          %2625 = vmatpush1.msra.mxu0 0.0
          %2626 = vmatprep.subr.mxu0 0.0
          %2627 = vmatpush1.msra.mxu0 0.0
          %2628 = vmatprep.subr.mxu0 0.0
          %2629 = vmatpush1.msra.mxu0 0.0
          %2630 = vmatprep.subr.mxu0 0.0
          %2631 = vmatpush1.msra.mxu0 0.0
          %2632 = vmatprep.subr.mxu0 0.0
          %2633 = vmatpush1.msra.mxu0 0.0
          %2634 = vmatprep.subr.mxu0 0.0
          %2635 = vmatpush1.msra.mxu0 0.0
          %2636 = vmatprep.mubr.f32.mxu0 0.0
          %2637 = vmatmul.mubr.f32.gmra.mrb[0].mxu0 %v2567
          %v2638 = vpop.f32.mrb[0].mxu0
          %v2639 = vadd.f32 0.0, %v2638
          %v2640 = vpop.f32.mrb[0].mxu0
          %v2641 = vadd.f32 0.0, %v2640
          %2642 = vmatprep.mubr.f32.mxu0 0.0
          %2643 = vmatmul.mubr.f32.gmra.mrb[0].mxu0 %v2570
          %v2644 = vpop.f32.mrb[0].mxu0
          %v2645 = vadd.f32 0.0, %v2644
          %v2646 = vpop.f32.mrb[0].mxu0
          %v2647 = vadd.f32 0.0, %v2646
          %2648 = vdwg.mxu0
          %2649 = vmatprep.subr.mxu0 0.0
          %2650 = vmatpush1.msra.mxu0 %v2561
          %2651 = vmatprep.subr.mxu0 0.0
          %2652 = vmatpush1.msra.mxu0 %v2562
          %2653 = vmatprep.subr.mxu0 0.0
          %2654 = vmatpush1.msra.mxu0 0.0
          %2655 = vmatprep.subr.mxu0 0.0
          %2656 = vmatpush1.msra.mxu0 0.0
          %2657 = vmatprep.subr.mxu0 0.0
          %2658 = vmatpush1.msra.mxu0 0.0
          %2659 = vmatprep.subr.mxu0 0.0
          %2660 = vmatpush1.msra.mxu0 0.0
          %2661 = vmatprep.subr.mxu0 0.0
          %2662 = vmatpush1.msra.mxu0 0.0
          %2663 = vmatprep.subr.mxu0 0.0
          %2664 = vmatpush1.msra.mxu0 0.0
          %2665 = vmatprep.subr.mxu0 0.0
          %2666 = vmatpush1.msra.mxu0 0.0
          %2667 = vmatprep.subr.mxu0 0.0
          %2668 = vmatpush1.msra.mxu0 0.0
          %2669 = vmatprep.subr.mxu0 0.0
          %2670 = vmatpush1.msra.mxu0 0.0
          %2671 = vmatprep.subr.mxu0 0.0
          %2672 = vmatpush1.msra.mxu0 0.0
          %2673 = vmatprep.subr.mxu0 0.0
          %2674 = vmatpush1.msra.mxu0 0.0
          %2675 = vmatprep.subr.mxu0 0.0
          %2676 = vmatpush1.msra.mxu0 0.0
          %2677 = vmatprep.subr.mxu0 0.0
          %2678 = vmatpush1.msra.mxu0 0.0
          %2679 = vmatprep.subr.mxu0 0.0
          %2680 = vmatpush1.msra.mxu0 0.0
          %2681 = vmatprep.subr.mxu0 0.0
          %2682 = vmatpush1.msra.mxu0 0.0
          %2683 = vmatprep.subr.mxu0 0.0
          %2684 = vmatpush1.msra.mxu0 0.0
          %2685 = vmatprep.subr.mxu0 0.0
          %2686 = vmatpush1.msra.mxu0 0.0
          %2687 = vmatprep.subr.mxu0 0.0
          %2688 = vmatpush1.msra.mxu0 0.0
          %2689 = vmatprep.subr.mxu0 0.0
          %2690 = vmatpush1.msra.mxu0 0.0
          %2691 = vmatprep.subr.mxu0 0.0
          %2692 = vmatpush1.msra.mxu0 0.0
          %2693 = vmatprep.subr.mxu0 0.0
          %2694 = vmatpush1.msra.mxu0 0.0
          %2695 = vmatprep.subr.mxu0 0.0
          %2696 = vmatpush1.msra.mxu0 0.0
          %2697 = vmatprep.subr.mxu0 0.0
          %2698 = vmatpush1.msra.mxu0 0.0
          %2699 = vmatprep.subr.mxu0 0.0
          %2700 = vmatpush1.msra.mxu0 0.0
          %2701 = vmatprep.subr.mxu0 0.0
          %2702 = vmatpush1.msra.mxu0 0.0
          %2703 = vmatprep.subr.mxu0 0.0
          %2704 = vmatpush1.msra.mxu0 0.0
          %2705 = vmatprep.subr.mxu0 0.0
          %2706 = vmatpush1.msra.mxu0 0.0
          %2707 = vmatprep.subr.mxu0 0.0
          %2708 = vmatpush1.msra.mxu0 0.0
          %2709 = vmatprep.subr.mxu0 0.0
          %2710 = vmatpush1.msra.mxu0 0.0
          %2711 = vmatprep.subr.mxu0 0.0
          %2712 = vmatpush1.msra.mxu0 0.0
          %2713 = vmatprep.mubr.f32.mxu0 0.0
          %2714 = vmatmul.mubr.f32.gmra.mrb[0].mxu0 %v2567
          %v2715 = vpop.f32.mrb[0].mxu0
          %v2716 = vadd.f32 0.0, %v2715
          %v2717 = vpop.f32.mrb[0].mxu0
          %2718 = vmatprep.mubr.f32.mxu0 0.0
          %2719 = vmatmul.mubr.f32.gmra.mrb[0].mxu0 %v2570
          %v2720 = vpop.f32.mrb[0].mxu0
          %v2721 = vadd.f32 0.0, %v2720
          %v2722 = vpop.f32.mrb[0].mxu0
          %2723 = vdwg.mxu0
          %v2724 = vadd.f32 %v2460, %v2639
          %v2725 = vadd.f32 %v2462, %v2641
          %v2726 = vadd.f32 %v2537, %v2716
          %v2727 = vadd.f32 %v2466, %v2645
          %v2728 = vadd.f32 %v2468, %v2647
          %v2729 = vadd.f32 %v2542, %v2721
          %s2730 = scalar_lea.vmem %s6, 16
          %v2731 = vld [vmem:[%s2730] sm:$0xff]
          %v2732 = vld [vmem:[%s2730 + $0x8] sm:$0xff]
          %2734 = vset.pattern.permute.xlu0 0
          %2735 = vperm.xlu0 %2734, %v2731
          %v2736 = vpop.permute.xlu0 %2735
          %2739 = vset.pattern.permute.xlu0 0
          %2740 = vperm.xlu0 %2739, %v2732
          %v2741 = vpop.permute.xlu0 %2740
          %v2743 = vadd.f32 %v2724, %v2736
          %v2744 = vadd.f32 %v2725, %v2736
          %v2745 = vadd.f32 %v2726, %v2736
          %v2746 = vadd.f32 %v2727, %v2741
          %v2747 = vadd.f32 %v2728, %v2741
          %v2748 = vadd.f32 %v2729, %v2741
          %v2749 = vadd.f32 %v1629, %v2743
          %v2750 = vadd.f32 %v1630, %v2744
          %v2751 = vadd.f32 %v1631, %v2745
          %v2752 = vadd.f32 %v1632, %v2746
          %v2753 = vadd.f32 %v1633, %v2747
          %v2754 = vadd.f32 %v1634, %v2748
          %2755 = vst [vmem:[#allocation2] sm:$0xff] %v2749
          %2756 = vst [vmem:[#allocation2 + $0x8] sm:$0xff] %v2750
          %2757 = vst [vmem:[#allocation2 + $0x10] sm:$0xff] %v2751
          %2758 = vst [vmem:[#allocation2 + $0x18] sm:$0xff] %v2752
          %2759 = vst [vmem:[#allocation2 + $0x20] sm:$0xff] %v2753
          %2760 = vst [vmem:[#allocation2 + $0x28] sm:$0xff] %v2754
          %v2761 = vld [vmem:[#allocation2] sm:$0xff]
          %v2762 = vld [vmem:[#allocation2 + $0x8] sm:$0xff]
          %v2763 = vld [vmem:[#allocation2 + $0x10] sm:$0xff]
          %v2764 = vld [vmem:[#allocation2 + $0x18] sm:$0xff]
          %v2765 = vld [vmem:[#allocation2 + $0x20] sm:$0xff]
          %v2766 = vld [vmem:[#allocation2 + $0x28] sm:$0xff]
          %v2767 = vmul.f32 %v2761, 0.1
          %v2768 = vmul.f32 %v2762, 0.1
          %v2769 = vmul.f32 %v2763, 0.1
          %v2770 = vmul.f32 %v2764, 0.1
          %v2771 = vmul.f32 %v2765, 0.1
          %v2772 = vmul.f32 %v2766, 0.1
          %v2773 = vmax.f32 %v2761, %v2767
          %v2774 = vmax.f32 %v2762, %v2768
          %v2775 = vmax.f32 %v2763, %v2769
          %v2776 = vmax.f32 %v2764, %v2770
          %v2777 = vmax.f32 %v2765, %v2771
          %v2778 = vmax.f32 %v2766, %v2772
          %2779 = vrot.lane.b32.xlu0 %v2773, 5
          %v2780 = vpop.permute.xlu0 %2779
          %2781 = vrot.lane.b32.xlu0 %v2776, 5
          %v2782 = vpop.permute.xlu0 %2781
          %2783 = vrot.lane.b32.xlu0 %v2774, 5
          %v2784 = vpop.permute.xlu0 %2783
          %2785 = vrot.lane.b32.xlu0 %v2777, 5
          %v2786 = vpop.permute.xlu0 %2785
          %2787 = vrot.lane.b32.xlu0 %v2775, 5
          %v2788 = vpop.permute.xlu0 %2787
          %2789 = vrot.lane.b32.xlu0 %v2778, 5
          %v2790 = vpop.permute.xlu0 %2789
          %vm2791 = vcmp.lt.s32.totalorder %v529, 5
          %v2792 = vsel %vm2791, %v2784, %v2788
          %v2793 = vsel %vm2791, %v2786, %v2790
          %v2794 = vsel %vm2791, %v2780, %v2784
          %v2795 = vsel %vm2791, %v2782, %v2786
          %v2796 = vsel %vm2791, %v2788, %v2780
          %v2797 = vsel %vm2791, %v2790, %v2782
          %s2798 = scalar_lea.vmem %s3, 96
          %v2799 = vld [vmem:[%s2798] sm:$0xff]
          %v2800 = vld [vmem:[%s2798 + $0x8] sm:$0xff]
          %s2801 = scalar_lea.vmem %s3, 112
          %v2802 = vld [vmem:[%s2801] sm:$0xff]
          %v2803 = vld [vmem:[%s2801 + $0x8] sm:$0xff]
          %v2805 = vsel %vm542, %v2802, 0
          %v2808 = vsel %vm542, %v2803, 0
          %2810 = vmatprep.subr.mxu0 %v2774
          %2811 = vmatpush1.msra.mxu0 %v2773
          %2812 = vmatprep.subr.mxu0 %v2777
          %2813 = vmatpush1.msra.mxu0 %v2776
          %2814 = vmatprep.subr.mxu0 0.0
          %2815 = vmatpush1.msra.mxu0 0.0
          %2816 = vmatprep.subr.mxu0 0.0
          %2817 = vmatpush1.msra.mxu0 0.0
          %2818 = vmatprep.subr.mxu0 0.0
          %2819 = vmatpush1.msra.mxu0 0.0
          %2820 = vmatprep.subr.mxu0 0.0
          %2821 = vmatpush1.msra.mxu0 0.0
          %2822 = vmatprep.subr.mxu0 0.0
          %2823 = vmatpush1.msra.mxu0 0.0
          %2824 = vmatprep.subr.mxu0 0.0
          %2825 = vmatpush1.msra.mxu0 0.0
          %2826 = vmatprep.subr.mxu0 0.0
          %2827 = vmatpush1.msra.mxu0 0.0
          %2828 = vmatprep.subr.mxu0 0.0
          %2829 = vmatpush1.msra.mxu0 0.0
          %2830 = vmatprep.subr.mxu0 0.0
          %2831 = vmatpush1.msra.mxu0 0.0
          %2832 = vmatprep.subr.mxu0 0.0
          %2833 = vmatpush1.msra.mxu0 0.0
          %2834 = vmatprep.subr.mxu0 0.0
          %2835 = vmatpush1.msra.mxu0 0.0
          %2836 = vmatprep.subr.mxu0 0.0
          %2837 = vmatpush1.msra.mxu0 0.0
          %2838 = vmatprep.subr.mxu0 0.0
          %2839 = vmatpush1.msra.mxu0 0.0
          %2840 = vmatprep.subr.mxu0 0.0
          %2841 = vmatpush1.msra.mxu0 0.0
          %2842 = vmatprep.subr.mxu0 0.0
          %2843 = vmatpush1.msra.mxu0 0.0
          %2844 = vmatprep.subr.mxu0 0.0
          %2845 = vmatpush1.msra.mxu0 0.0
          %2846 = vmatprep.subr.mxu0 0.0
          %2847 = vmatpush1.msra.mxu0 0.0
          %2848 = vmatprep.subr.mxu0 0.0
          %2849 = vmatpush1.msra.mxu0 0.0
          %2850 = vmatprep.subr.mxu0 0.0
          %2851 = vmatpush1.msra.mxu0 0.0
          %2852 = vmatprep.subr.mxu0 0.0
          %2853 = vmatpush1.msra.mxu0 0.0
          %2854 = vmatprep.subr.mxu0 0.0
          %2855 = vmatpush1.msra.mxu0 0.0
          %2856 = vmatprep.subr.mxu0 0.0
          %2857 = vmatpush1.msra.mxu0 0.0
          %2858 = vmatprep.subr.mxu0 0.0
          %2859 = vmatpush1.msra.mxu0 0.0
          %2860 = vmatprep.subr.mxu0 0.0
          %2861 = vmatpush1.msra.mxu0 0.0
          %2862 = vmatprep.subr.mxu0 0.0
          %2863 = vmatpush1.msra.mxu0 0.0
          %2864 = vmatprep.subr.mxu0 0.0
          %2865 = vmatpush1.msra.mxu0 0.0
          %2866 = vmatprep.subr.mxu0 0.0
          %2867 = vmatpush1.msra.mxu0 0.0
          %2868 = vmatprep.subr.mxu0 0.0
          %2869 = vmatpush1.msra.mxu0 0.0
          %2870 = vmatprep.subr.mxu0 0.0
          %2871 = vmatpush1.msra.mxu0 0.0
          %2872 = vmatprep.subr.mxu0 0.0
          %2873 = vmatpush1.msra.mxu0 0.0
          %2874 = vmatprep.mubr.f32.mxu0 0.0
          %2875 = vmatmul.mubr.f32.gmra.mrb[0].mxu0 %v2805
          %v2876 = vpop.f32.mrb[0].mxu0
          %v2877 = vadd.f32 0.0, %v2876
          %v2878 = vpop.f32.mrb[0].mxu0
          %v2879 = vadd.f32 0.0, %v2878
          %2880 = vmatprep.mubr.f32.mxu0 0.0
          %2881 = vmatmul.mubr.f32.gmra.mrb[0].mxu0 %v2808
          %v2882 = vpop.f32.mrb[0].mxu0
          %v2883 = vadd.f32 0.0, %v2882
          %v2884 = vpop.f32.mrb[0].mxu0
          %v2885 = vadd.f32 0.0, %v2884
          %2886 = vdwg.mxu0
          %2887 = vmatprep.subr.mxu0 0.0
          %2888 = vmatpush1.msra.mxu0 %v2775
          %2889 = vmatprep.subr.mxu0 0.0
          %2890 = vmatpush1.msra.mxu0 %v2778
          %2891 = vmatprep.subr.mxu0 0.0
          %2892 = vmatpush1.msra.mxu0 0.0
          %2893 = vmatprep.subr.mxu0 0.0
          %2894 = vmatpush1.msra.mxu0 0.0
          %2895 = vmatprep.subr.mxu0 0.0
          %2896 = vmatpush1.msra.mxu0 0.0
          %2897 = vmatprep.subr.mxu0 0.0
          %2898 = vmatpush1.msra.mxu0 0.0
          %2899 = vmatprep.subr.mxu0 0.0
          %2900 = vmatpush1.msra.mxu0 0.0
          %2901 = vmatprep.subr.mxu0 0.0
          %2902 = vmatpush1.msra.mxu0 0.0
          %2903 = vmatprep.subr.mxu0 0.0
          %2904 = vmatpush1.msra.mxu0 0.0
          %2905 = vmatprep.subr.mxu0 0.0
          %2906 = vmatpush1.msra.mxu0 0.0
          %2907 = vmatprep.subr.mxu0 0.0
          %2908 = vmatpush1.msra.mxu0 0.0
          %2909 = vmatprep.subr.mxu0 0.0
          %2910 = vmatpush1.msra.mxu0 0.0
          %2911 = vmatprep.subr.mxu0 0.0
          %2912 = vmatpush1.msra.mxu0 0.0
          %2913 = vmatprep.subr.mxu0 0.0
          %2914 = vmatpush1.msra.mxu0 0.0
          %2915 = vmatprep.subr.mxu0 0.0
          %2916 = vmatpush1.msra.mxu0 0.0
          %2917 = vmatprep.subr.mxu0 0.0
          %2918 = vmatpush1.msra.mxu0 0.0
          %2919 = vmatprep.subr.mxu0 0.0
          %2920 = vmatpush1.msra.mxu0 0.0
          %2921 = vmatprep.subr.mxu0 0.0
          %2922 = vmatpush1.msra.mxu0 0.0
          %2923 = vmatprep.subr.mxu0 0.0
          %2924 = vmatpush1.msra.mxu0 0.0
          %2925 = vmatprep.subr.mxu0 0.0
          %2926 = vmatpush1.msra.mxu0 0.0
          %2927 = vmatprep.subr.mxu0 0.0
          %2928 = vmatpush1.msra.mxu0 0.0
          %2929 = vmatprep.subr.mxu0 0.0
          %2930 = vmatpush1.msra.mxu0 0.0
          %2931 = vmatprep.subr.mxu0 0.0
          %2932 = vmatpush1.msra.mxu0 0.0
          %2933 = vmatprep.subr.mxu0 0.0
          %2934 = vmatpush1.msra.mxu0 0.0
          %2935 = vmatprep.subr.mxu0 0.0
          %2936 = vmatpush1.msra.mxu0 0.0
          %2937 = vmatprep.subr.mxu0 0.0
          %2938 = vmatpush1.msra.mxu0 0.0
          %2939 = vmatprep.subr.mxu0 0.0
          %2940 = vmatpush1.msra.mxu0 0.0
          %2941 = vmatprep.subr.mxu0 0.0
          %2942 = vmatpush1.msra.mxu0 0.0
          %2943 = vmatprep.subr.mxu0 0.0
          %2944 = vmatpush1.msra.mxu0 0.0
          %2945 = vmatprep.subr.mxu0 0.0
          %2946 = vmatpush1.msra.mxu0 0.0
          %2947 = vmatprep.subr.mxu0 0.0
          %2948 = vmatpush1.msra.mxu0 0.0
          %2949 = vmatprep.subr.mxu0 0.0
          %2950 = vmatpush1.msra.mxu0 0.0
          %2951 = vmatprep.mubr.f32.mxu0 0.0
          %2952 = vmatmul.mubr.f32.gmra.mrb[0].mxu0 %v2805
          %v2953 = vpop.f32.mrb[0].mxu0
          %v2954 = vadd.f32 0.0, %v2953
          %v2955 = vpop.f32.mrb[0].mxu0
          %2956 = vmatprep.mubr.f32.mxu0 0.0
          %2957 = vmatmul.mubr.f32.gmra.mrb[0].mxu0 %v2808
          %v2958 = vpop.f32.mrb[0].mxu0
          %v2959 = vadd.f32 0.0, %v2958
          %v2960 = vpop.f32.mrb[0].mxu0
          %2961 = vdwg.mxu0
          %v2963 = vsel %vm542, %v2799, 0
          %v2966 = vsel %vm542, %v2800, 0
          %2968 = vmatprep.subr.mxu0 %v2794
          %2969 = vmatpush1.msra.mxu0 %v2796
          %2970 = vmatprep.subr.mxu0 %v2795
          %2971 = vmatpush1.msra.mxu0 %v2797
          %2972 = vmatprep.subr.mxu0 0.0
          %2973 = vmatpush1.msra.mxu0 0.0
          %2974 = vmatprep.subr.mxu0 0.0
          %2975 = vmatpush1.msra.mxu0 0.0
          %2976 = vmatprep.subr.mxu0 0.0
          %2977 = vmatpush1.msra.mxu0 0.0
          %2978 = vmatprep.subr.mxu0 0.0
          %2979 = vmatpush1.msra.mxu0 0.0
          %2980 = vmatprep.subr.mxu0 0.0
          %2981 = vmatpush1.msra.mxu0 0.0
          %2982 = vmatprep.subr.mxu0 0.0
          %2983 = vmatpush1.msra.mxu0 0.0
          %2984 = vmatprep.subr.mxu0 0.0
          %2985 = vmatpush1.msra.mxu0 0.0
          %2986 = vmatprep.subr.mxu0 0.0
          %2987 = vmatpush1.msra.mxu0 0.0
          %2988 = vmatprep.subr.mxu0 0.0
          %2989 = vmatpush1.msra.mxu0 0.0
          %2990 = vmatprep.subr.mxu0 0.0
          %2991 = vmatpush1.msra.mxu0 0.0
          %2992 = vmatprep.subr.mxu0 0.0
          %2993 = vmatpush1.msra.mxu0 0.0
          %2994 = vmatprep.subr.mxu0 0.0
          %2995 = vmatpush1.msra.mxu0 0.0
          %2996 = vmatprep.subr.mxu0 0.0
          %2997 = vmatpush1.msra.mxu0 0.0
          %2998 = vmatprep.subr.mxu0 0.0
          %2999 = vmatpush1.msra.mxu0 0.0
          %3000 = vmatprep.subr.mxu0 0.0
          %3001 = vmatpush1.msra.mxu0 0.0
          %3002 = vmatprep.subr.mxu0 0.0
          %3003 = vmatpush1.msra.mxu0 0.0
          %3004 = vmatprep.subr.mxu0 0.0
          %3005 = vmatpush1.msra.mxu0 0.0
          %3006 = vmatprep.subr.mxu0 0.0
          %3007 = vmatpush1.msra.mxu0 0.0
          %3008 = vmatprep.subr.mxu0 0.0
          %3009 = vmatpush1.msra.mxu0 0.0
          %3010 = vmatprep.subr.mxu0 0.0
          %3011 = vmatpush1.msra.mxu0 0.0
          %3012 = vmatprep.subr.mxu0 0.0
          %3013 = vmatpush1.msra.mxu0 0.0
          %3014 = vmatprep.subr.mxu0 0.0
          %3015 = vmatpush1.msra.mxu0 0.0
          %3016 = vmatprep.subr.mxu0 0.0
          %3017 = vmatpush1.msra.mxu0 0.0
          %3018 = vmatprep.subr.mxu0 0.0
          %3019 = vmatpush1.msra.mxu0 0.0
          %3020 = vmatprep.subr.mxu0 0.0
          %3021 = vmatpush1.msra.mxu0 0.0
          %3022 = vmatprep.subr.mxu0 0.0
          %3023 = vmatpush1.msra.mxu0 0.0
          %3024 = vmatprep.subr.mxu0 0.0
          %3025 = vmatpush1.msra.mxu0 0.0
          %3026 = vmatprep.subr.mxu0 0.0
          %3027 = vmatpush1.msra.mxu0 0.0
          %3028 = vmatprep.subr.mxu0 0.0
          %3029 = vmatpush1.msra.mxu0 0.0
          %3030 = vmatprep.subr.mxu0 0.0
          %3031 = vmatpush1.msra.mxu0 0.0
          %3032 = vmatprep.mubr.f32.mxu0 0.0
          %3033 = vmatmul.mubr.f32.gmra.mrb[0].mxu0 %v2963
          %v3034 = vpop.f32.mrb[0].mxu0
          %v3035 = vadd.f32 %v2877, %v3034
          %v3036 = vpop.f32.mrb[0].mxu0
          %v3037 = vadd.f32 %v2879, %v3036
          %3038 = vmatprep.mubr.f32.mxu0 0.0
          %3039 = vmatmul.mubr.f32.gmra.mrb[0].mxu0 %v2966
          %v3040 = vpop.f32.mrb[0].mxu0
          %v3041 = vadd.f32 %v2883, %v3040
          %v3042 = vpop.f32.mrb[0].mxu0
          %v3043 = vadd.f32 %v2885, %v3042
          %3044 = vdwg.mxu0
          %3045 = vmatprep.subr.mxu0 0.0
          %3046 = vmatpush1.msra.mxu0 %v2792
          %3047 = vmatprep.subr.mxu0 0.0
          %3048 = vmatpush1.msra.mxu0 %v2793
          %3049 = vmatprep.subr.mxu0 0.0
          %3050 = vmatpush1.msra.mxu0 0.0
          %3051 = vmatprep.subr.mxu0 0.0
          %3052 = vmatpush1.msra.mxu0 0.0
          %3053 = vmatprep.subr.mxu0 0.0
          %3054 = vmatpush1.msra.mxu0 0.0
          %3055 = vmatprep.subr.mxu0 0.0
          %3056 = vmatpush1.msra.mxu0 0.0
          %3057 = vmatprep.subr.mxu0 0.0
          %3058 = vmatpush1.msra.mxu0 0.0
          %3059 = vmatprep.subr.mxu0 0.0
          %3060 = vmatpush1.msra.mxu0 0.0
          %3061 = vmatprep.subr.mxu0 0.0
          %3062 = vmatpush1.msra.mxu0 0.0
          %3063 = vmatprep.subr.mxu0 0.0
          %3064 = vmatpush1.msra.mxu0 0.0
          %3065 = vmatprep.subr.mxu0 0.0
          %3066 = vmatpush1.msra.mxu0 0.0
          %3067 = vmatprep.subr.mxu0 0.0
          %3068 = vmatpush1.msra.mxu0 0.0
          %3069 = vmatprep.subr.mxu0 0.0
          %3070 = vmatpush1.msra.mxu0 0.0
          %3071 = vmatprep.subr.mxu0 0.0
          %3072 = vmatpush1.msra.mxu0 0.0
          %3073 = vmatprep.subr.mxu0 0.0
          %3074 = vmatpush1.msra.mxu0 0.0
          %3075 = vmatprep.subr.mxu0 0.0
          %3076 = vmatpush1.msra.mxu0 0.0
          %3077 = vmatprep.subr.mxu0 0.0
          %3078 = vmatpush1.msra.mxu0 0.0
          %3079 = vmatprep.subr.mxu0 0.0
          %3080 = vmatpush1.msra.mxu0 0.0
          %3081 = vmatprep.subr.mxu0 0.0
          %3082 = vmatpush1.msra.mxu0 0.0
          %3083 = vmatprep.subr.mxu0 0.0
          %3084 = vmatpush1.msra.mxu0 0.0
          %3085 = vmatprep.subr.mxu0 0.0
          %3086 = vmatpush1.msra.mxu0 0.0
          %3087 = vmatprep.subr.mxu0 0.0
          %3088 = vmatpush1.msra.mxu0 0.0
          %3089 = vmatprep.subr.mxu0 0.0
          %3090 = vmatpush1.msra.mxu0 0.0
          %3091 = vmatprep.subr.mxu0 0.0
          %3092 = vmatpush1.msra.mxu0 0.0
          %3093 = vmatprep.subr.mxu0 0.0
          %3094 = vmatpush1.msra.mxu0 0.0
          %3095 = vmatprep.subr.mxu0 0.0
          %3096 = vmatpush1.msra.mxu0 0.0
          %3097 = vmatprep.subr.mxu0 0.0
          %3098 = vmatpush1.msra.mxu0 0.0
          %3099 = vmatprep.subr.mxu0 0.0
          %3100 = vmatpush1.msra.mxu0 0.0
          %3101 = vmatprep.subr.mxu0 0.0
          %3102 = vmatpush1.msra.mxu0 0.0
          %3103 = vmatprep.subr.mxu0 0.0
          %3104 = vmatpush1.msra.mxu0 0.0
          %3105 = vmatprep.subr.mxu0 0.0
          %3106 = vmatpush1.msra.mxu0 0.0
          %3107 = vmatprep.subr.mxu0 0.0
          %3108 = vmatpush1.msra.mxu0 0.0
          %3109 = vmatprep.mubr.f32.mxu0 0.0
          %3110 = vmatmul.mubr.f32.gmra.mrb[0].mxu0 %v2963
          %v3111 = vpop.f32.mrb[0].mxu0
          %v3112 = vadd.f32 %v2954, %v3111
          %v3113 = vpop.f32.mrb[0].mxu0
          %3114 = vmatprep.mubr.f32.mxu0 0.0
          %3115 = vmatmul.mubr.f32.gmra.mrb[0].mxu0 %v2966
          %v3116 = vpop.f32.mrb[0].mxu0
          %v3117 = vadd.f32 %v2959, %v3116
          %v3118 = vpop.f32.mrb[0].mxu0
          %3119 = vdwg.mxu0
          %3120 = vrot.lane.b32.xlu0 %v2773, 123
          %v3121 = vpop.permute.xlu0 %3120
          %3122 = vrot.lane.b32.xlu0 %v2776, 123
          %v3123 = vpop.permute.xlu0 %3122
          %3124 = vrot.lane.b32.xlu0 %v2774, 123
          %v3125 = vpop.permute.xlu0 %3124
          %3126 = vrot.lane.b32.xlu0 %v2777, 123
          %v3127 = vpop.permute.xlu0 %3126
          %3128 = vrot.lane.b32.xlu0 %v2775, 123
          %v3129 = vpop.permute.xlu0 %3128
          %3130 = vrot.lane.b32.xlu0 %v2778, 123
          %v3131 = vpop.permute.xlu0 %3130
          %vm3132 = vcmp.lt.s32.totalorder %v529, 123
          %v3133 = vsel %vm3132, %v3125, %v3129
          %v3134 = vsel %vm3132, %v3127, %v3131
          %v3135 = vsel %vm3132, %v3121, %v3125
          %v3136 = vsel %vm3132, %v3123, %v3127
          %v3137 = vsel %vm3132, %v3129, %v3121
          %v3138 = vsel %vm3132, %v3131, %v3123
          %s3139 = scalar_lea.vmem %s3, 128
          %v3140 = vld [vmem:[%s3139] sm:$0xff]
          %v3141 = vld [vmem:[%s3139 + $0x8] sm:$0xff]
          %v3143 = vsel %vm542, %v3140, 0
          %v3146 = vsel %vm542, %v3141, 0
          %3148 = vmatprep.subr.mxu0 %v3133
          %3149 = vmatpush1.msra.mxu0 %v3135
          %3150 = vmatprep.subr.mxu0 %v3134
          %3151 = vmatpush1.msra.mxu0 %v3136
          %3152 = vmatprep.subr.mxu0 0.0
          %3153 = vmatpush1.msra.mxu0 0.0
          %3154 = vmatprep.subr.mxu0 0.0
          %3155 = vmatpush1.msra.mxu0 0.0
          %3156 = vmatprep.subr.mxu0 0.0
          %3157 = vmatpush1.msra.mxu0 0.0
          %3158 = vmatprep.subr.mxu0 0.0
          %3159 = vmatpush1.msra.mxu0 0.0
          %3160 = vmatprep.subr.mxu0 0.0
          %3161 = vmatpush1.msra.mxu0 0.0
          %3162 = vmatprep.subr.mxu0 0.0
          %3163 = vmatpush1.msra.mxu0 0.0
          %3164 = vmatprep.subr.mxu0 0.0
          %3165 = vmatpush1.msra.mxu0 0.0
          %3166 = vmatprep.subr.mxu0 0.0
          %3167 = vmatpush1.msra.mxu0 0.0
          %3168 = vmatprep.subr.mxu0 0.0
          %3169 = vmatpush1.msra.mxu0 0.0
          %3170 = vmatprep.subr.mxu0 0.0
          %3171 = vmatpush1.msra.mxu0 0.0
          %3172 = vmatprep.subr.mxu0 0.0
          %3173 = vmatpush1.msra.mxu0 0.0
          %3174 = vmatprep.subr.mxu0 0.0
          %3175 = vmatpush1.msra.mxu0 0.0
          %3176 = vmatprep.subr.mxu0 0.0
          %3177 = vmatpush1.msra.mxu0 0.0
          %3178 = vmatprep.subr.mxu0 0.0
          %3179 = vmatpush1.msra.mxu0 0.0
          %3180 = vmatprep.subr.mxu0 0.0
          %3181 = vmatpush1.msra.mxu0 0.0
          %3182 = vmatprep.subr.mxu0 0.0
          %3183 = vmatpush1.msra.mxu0 0.0
          %3184 = vmatprep.subr.mxu0 0.0
          %3185 = vmatpush1.msra.mxu0 0.0
          %3186 = vmatprep.subr.mxu0 0.0
          %3187 = vmatpush1.msra.mxu0 0.0
          %3188 = vmatprep.subr.mxu0 0.0
          %3189 = vmatpush1.msra.mxu0 0.0
          %3190 = vmatprep.subr.mxu0 0.0
          %3191 = vmatpush1.msra.mxu0 0.0
          %3192 = vmatprep.subr.mxu0 0.0
          %3193 = vmatpush1.msra.mxu0 0.0
          %3194 = vmatprep.subr.mxu0 0.0
          %3195 = vmatpush1.msra.mxu0 0.0
          %3196 = vmatprep.subr.mxu0 0.0
          %3197 = vmatpush1.msra.mxu0 0.0
          %3198 = vmatprep.subr.mxu0 0.0
          %3199 = vmatpush1.msra.mxu0 0.0
          %3200 = vmatprep.subr.mxu0 0.0
          %3201 = vmatpush1.msra.mxu0 0.0
          %3202 = vmatprep.subr.mxu0 0.0
          %3203 = vmatpush1.msra.mxu0 0.0
          %3204 = vmatprep.subr.mxu0 0.0
          %3205 = vmatpush1.msra.mxu0 0.0
          %3206 = vmatprep.subr.mxu0 0.0
          %3207 = vmatpush1.msra.mxu0 0.0
          %3208 = vmatprep.subr.mxu0 0.0
          %3209 = vmatpush1.msra.mxu0 0.0
          %3210 = vmatprep.subr.mxu0 0.0
          %3211 = vmatpush1.msra.mxu0 0.0
          %3212 = vmatprep.mubr.f32.mxu0 0.0
          %3213 = vmatmul.mubr.f32.gmra.mrb[0].mxu0 %v3143
          %v3214 = vpop.f32.mrb[0].mxu0
          %v3215 = vadd.f32 0.0, %v3214
          %v3216 = vpop.f32.mrb[0].mxu0
          %v3217 = vadd.f32 0.0, %v3216
          %3218 = vmatprep.mubr.f32.mxu0 0.0
          %3219 = vmatmul.mubr.f32.gmra.mrb[0].mxu0 %v3146
          %v3220 = vpop.f32.mrb[0].mxu0
          %v3221 = vadd.f32 0.0, %v3220
          %v3222 = vpop.f32.mrb[0].mxu0
          %v3223 = vadd.f32 0.0, %v3222
          %3224 = vdwg.mxu0
          %3225 = vmatprep.subr.mxu0 0.0
          %3226 = vmatpush1.msra.mxu0 %v3137
          %3227 = vmatprep.subr.mxu0 0.0
          %3228 = vmatpush1.msra.mxu0 %v3138
          %3229 = vmatprep.subr.mxu0 0.0
          %3230 = vmatpush1.msra.mxu0 0.0
          %3231 = vmatprep.subr.mxu0 0.0
          %3232 = vmatpush1.msra.mxu0 0.0
          %3233 = vmatprep.subr.mxu0 0.0
          %3234 = vmatpush1.msra.mxu0 0.0
          %3235 = vmatprep.subr.mxu0 0.0
          %3236 = vmatpush1.msra.mxu0 0.0
          %3237 = vmatprep.subr.mxu0 0.0
          %3238 = vmatpush1.msra.mxu0 0.0
          %3239 = vmatprep.subr.mxu0 0.0
          %3240 = vmatpush1.msra.mxu0 0.0
          %3241 = vmatprep.subr.mxu0 0.0
          %3242 = vmatpush1.msra.mxu0 0.0
          %3243 = vmatprep.subr.mxu0 0.0
          %3244 = vmatpush1.msra.mxu0 0.0
          %3245 = vmatprep.subr.mxu0 0.0
          %3246 = vmatpush1.msra.mxu0 0.0
          %3247 = vmatprep.subr.mxu0 0.0
          %3248 = vmatpush1.msra.mxu0 0.0
          %3249 = vmatprep.subr.mxu0 0.0
          %3250 = vmatpush1.msra.mxu0 0.0
          %3251 = vmatprep.subr.mxu0 0.0
          %3252 = vmatpush1.msra.mxu0 0.0
          %3253 = vmatprep.subr.mxu0 0.0
          %3254 = vmatpush1.msra.mxu0 0.0
          %3255 = vmatprep.subr.mxu0 0.0
          %3256 = vmatpush1.msra.mxu0 0.0
          %3257 = vmatprep.subr.mxu0 0.0
          %3258 = vmatpush1.msra.mxu0 0.0
          %3259 = vmatprep.subr.mxu0 0.0
          %3260 = vmatpush1.msra.mxu0 0.0
          %3261 = vmatprep.subr.mxu0 0.0
          %3262 = vmatpush1.msra.mxu0 0.0
          %3263 = vmatprep.subr.mxu0 0.0
          %3264 = vmatpush1.msra.mxu0 0.0
          %3265 = vmatprep.subr.mxu0 0.0
          %3266 = vmatpush1.msra.mxu0 0.0
          %3267 = vmatprep.subr.mxu0 0.0
          %3268 = vmatpush1.msra.mxu0 0.0
          %3269 = vmatprep.subr.mxu0 0.0
          %3270 = vmatpush1.msra.mxu0 0.0
          %3271 = vmatprep.subr.mxu0 0.0
          %3272 = vmatpush1.msra.mxu0 0.0
          %3273 = vmatprep.subr.mxu0 0.0
          %3274 = vmatpush1.msra.mxu0 0.0
          %3275 = vmatprep.subr.mxu0 0.0
          %3276 = vmatpush1.msra.mxu0 0.0
          %3277 = vmatprep.subr.mxu0 0.0
          %3278 = vmatpush1.msra.mxu0 0.0
          %3279 = vmatprep.subr.mxu0 0.0
          %3280 = vmatpush1.msra.mxu0 0.0
          %3281 = vmatprep.subr.mxu0 0.0
          %3282 = vmatpush1.msra.mxu0 0.0
          %3283 = vmatprep.subr.mxu0 0.0
          %3284 = vmatpush1.msra.mxu0 0.0
          %3285 = vmatprep.subr.mxu0 0.0
          %3286 = vmatpush1.msra.mxu0 0.0
          %3287 = vmatprep.subr.mxu0 0.0
          %3288 = vmatpush1.msra.mxu0 0.0
          %3289 = vmatprep.mubr.f32.mxu0 0.0
          %3290 = vmatmul.mubr.f32.gmra.mrb[0].mxu0 %v3143
          %v3291 = vpop.f32.mrb[0].mxu0
          %v3292 = vadd.f32 0.0, %v3291
          %v3293 = vpop.f32.mrb[0].mxu0
          %3294 = vmatprep.mubr.f32.mxu0 0.0
          %3295 = vmatmul.mubr.f32.gmra.mrb[0].mxu0 %v3146
          %v3296 = vpop.f32.mrb[0].mxu0
          %v3297 = vadd.f32 0.0, %v3296
          %v3298 = vpop.f32.mrb[0].mxu0
          %3299 = vdwg.mxu0
          %v3300 = vadd.f32 %v3035, %v3215
          %v3301 = vadd.f32 %v3037, %v3217
          %v3302 = vadd.f32 %v3112, %v3292
          %v3303 = vadd.f32 %v3041, %v3221
          %v3304 = vadd.f32 %v3043, %v3223
          %v3305 = vadd.f32 %v3117, %v3297
          %s3306 = scalar_lea.vmem %s4, 32
          %v3307 = vld [vmem:[%s3306] sm:$0xff]
          %v3308 = vld [vmem:[%s3306 + $0x8] sm:$0xff]
          %3310 = vset.pattern.permute.xlu0 0
          %3311 = vperm.xlu0 %3310, %v3307
          %v3312 = vpop.permute.xlu0 %3311
          %3315 = vset.pattern.permute.xlu0 0
          %3316 = vperm.xlu0 %3315, %v3308
          %v3317 = vpop.permute.xlu0 %3316
          %v3319 = vadd.f32 %v3300, %v3312
          %v3320 = vadd.f32 %v3301, %v3312
          %v3321 = vadd.f32 %v3302, %v3312
          %v3322 = vadd.f32 %v3303, %v3317
          %v3323 = vadd.f32 %v3304, %v3317
          %v3324 = vadd.f32 %v3305, %v3317
          %v3325 = vmul.f32 %v3319, 0.1
          %v3326 = vmul.f32 %v3320, 0.1
          %v3327 = vmul.f32 %v3321, 0.1
          %v3328 = vmul.f32 %v3322, 0.1
          %v3329 = vmul.f32 %v3323, 0.1
          %v3330 = vmul.f32 %v3324, 0.1
          %v3331 = vmax.f32 %v3319, %v3325
          %v3332 = vmax.f32 %v3320, %v3326
          %v3333 = vmax.f32 %v3321, %v3327
          %v3334 = vmax.f32 %v3322, %v3328
          %v3335 = vmax.f32 %v3323, %v3329
          %v3336 = vmax.f32 %v3324, %v3330
          %3337 = vrot.lane.b32.xlu0 %v3331, 1
          %v3338 = vpop.permute.xlu0 %3337
          %3339 = vrot.lane.b32.xlu0 %v3334, 1
          %v3340 = vpop.permute.xlu0 %3339
          %3341 = vrot.lane.b32.xlu0 %v3332, 1
          %v3342 = vpop.permute.xlu0 %3341
          %3343 = vrot.lane.b32.xlu0 %v3335, 1
          %v3344 = vpop.permute.xlu0 %3343
          %3345 = vrot.lane.b32.xlu0 %v3333, 1
          %v3346 = vpop.permute.xlu0 %3345
          %3347 = vrot.lane.b32.xlu0 %v3336, 1
          %v3348 = vpop.permute.xlu0 %3347
          %v3349 = vsel %vm530, %v3342, %v3346
          %v3350 = vsel %vm530, %v3344, %v3348
          %v3351 = vsel %vm530, %v3338, %v3342
          %v3352 = vsel %vm530, %v3340, %v3344
          %v3353 = vsel %vm530, %v3346, %v3338
          %v3354 = vsel %vm530, %v3348, %v3340
          %s3355 = scalar_lea.vmem %s5, 96
          %v3356 = vld [vmem:[%s3355] sm:$0xff]
          %v3357 = vld [vmem:[%s3355 + $0x8] sm:$0xff]
          %s3358 = scalar_lea.vmem %s5, 112
          %v3359 = vld [vmem:[%s3358] sm:$0xff]
          %v3360 = vld [vmem:[%s3358 + $0x8] sm:$0xff]
          %v3362 = vsel %vm542, %v3359, 0
          %v3365 = vsel %vm542, %v3360, 0
          %3367 = vmatprep.subr.mxu0 %v3332
          %3368 = vmatpush1.msra.mxu0 %v3331
          %3369 = vmatprep.subr.mxu0 %v3335
          %3370 = vmatpush1.msra.mxu0 %v3334
          %3371 = vmatprep.subr.mxu0 0.0
          %3372 = vmatpush1.msra.mxu0 0.0
          %3373 = vmatprep.subr.mxu0 0.0
          %3374 = vmatpush1.msra.mxu0 0.0
          %3375 = vmatprep.subr.mxu0 0.0
          %3376 = vmatpush1.msra.mxu0 0.0
          %3377 = vmatprep.subr.mxu0 0.0
          %3378 = vmatpush1.msra.mxu0 0.0
          %3379 = vmatprep.subr.mxu0 0.0
          %3380 = vmatpush1.msra.mxu0 0.0
          %3381 = vmatprep.subr.mxu0 0.0
          %3382 = vmatpush1.msra.mxu0 0.0
          %3383 = vmatprep.subr.mxu0 0.0
          %3384 = vmatpush1.msra.mxu0 0.0
          %3385 = vmatprep.subr.mxu0 0.0
          %3386 = vmatpush1.msra.mxu0 0.0
          %3387 = vmatprep.subr.mxu0 0.0
          %3388 = vmatpush1.msra.mxu0 0.0
          %3389 = vmatprep.subr.mxu0 0.0
          %3390 = vmatpush1.msra.mxu0 0.0
          %3391 = vmatprep.subr.mxu0 0.0
          %3392 = vmatpush1.msra.mxu0 0.0
          %3393 = vmatprep.subr.mxu0 0.0
          %3394 = vmatpush1.msra.mxu0 0.0
          %3395 = vmatprep.subr.mxu0 0.0
          %3396 = vmatpush1.msra.mxu0 0.0
          %3397 = vmatprep.subr.mxu0 0.0
          %3398 = vmatpush1.msra.mxu0 0.0
          %3399 = vmatprep.subr.mxu0 0.0
          %3400 = vmatpush1.msra.mxu0 0.0
          %3401 = vmatprep.subr.mxu0 0.0
          %3402 = vmatpush1.msra.mxu0 0.0
          %3403 = vmatprep.subr.mxu0 0.0
          %3404 = vmatpush1.msra.mxu0 0.0
          %3405 = vmatprep.subr.mxu0 0.0
          %3406 = vmatpush1.msra.mxu0 0.0
          %3407 = vmatprep.subr.mxu0 0.0
          %3408 = vmatpush1.msra.mxu0 0.0
          %3409 = vmatprep.subr.mxu0 0.0
          %3410 = vmatpush1.msra.mxu0 0.0
          %3411 = vmatprep.subr.mxu0 0.0
          %3412 = vmatpush1.msra.mxu0 0.0
          %3413 = vmatprep.subr.mxu0 0.0
          %3414 = vmatpush1.msra.mxu0 0.0
          %3415 = vmatprep.subr.mxu0 0.0
          %3416 = vmatpush1.msra.mxu0 0.0
          %3417 = vmatprep.subr.mxu0 0.0
          %3418 = vmatpush1.msra.mxu0 0.0
          %3419 = vmatprep.subr.mxu0 0.0
          %3420 = vmatpush1.msra.mxu0 0.0
          %3421 = vmatprep.subr.mxu0 0.0
          %3422 = vmatpush1.msra.mxu0 0.0
          %3423 = vmatprep.subr.mxu0 0.0
          %3424 = vmatpush1.msra.mxu0 0.0
          %3425 = vmatprep.subr.mxu0 0.0
          %3426 = vmatpush1.msra.mxu0 0.0
          %3427 = vmatprep.subr.mxu0 0.0
          %3428 = vmatpush1.msra.mxu0 0.0
          %3429 = vmatprep.subr.mxu0 0.0
          %3430 = vmatpush1.msra.mxu0 0.0
          %3431 = vmatprep.mubr.f32.mxu0 0.0
          %3432 = vmatmul.mubr.f32.gmra.mrb[0].mxu0 %v3362
          %v3433 = vpop.f32.mrb[0].mxu0
          %v3434 = vadd.f32 0.0, %v3433
          %v3435 = vpop.f32.mrb[0].mxu0
          %v3436 = vadd.f32 0.0, %v3435
          %3437 = vmatprep.mubr.f32.mxu0 0.0
          %3438 = vmatmul.mubr.f32.gmra.mrb[0].mxu0 %v3365
          %v3439 = vpop.f32.mrb[0].mxu0
          %v3440 = vadd.f32 0.0, %v3439
          %v3441 = vpop.f32.mrb[0].mxu0
          %v3442 = vadd.f32 0.0, %v3441
          %3443 = vdwg.mxu0
          %3444 = vmatprep.subr.mxu0 0.0
          %3445 = vmatpush1.msra.mxu0 %v3333
          %3446 = vmatprep.subr.mxu0 0.0
          %3447 = vmatpush1.msra.mxu0 %v3336
          %3448 = vmatprep.subr.mxu0 0.0
          %3449 = vmatpush1.msra.mxu0 0.0
          %3450 = vmatprep.subr.mxu0 0.0
          %3451 = vmatpush1.msra.mxu0 0.0
          %3452 = vmatprep.subr.mxu0 0.0
          %3453 = vmatpush1.msra.mxu0 0.0
          %3454 = vmatprep.subr.mxu0 0.0
          %3455 = vmatpush1.msra.mxu0 0.0
          %3456 = vmatprep.subr.mxu0 0.0
          %3457 = vmatpush1.msra.mxu0 0.0
          %3458 = vmatprep.subr.mxu0 0.0
          %3459 = vmatpush1.msra.mxu0 0.0
          %3460 = vmatprep.subr.mxu0 0.0
          %3461 = vmatpush1.msra.mxu0 0.0
          %3462 = vmatprep.subr.mxu0 0.0
          %3463 = vmatpush1.msra.mxu0 0.0
          %3464 = vmatprep.subr.mxu0 0.0
          %3465 = vmatpush1.msra.mxu0 0.0
          %3466 = vmatprep.subr.mxu0 0.0
          %3467 = vmatpush1.msra.mxu0 0.0
          %3468 = vmatprep.subr.mxu0 0.0
          %3469 = vmatpush1.msra.mxu0 0.0
          %3470 = vmatprep.subr.mxu0 0.0
          %3471 = vmatpush1.msra.mxu0 0.0
          %3472 = vmatprep.subr.mxu0 0.0
          %3473 = vmatpush1.msra.mxu0 0.0
          %3474 = vmatprep.subr.mxu0 0.0
          %3475 = vmatpush1.msra.mxu0 0.0
          %3476 = vmatprep.subr.mxu0 0.0
          %3477 = vmatpush1.msra.mxu0 0.0
          %3478 = vmatprep.subr.mxu0 0.0
          %3479 = vmatpush1.msra.mxu0 0.0
          %3480 = vmatprep.subr.mxu0 0.0
          %3481 = vmatpush1.msra.mxu0 0.0
          %3482 = vmatprep.subr.mxu0 0.0
          %3483 = vmatpush1.msra.mxu0 0.0
          %3484 = vmatprep.subr.mxu0 0.0
          %3485 = vmatpush1.msra.mxu0 0.0
          %3486 = vmatprep.subr.mxu0 0.0
          %3487 = vmatpush1.msra.mxu0 0.0
          %3488 = vmatprep.subr.mxu0 0.0
          %3489 = vmatpush1.msra.mxu0 0.0
          %3490 = vmatprep.subr.mxu0 0.0
          %3491 = vmatpush1.msra.mxu0 0.0
          %3492 = vmatprep.subr.mxu0 0.0
          %3493 = vmatpush1.msra.mxu0 0.0
          %3494 = vmatprep.subr.mxu0 0.0
          %3495 = vmatpush1.msra.mxu0 0.0
          %3496 = vmatprep.subr.mxu0 0.0
          %3497 = vmatpush1.msra.mxu0 0.0
          %3498 = vmatprep.subr.mxu0 0.0
          %3499 = vmatpush1.msra.mxu0 0.0
          %3500 = vmatprep.subr.mxu0 0.0
          %3501 = vmatpush1.msra.mxu0 0.0
          %3502 = vmatprep.subr.mxu0 0.0
          %3503 = vmatpush1.msra.mxu0 0.0
          %3504 = vmatprep.subr.mxu0 0.0
          %3505 = vmatpush1.msra.mxu0 0.0
          %3506 = vmatprep.subr.mxu0 0.0
          %3507 = vmatpush1.msra.mxu0 0.0
          %3508 = vmatprep.mubr.f32.mxu0 0.0
          %3509 = vmatmul.mubr.f32.gmra.mrb[0].mxu0 %v3362
          %v3510 = vpop.f32.mrb[0].mxu0
          %v3511 = vadd.f32 0.0, %v3510
          %v3512 = vpop.f32.mrb[0].mxu0
          %3513 = vmatprep.mubr.f32.mxu0 0.0
          %3514 = vmatmul.mubr.f32.gmra.mrb[0].mxu0 %v3365
          %v3515 = vpop.f32.mrb[0].mxu0
          %v3516 = vadd.f32 0.0, %v3515
          %v3517 = vpop.f32.mrb[0].mxu0
          %3518 = vdwg.mxu0
          %v3520 = vsel %vm542, %v3356, 0
          %v3523 = vsel %vm542, %v3357, 0
          %3525 = vmatprep.subr.mxu0 %v3351
          %3526 = vmatpush1.msra.mxu0 %v3353
          %3527 = vmatprep.subr.mxu0 %v3352
          %3528 = vmatpush1.msra.mxu0 %v3354
          %3529 = vmatprep.subr.mxu0 0.0
          %3530 = vmatpush1.msra.mxu0 0.0
          %3531 = vmatprep.subr.mxu0 0.0
          %3532 = vmatpush1.msra.mxu0 0.0
          %3533 = vmatprep.subr.mxu0 0.0
          %3534 = vmatpush1.msra.mxu0 0.0
          %3535 = vmatprep.subr.mxu0 0.0
          %3536 = vmatpush1.msra.mxu0 0.0
          %3537 = vmatprep.subr.mxu0 0.0
          %3538 = vmatpush1.msra.mxu0 0.0
          %3539 = vmatprep.subr.mxu0 0.0
          %3540 = vmatpush1.msra.mxu0 0.0
          %3541 = vmatprep.subr.mxu0 0.0
          %3542 = vmatpush1.msra.mxu0 0.0
          %3543 = vmatprep.subr.mxu0 0.0
          %3544 = vmatpush1.msra.mxu0 0.0
          %3545 = vmatprep.subr.mxu0 0.0
          %3546 = vmatpush1.msra.mxu0 0.0
          %3547 = vmatprep.subr.mxu0 0.0
          %3548 = vmatpush1.msra.mxu0 0.0
          %3549 = vmatprep.subr.mxu0 0.0
          %3550 = vmatpush1.msra.mxu0 0.0
          %3551 = vmatprep.subr.mxu0 0.0
          %3552 = vmatpush1.msra.mxu0 0.0
          %3553 = vmatprep.subr.mxu0 0.0
          %3554 = vmatpush1.msra.mxu0 0.0
          %3555 = vmatprep.subr.mxu0 0.0
          %3556 = vmatpush1.msra.mxu0 0.0
          %3557 = vmatprep.subr.mxu0 0.0
          %3558 = vmatpush1.msra.mxu0 0.0
          %3559 = vmatprep.subr.mxu0 0.0
          %3560 = vmatpush1.msra.mxu0 0.0
          %3561 = vmatprep.subr.mxu0 0.0
          %3562 = vmatpush1.msra.mxu0 0.0
          %3563 = vmatprep.subr.mxu0 0.0
          %3564 = vmatpush1.msra.mxu0 0.0
          %3565 = vmatprep.subr.mxu0 0.0
          %3566 = vmatpush1.msra.mxu0 0.0
          %3567 = vmatprep.subr.mxu0 0.0
          %3568 = vmatpush1.msra.mxu0 0.0
          %3569 = vmatprep.subr.mxu0 0.0
          %3570 = vmatpush1.msra.mxu0 0.0
          %3571 = vmatprep.subr.mxu0 0.0
          %3572 = vmatpush1.msra.mxu0 0.0
          %3573 = vmatprep.subr.mxu0 0.0
          %3574 = vmatpush1.msra.mxu0 0.0
          %3575 = vmatprep.subr.mxu0 0.0
          %3576 = vmatpush1.msra.mxu0 0.0
          %3577 = vmatprep.subr.mxu0 0.0
          %3578 = vmatpush1.msra.mxu0 0.0
          %3579 = vmatprep.subr.mxu0 0.0
          %3580 = vmatpush1.msra.mxu0 0.0
          %3581 = vmatprep.subr.mxu0 0.0
          %3582 = vmatpush1.msra.mxu0 0.0
          %3583 = vmatprep.subr.mxu0 0.0
          %3584 = vmatpush1.msra.mxu0 0.0
          %3585 = vmatprep.subr.mxu0 0.0
          %3586 = vmatpush1.msra.mxu0 0.0
          %3587 = vmatprep.subr.mxu0 0.0
          %3588 = vmatpush1.msra.mxu0 0.0
          %3589 = vmatprep.mubr.f32.mxu0 0.0
          %3590 = vmatmul.mubr.f32.gmra.mrb[0].mxu0 %v3520
          %v3591 = vpop.f32.mrb[0].mxu0
          %v3592 = vadd.f32 %v3434, %v3591
          %v3593 = vpop.f32.mrb[0].mxu0
          %v3594 = vadd.f32 %v3436, %v3593
          %3595 = vmatprep.mubr.f32.mxu0 0.0
          %3596 = vmatmul.mubr.f32.gmra.mrb[0].mxu0 %v3523
          %v3597 = vpop.f32.mrb[0].mxu0
          %v3598 = vadd.f32 %v3440, %v3597
          %v3599 = vpop.f32.mrb[0].mxu0
          %v3600 = vadd.f32 %v3442, %v3599
          %3601 = vdwg.mxu0
          %3602 = vmatprep.subr.mxu0 0.0
          %3603 = vmatpush1.msra.mxu0 %v3349
          %3604 = vmatprep.subr.mxu0 0.0
          %3605 = vmatpush1.msra.mxu0 %v3350
          %3606 = vmatprep.subr.mxu0 0.0
          %3607 = vmatpush1.msra.mxu0 0.0
          %3608 = vmatprep.subr.mxu0 0.0
          %3609 = vmatpush1.msra.mxu0 0.0
          %3610 = vmatprep.subr.mxu0 0.0
          %3611 = vmatpush1.msra.mxu0 0.0
          %3612 = vmatprep.subr.mxu0 0.0
          %3613 = vmatpush1.msra.mxu0 0.0
          %3614 = vmatprep.subr.mxu0 0.0
          %3615 = vmatpush1.msra.mxu0 0.0
          %3616 = vmatprep.subr.mxu0 0.0
          %3617 = vmatpush1.msra.mxu0 0.0
          %3618 = vmatprep.subr.mxu0 0.0
          %3619 = vmatpush1.msra.mxu0 0.0
          %3620 = vmatprep.subr.mxu0 0.0
          %3621 = vmatpush1.msra.mxu0 0.0
          %3622 = vmatprep.subr.mxu0 0.0
          %3623 = vmatpush1.msra.mxu0 0.0
          %3624 = vmatprep.subr.mxu0 0.0
          %3625 = vmatpush1.msra.mxu0 0.0
          %3626 = vmatprep.subr.mxu0 0.0
          %3627 = vmatpush1.msra.mxu0 0.0
          %3628 = vmatprep.subr.mxu0 0.0
          %3629 = vmatpush1.msra.mxu0 0.0
          %3630 = vmatprep.subr.mxu0 0.0
          %3631 = vmatpush1.msra.mxu0 0.0
          %3632 = vmatprep.subr.mxu0 0.0
          %3633 = vmatpush1.msra.mxu0 0.0
          %3634 = vmatprep.subr.mxu0 0.0
          %3635 = vmatpush1.msra.mxu0 0.0
          %3636 = vmatprep.subr.mxu0 0.0
          %3637 = vmatpush1.msra.mxu0 0.0
          %3638 = vmatprep.subr.mxu0 0.0
          %3639 = vmatpush1.msra.mxu0 0.0
          %3640 = vmatprep.subr.mxu0 0.0
          %3641 = vmatpush1.msra.mxu0 0.0
          %3642 = vmatprep.subr.mxu0 0.0
          %3643 = vmatpush1.msra.mxu0 0.0
          %3644 = vmatprep.subr.mxu0 0.0
          %3645 = vmatpush1.msra.mxu0 0.0
          %3646 = vmatprep.subr.mxu0 0.0
          %3647 = vmatpush1.msra.mxu0 0.0
          %3648 = vmatprep.subr.mxu0 0.0
          %3649 = vmatpush1.msra.mxu0 0.0
          %3650 = vmatprep.subr.mxu0 0.0
          %3651 = vmatpush1.msra.mxu0 0.0
          %3652 = vmatprep.subr.mxu0 0.0
          %3653 = vmatpush1.msra.mxu0 0.0
          %3654 = vmatprep.subr.mxu0 0.0
          %3655 = vmatpush1.msra.mxu0 0.0
          %3656 = vmatprep.subr.mxu0 0.0
          %3657 = vmatpush1.msra.mxu0 0.0
          %3658 = vmatprep.subr.mxu0 0.0
          %3659 = vmatpush1.msra.mxu0 0.0
          %3660 = vmatprep.subr.mxu0 0.0
          %3661 = vmatpush1.msra.mxu0 0.0
          %3662 = vmatprep.subr.mxu0 0.0
          %3663 = vmatpush1.msra.mxu0 0.0
          %3664 = vmatprep.subr.mxu0 0.0
          %3665 = vmatpush1.msra.mxu0 0.0
          %3666 = vmatprep.mubr.f32.mxu0 0.0
          %3667 = vmatmul.mubr.f32.gmra.mrb[0].mxu0 %v3520
          %v3668 = vpop.f32.mrb[0].mxu0
          %v3669 = vadd.f32 %v3511, %v3668
          %v3670 = vpop.f32.mrb[0].mxu0
          %3671 = vmatprep.mubr.f32.mxu0 0.0
          %3672 = vmatmul.mubr.f32.gmra.mrb[0].mxu0 %v3523
          %v3673 = vpop.f32.mrb[0].mxu0
          %v3674 = vadd.f32 %v3516, %v3673
          %v3675 = vpop.f32.mrb[0].mxu0
          %3676 = vdwg.mxu0
          %3677 = vrot.lane.b32.xlu0 %v3331, 127
          %v3678 = vpop.permute.xlu0 %3677
          %3679 = vrot.lane.b32.xlu0 %v3334, 127
          %v3680 = vpop.permute.xlu0 %3679
          %3681 = vrot.lane.b32.xlu0 %v3332, 127
          %v3682 = vpop.permute.xlu0 %3681
          %3683 = vrot.lane.b32.xlu0 %v3335, 127
          %v3684 = vpop.permute.xlu0 %3683
          %3685 = vrot.lane.b32.xlu0 %v3333, 127
          %v3686 = vpop.permute.xlu0 %3685
          %3687 = vrot.lane.b32.xlu0 %v3336, 127
          %v3688 = vpop.permute.xlu0 %3687
          %v3689 = vsel %vm871, %v3682, %v3686
          %v3690 = vsel %vm871, %v3684, %v3688
          %v3691 = vsel %vm871, %v3678, %v3682
          %v3692 = vsel %vm871, %v3680, %v3684
          %v3693 = vsel %vm871, %v3686, %v3678
          %v3694 = vsel %vm871, %v3688, %v3680
          %s3695 = scalar_lea.vmem %s5, 128
          %v3696 = vld [vmem:[%s3695] sm:$0xff]
          %v3697 = vld [vmem:[%s3695 + $0x8] sm:$0xff]
          %v3699 = vsel %vm542, %v3696, 0
          %v3702 = vsel %vm542, %v3697, 0
          %3704 = vmatprep.subr.mxu0 %v3689
          %3705 = vmatpush1.msra.mxu0 %v3691
          %3706 = vmatprep.subr.mxu0 %v3690
          %3707 = vmatpush1.msra.mxu0 %v3692
          %3708 = vmatprep.subr.mxu0 0.0
          %3709 = vmatpush1.msra.mxu0 0.0
          %3710 = vmatprep.subr.mxu0 0.0
          %3711 = vmatpush1.msra.mxu0 0.0
          %3712 = vmatprep.subr.mxu0 0.0
          %3713 = vmatpush1.msra.mxu0 0.0
          %3714 = vmatprep.subr.mxu0 0.0
          %3715 = vmatpush1.msra.mxu0 0.0
          %3716 = vmatprep.subr.mxu0 0.0
          %3717 = vmatpush1.msra.mxu0 0.0
          %3718 = vmatprep.subr.mxu0 0.0
          %3719 = vmatpush1.msra.mxu0 0.0
          %3720 = vmatprep.subr.mxu0 0.0
          %3721 = vmatpush1.msra.mxu0 0.0
          %3722 = vmatprep.subr.mxu0 0.0
          %3723 = vmatpush1.msra.mxu0 0.0
          %3724 = vmatprep.subr.mxu0 0.0
          %3725 = vmatpush1.msra.mxu0 0.0
          %3726 = vmatprep.subr.mxu0 0.0
          %3727 = vmatpush1.msra.mxu0 0.0
          %3728 = vmatprep.subr.mxu0 0.0
          %3729 = vmatpush1.msra.mxu0 0.0
          %3730 = vmatprep.subr.mxu0 0.0
          %3731 = vmatpush1.msra.mxu0 0.0
          %3732 = vmatprep.subr.mxu0 0.0
          %3733 = vmatpush1.msra.mxu0 0.0
          %3734 = vmatprep.subr.mxu0 0.0
          %3735 = vmatpush1.msra.mxu0 0.0
          %3736 = vmatprep.subr.mxu0 0.0
          %3737 = vmatpush1.msra.mxu0 0.0
          %3738 = vmatprep.subr.mxu0 0.0
          %3739 = vmatpush1.msra.mxu0 0.0
          %3740 = vmatprep.subr.mxu0 0.0
          %3741 = vmatpush1.msra.mxu0 0.0
          %3742 = vmatprep.subr.mxu0 0.0
          %3743 = vmatpush1.msra.mxu0 0.0
          %3744 = vmatprep.subr.mxu0 0.0
          %3745 = vmatpush1.msra.mxu0 0.0
          %3746 = vmatprep.subr.mxu0 0.0
          %3747 = vmatpush1.msra.mxu0 0.0
          %3748 = vmatprep.subr.mxu0 0.0
          %3749 = vmatpush1.msra.mxu0 0.0
          %3750 = vmatprep.subr.mxu0 0.0
          %3751 = vmatpush1.msra.mxu0 0.0
          %3752 = vmatprep.subr.mxu0 0.0
          %3753 = vmatpush1.msra.mxu0 0.0
          %3754 = vmatprep.subr.mxu0 0.0
          %3755 = vmatpush1.msra.mxu0 0.0
          %3756 = vmatprep.subr.mxu0 0.0
          %3757 = vmatpush1.msra.mxu0 0.0
          %3758 = vmatprep.subr.mxu0 0.0
          %3759 = vmatpush1.msra.mxu0 0.0
          %3760 = vmatprep.subr.mxu0 0.0
          %3761 = vmatpush1.msra.mxu0 0.0
          %3762 = vmatprep.subr.mxu0 0.0
          %3763 = vmatpush1.msra.mxu0 0.0
          %3764 = vmatprep.subr.mxu0 0.0
          %3765 = vmatpush1.msra.mxu0 0.0
          %3766 = vmatprep.subr.mxu0 0.0
          %3767 = vmatpush1.msra.mxu0 0.0
          %3768 = vmatprep.mubr.f32.mxu0 0.0
          %3769 = vmatmul.mubr.f32.gmra.mrb[0].mxu0 %v3699
          %v3770 = vpop.f32.mrb[0].mxu0
          %v3771 = vadd.f32 0.0, %v3770
          %v3772 = vpop.f32.mrb[0].mxu0
          %v3773 = vadd.f32 0.0, %v3772
          %3774 = vmatprep.mubr.f32.mxu0 0.0
          %3775 = vmatmul.mubr.f32.gmra.mrb[0].mxu0 %v3702
          %v3776 = vpop.f32.mrb[0].mxu0
          %v3777 = vadd.f32 0.0, %v3776
          %v3778 = vpop.f32.mrb[0].mxu0
          %v3779 = vadd.f32 0.0, %v3778
          %3780 = vdwg.mxu0
          %3781 = vmatprep.subr.mxu0 0.0
          %3782 = vmatpush1.msra.mxu0 %v3693
          %3783 = vmatprep.subr.mxu0 0.0
          %3784 = vmatpush1.msra.mxu0 %v3694
          %3785 = vmatprep.subr.mxu0 0.0
          %3786 = vmatpush1.msra.mxu0 0.0
          %3787 = vmatprep.subr.mxu0 0.0
          %3788 = vmatpush1.msra.mxu0 0.0
          %3789 = vmatprep.subr.mxu0 0.0
          %3790 = vmatpush1.msra.mxu0 0.0
          %3791 = vmatprep.subr.mxu0 0.0
          %3792 = vmatpush1.msra.mxu0 0.0
          %3793 = vmatprep.subr.mxu0 0.0
          %3794 = vmatpush1.msra.mxu0 0.0
          %3795 = vmatprep.subr.mxu0 0.0
          %3796 = vmatpush1.msra.mxu0 0.0
          %3797 = vmatprep.subr.mxu0 0.0
          %3798 = vmatpush1.msra.mxu0 0.0
          %3799 = vmatprep.subr.mxu0 0.0
          %3800 = vmatpush1.msra.mxu0 0.0
          %3801 = vmatprep.subr.mxu0 0.0
          %3802 = vmatpush1.msra.mxu0 0.0
          %3803 = vmatprep.subr.mxu0 0.0
          %3804 = vmatpush1.msra.mxu0 0.0
          %3805 = vmatprep.subr.mxu0 0.0
          %3806 = vmatpush1.msra.mxu0 0.0
          %3807 = vmatprep.subr.mxu0 0.0
          %3808 = vmatpush1.msra.mxu0 0.0
          %3809 = vmatprep.subr.mxu0 0.0
          %3810 = vmatpush1.msra.mxu0 0.0
          %3811 = vmatprep.subr.mxu0 0.0
          %3812 = vmatpush1.msra.mxu0 0.0
          %3813 = vmatprep.subr.mxu0 0.0
          %3814 = vmatpush1.msra.mxu0 0.0
          %3815 = vmatprep.subr.mxu0 0.0
          %3816 = vmatpush1.msra.mxu0 0.0
          %3817 = vmatprep.subr.mxu0 0.0
          %3818 = vmatpush1.msra.mxu0 0.0
          %3819 = vmatprep.subr.mxu0 0.0
          %3820 = vmatpush1.msra.mxu0 0.0
          %3821 = vmatprep.subr.mxu0 0.0
          %3822 = vmatpush1.msra.mxu0 0.0
          %3823 = vmatprep.subr.mxu0 0.0
          %3824 = vmatpush1.msra.mxu0 0.0
          %3825 = vmatprep.subr.mxu0 0.0
          %3826 = vmatpush1.msra.mxu0 0.0
          %3827 = vmatprep.subr.mxu0 0.0
          %3828 = vmatpush1.msra.mxu0 0.0
          %3829 = vmatprep.subr.mxu0 0.0
          %3830 = vmatpush1.msra.mxu0 0.0
          %3831 = vmatprep.subr.mxu0 0.0
          %3832 = vmatpush1.msra.mxu0 0.0
          %3833 = vmatprep.subr.mxu0 0.0
          %3834 = vmatpush1.msra.mxu0 0.0
          %3835 = vmatprep.subr.mxu0 0.0
          %3836 = vmatpush1.msra.mxu0 0.0
          %3837 = vmatprep.subr.mxu0 0.0
          %3838 = vmatpush1.msra.mxu0 0.0
          %3839 = vmatprep.subr.mxu0 0.0
          %3840 = vmatpush1.msra.mxu0 0.0
          %3841 = vmatprep.subr.mxu0 0.0
          %3842 = vmatpush1.msra.mxu0 0.0
          %3843 = vmatprep.subr.mxu0 0.0
          %3844 = vmatpush1.msra.mxu0 0.0
          %3845 = vmatprep.mubr.f32.mxu0 0.0
          %3846 = vmatmul.mubr.f32.gmra.mrb[0].mxu0 %v3699
          %v3847 = vpop.f32.mrb[0].mxu0
          %v3848 = vadd.f32 0.0, %v3847
          %v3849 = vpop.f32.mrb[0].mxu0
          %3850 = vmatprep.mubr.f32.mxu0 0.0
          %3851 = vmatmul.mubr.f32.gmra.mrb[0].mxu0 %v3702
          %v3852 = vpop.f32.mrb[0].mxu0
          %v3853 = vadd.f32 0.0, %v3852
          %v3854 = vpop.f32.mrb[0].mxu0
          %3855 = vdwg.mxu0
          %v3856 = vadd.f32 %v3592, %v3771
          %v3857 = vadd.f32 %v3594, %v3773
          %v3858 = vadd.f32 %v3669, %v3848
          %v3859 = vadd.f32 %v3598, %v3777
          %v3860 = vadd.f32 %v3600, %v3779
          %v3861 = vadd.f32 %v3674, %v3853
          %s3862 = scalar_lea.vmem %s6, 32
          %v3863 = vld [vmem:[%s3862] sm:$0xff]
          %v3864 = vld [vmem:[%s3862 + $0x8] sm:$0xff]
          %3866 = vset.pattern.permute.xlu0 0
          %3867 = vperm.xlu0 %3866, %v3863
          %v3868 = vpop.permute.xlu0 %3867
          %3871 = vset.pattern.permute.xlu0 0
          %3872 = vperm.xlu0 %3871, %v3864
          %v3873 = vpop.permute.xlu0 %3872
          %v3875 = vadd.f32 %v3856, %v3868
          %v3876 = vadd.f32 %v3857, %v3868
          %v3877 = vadd.f32 %v3858, %v3868
          %v3878 = vadd.f32 %v3859, %v3873
          %v3879 = vadd.f32 %v3860, %v3873
          %v3880 = vadd.f32 %v3861, %v3873
          %v3881 = vadd.f32 %v2761, %v3875
          %v3882 = vadd.f32 %v2762, %v3876
          %v3883 = vadd.f32 %v2763, %v3877
          %v3884 = vadd.f32 %v2764, %v3878
          %v3885 = vadd.f32 %v2765, %v3879
          %v3886 = vadd.f32 %v2766, %v3880
          %3887 = vst [vmem:[#allocation2] sm:$0xff] %v3881
          %3888 = vst [vmem:[#allocation2 + $0x8] sm:$0xff] %v3882
          %3889 = vst [vmem:[#allocation2 + $0x10] sm:$0xff] %v3883
          %3890 = vst [vmem:[#allocation2 + $0x18] sm:$0xff] %v3884
          %3891 = vst [vmem:[#allocation2 + $0x20] sm:$0xff] %v3885
          %3892 = vst [vmem:[#allocation2 + $0x28] sm:$0xff] %v3886
        $region166: #{residual_block.1} parent=149 // pred_fallthru
          _
        %p3893 = pneg %p495
        // Predicated region
        $region167: #{residual_block.1} parent=149 // pred_check
          _
        $region168: #{residual_block.1} parent=149 // pred_check_branch
          %3895 = sbr.rel (%p495) target = $region170
        $region169: #{residual_block.1} parent=149 // pred_region
          %v3896 = vlaneseq
          %v3897 = vand.u32 %v3896, 127
          %v3898 = vadd.s32 %v3897, 128
          %v3899 = vadd.s32 %v3897, 256
          %v3900 = vstv %s478
          %v3901 = vadd.s32 %v3900, %v3897
          %v3902 = vadd.s32 %v3900, %v3898
          %v3903 = vadd.s32 %v3900, %v3899
          %vm3904 = vcmp.ge.s32.totalorder %v3901, 0
          %vm3905 = vcmp.ge.s32.totalorder %v3902, 0
          %vm3906 = vcmp.ge.s32.totalorder %v3903, 0
          %vm3907 = vcmp.lt.s32.totalorder %v3901, 600
          %vm3908 = vcmp.lt.s32.totalorder %v3902, 600
          %vm3909 = vcmp.lt.s32.totalorder %v3903, 600
          %vm3910 = vmand %vm3904, %vm3907
          %vm3911 = vmand %vm3905, %vm3908
          %vm3912 = vmand %vm3906, %vm3909
          %v3913 = vld [vmem:[#allocation2] sm:$0xff]
          %v3914 = vld [vmem:[#allocation2 + $0x8] sm:$0xff]
          %v3915 = vld [vmem:[#allocation2 + $0x10] sm:$0xff]
          %v3916 = vld [vmem:[#allocation2 + $0x18] sm:$0xff]
          %v3917 = vld [vmem:[#allocation2 + $0x20] sm:$0xff]
          %v3918 = vld [vmem:[#allocation2 + $0x28] sm:$0xff]
          %v3919 = vmul.f32 %v3913, 0.1
          %v3920 = vmul.f32 %v3914, 0.1
          %v3921 = vmul.f32 %v3915, 0.1
          %v3922 = vmul.f32 %v3916, 0.1
          %v3923 = vmul.f32 %v3917, 0.1
          %v3924 = vmul.f32 %v3918, 0.1
          %v3925 = vmax.f32 %v3913, %v3919
          %v3926 = vmax.f32 %v3914, %v3920
          %v3927 = vmax.f32 %v3915, %v3921
          %v3928 = vmax.f32 %v3916, %v3922
          %v3929 = vmax.f32 %v3917, %v3923
          %v3930 = vmax.f32 %v3918, %v3924
          %v3931 = vsel %vm3910, 1, 0
          %v3932 = vsel %vm3911, 1, 0
          %v3933 = vsel %vm3912, 1, 0
          %vm3934 = vcmp.eq.s32.totalorder %v3931, 1
          %vm3935 = vcmp.eq.s32.totalorder %v3932, 1
          %vm3936 = vcmp.eq.s32.totalorder %v3933, 1
          %v3937 = vsel %vm3934, %v3925, 0.0
          %v3938 = vsel %vm3935, %v3926, 0.0
          %v3939 = vsel %vm3936, %v3927, 0.0
          %v3940 = vsel %vm3934, %v3928, 0.0
          %v3941 = vsel %vm3935, %v3929, 0.0
          %v3942 = vsel %vm3936, %v3930, 0.0
          %3943 = vrot.lane.b32.xlu0 %v3937, 1
          %v3944 = vpop.permute.xlu0 %3943
          %3945 = vrot.lane.b32.xlu0 %v3940, 1
          %v3946 = vpop.permute.xlu0 %3945
          %3947 = vrot.lane.b32.xlu0 %v3938, 1
          %v3948 = vpop.permute.xlu0 %3947
          %3949 = vrot.lane.b32.xlu0 %v3941, 1
          %v3950 = vpop.permute.xlu0 %3949
          %3951 = vrot.lane.b32.xlu0 %v3939, 1
          %v3952 = vpop.permute.xlu0 %3951
          %3953 = vrot.lane.b32.xlu0 %v3942, 1
          %v3954 = vpop.permute.xlu0 %3953
          %vm3955 = vcmp.lt.s32.totalorder %v3897, 1
          %v3956 = vsel %vm3955, %v3948, %v3952
          %v3957 = vsel %vm3955, %v3950, %v3954
          %v3958 = vsel %vm3955, %v3944, %v3948
          %v3959 = vsel %vm3955, %v3946, %v3950
          %v3960 = vsel %vm3955, %v3952, %v3944
          %v3961 = vsel %vm3955, %v3954, %v3946
          %v3962 = vld [vmem:[%s3] sm:$0xff]
          %v3963 = vld [vmem:[%s3 + $0x8] sm:$0xff]
          %s3964 = scalar_lea.vmem %s3, 16
          %v3965 = vld [vmem:[%s3964] sm:$0xff]
          %v3966 = vld [vmem:[%s3964 + $0x8] sm:$0xff]
          %vm3967 = vcmask 130048
          %v3969 = vsel %vm3967, %v3965, 0
          %v3972 = vsel %vm3967, %v3966, 0
          %3974 = vmatprep.subr.mxu0 %v3938
          %3975 = vmatpush1.msra.mxu0 %v3937
          %3976 = vmatprep.subr.mxu0 %v3941
          %3977 = vmatpush1.msra.mxu0 %v3940
          %3978 = vmatprep.subr.mxu0 0.0
          %3979 = vmatpush1.msra.mxu0 0.0
          %3980 = vmatprep.subr.mxu0 0.0
          %3981 = vmatpush1.msra.mxu0 0.0
          %3982 = vmatprep.subr.mxu0 0.0
          %3983 = vmatpush1.msra.mxu0 0.0
          %3984 = vmatprep.subr.mxu0 0.0
          %3985 = vmatpush1.msra.mxu0 0.0
          %3986 = vmatprep.subr.mxu0 0.0
          %3987 = vmatpush1.msra.mxu0 0.0
          %3988 = vmatprep.subr.mxu0 0.0
          %3989 = vmatpush1.msra.mxu0 0.0
          %3990 = vmatprep.subr.mxu0 0.0
          %3991 = vmatpush1.msra.mxu0 0.0
          %3992 = vmatprep.subr.mxu0 0.0
          %3993 = vmatpush1.msra.mxu0 0.0
          %3994 = vmatprep.subr.mxu0 0.0
          %3995 = vmatpush1.msra.mxu0 0.0
          %3996 = vmatprep.subr.mxu0 0.0
          %3997 = vmatpush1.msra.mxu0 0.0
          %3998 = vmatprep.subr.mxu0 0.0
          %3999 = vmatpush1.msra.mxu0 0.0
          %4000 = vmatprep.subr.mxu0 0.0
          %4001 = vmatpush1.msra.mxu0 0.0
          %4002 = vmatprep.subr.mxu0 0.0
          %4003 = vmatpush1.msra.mxu0 0.0
          %4004 = vmatprep.subr.mxu0 0.0
          %4005 = vmatpush1.msra.mxu0 0.0
          %4006 = vmatprep.subr.mxu0 0.0
          %4007 = vmatpush1.msra.mxu0 0.0
          %4008 = vmatprep.subr.mxu0 0.0
          %4009 = vmatpush1.msra.mxu0 0.0
          %4010 = vmatprep.subr.mxu0 0.0
          %4011 = vmatpush1.msra.mxu0 0.0
          %4012 = vmatprep.subr.mxu0 0.0
          %4013 = vmatpush1.msra.mxu0 0.0
          %4014 = vmatprep.subr.mxu0 0.0
          %4015 = vmatpush1.msra.mxu0 0.0
          %4016 = vmatprep.subr.mxu0 0.0
          %4017 = vmatpush1.msra.mxu0 0.0
          %4018 = vmatprep.subr.mxu0 0.0
          %4019 = vmatpush1.msra.mxu0 0.0
          %4020 = vmatprep.subr.mxu0 0.0
          %4021 = vmatpush1.msra.mxu0 0.0
          %4022 = vmatprep.subr.mxu0 0.0
          %4023 = vmatpush1.msra.mxu0 0.0
          %4024 = vmatprep.subr.mxu0 0.0
          %4025 = vmatpush1.msra.mxu0 0.0
          %4026 = vmatprep.subr.mxu0 0.0
          %4027 = vmatpush1.msra.mxu0 0.0
          %4028 = vmatprep.subr.mxu0 0.0
          %4029 = vmatpush1.msra.mxu0 0.0
          %4030 = vmatprep.subr.mxu0 0.0
          %4031 = vmatpush1.msra.mxu0 0.0
          %4032 = vmatprep.subr.mxu0 0.0
          %4033 = vmatpush1.msra.mxu0 0.0
          %4034 = vmatprep.subr.mxu0 0.0
          %4035 = vmatpush1.msra.mxu0 0.0
          %4036 = vmatprep.subr.mxu0 0.0
          %4037 = vmatpush1.msra.mxu0 0.0
          %4038 = vmatprep.mubr.f32.mxu0 0.0
          %4039 = vmatmul.mubr.f32.gmra.mrb[0].mxu0 %v3969
          %v4040 = vpop.f32.mrb[0].mxu0
          %v4041 = vadd.f32 0.0, %v4040
          %v4042 = vpop.f32.mrb[0].mxu0
          %v4043 = vadd.f32 0.0, %v4042
          %4044 = vmatprep.mubr.f32.mxu0 0.0
          %4045 = vmatmul.mubr.f32.gmra.mrb[0].mxu0 %v3972
          %v4046 = vpop.f32.mrb[0].mxu0
          %v4047 = vadd.f32 0.0, %v4046
          %v4048 = vpop.f32.mrb[0].mxu0
          %v4049 = vadd.f32 0.0, %v4048
          %4050 = vdwg.mxu0
          %4051 = vmatprep.subr.mxu0 0.0
          %4052 = vmatpush1.msra.mxu0 %v3939
          %4053 = vmatprep.subr.mxu0 0.0
          %4054 = vmatpush1.msra.mxu0 %v3942
          %4055 = vmatprep.subr.mxu0 0.0
          %4056 = vmatpush1.msra.mxu0 0.0
          %4057 = vmatprep.subr.mxu0 0.0
          %4058 = vmatpush1.msra.mxu0 0.0
          %4059 = vmatprep.subr.mxu0 0.0
          %4060 = vmatpush1.msra.mxu0 0.0
          %4061 = vmatprep.subr.mxu0 0.0
          %4062 = vmatpush1.msra.mxu0 0.0
          %4063 = vmatprep.subr.mxu0 0.0
          %4064 = vmatpush1.msra.mxu0 0.0
          %4065 = vmatprep.subr.mxu0 0.0
          %4066 = vmatpush1.msra.mxu0 0.0
          %4067 = vmatprep.subr.mxu0 0.0
          %4068 = vmatpush1.msra.mxu0 0.0
          %4069 = vmatprep.subr.mxu0 0.0
          %4070 = vmatpush1.msra.mxu0 0.0
          %4071 = vmatprep.subr.mxu0 0.0
          %4072 = vmatpush1.msra.mxu0 0.0
          %4073 = vmatprep.subr.mxu0 0.0
          %4074 = vmatpush1.msra.mxu0 0.0
          %4075 = vmatprep.subr.mxu0 0.0
          %4076 = vmatpush1.msra.mxu0 0.0
          %4077 = vmatprep.subr.mxu0 0.0
          %4078 = vmatpush1.msra.mxu0 0.0
          %4079 = vmatprep.subr.mxu0 0.0
          %4080 = vmatpush1.msra.mxu0 0.0
          %4081 = vmatprep.subr.mxu0 0.0
          %4082 = vmatpush1.msra.mxu0 0.0
          %4083 = vmatprep.subr.mxu0 0.0
          %4084 = vmatpush1.msra.mxu0 0.0
          %4085 = vmatprep.subr.mxu0 0.0
          %4086 = vmatpush1.msra.mxu0 0.0
          %4087 = vmatprep.subr.mxu0 0.0
          %4088 = vmatpush1.msra.mxu0 0.0
          %4089 = vmatprep.subr.mxu0 0.0
          %4090 = vmatpush1.msra.mxu0 0.0
          %4091 = vmatprep.subr.mxu0 0.0
          %4092 = vmatpush1.msra.mxu0 0.0
          %4093 = vmatprep.subr.mxu0 0.0
          %4094 = vmatpush1.msra.mxu0 0.0
          %4095 = vmatprep.subr.mxu0 0.0
          %4096 = vmatpush1.msra.mxu0 0.0
          %4097 = vmatprep.subr.mxu0 0.0
          %4098 = vmatpush1.msra.mxu0 0.0
          %4099 = vmatprep.subr.mxu0 0.0
          %4100 = vmatpush1.msra.mxu0 0.0
          %4101 = vmatprep.subr.mxu0 0.0
          %4102 = vmatpush1.msra.mxu0 0.0
          %4103 = vmatprep.subr.mxu0 0.0
          %4104 = vmatpush1.msra.mxu0 0.0
          %4105 = vmatprep.subr.mxu0 0.0
          %4106 = vmatpush1.msra.mxu0 0.0
          %4107 = vmatprep.subr.mxu0 0.0
          %4108 = vmatpush1.msra.mxu0 0.0
          %4109 = vmatprep.subr.mxu0 0.0
          %4110 = vmatpush1.msra.mxu0 0.0
          %4111 = vmatprep.subr.mxu0 0.0
          %4112 = vmatpush1.msra.mxu0 0.0
          %4113 = vmatprep.subr.mxu0 0.0
          %4114 = vmatpush1.msra.mxu0 0.0
          %4115 = vmatprep.mubr.f32.mxu0 0.0
          %4116 = vmatmul.mubr.f32.gmra.mrb[0].mxu0 %v3969
          %v4117 = vpop.f32.mrb[0].mxu0
          %v4118 = vadd.f32 0.0, %v4117
          %v4119 = vpop.f32.mrb[0].mxu0
          %4120 = vmatprep.mubr.f32.mxu0 0.0
          %4121 = vmatmul.mubr.f32.gmra.mrb[0].mxu0 %v3972
          %v4122 = vpop.f32.mrb[0].mxu0
          %v4123 = vadd.f32 0.0, %v4122
          %v4124 = vpop.f32.mrb[0].mxu0
          %4125 = vdwg.mxu0
          %v4127 = vsel %vm3967, %v3962, 0
          %v4130 = vsel %vm3967, %v3963, 0
          %4132 = vmatprep.subr.mxu0 %v3958
          %4133 = vmatpush1.msra.mxu0 %v3960
          %4134 = vmatprep.subr.mxu0 %v3959
          %4135 = vmatpush1.msra.mxu0 %v3961
          %4136 = vmatprep.subr.mxu0 0.0
          %4137 = vmatpush1.msra.mxu0 0.0
          %4138 = vmatprep.subr.mxu0 0.0
          %4139 = vmatpush1.msra.mxu0 0.0
          %4140 = vmatprep.subr.mxu0 0.0
          %4141 = vmatpush1.msra.mxu0 0.0
          %4142 = vmatprep.subr.mxu0 0.0
          %4143 = vmatpush1.msra.mxu0 0.0
          %4144 = vmatprep.subr.mxu0 0.0
          %4145 = vmatpush1.msra.mxu0 0.0
          %4146 = vmatprep.subr.mxu0 0.0
          %4147 = vmatpush1.msra.mxu0 0.0
          %4148 = vmatprep.subr.mxu0 0.0
          %4149 = vmatpush1.msra.mxu0 0.0
          %4150 = vmatprep.subr.mxu0 0.0
          %4151 = vmatpush1.msra.mxu0 0.0
          %4152 = vmatprep.subr.mxu0 0.0
          %4153 = vmatpush1.msra.mxu0 0.0
          %4154 = vmatprep.subr.mxu0 0.0
          %4155 = vmatpush1.msra.mxu0 0.0
          %4156 = vmatprep.subr.mxu0 0.0
          %4157 = vmatpush1.msra.mxu0 0.0
          %4158 = vmatprep.subr.mxu0 0.0
          %4159 = vmatpush1.msra.mxu0 0.0
          %4160 = vmatprep.subr.mxu0 0.0
          %4161 = vmatpush1.msra.mxu0 0.0
          %4162 = vmatprep.subr.mxu0 0.0
          %4163 = vmatpush1.msra.mxu0 0.0
          %4164 = vmatprep.subr.mxu0 0.0
          %4165 = vmatpush1.msra.mxu0 0.0
          %4166 = vmatprep.subr.mxu0 0.0
          %4167 = vmatpush1.msra.mxu0 0.0
          %4168 = vmatprep.subr.mxu0 0.0
          %4169 = vmatpush1.msra.mxu0 0.0
          %4170 = vmatprep.subr.mxu0 0.0
          %4171 = vmatpush1.msra.mxu0 0.0
          %4172 = vmatprep.subr.mxu0 0.0
          %4173 = vmatpush1.msra.mxu0 0.0
          %4174 = vmatprep.subr.mxu0 0.0
          %4175 = vmatpush1.msra.mxu0 0.0
          %4176 = vmatprep.subr.mxu0 0.0
          %4177 = vmatpush1.msra.mxu0 0.0
          %4178 = vmatprep.subr.mxu0 0.0
          %4179 = vmatpush1.msra.mxu0 0.0
          %4180 = vmatprep.subr.mxu0 0.0
          %4181 = vmatpush1.msra.mxu0 0.0
          %4182 = vmatprep.subr.mxu0 0.0
          %4183 = vmatpush1.msra.mxu0 0.0
          %4184 = vmatprep.subr.mxu0 0.0
          %4185 = vmatpush1.msra.mxu0 0.0
          %4186 = vmatprep.subr.mxu0 0.0
          %4187 = vmatpush1.msra.mxu0 0.0
          %4188 = vmatprep.subr.mxu0 0.0
          %4189 = vmatpush1.msra.mxu0 0.0
          %4190 = vmatprep.subr.mxu0 0.0
          %4191 = vmatpush1.msra.mxu0 0.0
          %4192 = vmatprep.subr.mxu0 0.0
          %4193 = vmatpush1.msra.mxu0 0.0
          %4194 = vmatprep.subr.mxu0 0.0
          %4195 = vmatpush1.msra.mxu0 0.0
          %4196 = vmatprep.mubr.f32.mxu0 0.0
          %4197 = vmatmul.mubr.f32.gmra.mrb[0].mxu0 %v4127
          %v4198 = vpop.f32.mrb[0].mxu0
          %v4199 = vadd.f32 %v4041, %v4198
          %v4200 = vpop.f32.mrb[0].mxu0
          %v4201 = vadd.f32 %v4043, %v4200
          %4202 = vmatprep.mubr.f32.mxu0 0.0
          %4203 = vmatmul.mubr.f32.gmra.mrb[0].mxu0 %v4130
          %v4204 = vpop.f32.mrb[0].mxu0
          %v4205 = vadd.f32 %v4047, %v4204
          %v4206 = vpop.f32.mrb[0].mxu0
          %v4207 = vadd.f32 %v4049, %v4206
          %4208 = vdwg.mxu0
          %4209 = vmatprep.subr.mxu0 0.0
          %4210 = vmatpush1.msra.mxu0 %v3956
          %4211 = vmatprep.subr.mxu0 0.0
          %4212 = vmatpush1.msra.mxu0 %v3957
          %4213 = vmatprep.subr.mxu0 0.0
          %4214 = vmatpush1.msra.mxu0 0.0
          %4215 = vmatprep.subr.mxu0 0.0
          %4216 = vmatpush1.msra.mxu0 0.0
          %4217 = vmatprep.subr.mxu0 0.0
          %4218 = vmatpush1.msra.mxu0 0.0
          %4219 = vmatprep.subr.mxu0 0.0
          %4220 = vmatpush1.msra.mxu0 0.0
          %4221 = vmatprep.subr.mxu0 0.0
          %4222 = vmatpush1.msra.mxu0 0.0
          %4223 = vmatprep.subr.mxu0 0.0
          %4224 = vmatpush1.msra.mxu0 0.0
          %4225 = vmatprep.subr.mxu0 0.0
          %4226 = vmatpush1.msra.mxu0 0.0
          %4227 = vmatprep.subr.mxu0 0.0
          %4228 = vmatpush1.msra.mxu0 0.0
          %4229 = vmatprep.subr.mxu0 0.0
          %4230 = vmatpush1.msra.mxu0 0.0
          %4231 = vmatprep.subr.mxu0 0.0
          %4232 = vmatpush1.msra.mxu0 0.0
          %4233 = vmatprep.subr.mxu0 0.0
          %4234 = vmatpush1.msra.mxu0 0.0
          %4235 = vmatprep.subr.mxu0 0.0
          %4236 = vmatpush1.msra.mxu0 0.0
          %4237 = vmatprep.subr.mxu0 0.0
          %4238 = vmatpush1.msra.mxu0 0.0
          %4239 = vmatprep.subr.mxu0 0.0
          %4240 = vmatpush1.msra.mxu0 0.0
          %4241 = vmatprep.subr.mxu0 0.0
          %4242 = vmatpush1.msra.mxu0 0.0
          %4243 = vmatprep.subr.mxu0 0.0
          %4244 = vmatpush1.msra.mxu0 0.0
          %4245 = vmatprep.subr.mxu0 0.0
          %4246 = vmatpush1.msra.mxu0 0.0
          %4247 = vmatprep.subr.mxu0 0.0
          %4248 = vmatpush1.msra.mxu0 0.0
          %4249 = vmatprep.subr.mxu0 0.0
          %4250 = vmatpush1.msra.mxu0 0.0
          %4251 = vmatprep.subr.mxu0 0.0
          %4252 = vmatpush1.msra.mxu0 0.0
          %4253 = vmatprep.subr.mxu0 0.0
          %4254 = vmatpush1.msra.mxu0 0.0
          %4255 = vmatprep.subr.mxu0 0.0
          %4256 = vmatpush1.msra.mxu0 0.0
          %4257 = vmatprep.subr.mxu0 0.0
          %4258 = vmatpush1.msra.mxu0 0.0
          %4259 = vmatprep.subr.mxu0 0.0
          %4260 = vmatpush1.msra.mxu0 0.0
          %4261 = vmatprep.subr.mxu0 0.0
          %4262 = vmatpush1.msra.mxu0 0.0
          %4263 = vmatprep.subr.mxu0 0.0
          %4264 = vmatpush1.msra.mxu0 0.0
          %4265 = vmatprep.subr.mxu0 0.0
          %4266 = vmatpush1.msra.mxu0 0.0
          %4267 = vmatprep.subr.mxu0 0.0
          %4268 = vmatpush1.msra.mxu0 0.0
          %4269 = vmatprep.subr.mxu0 0.0
          %4270 = vmatpush1.msra.mxu0 0.0
          %4271 = vmatprep.subr.mxu0 0.0
          %4272 = vmatpush1.msra.mxu0 0.0
          %4273 = vmatprep.mubr.f32.mxu0 0.0
          %4274 = vmatmul.mubr.f32.gmra.mrb[0].mxu0 %v4127
          %v4275 = vpop.f32.mrb[0].mxu0
          %v4276 = vadd.f32 %v4118, %v4275
          %v4277 = vpop.f32.mrb[0].mxu0
          %4278 = vmatprep.mubr.f32.mxu0 0.0
          %4279 = vmatmul.mubr.f32.gmra.mrb[0].mxu0 %v4130
          %v4280 = vpop.f32.mrb[0].mxu0
          %v4281 = vadd.f32 %v4123, %v4280
          %v4282 = vpop.f32.mrb[0].mxu0
          %4283 = vdwg.mxu0
          %4284 = vrot.lane.b32.xlu0 %v3937, 127
          %v4285 = vpop.permute.xlu0 %4284
          %4286 = vrot.lane.b32.xlu0 %v3940, 127
          %v4287 = vpop.permute.xlu0 %4286
          %4288 = vrot.lane.b32.xlu0 %v3938, 127
          %v4289 = vpop.permute.xlu0 %4288
          %4290 = vrot.lane.b32.xlu0 %v3941, 127
          %v4291 = vpop.permute.xlu0 %4290
          %4292 = vrot.lane.b32.xlu0 %v3939, 127
          %v4293 = vpop.permute.xlu0 %4292
          %4294 = vrot.lane.b32.xlu0 %v3942, 127
          %v4295 = vpop.permute.xlu0 %4294
          %vm4296 = vcmp.lt.s32.totalorder %v3897, 127
          %v4297 = vsel %vm4296, %v4289, %v4293
          %v4298 = vsel %vm4296, %v4291, %v4295
          %v4299 = vsel %vm4296, %v4285, %v4289
          %v4300 = vsel %vm4296, %v4287, %v4291
          %v4301 = vsel %vm4296, %v4293, %v4285
          %v4302 = vsel %vm4296, %v4295, %v4287
          %s4303 = scalar_lea.vmem %s3, 32
          %v4304 = vld [vmem:[%s4303] sm:$0xff]
          %v4305 = vld [vmem:[%s4303 + $0x8] sm:$0xff]
          %v4307 = vsel %vm3967, %v4304, 0
          %v4310 = vsel %vm3967, %v4305, 0
          %4312 = vmatprep.subr.mxu0 %v4297
          %4313 = vmatpush1.msra.mxu0 %v4299
          %4314 = vmatprep.subr.mxu0 %v4298
          %4315 = vmatpush1.msra.mxu0 %v4300
          %4316 = vmatprep.subr.mxu0 0.0
          %4317 = vmatpush1.msra.mxu0 0.0
          %4318 = vmatprep.subr.mxu0 0.0
          %4319 = vmatpush1.msra.mxu0 0.0
          %4320 = vmatprep.subr.mxu0 0.0
          %4321 = vmatpush1.msra.mxu0 0.0
          %4322 = vmatprep.subr.mxu0 0.0
          %4323 = vmatpush1.msra.mxu0 0.0
          %4324 = vmatprep.subr.mxu0 0.0
          %4325 = vmatpush1.msra.mxu0 0.0
          %4326 = vmatprep.subr.mxu0 0.0
          %4327 = vmatpush1.msra.mxu0 0.0
          %4328 = vmatprep.subr.mxu0 0.0
          %4329 = vmatpush1.msra.mxu0 0.0
          %4330 = vmatprep.subr.mxu0 0.0
          %4331 = vmatpush1.msra.mxu0 0.0
          %4332 = vmatprep.subr.mxu0 0.0
          %4333 = vmatpush1.msra.mxu0 0.0
          %4334 = vmatprep.subr.mxu0 0.0
          %4335 = vmatpush1.msra.mxu0 0.0
          %4336 = vmatprep.subr.mxu0 0.0
          %4337 = vmatpush1.msra.mxu0 0.0
          %4338 = vmatprep.subr.mxu0 0.0
          %4339 = vmatpush1.msra.mxu0 0.0
          %4340 = vmatprep.subr.mxu0 0.0
          %4341 = vmatpush1.msra.mxu0 0.0
          %4342 = vmatprep.subr.mxu0 0.0
          %4343 = vmatpush1.msra.mxu0 0.0
          %4344 = vmatprep.subr.mxu0 0.0
          %4345 = vmatpush1.msra.mxu0 0.0
          %4346 = vmatprep.subr.mxu0 0.0
          %4347 = vmatpush1.msra.mxu0 0.0
          %4348 = vmatprep.subr.mxu0 0.0
          %4349 = vmatpush1.msra.mxu0 0.0
          %4350 = vmatprep.subr.mxu0 0.0
          %4351 = vmatpush1.msra.mxu0 0.0
          %4352 = vmatprep.subr.mxu0 0.0
          %4353 = vmatpush1.msra.mxu0 0.0
          %4354 = vmatprep.subr.mxu0 0.0
          %4355 = vmatpush1.msra.mxu0 0.0
          %4356 = vmatprep.subr.mxu0 0.0
          %4357 = vmatpush1.msra.mxu0 0.0
          %4358 = vmatprep.subr.mxu0 0.0
          %4359 = vmatpush1.msra.mxu0 0.0
          %4360 = vmatprep.subr.mxu0 0.0
          %4361 = vmatpush1.msra.mxu0 0.0
          %4362 = vmatprep.subr.mxu0 0.0
          %4363 = vmatpush1.msra.mxu0 0.0
          %4364 = vmatprep.subr.mxu0 0.0
          %4365 = vmatpush1.msra.mxu0 0.0
          %4366 = vmatprep.subr.mxu0 0.0
          %4367 = vmatpush1.msra.mxu0 0.0
          %4368 = vmatprep.subr.mxu0 0.0
          %4369 = vmatpush1.msra.mxu0 0.0
          %4370 = vmatprep.subr.mxu0 0.0
          %4371 = vmatpush1.msra.mxu0 0.0
          %4372 = vmatprep.subr.mxu0 0.0
          %4373 = vmatpush1.msra.mxu0 0.0
          %4374 = vmatprep.subr.mxu0 0.0
          %4375 = vmatpush1.msra.mxu0 0.0
          %4376 = vmatprep.mubr.f32.mxu0 0.0
          %4377 = vmatmul.mubr.f32.gmra.mrb[0].mxu0 %v4307
          %v4378 = vpop.f32.mrb[0].mxu0
          %v4379 = vadd.f32 0.0, %v4378
          %v4380 = vpop.f32.mrb[0].mxu0
          %v4381 = vadd.f32 0.0, %v4380
          %4382 = vmatprep.mubr.f32.mxu0 0.0
          %4383 = vmatmul.mubr.f32.gmra.mrb[0].mxu0 %v4310
          %v4384 = vpop.f32.mrb[0].mxu0
          %v4385 = vadd.f32 0.0, %v4384
          %v4386 = vpop.f32.mrb[0].mxu0
          %v4387 = vadd.f32 0.0, %v4386
          %4388 = vdwg.mxu0
          %4389 = vmatprep.subr.mxu0 0.0
          %4390 = vmatpush1.msra.mxu0 %v4301
          %4391 = vmatprep.subr.mxu0 0.0
          %4392 = vmatpush1.msra.mxu0 %v4302
          %4393 = vmatprep.subr.mxu0 0.0
          %4394 = vmatpush1.msra.mxu0 0.0
          %4395 = vmatprep.subr.mxu0 0.0
          %4396 = vmatpush1.msra.mxu0 0.0
          %4397 = vmatprep.subr.mxu0 0.0
          %4398 = vmatpush1.msra.mxu0 0.0
          %4399 = vmatprep.subr.mxu0 0.0
          %4400 = vmatpush1.msra.mxu0 0.0
          %4401 = vmatprep.subr.mxu0 0.0
          %4402 = vmatpush1.msra.mxu0 0.0
          %4403 = vmatprep.subr.mxu0 0.0
          %4404 = vmatpush1.msra.mxu0 0.0
          %4405 = vmatprep.subr.mxu0 0.0
          %4406 = vmatpush1.msra.mxu0 0.0
          %4407 = vmatprep.subr.mxu0 0.0
          %4408 = vmatpush1.msra.mxu0 0.0
          %4409 = vmatprep.subr.mxu0 0.0
          %4410 = vmatpush1.msra.mxu0 0.0
          %4411 = vmatprep.subr.mxu0 0.0
          %4412 = vmatpush1.msra.mxu0 0.0
          %4413 = vmatprep.subr.mxu0 0.0
          %4414 = vmatpush1.msra.mxu0 0.0
          %4415 = vmatprep.subr.mxu0 0.0
          %4416 = vmatpush1.msra.mxu0 0.0
          %4417 = vmatprep.subr.mxu0 0.0
          %4418 = vmatpush1.msra.mxu0 0.0
          %4419 = vmatprep.subr.mxu0 0.0
          %4420 = vmatpush1.msra.mxu0 0.0
          %4421 = vmatprep.subr.mxu0 0.0
          %4422 = vmatpush1.msra.mxu0 0.0
          %4423 = vmatprep.subr.mxu0 0.0
          %4424 = vmatpush1.msra.mxu0 0.0
          %4425 = vmatprep.subr.mxu0 0.0
          %4426 = vmatpush1.msra.mxu0 0.0
          %4427 = vmatprep.subr.mxu0 0.0
          %4428 = vmatpush1.msra.mxu0 0.0
          %4429 = vmatprep.subr.mxu0 0.0
          %4430 = vmatpush1.msra.mxu0 0.0
          %4431 = vmatprep.subr.mxu0 0.0
          %4432 = vmatpush1.msra.mxu0 0.0
          %4433 = vmatprep.subr.mxu0 0.0
          %4434 = vmatpush1.msra.mxu0 0.0
          %4435 = vmatprep.subr.mxu0 0.0
          %4436 = vmatpush1.msra.mxu0 0.0
          %4437 = vmatprep.subr.mxu0 0.0
          %4438 = vmatpush1.msra.mxu0 0.0
          %4439 = vmatprep.subr.mxu0 0.0
          %4440 = vmatpush1.msra.mxu0 0.0
          %4441 = vmatprep.subr.mxu0 0.0
          %4442 = vmatpush1.msra.mxu0 0.0
          %4443 = vmatprep.subr.mxu0 0.0
          %4444 = vmatpush1.msra.mxu0 0.0
          %4445 = vmatprep.subr.mxu0 0.0
          %4446 = vmatpush1.msra.mxu0 0.0
          %4447 = vmatprep.subr.mxu0 0.0
          %4448 = vmatpush1.msra.mxu0 0.0
          %4449 = vmatprep.subr.mxu0 0.0
          %4450 = vmatpush1.msra.mxu0 0.0
          %4451 = vmatprep.subr.mxu0 0.0
          %4452 = vmatpush1.msra.mxu0 0.0
          %4453 = vmatprep.mubr.f32.mxu0 0.0
          %4454 = vmatmul.mubr.f32.gmra.mrb[0].mxu0 %v4307
          %v4455 = vpop.f32.mrb[0].mxu0
          %v4456 = vadd.f32 0.0, %v4455
          %v4457 = vpop.f32.mrb[0].mxu0
          %4458 = vmatprep.mubr.f32.mxu0 0.0
          %4459 = vmatmul.mubr.f32.gmra.mrb[0].mxu0 %v4310
          %v4460 = vpop.f32.mrb[0].mxu0
          %v4461 = vadd.f32 0.0, %v4460
          %v4462 = vpop.f32.mrb[0].mxu0
          %4463 = vdwg.mxu0
          %v4464 = vadd.f32 %v4199, %v4379
          %v4465 = vadd.f32 %v4201, %v4381
          %v4466 = vadd.f32 %v4276, %v4456
          %v4467 = vadd.f32 %v4205, %v4385
          %v4468 = vadd.f32 %v4207, %v4387
          %v4469 = vadd.f32 %v4281, %v4461
          %v4470 = vld [vmem:[%s4] sm:$0xff]
          %v4471 = vld [vmem:[%s4 + $0x8] sm:$0xff]
          %4473 = vset.pattern.permute.xlu0 0
          %4474 = vperm.xlu0 %4473, %v4470
          %v4475 = vpop.permute.xlu0 %4474
          %4478 = vset.pattern.permute.xlu0 0
          %4479 = vperm.xlu0 %4478, %v4471
          %v4480 = vpop.permute.xlu0 %4479
          %v4482 = vadd.f32 %v4464, %v4475
          %v4483 = vadd.f32 %v4465, %v4475
          %v4484 = vadd.f32 %v4466, %v4475
          %v4485 = vadd.f32 %v4467, %v4480
          %v4486 = vadd.f32 %v4468, %v4480
          %v4487 = vadd.f32 %v4469, %v4480
          %v4488 = vmul.f32 %v4482, 0.1
          %v4489 = vmul.f32 %v4483, 0.1
          %v4490 = vmul.f32 %v4484, 0.1
          %v4491 = vmul.f32 %v4485, 0.1
          %v4492 = vmul.f32 %v4486, 0.1
          %v4493 = vmul.f32 %v4487, 0.1
          %v4494 = vmax.f32 %v4482, %v4488
          %v4495 = vmax.f32 %v4483, %v4489
          %v4496 = vmax.f32 %v4484, %v4490
          %v4497 = vmax.f32 %v4485, %v4491
          %v4498 = vmax.f32 %v4486, %v4492
          %v4499 = vmax.f32 %v4487, %v4493
          %v4500 = vsel %vm3934, %v4494, 0.0
          %v4501 = vsel %vm3935, %v4495, 0.0
          %v4502 = vsel %vm3936, %v4496, 0.0
          %v4503 = vsel %vm3934, %v4497, 0.0
          %v4504 = vsel %vm3935, %v4498, 0.0
          %v4505 = vsel %vm3936, %v4499, 0.0
          %4506 = vrot.lane.b32.xlu0 %v4500, 1
          %v4507 = vpop.permute.xlu0 %4506
          %4508 = vrot.lane.b32.xlu0 %v4503, 1
          %v4509 = vpop.permute.xlu0 %4508
          %4510 = vrot.lane.b32.xlu0 %v4501, 1
          %v4511 = vpop.permute.xlu0 %4510
          %4512 = vrot.lane.b32.xlu0 %v4504, 1
          %v4513 = vpop.permute.xlu0 %4512
          %4514 = vrot.lane.b32.xlu0 %v4502, 1
          %v4515 = vpop.permute.xlu0 %4514
          %4516 = vrot.lane.b32.xlu0 %v4505, 1
          %v4517 = vpop.permute.xlu0 %4516
          %v4518 = vsel %vm3955, %v4511, %v4515
          %v4519 = vsel %vm3955, %v4513, %v4517
          %v4520 = vsel %vm3955, %v4507, %v4511
          %v4521 = vsel %vm3955, %v4509, %v4513
          %v4522 = vsel %vm3955, %v4515, %v4507
          %v4523 = vsel %vm3955, %v4517, %v4509
          %v4524 = vld [vmem:[%s5] sm:$0xff]
          %v4525 = vld [vmem:[%s5 + $0x8] sm:$0xff]
          %s4526 = scalar_lea.vmem %s5, 16
          %v4527 = vld [vmem:[%s4526] sm:$0xff]
          %v4528 = vld [vmem:[%s4526 + $0x8] sm:$0xff]
          %v4530 = vsel %vm3967, %v4527, 0
          %v4533 = vsel %vm3967, %v4528, 0
          %4535 = vmatprep.subr.mxu0 %v4501
          %4536 = vmatpush1.msra.mxu0 %v4500
          %4537 = vmatprep.subr.mxu0 %v4504
          %4538 = vmatpush1.msra.mxu0 %v4503
          %4539 = vmatprep.subr.mxu0 0.0
          %4540 = vmatpush1.msra.mxu0 0.0
          %4541 = vmatprep.subr.mxu0 0.0
          %4542 = vmatpush1.msra.mxu0 0.0
          %4543 = vmatprep.subr.mxu0 0.0
          %4544 = vmatpush1.msra.mxu0 0.0
          %4545 = vmatprep.subr.mxu0 0.0
          %4546 = vmatpush1.msra.mxu0 0.0
          %4547 = vmatprep.subr.mxu0 0.0
          %4548 = vmatpush1.msra.mxu0 0.0
          %4549 = vmatprep.subr.mxu0 0.0
          %4550 = vmatpush1.msra.mxu0 0.0
          %4551 = vmatprep.subr.mxu0 0.0
          %4552 = vmatpush1.msra.mxu0 0.0
          %4553 = vmatprep.subr.mxu0 0.0
          %4554 = vmatpush1.msra.mxu0 0.0
          %4555 = vmatprep.subr.mxu0 0.0
          %4556 = vmatpush1.msra.mxu0 0.0
          %4557 = vmatprep.subr.mxu0 0.0
          %4558 = vmatpush1.msra.mxu0 0.0
          %4559 = vmatprep.subr.mxu0 0.0
          %4560 = vmatpush1.msra.mxu0 0.0
          %4561 = vmatprep.subr.mxu0 0.0
          %4562 = vmatpush1.msra.mxu0 0.0
          %4563 = vmatprep.subr.mxu0 0.0
          %4564 = vmatpush1.msra.mxu0 0.0
          %4565 = vmatprep.subr.mxu0 0.0
          %4566 = vmatpush1.msra.mxu0 0.0
          %4567 = vmatprep.subr.mxu0 0.0
          %4568 = vmatpush1.msra.mxu0 0.0
          %4569 = vmatprep.subr.mxu0 0.0
          %4570 = vmatpush1.msra.mxu0 0.0
          %4571 = vmatprep.subr.mxu0 0.0
          %4572 = vmatpush1.msra.mxu0 0.0
          %4573 = vmatprep.subr.mxu0 0.0
          %4574 = vmatpush1.msra.mxu0 0.0
          %4575 = vmatprep.subr.mxu0 0.0
          %4576 = vmatpush1.msra.mxu0 0.0
          %4577 = vmatprep.subr.mxu0 0.0
          %4578 = vmatpush1.msra.mxu0 0.0
          %4579 = vmatprep.subr.mxu0 0.0
          %4580 = vmatpush1.msra.mxu0 0.0
          %4581 = vmatprep.subr.mxu0 0.0
          %4582 = vmatpush1.msra.mxu0 0.0
          %4583 = vmatprep.subr.mxu0 0.0
          %4584 = vmatpush1.msra.mxu0 0.0
          %4585 = vmatprep.subr.mxu0 0.0
          %4586 = vmatpush1.msra.mxu0 0.0
          %4587 = vmatprep.subr.mxu0 0.0
          %4588 = vmatpush1.msra.mxu0 0.0
          %4589 = vmatprep.subr.mxu0 0.0
          %4590 = vmatpush1.msra.mxu0 0.0
          %4591 = vmatprep.subr.mxu0 0.0
          %4592 = vmatpush1.msra.mxu0 0.0
          %4593 = vmatprep.subr.mxu0 0.0
          %4594 = vmatpush1.msra.mxu0 0.0
          %4595 = vmatprep.subr.mxu0 0.0
          %4596 = vmatpush1.msra.mxu0 0.0
          %4597 = vmatprep.subr.mxu0 0.0
          %4598 = vmatpush1.msra.mxu0 0.0
          %4599 = vmatprep.mubr.f32.mxu0 0.0
          %4600 = vmatmul.mubr.f32.gmra.mrb[0].mxu0 %v4530
          %v4601 = vpop.f32.mrb[0].mxu0
          %v4602 = vadd.f32 0.0, %v4601
          %v4603 = vpop.f32.mrb[0].mxu0
          %v4604 = vadd.f32 0.0, %v4603
          %4605 = vmatprep.mubr.f32.mxu0 0.0
          %4606 = vmatmul.mubr.f32.gmra.mrb[0].mxu0 %v4533
          %v4607 = vpop.f32.mrb[0].mxu0
          %v4608 = vadd.f32 0.0, %v4607
          %v4609 = vpop.f32.mrb[0].mxu0
          %v4610 = vadd.f32 0.0, %v4609
          %4611 = vdwg.mxu0
          %4612 = vmatprep.subr.mxu0 0.0
          %4613 = vmatpush1.msra.mxu0 %v4502
          %4614 = vmatprep.subr.mxu0 0.0
          %4615 = vmatpush1.msra.mxu0 %v4505
          %4616 = vmatprep.subr.mxu0 0.0
          %4617 = vmatpush1.msra.mxu0 0.0
          %4618 = vmatprep.subr.mxu0 0.0
          %4619 = vmatpush1.msra.mxu0 0.0
          %4620 = vmatprep.subr.mxu0 0.0
          %4621 = vmatpush1.msra.mxu0 0.0
          %4622 = vmatprep.subr.mxu0 0.0
          %4623 = vmatpush1.msra.mxu0 0.0
          %4624 = vmatprep.subr.mxu0 0.0
          %4625 = vmatpush1.msra.mxu0 0.0
          %4626 = vmatprep.subr.mxu0 0.0
          %4627 = vmatpush1.msra.mxu0 0.0
          %4628 = vmatprep.subr.mxu0 0.0
          %4629 = vmatpush1.msra.mxu0 0.0
          %4630 = vmatprep.subr.mxu0 0.0
          %4631 = vmatpush1.msra.mxu0 0.0
          %4632 = vmatprep.subr.mxu0 0.0
          %4633 = vmatpush1.msra.mxu0 0.0
          %4634 = vmatprep.subr.mxu0 0.0
          %4635 = vmatpush1.msra.mxu0 0.0
          %4636 = vmatprep.subr.mxu0 0.0
          %4637 = vmatpush1.msra.mxu0 0.0
          %4638 = vmatprep.subr.mxu0 0.0
          %4639 = vmatpush1.msra.mxu0 0.0
          %4640 = vmatprep.subr.mxu0 0.0
          %4641 = vmatpush1.msra.mxu0 0.0
          %4642 = vmatprep.subr.mxu0 0.0
          %4643 = vmatpush1.msra.mxu0 0.0
          %4644 = vmatprep.subr.mxu0 0.0
          %4645 = vmatpush1.msra.mxu0 0.0
          %4646 = vmatprep.subr.mxu0 0.0
          %4647 = vmatpush1.msra.mxu0 0.0
          %4648 = vmatprep.subr.mxu0 0.0
          %4649 = vmatpush1.msra.mxu0 0.0
          %4650 = vmatprep.subr.mxu0 0.0
          %4651 = vmatpush1.msra.mxu0 0.0
          %4652 = vmatprep.subr.mxu0 0.0
          %4653 = vmatpush1.msra.mxu0 0.0
          %4654 = vmatprep.subr.mxu0 0.0
          %4655 = vmatpush1.msra.mxu0 0.0
          %4656 = vmatprep.subr.mxu0 0.0
          %4657 = vmatpush1.msra.mxu0 0.0
          %4658 = vmatprep.subr.mxu0 0.0
          %4659 = vmatpush1.msra.mxu0 0.0
          %4660 = vmatprep.subr.mxu0 0.0
          %4661 = vmatpush1.msra.mxu0 0.0
          %4662 = vmatprep.subr.mxu0 0.0
          %4663 = vmatpush1.msra.mxu0 0.0
          %4664 = vmatprep.subr.mxu0 0.0
          %4665 = vmatpush1.msra.mxu0 0.0
          %4666 = vmatprep.subr.mxu0 0.0
          %4667 = vmatpush1.msra.mxu0 0.0
          %4668 = vmatprep.subr.mxu0 0.0
          %4669 = vmatpush1.msra.mxu0 0.0
          %4670 = vmatprep.subr.mxu0 0.0
          %4671 = vmatpush1.msra.mxu0 0.0
          %4672 = vmatprep.subr.mxu0 0.0
          %4673 = vmatpush1.msra.mxu0 0.0
          %4674 = vmatprep.subr.mxu0 0.0
          %4675 = vmatpush1.msra.mxu0 0.0
          %4676 = vmatprep.mubr.f32.mxu0 0.0
          %4677 = vmatmul.mubr.f32.gmra.mrb[0].mxu0 %v4530
          %v4678 = vpop.f32.mrb[0].mxu0
          %v4679 = vadd.f32 0.0, %v4678
          %v4680 = vpop.f32.mrb[0].mxu0
          %4681 = vmatprep.mubr.f32.mxu0 0.0
          %4682 = vmatmul.mubr.f32.gmra.mrb[0].mxu0 %v4533
          %v4683 = vpop.f32.mrb[0].mxu0
          %v4684 = vadd.f32 0.0, %v4683
          %v4685 = vpop.f32.mrb[0].mxu0
          %4686 = vdwg.mxu0
          %v4688 = vsel %vm3967, %v4524, 0
          %v4691 = vsel %vm3967, %v4525, 0
          %4693 = vmatprep.subr.mxu0 %v4520
          %4694 = vmatpush1.msra.mxu0 %v4522
          %4695 = vmatprep.subr.mxu0 %v4521
          %4696 = vmatpush1.msra.mxu0 %v4523
          %4697 = vmatprep.subr.mxu0 0.0
          %4698 = vmatpush1.msra.mxu0 0.0
          %4699 = vmatprep.subr.mxu0 0.0
          %4700 = vmatpush1.msra.mxu0 0.0
          %4701 = vmatprep.subr.mxu0 0.0
          %4702 = vmatpush1.msra.mxu0 0.0
          %4703 = vmatprep.subr.mxu0 0.0
          %4704 = vmatpush1.msra.mxu0 0.0
          %4705 = vmatprep.subr.mxu0 0.0
          %4706 = vmatpush1.msra.mxu0 0.0
          %4707 = vmatprep.subr.mxu0 0.0
          %4708 = vmatpush1.msra.mxu0 0.0
          %4709 = vmatprep.subr.mxu0 0.0
          %4710 = vmatpush1.msra.mxu0 0.0
          %4711 = vmatprep.subr.mxu0 0.0
          %4712 = vmatpush1.msra.mxu0 0.0
          %4713 = vmatprep.subr.mxu0 0.0
          %4714 = vmatpush1.msra.mxu0 0.0
          %4715 = vmatprep.subr.mxu0 0.0
          %4716 = vmatpush1.msra.mxu0 0.0
          %4717 = vmatprep.subr.mxu0 0.0
          %4718 = vmatpush1.msra.mxu0 0.0
          %4719 = vmatprep.subr.mxu0 0.0
          %4720 = vmatpush1.msra.mxu0 0.0
          %4721 = vmatprep.subr.mxu0 0.0
          %4722 = vmatpush1.msra.mxu0 0.0
          %4723 = vmatprep.subr.mxu0 0.0
          %4724 = vmatpush1.msra.mxu0 0.0
          %4725 = vmatprep.subr.mxu0 0.0
          %4726 = vmatpush1.msra.mxu0 0.0
          %4727 = vmatprep.subr.mxu0 0.0
          %4728 = vmatpush1.msra.mxu0 0.0
          %4729 = vmatprep.subr.mxu0 0.0
          %4730 = vmatpush1.msra.mxu0 0.0
          %4731 = vmatprep.subr.mxu0 0.0
          %4732 = vmatpush1.msra.mxu0 0.0
          %4733 = vmatprep.subr.mxu0 0.0
          %4734 = vmatpush1.msra.mxu0 0.0
          %4735 = vmatprep.subr.mxu0 0.0
          %4736 = vmatpush1.msra.mxu0 0.0
          %4737 = vmatprep.subr.mxu0 0.0
          %4738 = vmatpush1.msra.mxu0 0.0
          %4739 = vmatprep.subr.mxu0 0.0
          %4740 = vmatpush1.msra.mxu0 0.0
          %4741 = vmatprep.subr.mxu0 0.0
          %4742 = vmatpush1.msra.mxu0 0.0
          %4743 = vmatprep.subr.mxu0 0.0
          %4744 = vmatpush1.msra.mxu0 0.0
          %4745 = vmatprep.subr.mxu0 0.0
          %4746 = vmatpush1.msra.mxu0 0.0
          %4747 = vmatprep.subr.mxu0 0.0
          %4748 = vmatpush1.msra.mxu0 0.0
          %4749 = vmatprep.subr.mxu0 0.0
          %4750 = vmatpush1.msra.mxu0 0.0
          %4751 = vmatprep.subr.mxu0 0.0
          %4752 = vmatpush1.msra.mxu0 0.0
          %4753 = vmatprep.subr.mxu0 0.0
          %4754 = vmatpush1.msra.mxu0 0.0
          %4755 = vmatprep.subr.mxu0 0.0
          %4756 = vmatpush1.msra.mxu0 0.0
          %4757 = vmatprep.mubr.f32.mxu0 0.0
          %4758 = vmatmul.mubr.f32.gmra.mrb[0].mxu0 %v4688
          %v4759 = vpop.f32.mrb[0].mxu0
          %v4760 = vadd.f32 %v4602, %v4759
          %v4761 = vpop.f32.mrb[0].mxu0
          %v4762 = vadd.f32 %v4604, %v4761
          %4763 = vmatprep.mubr.f32.mxu0 0.0
          %4764 = vmatmul.mubr.f32.gmra.mrb[0].mxu0 %v4691
          %v4765 = vpop.f32.mrb[0].mxu0
          %v4766 = vadd.f32 %v4608, %v4765
          %v4767 = vpop.f32.mrb[0].mxu0
          %v4768 = vadd.f32 %v4610, %v4767
          %4769 = vdwg.mxu0
          %4770 = vmatprep.subr.mxu0 0.0
          %4771 = vmatpush1.msra.mxu0 %v4518
          %4772 = vmatprep.subr.mxu0 0.0
          %4773 = vmatpush1.msra.mxu0 %v4519
          %4774 = vmatprep.subr.mxu0 0.0
          %4775 = vmatpush1.msra.mxu0 0.0
          %4776 = vmatprep.subr.mxu0 0.0
          %4777 = vmatpush1.msra.mxu0 0.0
          %4778 = vmatprep.subr.mxu0 0.0
          %4779 = vmatpush1.msra.mxu0 0.0
          %4780 = vmatprep.subr.mxu0 0.0
          %4781 = vmatpush1.msra.mxu0 0.0
          %4782 = vmatprep.subr.mxu0 0.0
          %4783 = vmatpush1.msra.mxu0 0.0
          %4784 = vmatprep.subr.mxu0 0.0
          %4785 = vmatpush1.msra.mxu0 0.0
          %4786 = vmatprep.subr.mxu0 0.0
          %4787 = vmatpush1.msra.mxu0 0.0
          %4788 = vmatprep.subr.mxu0 0.0
          %4789 = vmatpush1.msra.mxu0 0.0
          %4790 = vmatprep.subr.mxu0 0.0
          %4791 = vmatpush1.msra.mxu0 0.0
          %4792 = vmatprep.subr.mxu0 0.0
          %4793 = vmatpush1.msra.mxu0 0.0
          %4794 = vmatprep.subr.mxu0 0.0
          %4795 = vmatpush1.msra.mxu0 0.0
          %4796 = vmatprep.subr.mxu0 0.0
          %4797 = vmatpush1.msra.mxu0 0.0
          %4798 = vmatprep.subr.mxu0 0.0
          %4799 = vmatpush1.msra.mxu0 0.0
          %4800 = vmatprep.subr.mxu0 0.0
          %4801 = vmatpush1.msra.mxu0 0.0
          %4802 = vmatprep.subr.mxu0 0.0
          %4803 = vmatpush1.msra.mxu0 0.0
          %4804 = vmatprep.subr.mxu0 0.0
          %4805 = vmatpush1.msra.mxu0 0.0
          %4806 = vmatprep.subr.mxu0 0.0
          %4807 = vmatpush1.msra.mxu0 0.0
          %4808 = vmatprep.subr.mxu0 0.0
          %4809 = vmatpush1.msra.mxu0 0.0
          %4810 = vmatprep.subr.mxu0 0.0
          %4811 = vmatpush1.msra.mxu0 0.0
          %4812 = vmatprep.subr.mxu0 0.0
          %4813 = vmatpush1.msra.mxu0 0.0
          %4814 = vmatprep.subr.mxu0 0.0
          %4815 = vmatpush1.msra.mxu0 0.0
          %4816 = vmatprep.subr.mxu0 0.0
          %4817 = vmatpush1.msra.mxu0 0.0
          %4818 = vmatprep.subr.mxu0 0.0
          %4819 = vmatpush1.msra.mxu0 0.0
          %4820 = vmatprep.subr.mxu0 0.0
          %4821 = vmatpush1.msra.mxu0 0.0
          %4822 = vmatprep.subr.mxu0 0.0
          %4823 = vmatpush1.msra.mxu0 0.0
          %4824 = vmatprep.subr.mxu0 0.0
          %4825 = vmatpush1.msra.mxu0 0.0
          %4826 = vmatprep.subr.mxu0 0.0
          %4827 = vmatpush1.msra.mxu0 0.0
          %4828 = vmatprep.subr.mxu0 0.0
          %4829 = vmatpush1.msra.mxu0 0.0
          %4830 = vmatprep.subr.mxu0 0.0
          %4831 = vmatpush1.msra.mxu0 0.0
          %4832 = vmatprep.subr.mxu0 0.0
          %4833 = vmatpush1.msra.mxu0 0.0
          %4834 = vmatprep.mubr.f32.mxu0 0.0
          %4835 = vmatmul.mubr.f32.gmra.mrb[0].mxu0 %v4688
          %v4836 = vpop.f32.mrb[0].mxu0
          %v4837 = vadd.f32 %v4679, %v4836
          %v4838 = vpop.f32.mrb[0].mxu0
          %4839 = vmatprep.mubr.f32.mxu0 0.0
          %4840 = vmatmul.mubr.f32.gmra.mrb[0].mxu0 %v4691
          %v4841 = vpop.f32.mrb[0].mxu0
          %v4842 = vadd.f32 %v4684, %v4841
          %v4843 = vpop.f32.mrb[0].mxu0
          %4844 = vdwg.mxu0
          %4845 = vrot.lane.b32.xlu0 %v4500, 127
          %v4846 = vpop.permute.xlu0 %4845
          %4847 = vrot.lane.b32.xlu0 %v4503, 127
          %v4848 = vpop.permute.xlu0 %4847
          %4849 = vrot.lane.b32.xlu0 %v4501, 127
          %v4850 = vpop.permute.xlu0 %4849
          %4851 = vrot.lane.b32.xlu0 %v4504, 127
          %v4852 = vpop.permute.xlu0 %4851
          %4853 = vrot.lane.b32.xlu0 %v4502, 127
          %v4854 = vpop.permute.xlu0 %4853
          %4855 = vrot.lane.b32.xlu0 %v4505, 127
          %v4856 = vpop.permute.xlu0 %4855
          %v4857 = vsel %vm4296, %v4850, %v4854
          %v4858 = vsel %vm4296, %v4852, %v4856
          %v4859 = vsel %vm4296, %v4846, %v4850
          %v4860 = vsel %vm4296, %v4848, %v4852
          %v4861 = vsel %vm4296, %v4854, %v4846
          %v4862 = vsel %vm4296, %v4856, %v4848
          %s4863 = scalar_lea.vmem %s5, 32
          %v4864 = vld [vmem:[%s4863] sm:$0xff]
          %v4865 = vld [vmem:[%s4863 + $0x8] sm:$0xff]
          %v4867 = vsel %vm3967, %v4864, 0
          %v4870 = vsel %vm3967, %v4865, 0
          %4872 = vmatprep.subr.mxu0 %v4857
          %4873 = vmatpush1.msra.mxu0 %v4859
          %4874 = vmatprep.subr.mxu0 %v4858
          %4875 = vmatpush1.msra.mxu0 %v4860
          %4876 = vmatprep.subr.mxu0 0.0
          %4877 = vmatpush1.msra.mxu0 0.0
          %4878 = vmatprep.subr.mxu0 0.0
          %4879 = vmatpush1.msra.mxu0 0.0
          %4880 = vmatprep.subr.mxu0 0.0
          %4881 = vmatpush1.msra.mxu0 0.0
          %4882 = vmatprep.subr.mxu0 0.0
          %4883 = vmatpush1.msra.mxu0 0.0
          %4884 = vmatprep.subr.mxu0 0.0
          %4885 = vmatpush1.msra.mxu0 0.0
          %4886 = vmatprep.subr.mxu0 0.0
          %4887 = vmatpush1.msra.mxu0 0.0
          %4888 = vmatprep.subr.mxu0 0.0
          %4889 = vmatpush1.msra.mxu0 0.0
          %4890 = vmatprep.subr.mxu0 0.0
          %4891 = vmatpush1.msra.mxu0 0.0
          %4892 = vmatprep.subr.mxu0 0.0
          %4893 = vmatpush1.msra.mxu0 0.0
          %4894 = vmatprep.subr.mxu0 0.0
          %4895 = vmatpush1.msra.mxu0 0.0
          %4896 = vmatprep.subr.mxu0 0.0
          %4897 = vmatpush1.msra.mxu0 0.0
          %4898 = vmatprep.subr.mxu0 0.0
          %4899 = vmatpush1.msra.mxu0 0.0
          %4900 = vmatprep.subr.mxu0 0.0
          %4901 = vmatpush1.msra.mxu0 0.0
          %4902 = vmatprep.subr.mxu0 0.0
          %4903 = vmatpush1.msra.mxu0 0.0
          %4904 = vmatprep.subr.mxu0 0.0
          %4905 = vmatpush1.msra.mxu0 0.0
          %4906 = vmatprep.subr.mxu0 0.0
          %4907 = vmatpush1.msra.mxu0 0.0
          %4908 = vmatprep.subr.mxu0 0.0
          %4909 = vmatpush1.msra.mxu0 0.0
          %4910 = vmatprep.subr.mxu0 0.0
          %4911 = vmatpush1.msra.mxu0 0.0
          %4912 = vmatprep.subr.mxu0 0.0
          %4913 = vmatpush1.msra.mxu0 0.0
          %4914 = vmatprep.subr.mxu0 0.0
          %4915 = vmatpush1.msra.mxu0 0.0
          %4916 = vmatprep.subr.mxu0 0.0
          %4917 = vmatpush1.msra.mxu0 0.0
          %4918 = vmatprep.subr.mxu0 0.0
          %4919 = vmatpush1.msra.mxu0 0.0
          %4920 = vmatprep.subr.mxu0 0.0
          %4921 = vmatpush1.msra.mxu0 0.0
          %4922 = vmatprep.subr.mxu0 0.0
          %4923 = vmatpush1.msra.mxu0 0.0
          %4924 = vmatprep.subr.mxu0 0.0
          %4925 = vmatpush1.msra.mxu0 0.0
          %4926 = vmatprep.subr.mxu0 0.0
          %4927 = vmatpush1.msra.mxu0 0.0
          %4928 = vmatprep.subr.mxu0 0.0
          %4929 = vmatpush1.msra.mxu0 0.0
          %4930 = vmatprep.subr.mxu0 0.0
          %4931 = vmatpush1.msra.mxu0 0.0
          %4932 = vmatprep.subr.mxu0 0.0
          %4933 = vmatpush1.msra.mxu0 0.0
          %4934 = vmatprep.subr.mxu0 0.0
          %4935 = vmatpush1.msra.mxu0 0.0
          %4936 = vmatprep.mubr.f32.mxu0 0.0
          %4937 = vmatmul.mubr.f32.gmra.mrb[0].mxu0 %v4867
          %v4938 = vpop.f32.mrb[0].mxu0
          %v4939 = vadd.f32 0.0, %v4938
          %v4940 = vpop.f32.mrb[0].mxu0
          %v4941 = vadd.f32 0.0, %v4940
          %4942 = vmatprep.mubr.f32.mxu0 0.0
          %4943 = vmatmul.mubr.f32.gmra.mrb[0].mxu0 %v4870
          %v4944 = vpop.f32.mrb[0].mxu0
          %v4945 = vadd.f32 0.0, %v4944
          %v4946 = vpop.f32.mrb[0].mxu0
          %v4947 = vadd.f32 0.0, %v4946
          %4948 = vdwg.mxu0
          %4949 = vmatprep.subr.mxu0 0.0
          %4950 = vmatpush1.msra.mxu0 %v4861
          %4951 = vmatprep.subr.mxu0 0.0
          %4952 = vmatpush1.msra.mxu0 %v4862
          %4953 = vmatprep.subr.mxu0 0.0
          %4954 = vmatpush1.msra.mxu0 0.0
          %4955 = vmatprep.subr.mxu0 0.0
          %4956 = vmatpush1.msra.mxu0 0.0
          %4957 = vmatprep.subr.mxu0 0.0
          %4958 = vmatpush1.msra.mxu0 0.0
          %4959 = vmatprep.subr.mxu0 0.0
          %4960 = vmatpush1.msra.mxu0 0.0
          %4961 = vmatprep.subr.mxu0 0.0
          %4962 = vmatpush1.msra.mxu0 0.0
          %4963 = vmatprep.subr.mxu0 0.0
          %4964 = vmatpush1.msra.mxu0 0.0
          %4965 = vmatprep.subr.mxu0 0.0
          %4966 = vmatpush1.msra.mxu0 0.0
          %4967 = vmatprep.subr.mxu0 0.0
          %4968 = vmatpush1.msra.mxu0 0.0
          %4969 = vmatprep.subr.mxu0 0.0
          %4970 = vmatpush1.msra.mxu0 0.0
          %4971 = vmatprep.subr.mxu0 0.0
          %4972 = vmatpush1.msra.mxu0 0.0
          %4973 = vmatprep.subr.mxu0 0.0
          %4974 = vmatpush1.msra.mxu0 0.0
          %4975 = vmatprep.subr.mxu0 0.0
          %4976 = vmatpush1.msra.mxu0 0.0
          %4977 = vmatprep.subr.mxu0 0.0
          %4978 = vmatpush1.msra.mxu0 0.0
          %4979 = vmatprep.subr.mxu0 0.0
          %4980 = vmatpush1.msra.mxu0 0.0
          %4981 = vmatprep.subr.mxu0 0.0
          %4982 = vmatpush1.msra.mxu0 0.0
          %4983 = vmatprep.subr.mxu0 0.0
          %4984 = vmatpush1.msra.mxu0 0.0
          %4985 = vmatprep.subr.mxu0 0.0
          %4986 = vmatpush1.msra.mxu0 0.0
          %4987 = vmatprep.subr.mxu0 0.0
          %4988 = vmatpush1.msra.mxu0 0.0
          %4989 = vmatprep.subr.mxu0 0.0
          %4990 = vmatpush1.msra.mxu0 0.0
          %4991 = vmatprep.subr.mxu0 0.0
          %4992 = vmatpush1.msra.mxu0 0.0
          %4993 = vmatprep.subr.mxu0 0.0
          %4994 = vmatpush1.msra.mxu0 0.0
          %4995 = vmatprep.subr.mxu0 0.0
          %4996 = vmatpush1.msra.mxu0 0.0
          %4997 = vmatprep.subr.mxu0 0.0
          %4998 = vmatpush1.msra.mxu0 0.0
          %4999 = vmatprep.subr.mxu0 0.0
          %5000 = vmatpush1.msra.mxu0 0.0
          %5001 = vmatprep.subr.mxu0 0.0
          %5002 = vmatpush1.msra.mxu0 0.0
          %5003 = vmatprep.subr.mxu0 0.0
          %5004 = vmatpush1.msra.mxu0 0.0
          %5005 = vmatprep.subr.mxu0 0.0
          %5006 = vmatpush1.msra.mxu0 0.0
          %5007 = vmatprep.subr.mxu0 0.0
          %5008 = vmatpush1.msra.mxu0 0.0
          %5009 = vmatprep.subr.mxu0 0.0
          %5010 = vmatpush1.msra.mxu0 0.0
          %5011 = vmatprep.subr.mxu0 0.0
          %5012 = vmatpush1.msra.mxu0 0.0
          %5013 = vmatprep.mubr.f32.mxu0 0.0
          %5014 = vmatmul.mubr.f32.gmra.mrb[0].mxu0 %v4867
          %v5015 = vpop.f32.mrb[0].mxu0
          %v5016 = vadd.f32 0.0, %v5015
          %v5017 = vpop.f32.mrb[0].mxu0
          %5018 = vmatprep.mubr.f32.mxu0 0.0
          %5019 = vmatmul.mubr.f32.gmra.mrb[0].mxu0 %v4870
          %v5020 = vpop.f32.mrb[0].mxu0
          %v5021 = vadd.f32 0.0, %v5020
          %v5022 = vpop.f32.mrb[0].mxu0
          %5023 = vdwg.mxu0
          %v5024 = vadd.f32 %v4760, %v4939
          %v5025 = vadd.f32 %v4762, %v4941
          %v5026 = vadd.f32 %v4837, %v5016
          %v5027 = vadd.f32 %v4766, %v4945
          %v5028 = vadd.f32 %v4768, %v4947
          %v5029 = vadd.f32 %v4842, %v5021
          %v5030 = vld [vmem:[%s6] sm:$0xff]
          %v5031 = vld [vmem:[%s6 + $0x8] sm:$0xff]
          %5033 = vset.pattern.permute.xlu0 0
          %5034 = vperm.xlu0 %5033, %v5030
          %v5035 = vpop.permute.xlu0 %5034
          %5038 = vset.pattern.permute.xlu0 0
          %5039 = vperm.xlu0 %5038, %v5031
          %v5040 = vpop.permute.xlu0 %5039
          %v5042 = vadd.f32 %v5024, %v5035
          %v5043 = vadd.f32 %v5025, %v5035
          %v5044 = vadd.f32 %v5026, %v5035
          %v5045 = vadd.f32 %v5027, %v5040
          %v5046 = vadd.f32 %v5028, %v5040
          %v5047 = vadd.f32 %v5029, %v5040
          %v5048 = vadd.f32 %v3913, %v5042
          %v5049 = vadd.f32 %v3914, %v5043
          %v5050 = vadd.f32 %v3915, %v5044
          %v5051 = vadd.f32 %v3916, %v5045
          %v5052 = vadd.f32 %v3917, %v5046
          %v5053 = vadd.f32 %v3918, %v5047
          %5054 = vst [vmem:[#allocation2] sm:$0xff] %v5048
          %5055 = vst [vmem:[#allocation2 + $0x8] sm:$0xff] %v5049
          %5056 = vst [vmem:[#allocation2 + $0x10] sm:$0xff] %v5050
          %5057 = vst [vmem:[#allocation2 + $0x18] sm:$0xff] %v5051
          %5058 = vst [vmem:[#allocation2 + $0x20] sm:$0xff] %v5052
          %5059 = vst [vmem:[#allocation2 + $0x28] sm:$0xff] %v5053
          %v5060 = vld [vmem:[#allocation2] sm:$0xff]
          %v5061 = vld [vmem:[#allocation2 + $0x8] sm:$0xff]
          %v5062 = vld [vmem:[#allocation2 + $0x10] sm:$0xff]
          %v5063 = vld [vmem:[#allocation2 + $0x18] sm:$0xff]
          %v5064 = vld [vmem:[#allocation2 + $0x20] sm:$0xff]
          %v5065 = vld [vmem:[#allocation2 + $0x28] sm:$0xff]
          %v5066 = vmul.f32 %v5060, 0.1
          %v5067 = vmul.f32 %v5061, 0.1
          %v5068 = vmul.f32 %v5062, 0.1
          %v5069 = vmul.f32 %v5063, 0.1
          %v5070 = vmul.f32 %v5064, 0.1
          %v5071 = vmul.f32 %v5065, 0.1
          %v5072 = vmax.f32 %v5060, %v5066
          %v5073 = vmax.f32 %v5061, %v5067
          %v5074 = vmax.f32 %v5062, %v5068
          %v5075 = vmax.f32 %v5063, %v5069
          %v5076 = vmax.f32 %v5064, %v5070
          %v5077 = vmax.f32 %v5065, %v5071
          %v5078 = vsel %vm3934, %v5072, 0.0
          %v5079 = vsel %vm3935, %v5073, 0.0
          %v5080 = vsel %vm3936, %v5074, 0.0
          %v5081 = vsel %vm3934, %v5075, 0.0
          %v5082 = vsel %vm3935, %v5076, 0.0
          %v5083 = vsel %vm3936, %v5077, 0.0
          %5084 = vrot.lane.b32.xlu0 %v5078, 3
          %v5085 = vpop.permute.xlu0 %5084
          %5086 = vrot.lane.b32.xlu0 %v5081, 3
          %v5087 = vpop.permute.xlu0 %5086
          %5088 = vrot.lane.b32.xlu0 %v5079, 3
          %v5089 = vpop.permute.xlu0 %5088
          %5090 = vrot.lane.b32.xlu0 %v5082, 3
          %v5091 = vpop.permute.xlu0 %5090
          %5092 = vrot.lane.b32.xlu0 %v5080, 3
          %v5093 = vpop.permute.xlu0 %5092
          %5094 = vrot.lane.b32.xlu0 %v5083, 3
          %v5095 = vpop.permute.xlu0 %5094
          %vm5096 = vcmp.lt.s32.totalorder %v3897, 3
          %v5097 = vsel %vm5096, %v5089, %v5093
          %v5098 = vsel %vm5096, %v5091, %v5095
          %v5099 = vsel %vm5096, %v5085, %v5089
          %v5100 = vsel %vm5096, %v5087, %v5091
          %v5101 = vsel %vm5096, %v5093, %v5085
          %v5102 = vsel %vm5096, %v5095, %v5087
          %s5103 = scalar_lea.vmem %s3, 48
          %v5104 = vld [vmem:[%s5103] sm:$0xff]
          %v5105 = vld [vmem:[%s5103 + $0x8] sm:$0xff]
          %s5106 = scalar_lea.vmem %s3, 64
          %v5107 = vld [vmem:[%s5106] sm:$0xff]
          %v5108 = vld [vmem:[%s5106 + $0x8] sm:$0xff]
          %v5110 = vsel %vm3967, %v5107, 0
          %v5113 = vsel %vm3967, %v5108, 0
          %5115 = vmatprep.subr.mxu0 %v5079
          %5116 = vmatpush1.msra.mxu0 %v5078
          %5117 = vmatprep.subr.mxu0 %v5082
          %5118 = vmatpush1.msra.mxu0 %v5081
          %5119 = vmatprep.subr.mxu0 0.0
          %5120 = vmatpush1.msra.mxu0 0.0
          %5121 = vmatprep.subr.mxu0 0.0
          %5122 = vmatpush1.msra.mxu0 0.0
          %5123 = vmatprep.subr.mxu0 0.0
          %5124 = vmatpush1.msra.mxu0 0.0
          %5125 = vmatprep.subr.mxu0 0.0
          %5126 = vmatpush1.msra.mxu0 0.0
          %5127 = vmatprep.subr.mxu0 0.0
          %5128 = vmatpush1.msra.mxu0 0.0
          %5129 = vmatprep.subr.mxu0 0.0
          %5130 = vmatpush1.msra.mxu0 0.0
          %5131 = vmatprep.subr.mxu0 0.0
          %5132 = vmatpush1.msra.mxu0 0.0
          %5133 = vmatprep.subr.mxu0 0.0
          %5134 = vmatpush1.msra.mxu0 0.0
          %5135 = vmatprep.subr.mxu0 0.0
          %5136 = vmatpush1.msra.mxu0 0.0
          %5137 = vmatprep.subr.mxu0 0.0
          %5138 = vmatpush1.msra.mxu0 0.0
          %5139 = vmatprep.subr.mxu0 0.0
          %5140 = vmatpush1.msra.mxu0 0.0
          %5141 = vmatprep.subr.mxu0 0.0
          %5142 = vmatpush1.msra.mxu0 0.0
          %5143 = vmatprep.subr.mxu0 0.0
          %5144 = vmatpush1.msra.mxu0 0.0
          %5145 = vmatprep.subr.mxu0 0.0
          %5146 = vmatpush1.msra.mxu0 0.0
          %5147 = vmatprep.subr.mxu0 0.0
          %5148 = vmatpush1.msra.mxu0 0.0
          %5149 = vmatprep.subr.mxu0 0.0
          %5150 = vmatpush1.msra.mxu0 0.0
          %5151 = vmatprep.subr.mxu0 0.0
          %5152 = vmatpush1.msra.mxu0 0.0
          %5153 = vmatprep.subr.mxu0 0.0
          %5154 = vmatpush1.msra.mxu0 0.0
          %5155 = vmatprep.subr.mxu0 0.0
          %5156 = vmatpush1.msra.mxu0 0.0
          %5157 = vmatprep.subr.mxu0 0.0
          %5158 = vmatpush1.msra.mxu0 0.0
          %5159 = vmatprep.subr.mxu0 0.0
          %5160 = vmatpush1.msra.mxu0 0.0
          %5161 = vmatprep.subr.mxu0 0.0
          %5162 = vmatpush1.msra.mxu0 0.0
          %5163 = vmatprep.subr.mxu0 0.0
          %5164 = vmatpush1.msra.mxu0 0.0
          %5165 = vmatprep.subr.mxu0 0.0
          %5166 = vmatpush1.msra.mxu0 0.0
          %5167 = vmatprep.subr.mxu0 0.0
          %5168 = vmatpush1.msra.mxu0 0.0
          %5169 = vmatprep.subr.mxu0 0.0
          %5170 = vmatpush1.msra.mxu0 0.0
          %5171 = vmatprep.subr.mxu0 0.0
          %5172 = vmatpush1.msra.mxu0 0.0
          %5173 = vmatprep.subr.mxu0 0.0
          %5174 = vmatpush1.msra.mxu0 0.0
          %5175 = vmatprep.subr.mxu0 0.0
          %5176 = vmatpush1.msra.mxu0 0.0
          %5177 = vmatprep.subr.mxu0 0.0
          %5178 = vmatpush1.msra.mxu0 0.0
          %5179 = vmatprep.mubr.f32.mxu0 0.0
          %5180 = vmatmul.mubr.f32.gmra.mrb[0].mxu0 %v5110
          %v5181 = vpop.f32.mrb[0].mxu0
          %v5182 = vadd.f32 0.0, %v5181
          %v5183 = vpop.f32.mrb[0].mxu0
          %v5184 = vadd.f32 0.0, %v5183
          %5185 = vmatprep.mubr.f32.mxu0 0.0
          %5186 = vmatmul.mubr.f32.gmra.mrb[0].mxu0 %v5113
          %v5187 = vpop.f32.mrb[0].mxu0
          %v5188 = vadd.f32 0.0, %v5187
          %v5189 = vpop.f32.mrb[0].mxu0
          %v5190 = vadd.f32 0.0, %v5189
          %5191 = vdwg.mxu0
          %5192 = vmatprep.subr.mxu0 0.0
          %5193 = vmatpush1.msra.mxu0 %v5080
          %5194 = vmatprep.subr.mxu0 0.0
          %5195 = vmatpush1.msra.mxu0 %v5083
          %5196 = vmatprep.subr.mxu0 0.0
          %5197 = vmatpush1.msra.mxu0 0.0
          %5198 = vmatprep.subr.mxu0 0.0
          %5199 = vmatpush1.msra.mxu0 0.0
          %5200 = vmatprep.subr.mxu0 0.0
          %5201 = vmatpush1.msra.mxu0 0.0
          %5202 = vmatprep.subr.mxu0 0.0
          %5203 = vmatpush1.msra.mxu0 0.0
          %5204 = vmatprep.subr.mxu0 0.0
          %5205 = vmatpush1.msra.mxu0 0.0
          %5206 = vmatprep.subr.mxu0 0.0
          %5207 = vmatpush1.msra.mxu0 0.0
          %5208 = vmatprep.subr.mxu0 0.0
          %5209 = vmatpush1.msra.mxu0 0.0
          %5210 = vmatprep.subr.mxu0 0.0
          %5211 = vmatpush1.msra.mxu0 0.0
          %5212 = vmatprep.subr.mxu0 0.0
          %5213 = vmatpush1.msra.mxu0 0.0
          %5214 = vmatprep.subr.mxu0 0.0
          %5215 = vmatpush1.msra.mxu0 0.0
          %5216 = vmatprep.subr.mxu0 0.0
          %5217 = vmatpush1.msra.mxu0 0.0
          %5218 = vmatprep.subr.mxu0 0.0
          %5219 = vmatpush1.msra.mxu0 0.0
          %5220 = vmatprep.subr.mxu0 0.0
          %5221 = vmatpush1.msra.mxu0 0.0
          %5222 = vmatprep.subr.mxu0 0.0
          %5223 = vmatpush1.msra.mxu0 0.0
          %5224 = vmatprep.subr.mxu0 0.0
          %5225 = vmatpush1.msra.mxu0 0.0
          %5226 = vmatprep.subr.mxu0 0.0
          %5227 = vmatpush1.msra.mxu0 0.0
          %5228 = vmatprep.subr.mxu0 0.0
          %5229 = vmatpush1.msra.mxu0 0.0
          %5230 = vmatprep.subr.mxu0 0.0
          %5231 = vmatpush1.msra.mxu0 0.0
          %5232 = vmatprep.subr.mxu0 0.0
          %5233 = vmatpush1.msra.mxu0 0.0
          %5234 = vmatprep.subr.mxu0 0.0
          %5235 = vmatpush1.msra.mxu0 0.0
          %5236 = vmatprep.subr.mxu0 0.0
          %5237 = vmatpush1.msra.mxu0 0.0
          %5238 = vmatprep.subr.mxu0 0.0
          %5239 = vmatpush1.msra.mxu0 0.0
          %5240 = vmatprep.subr.mxu0 0.0
          %5241 = vmatpush1.msra.mxu0 0.0
          %5242 = vmatprep.subr.mxu0 0.0
          %5243 = vmatpush1.msra.mxu0 0.0
          %5244 = vmatprep.subr.mxu0 0.0
          %5245 = vmatpush1.msra.mxu0 0.0
          %5246 = vmatprep.subr.mxu0 0.0
          %5247 = vmatpush1.msra.mxu0 0.0
          %5248 = vmatprep.subr.mxu0 0.0
          %5249 = vmatpush1.msra.mxu0 0.0
          %5250 = vmatprep.subr.mxu0 0.0
          %5251 = vmatpush1.msra.mxu0 0.0
          %5252 = vmatprep.subr.mxu0 0.0
          %5253 = vmatpush1.msra.mxu0 0.0
          %5254 = vmatprep.subr.mxu0 0.0
          %5255 = vmatpush1.msra.mxu0 0.0
          %5256 = vmatprep.mubr.f32.mxu0 0.0
          %5257 = vmatmul.mubr.f32.gmra.mrb[0].mxu0 %v5110
          %v5258 = vpop.f32.mrb[0].mxu0
          %v5259 = vadd.f32 0.0, %v5258
          %v5260 = vpop.f32.mrb[0].mxu0
          %5261 = vmatprep.mubr.f32.mxu0 0.0
          %5262 = vmatmul.mubr.f32.gmra.mrb[0].mxu0 %v5113
          %v5263 = vpop.f32.mrb[0].mxu0
          %v5264 = vadd.f32 0.0, %v5263
          %v5265 = vpop.f32.mrb[0].mxu0
          %5266 = vdwg.mxu0
          %v5268 = vsel %vm3967, %v5104, 0
          %v5271 = vsel %vm3967, %v5105, 0
          %5273 = vmatprep.subr.mxu0 %v5099
          %5274 = vmatpush1.msra.mxu0 %v5101
          %5275 = vmatprep.subr.mxu0 %v5100
          %5276 = vmatpush1.msra.mxu0 %v5102
          %5277 = vmatprep.subr.mxu0 0.0
          %5278 = vmatpush1.msra.mxu0 0.0
          %5279 = vmatprep.subr.mxu0 0.0
          %5280 = vmatpush1.msra.mxu0 0.0
          %5281 = vmatprep.subr.mxu0 0.0
          %5282 = vmatpush1.msra.mxu0 0.0
          %5283 = vmatprep.subr.mxu0 0.0
          %5284 = vmatpush1.msra.mxu0 0.0
          %5285 = vmatprep.subr.mxu0 0.0
          %5286 = vmatpush1.msra.mxu0 0.0
          %5287 = vmatprep.subr.mxu0 0.0
          %5288 = vmatpush1.msra.mxu0 0.0
          %5289 = vmatprep.subr.mxu0 0.0
          %5290 = vmatpush1.msra.mxu0 0.0
          %5291 = vmatprep.subr.mxu0 0.0
          %5292 = vmatpush1.msra.mxu0 0.0
          %5293 = vmatprep.subr.mxu0 0.0
          %5294 = vmatpush1.msra.mxu0 0.0
          %5295 = vmatprep.subr.mxu0 0.0
          %5296 = vmatpush1.msra.mxu0 0.0
          %5297 = vmatprep.subr.mxu0 0.0
          %5298 = vmatpush1.msra.mxu0 0.0
          %5299 = vmatprep.subr.mxu0 0.0
          %5300 = vmatpush1.msra.mxu0 0.0
          %5301 = vmatprep.subr.mxu0 0.0
          %5302 = vmatpush1.msra.mxu0 0.0
          %5303 = vmatprep.subr.mxu0 0.0
          %5304 = vmatpush1.msra.mxu0 0.0
          %5305 = vmatprep.subr.mxu0 0.0
          %5306 = vmatpush1.msra.mxu0 0.0
          %5307 = vmatprep.subr.mxu0 0.0
          %5308 = vmatpush1.msra.mxu0 0.0
          %5309 = vmatprep.subr.mxu0 0.0
          %5310 = vmatpush1.msra.mxu0 0.0
          %5311 = vmatprep.subr.mxu0 0.0
          %5312 = vmatpush1.msra.mxu0 0.0
          %5313 = vmatprep.subr.mxu0 0.0
          %5314 = vmatpush1.msra.mxu0 0.0
          %5315 = vmatprep.subr.mxu0 0.0
          %5316 = vmatpush1.msra.mxu0 0.0
          %5317 = vmatprep.subr.mxu0 0.0
          %5318 = vmatpush1.msra.mxu0 0.0
          %5319 = vmatprep.subr.mxu0 0.0
          %5320 = vmatpush1.msra.mxu0 0.0
          %5321 = vmatprep.subr.mxu0 0.0
          %5322 = vmatpush1.msra.mxu0 0.0
          %5323 = vmatprep.subr.mxu0 0.0
          %5324 = vmatpush1.msra.mxu0 0.0
          %5325 = vmatprep.subr.mxu0 0.0
          %5326 = vmatpush1.msra.mxu0 0.0
          %5327 = vmatprep.subr.mxu0 0.0
          %5328 = vmatpush1.msra.mxu0 0.0
          %5329 = vmatprep.subr.mxu0 0.0
          %5330 = vmatpush1.msra.mxu0 0.0
          %5331 = vmatprep.subr.mxu0 0.0
          %5332 = vmatpush1.msra.mxu0 0.0
          %5333 = vmatprep.subr.mxu0 0.0
          %5334 = vmatpush1.msra.mxu0 0.0
          %5335 = vmatprep.subr.mxu0 0.0
          %5336 = vmatpush1.msra.mxu0 0.0
          %5337 = vmatprep.mubr.f32.mxu0 0.0
          %5338 = vmatmul.mubr.f32.gmra.mrb[0].mxu0 %v5268
          %v5339 = vpop.f32.mrb[0].mxu0
          %v5340 = vadd.f32 %v5182, %v5339
          %v5341 = vpop.f32.mrb[0].mxu0
          %v5342 = vadd.f32 %v5184, %v5341
          %5343 = vmatprep.mubr.f32.mxu0 0.0
          %5344 = vmatmul.mubr.f32.gmra.mrb[0].mxu0 %v5271
          %v5345 = vpop.f32.mrb[0].mxu0
          %v5346 = vadd.f32 %v5188, %v5345
          %v5347 = vpop.f32.mrb[0].mxu0
          %v5348 = vadd.f32 %v5190, %v5347
          %5349 = vdwg.mxu0
          %5350 = vmatprep.subr.mxu0 0.0
          %5351 = vmatpush1.msra.mxu0 %v5097
          %5352 = vmatprep.subr.mxu0 0.0
          %5353 = vmatpush1.msra.mxu0 %v5098
          %5354 = vmatprep.subr.mxu0 0.0
          %5355 = vmatpush1.msra.mxu0 0.0
          %5356 = vmatprep.subr.mxu0 0.0
          %5357 = vmatpush1.msra.mxu0 0.0
          %5358 = vmatprep.subr.mxu0 0.0
          %5359 = vmatpush1.msra.mxu0 0.0
          %5360 = vmatprep.subr.mxu0 0.0
          %5361 = vmatpush1.msra.mxu0 0.0
          %5362 = vmatprep.subr.mxu0 0.0
          %5363 = vmatpush1.msra.mxu0 0.0
          %5364 = vmatprep.subr.mxu0 0.0
          %5365 = vmatpush1.msra.mxu0 0.0
          %5366 = vmatprep.subr.mxu0 0.0
          %5367 = vmatpush1.msra.mxu0 0.0
          %5368 = vmatprep.subr.mxu0 0.0
          %5369 = vmatpush1.msra.mxu0 0.0
          %5370 = vmatprep.subr.mxu0 0.0
          %5371 = vmatpush1.msra.mxu0 0.0
          %5372 = vmatprep.subr.mxu0 0.0
          %5373 = vmatpush1.msra.mxu0 0.0
          %5374 = vmatprep.subr.mxu0 0.0
          %5375 = vmatpush1.msra.mxu0 0.0
          %5376 = vmatprep.subr.mxu0 0.0
          %5377 = vmatpush1.msra.mxu0 0.0
          %5378 = vmatprep.subr.mxu0 0.0
          %5379 = vmatpush1.msra.mxu0 0.0
          %5380 = vmatprep.subr.mxu0 0.0
          %5381 = vmatpush1.msra.mxu0 0.0
          %5382 = vmatprep.subr.mxu0 0.0
          %5383 = vmatpush1.msra.mxu0 0.0
          %5384 = vmatprep.subr.mxu0 0.0
          %5385 = vmatpush1.msra.mxu0 0.0
          %5386 = vmatprep.subr.mxu0 0.0
          %5387 = vmatpush1.msra.mxu0 0.0
          %5388 = vmatprep.subr.mxu0 0.0
          %5389 = vmatpush1.msra.mxu0 0.0
          %5390 = vmatprep.subr.mxu0 0.0
          %5391 = vmatpush1.msra.mxu0 0.0
          %5392 = vmatprep.subr.mxu0 0.0
          %5393 = vmatpush1.msra.mxu0 0.0
          %5394 = vmatprep.subr.mxu0 0.0
          %5395 = vmatpush1.msra.mxu0 0.0
          %5396 = vmatprep.subr.mxu0 0.0
          %5397 = vmatpush1.msra.mxu0 0.0
          %5398 = vmatprep.subr.mxu0 0.0
          %5399 = vmatpush1.msra.mxu0 0.0
          %5400 = vmatprep.subr.mxu0 0.0
          %5401 = vmatpush1.msra.mxu0 0.0
          %5402 = vmatprep.subr.mxu0 0.0
          %5403 = vmatpush1.msra.mxu0 0.0
          %5404 = vmatprep.subr.mxu0 0.0
          %5405 = vmatpush1.msra.mxu0 0.0
          %5406 = vmatprep.subr.mxu0 0.0
          %5407 = vmatpush1.msra.mxu0 0.0
          %5408 = vmatprep.subr.mxu0 0.0
          %5409 = vmatpush1.msra.mxu0 0.0
          %5410 = vmatprep.subr.mxu0 0.0
          %5411 = vmatpush1.msra.mxu0 0.0
          %5412 = vmatprep.subr.mxu0 0.0
          %5413 = vmatpush1.msra.mxu0 0.0
          %5414 = vmatprep.mubr.f32.mxu0 0.0
          %5415 = vmatmul.mubr.f32.gmra.mrb[0].mxu0 %v5268
          %v5416 = vpop.f32.mrb[0].mxu0
          %v5417 = vadd.f32 %v5259, %v5416
          %v5418 = vpop.f32.mrb[0].mxu0
          %5419 = vmatprep.mubr.f32.mxu0 0.0
          %5420 = vmatmul.mubr.f32.gmra.mrb[0].mxu0 %v5271
          %v5421 = vpop.f32.mrb[0].mxu0
          %v5422 = vadd.f32 %v5264, %v5421
          %v5423 = vpop.f32.mrb[0].mxu0
          %5424 = vdwg.mxu0
          %5425 = vrot.lane.b32.xlu0 %v5078, 125
          %v5426 = vpop.permute.xlu0 %5425
          %5427 = vrot.lane.b32.xlu0 %v5081, 125
          %v5428 = vpop.permute.xlu0 %5427
          %5429 = vrot.lane.b32.xlu0 %v5079, 125
          %v5430 = vpop.permute.xlu0 %5429
          %5431 = vrot.lane.b32.xlu0 %v5082, 125
          %v5432 = vpop.permute.xlu0 %5431
          %5433 = vrot.lane.b32.xlu0 %v5080, 125
          %v5434 = vpop.permute.xlu0 %5433
          %5435 = vrot.lane.b32.xlu0 %v5083, 125
          %v5436 = vpop.permute.xlu0 %5435
          %vm5437 = vcmp.lt.s32.totalorder %v3897, 125
          %v5438 = vsel %vm5437, %v5430, %v5434
          %v5439 = vsel %vm5437, %v5432, %v5436
          %v5440 = vsel %vm5437, %v5426, %v5430
          %v5441 = vsel %vm5437, %v5428, %v5432
          %v5442 = vsel %vm5437, %v5434, %v5426
          %v5443 = vsel %vm5437, %v5436, %v5428
          %s5444 = scalar_lea.vmem %s3, 80
          %v5445 = vld [vmem:[%s5444] sm:$0xff]
          %v5446 = vld [vmem:[%s5444 + $0x8] sm:$0xff]
          %v5448 = vsel %vm3967, %v5445, 0
          %v5451 = vsel %vm3967, %v5446, 0
          %5453 = vmatprep.subr.mxu0 %v5438
          %5454 = vmatpush1.msra.mxu0 %v5440
          %5455 = vmatprep.subr.mxu0 %v5439
          %5456 = vmatpush1.msra.mxu0 %v5441
          %5457 = vmatprep.subr.mxu0 0.0
          %5458 = vmatpush1.msra.mxu0 0.0
          %5459 = vmatprep.subr.mxu0 0.0
          %5460 = vmatpush1.msra.mxu0 0.0
          %5461 = vmatprep.subr.mxu0 0.0
          %5462 = vmatpush1.msra.mxu0 0.0
          %5463 = vmatprep.subr.mxu0 0.0
          %5464 = vmatpush1.msra.mxu0 0.0
          %5465 = vmatprep.subr.mxu0 0.0
          %5466 = vmatpush1.msra.mxu0 0.0
          %5467 = vmatprep.subr.mxu0 0.0
          %5468 = vmatpush1.msra.mxu0 0.0
          %5469 = vmatprep.subr.mxu0 0.0
          %5470 = vmatpush1.msra.mxu0 0.0
          %5471 = vmatprep.subr.mxu0 0.0
          %5472 = vmatpush1.msra.mxu0 0.0
          %5473 = vmatprep.subr.mxu0 0.0
          %5474 = vmatpush1.msra.mxu0 0.0
          %5475 = vmatprep.subr.mxu0 0.0
          %5476 = vmatpush1.msra.mxu0 0.0
          %5477 = vmatprep.subr.mxu0 0.0
          %5478 = vmatpush1.msra.mxu0 0.0
          %5479 = vmatprep.subr.mxu0 0.0
          %5480 = vmatpush1.msra.mxu0 0.0
          %5481 = vmatprep.subr.mxu0 0.0
          %5482 = vmatpush1.msra.mxu0 0.0
          %5483 = vmatprep.subr.mxu0 0.0
          %5484 = vmatpush1.msra.mxu0 0.0
          %5485 = vmatprep.subr.mxu0 0.0
          %5486 = vmatpush1.msra.mxu0 0.0
          %5487 = vmatprep.subr.mxu0 0.0
          %5488 = vmatpush1.msra.mxu0 0.0
          %5489 = vmatprep.subr.mxu0 0.0
          %5490 = vmatpush1.msra.mxu0 0.0
          %5491 = vmatprep.subr.mxu0 0.0
          %5492 = vmatpush1.msra.mxu0 0.0
          %5493 = vmatprep.subr.mxu0 0.0
          %5494 = vmatpush1.msra.mxu0 0.0
          %5495 = vmatprep.subr.mxu0 0.0
          %5496 = vmatpush1.msra.mxu0 0.0
          %5497 = vmatprep.subr.mxu0 0.0
          %5498 = vmatpush1.msra.mxu0 0.0
          %5499 = vmatprep.subr.mxu0 0.0
          %5500 = vmatpush1.msra.mxu0 0.0
          %5501 = vmatprep.subr.mxu0 0.0
          %5502 = vmatpush1.msra.mxu0 0.0
          %5503 = vmatprep.subr.mxu0 0.0
          %5504 = vmatpush1.msra.mxu0 0.0
          %5505 = vmatprep.subr.mxu0 0.0
          %5506 = vmatpush1.msra.mxu0 0.0
          %5507 = vmatprep.subr.mxu0 0.0
          %5508 = vmatpush1.msra.mxu0 0.0
          %5509 = vmatprep.subr.mxu0 0.0
          %5510 = vmatpush1.msra.mxu0 0.0
          %5511 = vmatprep.subr.mxu0 0.0
          %5512 = vmatpush1.msra.mxu0 0.0
          %5513 = vmatprep.subr.mxu0 0.0
          %5514 = vmatpush1.msra.mxu0 0.0
          %5515 = vmatprep.subr.mxu0 0.0
          %5516 = vmatpush1.msra.mxu0 0.0
          %5517 = vmatprep.mubr.f32.mxu0 0.0
          %5518 = vmatmul.mubr.f32.gmra.mrb[0].mxu0 %v5448
          %v5519 = vpop.f32.mrb[0].mxu0
          %v5520 = vadd.f32 0.0, %v5519
          %v5521 = vpop.f32.mrb[0].mxu0
          %v5522 = vadd.f32 0.0, %v5521
          %5523 = vmatprep.mubr.f32.mxu0 0.0
          %5524 = vmatmul.mubr.f32.gmra.mrb[0].mxu0 %v5451
          %v5525 = vpop.f32.mrb[0].mxu0
          %v5526 = vadd.f32 0.0, %v5525
          %v5527 = vpop.f32.mrb[0].mxu0
          %v5528 = vadd.f32 0.0, %v5527
          %5529 = vdwg.mxu0
          %5530 = vmatprep.subr.mxu0 0.0
          %5531 = vmatpush1.msra.mxu0 %v5442
          %5532 = vmatprep.subr.mxu0 0.0
          %5533 = vmatpush1.msra.mxu0 %v5443
          %5534 = vmatprep.subr.mxu0 0.0
          %5535 = vmatpush1.msra.mxu0 0.0
          %5536 = vmatprep.subr.mxu0 0.0
          %5537 = vmatpush1.msra.mxu0 0.0
          %5538 = vmatprep.subr.mxu0 0.0
          %5539 = vmatpush1.msra.mxu0 0.0
          %5540 = vmatprep.subr.mxu0 0.0
          %5541 = vmatpush1.msra.mxu0 0.0
          %5542 = vmatprep.subr.mxu0 0.0
          %5543 = vmatpush1.msra.mxu0 0.0
          %5544 = vmatprep.subr.mxu0 0.0
          %5545 = vmatpush1.msra.mxu0 0.0
          %5546 = vmatprep.subr.mxu0 0.0
          %5547 = vmatpush1.msra.mxu0 0.0
          %5548 = vmatprep.subr.mxu0 0.0
          %5549 = vmatpush1.msra.mxu0 0.0
          %5550 = vmatprep.subr.mxu0 0.0
          %5551 = vmatpush1.msra.mxu0 0.0
          %5552 = vmatprep.subr.mxu0 0.0
          %5553 = vmatpush1.msra.mxu0 0.0
          %5554 = vmatprep.subr.mxu0 0.0
          %5555 = vmatpush1.msra.mxu0 0.0
          %5556 = vmatprep.subr.mxu0 0.0
          %5557 = vmatpush1.msra.mxu0 0.0
          %5558 = vmatprep.subr.mxu0 0.0
          %5559 = vmatpush1.msra.mxu0 0.0
          %5560 = vmatprep.subr.mxu0 0.0
          %5561 = vmatpush1.msra.mxu0 0.0
          %5562 = vmatprep.subr.mxu0 0.0
          %5563 = vmatpush1.msra.mxu0 0.0
          %5564 = vmatprep.subr.mxu0 0.0
          %5565 = vmatpush1.msra.mxu0 0.0
          %5566 = vmatprep.subr.mxu0 0.0
          %5567 = vmatpush1.msra.mxu0 0.0
          %5568 = vmatprep.subr.mxu0 0.0
          %5569 = vmatpush1.msra.mxu0 0.0
          %5570 = vmatprep.subr.mxu0 0.0
          %5571 = vmatpush1.msra.mxu0 0.0
          %5572 = vmatprep.subr.mxu0 0.0
          %5573 = vmatpush1.msra.mxu0 0.0
          %5574 = vmatprep.subr.mxu0 0.0
          %5575 = vmatpush1.msra.mxu0 0.0
          %5576 = vmatprep.subr.mxu0 0.0
          %5577 = vmatpush1.msra.mxu0 0.0
          %5578 = vmatprep.subr.mxu0 0.0
          %5579 = vmatpush1.msra.mxu0 0.0
          %5580 = vmatprep.subr.mxu0 0.0
          %5581 = vmatpush1.msra.mxu0 0.0
          %5582 = vmatprep.subr.mxu0 0.0
          %5583 = vmatpush1.msra.mxu0 0.0
          %5584 = vmatprep.subr.mxu0 0.0
          %5585 = vmatpush1.msra.mxu0 0.0
          %5586 = vmatprep.subr.mxu0 0.0
          %5587 = vmatpush1.msra.mxu0 0.0
          %5588 = vmatprep.subr.mxu0 0.0
          %5589 = vmatpush1.msra.mxu0 0.0
          %5590 = vmatprep.subr.mxu0 0.0
          %5591 = vmatpush1.msra.mxu0 0.0
          %5592 = vmatprep.subr.mxu0 0.0
          %5593 = vmatpush1.msra.mxu0 0.0
          %5594 = vmatprep.mubr.f32.mxu0 0.0
          %5595 = vmatmul.mubr.f32.gmra.mrb[0].mxu0 %v5448
          %v5596 = vpop.f32.mrb[0].mxu0
          %v5597 = vadd.f32 0.0, %v5596
          %v5598 = vpop.f32.mrb[0].mxu0
          %5599 = vmatprep.mubr.f32.mxu0 0.0
          %5600 = vmatmul.mubr.f32.gmra.mrb[0].mxu0 %v5451
          %v5601 = vpop.f32.mrb[0].mxu0
          %v5602 = vadd.f32 0.0, %v5601
          %v5603 = vpop.f32.mrb[0].mxu0
          %5604 = vdwg.mxu0
          %v5605 = vadd.f32 %v5340, %v5520
          %v5606 = vadd.f32 %v5342, %v5522
          %v5607 = vadd.f32 %v5417, %v5597
          %v5608 = vadd.f32 %v5346, %v5526
          %v5609 = vadd.f32 %v5348, %v5528
          %v5610 = vadd.f32 %v5422, %v5602
          %s5611 = scalar_lea.vmem %s4, 16
          %v5612 = vld [vmem:[%s5611] sm:$0xff]
          %v5613 = vld [vmem:[%s5611 + $0x8] sm:$0xff]
          %5615 = vset.pattern.permute.xlu0 0
          %5616 = vperm.xlu0 %5615, %v5612
          %v5617 = vpop.permute.xlu0 %5616
          %5620 = vset.pattern.permute.xlu0 0
          %5621 = vperm.xlu0 %5620, %v5613
          %v5622 = vpop.permute.xlu0 %5621
          %v5624 = vadd.f32 %v5605, %v5617
          %v5625 = vadd.f32 %v5606, %v5617
          %v5626 = vadd.f32 %v5607, %v5617
          %v5627 = vadd.f32 %v5608, %v5622
          %v5628 = vadd.f32 %v5609, %v5622
          %v5629 = vadd.f32 %v5610, %v5622
          %v5630 = vmul.f32 %v5624, 0.1
          %v5631 = vmul.f32 %v5625, 0.1
          %v5632 = vmul.f32 %v5626, 0.1
          %v5633 = vmul.f32 %v5627, 0.1
          %v5634 = vmul.f32 %v5628, 0.1
          %v5635 = vmul.f32 %v5629, 0.1
          %v5636 = vmax.f32 %v5624, %v5630
          %v5637 = vmax.f32 %v5625, %v5631
          %v5638 = vmax.f32 %v5626, %v5632
          %v5639 = vmax.f32 %v5627, %v5633
          %v5640 = vmax.f32 %v5628, %v5634
          %v5641 = vmax.f32 %v5629, %v5635
          %v5642 = vsel %vm3934, %v5636, 0.0
          %v5643 = vsel %vm3935, %v5637, 0.0
          %v5644 = vsel %vm3936, %v5638, 0.0
          %v5645 = vsel %vm3934, %v5639, 0.0
          %v5646 = vsel %vm3935, %v5640, 0.0
          %v5647 = vsel %vm3936, %v5641, 0.0
          %5648 = vrot.lane.b32.xlu0 %v5642, 1
          %v5649 = vpop.permute.xlu0 %5648
          %5650 = vrot.lane.b32.xlu0 %v5645, 1
          %v5651 = vpop.permute.xlu0 %5650
          %5652 = vrot.lane.b32.xlu0 %v5643, 1
          %v5653 = vpop.permute.xlu0 %5652
          %5654 = vrot.lane.b32.xlu0 %v5646, 1
          %v5655 = vpop.permute.xlu0 %5654
          %5656 = vrot.lane.b32.xlu0 %v5644, 1
          %v5657 = vpop.permute.xlu0 %5656
          %5658 = vrot.lane.b32.xlu0 %v5647, 1
          %v5659 = vpop.permute.xlu0 %5658
          %v5660 = vsel %vm3955, %v5653, %v5657
          %v5661 = vsel %vm3955, %v5655, %v5659
          %v5662 = vsel %vm3955, %v5649, %v5653
          %v5663 = vsel %vm3955, %v5651, %v5655
          %v5664 = vsel %vm3955, %v5657, %v5649
          %v5665 = vsel %vm3955, %v5659, %v5651
          %s5666 = scalar_lea.vmem %s5, 48
          %v5667 = vld [vmem:[%s5666] sm:$0xff]
          %v5668 = vld [vmem:[%s5666 + $0x8] sm:$0xff]
          %s5669 = scalar_lea.vmem %s5, 64
          %v5670 = vld [vmem:[%s5669] sm:$0xff]
          %v5671 = vld [vmem:[%s5669 + $0x8] sm:$0xff]
          %v5673 = vsel %vm3967, %v5670, 0
          %v5676 = vsel %vm3967, %v5671, 0
          %5678 = vmatprep.subr.mxu0 %v5643
          %5679 = vmatpush1.msra.mxu0 %v5642
          %5680 = vmatprep.subr.mxu0 %v5646
          %5681 = vmatpush1.msra.mxu0 %v5645
          %5682 = vmatprep.subr.mxu0 0.0
          %5683 = vmatpush1.msra.mxu0 0.0
          %5684 = vmatprep.subr.mxu0 0.0
          %5685 = vmatpush1.msra.mxu0 0.0
          %5686 = vmatprep.subr.mxu0 0.0
          %5687 = vmatpush1.msra.mxu0 0.0
          %5688 = vmatprep.subr.mxu0 0.0
          %5689 = vmatpush1.msra.mxu0 0.0
          %5690 = vmatprep.subr.mxu0 0.0
          %5691 = vmatpush1.msra.mxu0 0.0
          %5692 = vmatprep.subr.mxu0 0.0
          %5693 = vmatpush1.msra.mxu0 0.0
          %5694 = vmatprep.subr.mxu0 0.0
          %5695 = vmatpush1.msra.mxu0 0.0
          %5696 = vmatprep.subr.mxu0 0.0
          %5697 = vmatpush1.msra.mxu0 0.0
          %5698 = vmatprep.subr.mxu0 0.0
          %5699 = vmatpush1.msra.mxu0 0.0
          %5700 = vmatprep.subr.mxu0 0.0
          %5701 = vmatpush1.msra.mxu0 0.0
          %5702 = vmatprep.subr.mxu0 0.0
          %5703 = vmatpush1.msra.mxu0 0.0
          %5704 = vmatprep.subr.mxu0 0.0
          %5705 = vmatpush1.msra.mxu0 0.0
          %5706 = vmatprep.subr.mxu0 0.0
          %5707 = vmatpush1.msra.mxu0 0.0
          %5708 = vmatprep.subr.mxu0 0.0
          %5709 = vmatpush1.msra.mxu0 0.0
          %5710 = vmatprep.subr.mxu0 0.0
          %5711 = vmatpush1.msra.mxu0 0.0
          %5712 = vmatprep.subr.mxu0 0.0
          %5713 = vmatpush1.msra.mxu0 0.0
          %5714 = vmatprep.subr.mxu0 0.0
          %5715 = vmatpush1.msra.mxu0 0.0
          %5716 = vmatprep.subr.mxu0 0.0
          %5717 = vmatpush1.msra.mxu0 0.0
          %5718 = vmatprep.subr.mxu0 0.0
          %5719 = vmatpush1.msra.mxu0 0.0
          %5720 = vmatprep.subr.mxu0 0.0
          %5721 = vmatpush1.msra.mxu0 0.0
          %5722 = vmatprep.subr.mxu0 0.0
          %5723 = vmatpush1.msra.mxu0 0.0
          %5724 = vmatprep.subr.mxu0 0.0
          %5725 = vmatpush1.msra.mxu0 0.0
          %5726 = vmatprep.subr.mxu0 0.0
          %5727 = vmatpush1.msra.mxu0 0.0
          %5728 = vmatprep.subr.mxu0 0.0
          %5729 = vmatpush1.msra.mxu0 0.0
          %5730 = vmatprep.subr.mxu0 0.0
          %5731 = vmatpush1.msra.mxu0 0.0
          %5732 = vmatprep.subr.mxu0 0.0
          %5733 = vmatpush1.msra.mxu0 0.0
          %5734 = vmatprep.subr.mxu0 0.0
          %5735 = vmatpush1.msra.mxu0 0.0
          %5736 = vmatprep.subr.mxu0 0.0
          %5737 = vmatpush1.msra.mxu0 0.0
          %5738 = vmatprep.subr.mxu0 0.0
          %5739 = vmatpush1.msra.mxu0 0.0
          %5740 = vmatprep.subr.mxu0 0.0
          %5741 = vmatpush1.msra.mxu0 0.0
          %5742 = vmatprep.mubr.f32.mxu0 0.0
          %5743 = vmatmul.mubr.f32.gmra.mrb[0].mxu0 %v5673
          %v5744 = vpop.f32.mrb[0].mxu0
          %v5745 = vadd.f32 0.0, %v5744
          %v5746 = vpop.f32.mrb[0].mxu0
          %v5747 = vadd.f32 0.0, %v5746
          %5748 = vmatprep.mubr.f32.mxu0 0.0
          %5749 = vmatmul.mubr.f32.gmra.mrb[0].mxu0 %v5676
          %v5750 = vpop.f32.mrb[0].mxu0
          %v5751 = vadd.f32 0.0, %v5750
          %v5752 = vpop.f32.mrb[0].mxu0
          %v5753 = vadd.f32 0.0, %v5752
          %5754 = vdwg.mxu0
          %5755 = vmatprep.subr.mxu0 0.0
          %5756 = vmatpush1.msra.mxu0 %v5644
          %5757 = vmatprep.subr.mxu0 0.0
          %5758 = vmatpush1.msra.mxu0 %v5647
          %5759 = vmatprep.subr.mxu0 0.0
          %5760 = vmatpush1.msra.mxu0 0.0
          %5761 = vmatprep.subr.mxu0 0.0
          %5762 = vmatpush1.msra.mxu0 0.0
          %5763 = vmatprep.subr.mxu0 0.0
          %5764 = vmatpush1.msra.mxu0 0.0
          %5765 = vmatprep.subr.mxu0 0.0
          %5766 = vmatpush1.msra.mxu0 0.0
          %5767 = vmatprep.subr.mxu0 0.0
          %5768 = vmatpush1.msra.mxu0 0.0
          %5769 = vmatprep.subr.mxu0 0.0
          %5770 = vmatpush1.msra.mxu0 0.0
          %5771 = vmatprep.subr.mxu0 0.0
          %5772 = vmatpush1.msra.mxu0 0.0
          %5773 = vmatprep.subr.mxu0 0.0
          %5774 = vmatpush1.msra.mxu0 0.0
          %5775 = vmatprep.subr.mxu0 0.0
          %5776 = vmatpush1.msra.mxu0 0.0
          %5777 = vmatprep.subr.mxu0 0.0
          %5778 = vmatpush1.msra.mxu0 0.0
          %5779 = vmatprep.subr.mxu0 0.0
          %5780 = vmatpush1.msra.mxu0 0.0
          %5781 = vmatprep.subr.mxu0 0.0
          %5782 = vmatpush1.msra.mxu0 0.0
          %5783 = vmatprep.subr.mxu0 0.0
          %5784 = vmatpush1.msra.mxu0 0.0
          %5785 = vmatprep.subr.mxu0 0.0
          %5786 = vmatpush1.msra.mxu0 0.0
          %5787 = vmatprep.subr.mxu0 0.0
          %5788 = vmatpush1.msra.mxu0 0.0
          %5789 = vmatprep.subr.mxu0 0.0
          %5790 = vmatpush1.msra.mxu0 0.0
          %5791 = vmatprep.subr.mxu0 0.0
          %5792 = vmatpush1.msra.mxu0 0.0
          %5793 = vmatprep.subr.mxu0 0.0
          %5794 = vmatpush1.msra.mxu0 0.0
          %5795 = vmatprep.subr.mxu0 0.0
          %5796 = vmatpush1.msra.mxu0 0.0
          %5797 = vmatprep.subr.mxu0 0.0
          %5798 = vmatpush1.msra.mxu0 0.0
          %5799 = vmatprep.subr.mxu0 0.0
          %5800 = vmatpush1.msra.mxu0 0.0
          %5801 = vmatprep.subr.mxu0 0.0
          %5802 = vmatpush1.msra.mxu0 0.0
          %5803 = vmatprep.subr.mxu0 0.0
          %5804 = vmatpush1.msra.mxu0 0.0
          %5805 = vmatprep.subr.mxu0 0.0
          %5806 = vmatpush1.msra.mxu0 0.0
          %5807 = vmatprep.subr.mxu0 0.0
          %5808 = vmatpush1.msra.mxu0 0.0
          %5809 = vmatprep.subr.mxu0 0.0
          %5810 = vmatpush1.msra.mxu0 0.0
          %5811 = vmatprep.subr.mxu0 0.0
          %5812 = vmatpush1.msra.mxu0 0.0
          %5813 = vmatprep.subr.mxu0 0.0
          %5814 = vmatpush1.msra.mxu0 0.0
          %5815 = vmatprep.subr.mxu0 0.0
          %5816 = vmatpush1.msra.mxu0 0.0
          %5817 = vmatprep.subr.mxu0 0.0
          %5818 = vmatpush1.msra.mxu0 0.0
          %5819 = vmatprep.mubr.f32.mxu0 0.0
          %5820 = vmatmul.mubr.f32.gmra.mrb[0].mxu0 %v5673
          %v5821 = vpop.f32.mrb[0].mxu0
          %v5822 = vadd.f32 0.0, %v5821
          %v5823 = vpop.f32.mrb[0].mxu0
          %5824 = vmatprep.mubr.f32.mxu0 0.0
          %5825 = vmatmul.mubr.f32.gmra.mrb[0].mxu0 %v5676
          %v5826 = vpop.f32.mrb[0].mxu0
          %v5827 = vadd.f32 0.0, %v5826
          %v5828 = vpop.f32.mrb[0].mxu0
          %5829 = vdwg.mxu0
          %v5831 = vsel %vm3967, %v5667, 0
          %v5834 = vsel %vm3967, %v5668, 0
          %5836 = vmatprep.subr.mxu0 %v5662
          %5837 = vmatpush1.msra.mxu0 %v5664
          %5838 = vmatprep.subr.mxu0 %v5663
          %5839 = vmatpush1.msra.mxu0 %v5665
          %5840 = vmatprep.subr.mxu0 0.0
          %5841 = vmatpush1.msra.mxu0 0.0
          %5842 = vmatprep.subr.mxu0 0.0
          %5843 = vmatpush1.msra.mxu0 0.0
          %5844 = vmatprep.subr.mxu0 0.0
          %5845 = vmatpush1.msra.mxu0 0.0
          %5846 = vmatprep.subr.mxu0 0.0
          %5847 = vmatpush1.msra.mxu0 0.0
          %5848 = vmatprep.subr.mxu0 0.0
          %5849 = vmatpush1.msra.mxu0 0.0
          %5850 = vmatprep.subr.mxu0 0.0
          %5851 = vmatpush1.msra.mxu0 0.0
          %5852 = vmatprep.subr.mxu0 0.0
          %5853 = vmatpush1.msra.mxu0 0.0
          %5854 = vmatprep.subr.mxu0 0.0
          %5855 = vmatpush1.msra.mxu0 0.0
          %5856 = vmatprep.subr.mxu0 0.0
          %5857 = vmatpush1.msra.mxu0 0.0
          %5858 = vmatprep.subr.mxu0 0.0
          %5859 = vmatpush1.msra.mxu0 0.0
          %5860 = vmatprep.subr.mxu0 0.0
          %5861 = vmatpush1.msra.mxu0 0.0
          %5862 = vmatprep.subr.mxu0 0.0
          %5863 = vmatpush1.msra.mxu0 0.0
          %5864 = vmatprep.subr.mxu0 0.0
          %5865 = vmatpush1.msra.mxu0 0.0
          %5866 = vmatprep.subr.mxu0 0.0
          %5867 = vmatpush1.msra.mxu0 0.0
          %5868 = vmatprep.subr.mxu0 0.0
          %5869 = vmatpush1.msra.mxu0 0.0
          %5870 = vmatprep.subr.mxu0 0.0
          %5871 = vmatpush1.msra.mxu0 0.0
          %5872 = vmatprep.subr.mxu0 0.0
          %5873 = vmatpush1.msra.mxu0 0.0
          %5874 = vmatprep.subr.mxu0 0.0
          %5875 = vmatpush1.msra.mxu0 0.0
          %5876 = vmatprep.subr.mxu0 0.0
          %5877 = vmatpush1.msra.mxu0 0.0
          %5878 = vmatprep.subr.mxu0 0.0
          %5879 = vmatpush1.msra.mxu0 0.0
          %5880 = vmatprep.subr.mxu0 0.0
          %5881 = vmatpush1.msra.mxu0 0.0
          %5882 = vmatprep.subr.mxu0 0.0
          %5883 = vmatpush1.msra.mxu0 0.0
          %5884 = vmatprep.subr.mxu0 0.0
          %5885 = vmatpush1.msra.mxu0 0.0
          %5886 = vmatprep.subr.mxu0 0.0
          %5887 = vmatpush1.msra.mxu0 0.0
          %5888 = vmatprep.subr.mxu0 0.0
          %5889 = vmatpush1.msra.mxu0 0.0
          %5890 = vmatprep.subr.mxu0 0.0
          %5891 = vmatpush1.msra.mxu0 0.0
          %5892 = vmatprep.subr.mxu0 0.0
          %5893 = vmatpush1.msra.mxu0 0.0
          %5894 = vmatprep.subr.mxu0 0.0
          %5895 = vmatpush1.msra.mxu0 0.0
          %5896 = vmatprep.subr.mxu0 0.0
          %5897 = vmatpush1.msra.mxu0 0.0
          %5898 = vmatprep.subr.mxu0 0.0
          %5899 = vmatpush1.msra.mxu0 0.0
          %5900 = vmatprep.mubr.f32.mxu0 0.0
          %5901 = vmatmul.mubr.f32.gmra.mrb[0].mxu0 %v5831
          %v5902 = vpop.f32.mrb[0].mxu0
          %v5903 = vadd.f32 %v5745, %v5902
          %v5904 = vpop.f32.mrb[0].mxu0
          %v5905 = vadd.f32 %v5747, %v5904
          %5906 = vmatprep.mubr.f32.mxu0 0.0
          %5907 = vmatmul.mubr.f32.gmra.mrb[0].mxu0 %v5834
          %v5908 = vpop.f32.mrb[0].mxu0
          %v5909 = vadd.f32 %v5751, %v5908
          %v5910 = vpop.f32.mrb[0].mxu0
          %v5911 = vadd.f32 %v5753, %v5910
          %5912 = vdwg.mxu0
          %5913 = vmatprep.subr.mxu0 0.0
          %5914 = vmatpush1.msra.mxu0 %v5660
          %5915 = vmatprep.subr.mxu0 0.0
          %5916 = vmatpush1.msra.mxu0 %v5661
          %5917 = vmatprep.subr.mxu0 0.0
          %5918 = vmatpush1.msra.mxu0 0.0
          %5919 = vmatprep.subr.mxu0 0.0
          %5920 = vmatpush1.msra.mxu0 0.0
          %5921 = vmatprep.subr.mxu0 0.0
          %5922 = vmatpush1.msra.mxu0 0.0
          %5923 = vmatprep.subr.mxu0 0.0
          %5924 = vmatpush1.msra.mxu0 0.0
          %5925 = vmatprep.subr.mxu0 0.0
          %5926 = vmatpush1.msra.mxu0 0.0
          %5927 = vmatprep.subr.mxu0 0.0
          %5928 = vmatpush1.msra.mxu0 0.0
          %5929 = vmatprep.subr.mxu0 0.0
          %5930 = vmatpush1.msra.mxu0 0.0
          %5931 = vmatprep.subr.mxu0 0.0
          %5932 = vmatpush1.msra.mxu0 0.0
          %5933 = vmatprep.subr.mxu0 0.0
          %5934 = vmatpush1.msra.mxu0 0.0
          %5935 = vmatprep.subr.mxu0 0.0
          %5936 = vmatpush1.msra.mxu0 0.0
          %5937 = vmatprep.subr.mxu0 0.0
          %5938 = vmatpush1.msra.mxu0 0.0
          %5939 = vmatprep.subr.mxu0 0.0
          %5940 = vmatpush1.msra.mxu0 0.0
          %5941 = vmatprep.subr.mxu0 0.0
          %5942 = vmatpush1.msra.mxu0 0.0
          %5943 = vmatprep.subr.mxu0 0.0
          %5944 = vmatpush1.msra.mxu0 0.0
          %5945 = vmatprep.subr.mxu0 0.0
          %5946 = vmatpush1.msra.mxu0 0.0
          %5947 = vmatprep.subr.mxu0 0.0
          %5948 = vmatpush1.msra.mxu0 0.0
          %5949 = vmatprep.subr.mxu0 0.0
          %5950 = vmatpush1.msra.mxu0 0.0
          %5951 = vmatprep.subr.mxu0 0.0
          %5952 = vmatpush1.msra.mxu0 0.0
          %5953 = vmatprep.subr.mxu0 0.0
          %5954 = vmatpush1.msra.mxu0 0.0
          %5955 = vmatprep.subr.mxu0 0.0
          %5956 = vmatpush1.msra.mxu0 0.0
          %5957 = vmatprep.subr.mxu0 0.0
          %5958 = vmatpush1.msra.mxu0 0.0
          %5959 = vmatprep.subr.mxu0 0.0
          %5960 = vmatpush1.msra.mxu0 0.0
          %5961 = vmatprep.subr.mxu0 0.0
          %5962 = vmatpush1.msra.mxu0 0.0
          %5963 = vmatprep.subr.mxu0 0.0
          %5964 = vmatpush1.msra.mxu0 0.0
          %5965 = vmatprep.subr.mxu0 0.0
          %5966 = vmatpush1.msra.mxu0 0.0
          %5967 = vmatprep.subr.mxu0 0.0
          %5968 = vmatpush1.msra.mxu0 0.0
          %5969 = vmatprep.subr.mxu0 0.0
          %5970 = vmatpush1.msra.mxu0 0.0
          %5971 = vmatprep.subr.mxu0 0.0
          %5972 = vmatpush1.msra.mxu0 0.0
          %5973 = vmatprep.subr.mxu0 0.0
          %5974 = vmatpush1.msra.mxu0 0.0
          %5975 = vmatprep.subr.mxu0 0.0
          %5976 = vmatpush1.msra.mxu0 0.0
          %5977 = vmatprep.mubr.f32.mxu0 0.0
          %5978 = vmatmul.mubr.f32.gmra.mrb[0].mxu0 %v5831
          %v5979 = vpop.f32.mrb[0].mxu0
          %v5980 = vadd.f32 %v5822, %v5979
          %v5981 = vpop.f32.mrb[0].mxu0
          %5982 = vmatprep.mubr.f32.mxu0 0.0
          %5983 = vmatmul.mubr.f32.gmra.mrb[0].mxu0 %v5834
          %v5984 = vpop.f32.mrb[0].mxu0
          %v5985 = vadd.f32 %v5827, %v5984
          %v5986 = vpop.f32.mrb[0].mxu0
          %5987 = vdwg.mxu0
          %5988 = vrot.lane.b32.xlu0 %v5642, 127
          %v5989 = vpop.permute.xlu0 %5988
          %5990 = vrot.lane.b32.xlu0 %v5645, 127
          %v5991 = vpop.permute.xlu0 %5990
          %5992 = vrot.lane.b32.xlu0 %v5643, 127
          %v5993 = vpop.permute.xlu0 %5992
          %5994 = vrot.lane.b32.xlu0 %v5646, 127
          %v5995 = vpop.permute.xlu0 %5994
          %5996 = vrot.lane.b32.xlu0 %v5644, 127
          %v5997 = vpop.permute.xlu0 %5996
          %5998 = vrot.lane.b32.xlu0 %v5647, 127
          %v5999 = vpop.permute.xlu0 %5998
          %v6000 = vsel %vm4296, %v5993, %v5997
          %v6001 = vsel %vm4296, %v5995, %v5999
          %v6002 = vsel %vm4296, %v5989, %v5993
          %v6003 = vsel %vm4296, %v5991, %v5995
          %v6004 = vsel %vm4296, %v5997, %v5989
          %v6005 = vsel %vm4296, %v5999, %v5991
          %s6006 = scalar_lea.vmem %s5, 80
          %v6007 = vld [vmem:[%s6006] sm:$0xff]
          %v6008 = vld [vmem:[%s6006 + $0x8] sm:$0xff]
          %v6010 = vsel %vm3967, %v6007, 0
          %v6013 = vsel %vm3967, %v6008, 0
          %6015 = vmatprep.subr.mxu0 %v6000
          %6016 = vmatpush1.msra.mxu0 %v6002
          %6017 = vmatprep.subr.mxu0 %v6001
          %6018 = vmatpush1.msra.mxu0 %v6003
          %6019 = vmatprep.subr.mxu0 0.0
          %6020 = vmatpush1.msra.mxu0 0.0
          %6021 = vmatprep.subr.mxu0 0.0
          %6022 = vmatpush1.msra.mxu0 0.0
          %6023 = vmatprep.subr.mxu0 0.0
          %6024 = vmatpush1.msra.mxu0 0.0
          %6025 = vmatprep.subr.mxu0 0.0
          %6026 = vmatpush1.msra.mxu0 0.0
          %6027 = vmatprep.subr.mxu0 0.0
          %6028 = vmatpush1.msra.mxu0 0.0
          %6029 = vmatprep.subr.mxu0 0.0
          %6030 = vmatpush1.msra.mxu0 0.0
          %6031 = vmatprep.subr.mxu0 0.0
          %6032 = vmatpush1.msra.mxu0 0.0
          %6033 = vmatprep.subr.mxu0 0.0
          %6034 = vmatpush1.msra.mxu0 0.0
          %6035 = vmatprep.subr.mxu0 0.0
          %6036 = vmatpush1.msra.mxu0 0.0
          %6037 = vmatprep.subr.mxu0 0.0
          %6038 = vmatpush1.msra.mxu0 0.0
          %6039 = vmatprep.subr.mxu0 0.0
          %6040 = vmatpush1.msra.mxu0 0.0
          %6041 = vmatprep.subr.mxu0 0.0
          %6042 = vmatpush1.msra.mxu0 0.0
          %6043 = vmatprep.subr.mxu0 0.0
          %6044 = vmatpush1.msra.mxu0 0.0
          %6045 = vmatprep.subr.mxu0 0.0
          %6046 = vmatpush1.msra.mxu0 0.0
          %6047 = vmatprep.subr.mxu0 0.0
          %6048 = vmatpush1.msra.mxu0 0.0
          %6049 = vmatprep.subr.mxu0 0.0
          %6050 = vmatpush1.msra.mxu0 0.0
          %6051 = vmatprep.subr.mxu0 0.0
          %6052 = vmatpush1.msra.mxu0 0.0
          %6053 = vmatprep.subr.mxu0 0.0
          %6054 = vmatpush1.msra.mxu0 0.0
          %6055 = vmatprep.subr.mxu0 0.0
          %6056 = vmatpush1.msra.mxu0 0.0
          %6057 = vmatprep.subr.mxu0 0.0
          %6058 = vmatpush1.msra.mxu0 0.0
          %6059 = vmatprep.subr.mxu0 0.0
          %6060 = vmatpush1.msra.mxu0 0.0
          %6061 = vmatprep.subr.mxu0 0.0
          %6062 = vmatpush1.msra.mxu0 0.0
          %6063 = vmatprep.subr.mxu0 0.0
          %6064 = vmatpush1.msra.mxu0 0.0
          %6065 = vmatprep.subr.mxu0 0.0
          %6066 = vmatpush1.msra.mxu0 0.0
          %6067 = vmatprep.subr.mxu0 0.0
          %6068 = vmatpush1.msra.mxu0 0.0
          %6069 = vmatprep.subr.mxu0 0.0
          %6070 = vmatpush1.msra.mxu0 0.0
          %6071 = vmatprep.subr.mxu0 0.0
          %6072 = vmatpush1.msra.mxu0 0.0
          %6073 = vmatprep.subr.mxu0 0.0
          %6074 = vmatpush1.msra.mxu0 0.0
          %6075 = vmatprep.subr.mxu0 0.0
          %6076 = vmatpush1.msra.mxu0 0.0
          %6077 = vmatprep.subr.mxu0 0.0
          %6078 = vmatpush1.msra.mxu0 0.0
          %6079 = vmatprep.mubr.f32.mxu0 0.0
          %6080 = vmatmul.mubr.f32.gmra.mrb[0].mxu0 %v6010
          %v6081 = vpop.f32.mrb[0].mxu0
          %v6082 = vadd.f32 0.0, %v6081
          %v6083 = vpop.f32.mrb[0].mxu0
          %v6084 = vadd.f32 0.0, %v6083
          %6085 = vmatprep.mubr.f32.mxu0 0.0
          %6086 = vmatmul.mubr.f32.gmra.mrb[0].mxu0 %v6013
          %v6087 = vpop.f32.mrb[0].mxu0
          %v6088 = vadd.f32 0.0, %v6087
          %v6089 = vpop.f32.mrb[0].mxu0
          %v6090 = vadd.f32 0.0, %v6089
          %6091 = vdwg.mxu0
          %6092 = vmatprep.subr.mxu0 0.0
          %6093 = vmatpush1.msra.mxu0 %v6004
          %6094 = vmatprep.subr.mxu0 0.0
          %6095 = vmatpush1.msra.mxu0 %v6005
          %6096 = vmatprep.subr.mxu0 0.0
          %6097 = vmatpush1.msra.mxu0 0.0
          %6098 = vmatprep.subr.mxu0 0.0
          %6099 = vmatpush1.msra.mxu0 0.0
          %6100 = vmatprep.subr.mxu0 0.0
          %6101 = vmatpush1.msra.mxu0 0.0
          %6102 = vmatprep.subr.mxu0 0.0
          %6103 = vmatpush1.msra.mxu0 0.0
          %6104 = vmatprep.subr.mxu0 0.0
          %6105 = vmatpush1.msra.mxu0 0.0
          %6106 = vmatprep.subr.mxu0 0.0
          %6107 = vmatpush1.msra.mxu0 0.0
          %6108 = vmatprep.subr.mxu0 0.0
          %6109 = vmatpush1.msra.mxu0 0.0
          %6110 = vmatprep.subr.mxu0 0.0
          %6111 = vmatpush1.msra.mxu0 0.0
          %6112 = vmatprep.subr.mxu0 0.0
          %6113 = vmatpush1.msra.mxu0 0.0
          %6114 = vmatprep.subr.mxu0 0.0
          %6115 = vmatpush1.msra.mxu0 0.0
          %6116 = vmatprep.subr.mxu0 0.0
          %6117 = vmatpush1.msra.mxu0 0.0
          %6118 = vmatprep.subr.mxu0 0.0
          %6119 = vmatpush1.msra.mxu0 0.0
          %6120 = vmatprep.subr.mxu0 0.0
          %6121 = vmatpush1.msra.mxu0 0.0
          %6122 = vmatprep.subr.mxu0 0.0
          %6123 = vmatpush1.msra.mxu0 0.0
          %6124 = vmatprep.subr.mxu0 0.0
          %6125 = vmatpush1.msra.mxu0 0.0
          %6126 = vmatprep.subr.mxu0 0.0
          %6127 = vmatpush1.msra.mxu0 0.0
          %6128 = vmatprep.subr.mxu0 0.0
          %6129 = vmatpush1.msra.mxu0 0.0
          %6130 = vmatprep.subr.mxu0 0.0
          %6131 = vmatpush1.msra.mxu0 0.0
          %6132 = vmatprep.subr.mxu0 0.0
          %6133 = vmatpush1.msra.mxu0 0.0
          %6134 = vmatprep.subr.mxu0 0.0
          %6135 = vmatpush1.msra.mxu0 0.0
          %6136 = vmatprep.subr.mxu0 0.0
          %6137 = vmatpush1.msra.mxu0 0.0
          %6138 = vmatprep.subr.mxu0 0.0
          %6139 = vmatpush1.msra.mxu0 0.0
          %6140 = vmatprep.subr.mxu0 0.0
          %6141 = vmatpush1.msra.mxu0 0.0
          %6142 = vmatprep.subr.mxu0 0.0
          %6143 = vmatpush1.msra.mxu0 0.0
          %6144 = vmatprep.subr.mxu0 0.0
          %6145 = vmatpush1.msra.mxu0 0.0
          %6146 = vmatprep.subr.mxu0 0.0
          %6147 = vmatpush1.msra.mxu0 0.0
          %6148 = vmatprep.subr.mxu0 0.0
          %6149 = vmatpush1.msra.mxu0 0.0
          %6150 = vmatprep.subr.mxu0 0.0
          %6151 = vmatpush1.msra.mxu0 0.0
          %6152 = vmatprep.subr.mxu0 0.0
          %6153 = vmatpush1.msra.mxu0 0.0
          %6154 = vmatprep.subr.mxu0 0.0
          %6155 = vmatpush1.msra.mxu0 0.0
          %6156 = vmatprep.mubr.f32.mxu0 0.0
          %6157 = vmatmul.mubr.f32.gmra.mrb[0].mxu0 %v6010
          %v6158 = vpop.f32.mrb[0].mxu0
          %v6159 = vadd.f32 0.0, %v6158
          %v6160 = vpop.f32.mrb[0].mxu0
          %6161 = vmatprep.mubr.f32.mxu0 0.0
          %6162 = vmatmul.mubr.f32.gmra.mrb[0].mxu0 %v6013
          %v6163 = vpop.f32.mrb[0].mxu0
          %v6164 = vadd.f32 0.0, %v6163
          %v6165 = vpop.f32.mrb[0].mxu0
          %6166 = vdwg.mxu0
          %v6167 = vadd.f32 %v5903, %v6082
          %v6168 = vadd.f32 %v5905, %v6084
          %v6169 = vadd.f32 %v5980, %v6159
          %v6170 = vadd.f32 %v5909, %v6088
          %v6171 = vadd.f32 %v5911, %v6090
          %v6172 = vadd.f32 %v5985, %v6164
          %s6173 = scalar_lea.vmem %s6, 16
          %v6174 = vld [vmem:[%s6173] sm:$0xff]
          %v6175 = vld [vmem:[%s6173 + $0x8] sm:$0xff]
          %6177 = vset.pattern.permute.xlu0 0
          %6178 = vperm.xlu0 %6177, %v6174
          %v6179 = vpop.permute.xlu0 %6178
          %6182 = vset.pattern.permute.xlu0 0
          %6183 = vperm.xlu0 %6182, %v6175
          %v6184 = vpop.permute.xlu0 %6183
          %v6186 = vadd.f32 %v6167, %v6179
          %v6187 = vadd.f32 %v6168, %v6179
          %v6188 = vadd.f32 %v6169, %v6179
          %v6189 = vadd.f32 %v6170, %v6184
          %v6190 = vadd.f32 %v6171, %v6184
          %v6191 = vadd.f32 %v6172, %v6184
          %v6192 = vadd.f32 %v5060, %v6186
          %v6193 = vadd.f32 %v5061, %v6187
          %v6194 = vadd.f32 %v5062, %v6188
          %v6195 = vadd.f32 %v5063, %v6189
          %v6196 = vadd.f32 %v5064, %v6190
          %v6197 = vadd.f32 %v5065, %v6191
          %6198 = vst [vmem:[#allocation2] sm:$0xff] %v6192
          %6199 = vst [vmem:[#allocation2 + $0x8] sm:$0xff] %v6193
          %6200 = vst [vmem:[#allocation2 + $0x10] sm:$0xff] %v6194
          %6201 = vst [vmem:[#allocation2 + $0x18] sm:$0xff] %v6195
          %6202 = vst [vmem:[#allocation2 + $0x20] sm:$0xff] %v6196
          %6203 = vst [vmem:[#allocation2 + $0x28] sm:$0xff] %v6197
          %v6204 = vld [vmem:[#allocation2] sm:$0xff]
          %v6205 = vld [vmem:[#allocation2 + $0x8] sm:$0xff]
          %v6206 = vld [vmem:[#allocation2 + $0x10] sm:$0xff]
          %v6207 = vld [vmem:[#allocation2 + $0x18] sm:$0xff]
          %v6208 = vld [vmem:[#allocation2 + $0x20] sm:$0xff]
          %v6209 = vld [vmem:[#allocation2 + $0x28] sm:$0xff]
          %v6210 = vmul.f32 %v6204, 0.1
          %v6211 = vmul.f32 %v6205, 0.1
          %v6212 = vmul.f32 %v6206, 0.1
          %v6213 = vmul.f32 %v6207, 0.1
          %v6214 = vmul.f32 %v6208, 0.1
          %v6215 = vmul.f32 %v6209, 0.1
          %v6216 = vmax.f32 %v6204, %v6210
          %v6217 = vmax.f32 %v6205, %v6211
          %v6218 = vmax.f32 %v6206, %v6212
          %v6219 = vmax.f32 %v6207, %v6213
          %v6220 = vmax.f32 %v6208, %v6214
          %v6221 = vmax.f32 %v6209, %v6215
          %v6222 = vsel %vm3934, %v6216, 0.0
          %v6223 = vsel %vm3935, %v6217, 0.0
          %v6224 = vsel %vm3936, %v6218, 0.0
          %v6225 = vsel %vm3934, %v6219, 0.0
          %v6226 = vsel %vm3935, %v6220, 0.0
          %v6227 = vsel %vm3936, %v6221, 0.0
          %6228 = vrot.lane.b32.xlu0 %v6222, 5
          %v6229 = vpop.permute.xlu0 %6228
          %6230 = vrot.lane.b32.xlu0 %v6225, 5
          %v6231 = vpop.permute.xlu0 %6230
          %6232 = vrot.lane.b32.xlu0 %v6223, 5
          %v6233 = vpop.permute.xlu0 %6232
          %6234 = vrot.lane.b32.xlu0 %v6226, 5
          %v6235 = vpop.permute.xlu0 %6234
          %6236 = vrot.lane.b32.xlu0 %v6224, 5
          %v6237 = vpop.permute.xlu0 %6236
          %6238 = vrot.lane.b32.xlu0 %v6227, 5
          %v6239 = vpop.permute.xlu0 %6238
          %vm6240 = vcmp.lt.s32.totalorder %v3897, 5
          %v6241 = vsel %vm6240, %v6233, %v6237
          %v6242 = vsel %vm6240, %v6235, %v6239
          %v6243 = vsel %vm6240, %v6229, %v6233
          %v6244 = vsel %vm6240, %v6231, %v6235
          %v6245 = vsel %vm6240, %v6237, %v6229
          %v6246 = vsel %vm6240, %v6239, %v6231
          %s6247 = scalar_lea.vmem %s3, 96
          %v6248 = vld [vmem:[%s6247] sm:$0xff]
          %v6249 = vld [vmem:[%s6247 + $0x8] sm:$0xff]
          %s6250 = scalar_lea.vmem %s3, 112
          %v6251 = vld [vmem:[%s6250] sm:$0xff]
          %v6252 = vld [vmem:[%s6250 + $0x8] sm:$0xff]
          %v6254 = vsel %vm3967, %v6251, 0
          %v6257 = vsel %vm3967, %v6252, 0
          %6259 = vmatprep.subr.mxu0 %v6223
          %6260 = vmatpush1.msra.mxu0 %v6222
          %6261 = vmatprep.subr.mxu0 %v6226
          %6262 = vmatpush1.msra.mxu0 %v6225
          %6263 = vmatprep.subr.mxu0 0.0
          %6264 = vmatpush1.msra.mxu0 0.0
          %6265 = vmatprep.subr.mxu0 0.0
          %6266 = vmatpush1.msra.mxu0 0.0
          %6267 = vmatprep.subr.mxu0 0.0
          %6268 = vmatpush1.msra.mxu0 0.0
          %6269 = vmatprep.subr.mxu0 0.0
          %6270 = vmatpush1.msra.mxu0 0.0
          %6271 = vmatprep.subr.mxu0 0.0
          %6272 = vmatpush1.msra.mxu0 0.0
          %6273 = vmatprep.subr.mxu0 0.0
          %6274 = vmatpush1.msra.mxu0 0.0
          %6275 = vmatprep.subr.mxu0 0.0
          %6276 = vmatpush1.msra.mxu0 0.0
          %6277 = vmatprep.subr.mxu0 0.0
          %6278 = vmatpush1.msra.mxu0 0.0
          %6279 = vmatprep.subr.mxu0 0.0
          %6280 = vmatpush1.msra.mxu0 0.0
          %6281 = vmatprep.subr.mxu0 0.0
          %6282 = vmatpush1.msra.mxu0 0.0
          %6283 = vmatprep.subr.mxu0 0.0
          %6284 = vmatpush1.msra.mxu0 0.0
          %6285 = vmatprep.subr.mxu0 0.0
          %6286 = vmatpush1.msra.mxu0 0.0
          %6287 = vmatprep.subr.mxu0 0.0
          %6288 = vmatpush1.msra.mxu0 0.0
          %6289 = vmatprep.subr.mxu0 0.0
          %6290 = vmatpush1.msra.mxu0 0.0
          %6291 = vmatprep.subr.mxu0 0.0
          %6292 = vmatpush1.msra.mxu0 0.0
          %6293 = vmatprep.subr.mxu0 0.0
          %6294 = vmatpush1.msra.mxu0 0.0
          %6295 = vmatprep.subr.mxu0 0.0
          %6296 = vmatpush1.msra.mxu0 0.0
          %6297 = vmatprep.subr.mxu0 0.0
          %6298 = vmatpush1.msra.mxu0 0.0
          %6299 = vmatprep.subr.mxu0 0.0
          %6300 = vmatpush1.msra.mxu0 0.0
          %6301 = vmatprep.subr.mxu0 0.0
          %6302 = vmatpush1.msra.mxu0 0.0
          %6303 = vmatprep.subr.mxu0 0.0
          %6304 = vmatpush1.msra.mxu0 0.0
          %6305 = vmatprep.subr.mxu0 0.0
          %6306 = vmatpush1.msra.mxu0 0.0
          %6307 = vmatprep.subr.mxu0 0.0
          %6308 = vmatpush1.msra.mxu0 0.0
          %6309 = vmatprep.subr.mxu0 0.0
          %6310 = vmatpush1.msra.mxu0 0.0
          %6311 = vmatprep.subr.mxu0 0.0
          %6312 = vmatpush1.msra.mxu0 0.0
          %6313 = vmatprep.subr.mxu0 0.0
          %6314 = vmatpush1.msra.mxu0 0.0
          %6315 = vmatprep.subr.mxu0 0.0
          %6316 = vmatpush1.msra.mxu0 0.0
          %6317 = vmatprep.subr.mxu0 0.0
          %6318 = vmatpush1.msra.mxu0 0.0
          %6319 = vmatprep.subr.mxu0 0.0
          %6320 = vmatpush1.msra.mxu0 0.0
          %6321 = vmatprep.subr.mxu0 0.0
          %6322 = vmatpush1.msra.mxu0 0.0
          %6323 = vmatprep.mubr.f32.mxu0 0.0
          %6324 = vmatmul.mubr.f32.gmra.mrb[0].mxu0 %v6254
          %v6325 = vpop.f32.mrb[0].mxu0
          %v6326 = vadd.f32 0.0, %v6325
          %v6327 = vpop.f32.mrb[0].mxu0
          %v6328 = vadd.f32 0.0, %v6327
          %6329 = vmatprep.mubr.f32.mxu0 0.0
          %6330 = vmatmul.mubr.f32.gmra.mrb[0].mxu0 %v6257
          %v6331 = vpop.f32.mrb[0].mxu0
          %v6332 = vadd.f32 0.0, %v6331
          %v6333 = vpop.f32.mrb[0].mxu0
          %v6334 = vadd.f32 0.0, %v6333
          %6335 = vdwg.mxu0
          %6336 = vmatprep.subr.mxu0 0.0
          %6337 = vmatpush1.msra.mxu0 %v6224
          %6338 = vmatprep.subr.mxu0 0.0
          %6339 = vmatpush1.msra.mxu0 %v6227
          %6340 = vmatprep.subr.mxu0 0.0
          %6341 = vmatpush1.msra.mxu0 0.0
          %6342 = vmatprep.subr.mxu0 0.0
          %6343 = vmatpush1.msra.mxu0 0.0
          %6344 = vmatprep.subr.mxu0 0.0
          %6345 = vmatpush1.msra.mxu0 0.0
          %6346 = vmatprep.subr.mxu0 0.0
          %6347 = vmatpush1.msra.mxu0 0.0
          %6348 = vmatprep.subr.mxu0 0.0
          %6349 = vmatpush1.msra.mxu0 0.0
          %6350 = vmatprep.subr.mxu0 0.0
          %6351 = vmatpush1.msra.mxu0 0.0
          %6352 = vmatprep.subr.mxu0 0.0
          %6353 = vmatpush1.msra.mxu0 0.0
          %6354 = vmatprep.subr.mxu0 0.0
          %6355 = vmatpush1.msra.mxu0 0.0
          %6356 = vmatprep.subr.mxu0 0.0
          %6357 = vmatpush1.msra.mxu0 0.0
          %6358 = vmatprep.subr.mxu0 0.0
          %6359 = vmatpush1.msra.mxu0 0.0
          %6360 = vmatprep.subr.mxu0 0.0
          %6361 = vmatpush1.msra.mxu0 0.0
          %6362 = vmatprep.subr.mxu0 0.0
          %6363 = vmatpush1.msra.mxu0 0.0
          %6364 = vmatprep.subr.mxu0 0.0
          %6365 = vmatpush1.msra.mxu0 0.0
          %6366 = vmatprep.subr.mxu0 0.0
          %6367 = vmatpush1.msra.mxu0 0.0
          %6368 = vmatprep.subr.mxu0 0.0
          %6369 = vmatpush1.msra.mxu0 0.0
          %6370 = vmatprep.subr.mxu0 0.0
          %6371 = vmatpush1.msra.mxu0 0.0
          %6372 = vmatprep.subr.mxu0 0.0
          %6373 = vmatpush1.msra.mxu0 0.0
          %6374 = vmatprep.subr.mxu0 0.0
          %6375 = vmatpush1.msra.mxu0 0.0
          %6376 = vmatprep.subr.mxu0 0.0
          %6377 = vmatpush1.msra.mxu0 0.0
          %6378 = vmatprep.subr.mxu0 0.0
          %6379 = vmatpush1.msra.mxu0 0.0
          %6380 = vmatprep.subr.mxu0 0.0
          %6381 = vmatpush1.msra.mxu0 0.0
          %6382 = vmatprep.subr.mxu0 0.0
          %6383 = vmatpush1.msra.mxu0 0.0
          %6384 = vmatprep.subr.mxu0 0.0
          %6385 = vmatpush1.msra.mxu0 0.0
          %6386 = vmatprep.subr.mxu0 0.0
          %6387 = vmatpush1.msra.mxu0 0.0
          %6388 = vmatprep.subr.mxu0 0.0
          %6389 = vmatpush1.msra.mxu0 0.0
          %6390 = vmatprep.subr.mxu0 0.0
          %6391 = vmatpush1.msra.mxu0 0.0
          %6392 = vmatprep.subr.mxu0 0.0
          %6393 = vmatpush1.msra.mxu0 0.0
          %6394 = vmatprep.subr.mxu0 0.0
          %6395 = vmatpush1.msra.mxu0 0.0
          %6396 = vmatprep.subr.mxu0 0.0
          %6397 = vmatpush1.msra.mxu0 0.0
          %6398 = vmatprep.subr.mxu0 0.0
          %6399 = vmatpush1.msra.mxu0 0.0
          %6400 = vmatprep.mubr.f32.mxu0 0.0
          %6401 = vmatmul.mubr.f32.gmra.mrb[0].mxu0 %v6254
          %v6402 = vpop.f32.mrb[0].mxu0
          %v6403 = vadd.f32 0.0, %v6402
          %v6404 = vpop.f32.mrb[0].mxu0
          %6405 = vmatprep.mubr.f32.mxu0 0.0
          %6406 = vmatmul.mubr.f32.gmra.mrb[0].mxu0 %v6257
          %v6407 = vpop.f32.mrb[0].mxu0
          %v6408 = vadd.f32 0.0, %v6407
          %v6409 = vpop.f32.mrb[0].mxu0
          %6410 = vdwg.mxu0
          %v6412 = vsel %vm3967, %v6248, 0
          %v6415 = vsel %vm3967, %v6249, 0
          %6417 = vmatprep.subr.mxu0 %v6243
          %6418 = vmatpush1.msra.mxu0 %v6245
          %6419 = vmatprep.subr.mxu0 %v6244
          %6420 = vmatpush1.msra.mxu0 %v6246
          %6421 = vmatprep.subr.mxu0 0.0
          %6422 = vmatpush1.msra.mxu0 0.0
          %6423 = vmatprep.subr.mxu0 0.0
          %6424 = vmatpush1.msra.mxu0 0.0
          %6425 = vmatprep.subr.mxu0 0.0
          %6426 = vmatpush1.msra.mxu0 0.0
          %6427 = vmatprep.subr.mxu0 0.0
          %6428 = vmatpush1.msra.mxu0 0.0
          %6429 = vmatprep.subr.mxu0 0.0
          %6430 = vmatpush1.msra.mxu0 0.0
          %6431 = vmatprep.subr.mxu0 0.0
          %6432 = vmatpush1.msra.mxu0 0.0
          %6433 = vmatprep.subr.mxu0 0.0
          %6434 = vmatpush1.msra.mxu0 0.0
          %6435 = vmatprep.subr.mxu0 0.0
          %6436 = vmatpush1.msra.mxu0 0.0
          %6437 = vmatprep.subr.mxu0 0.0
          %6438 = vmatpush1.msra.mxu0 0.0
          %6439 = vmatprep.subr.mxu0 0.0
          %6440 = vmatpush1.msra.mxu0 0.0
          %6441 = vmatprep.subr.mxu0 0.0
          %6442 = vmatpush1.msra.mxu0 0.0
          %6443 = vmatprep.subr.mxu0 0.0
          %6444 = vmatpush1.msra.mxu0 0.0
          %6445 = vmatprep.subr.mxu0 0.0
          %6446 = vmatpush1.msra.mxu0 0.0
          %6447 = vmatprep.subr.mxu0 0.0
          %6448 = vmatpush1.msra.mxu0 0.0
          %6449 = vmatprep.subr.mxu0 0.0
          %6450 = vmatpush1.msra.mxu0 0.0
          %6451 = vmatprep.subr.mxu0 0.0
          %6452 = vmatpush1.msra.mxu0 0.0
          %6453 = vmatprep.subr.mxu0 0.0
          %6454 = vmatpush1.msra.mxu0 0.0
          %6455 = vmatprep.subr.mxu0 0.0
          %6456 = vmatpush1.msra.mxu0 0.0
          %6457 = vmatprep.subr.mxu0 0.0
          %6458 = vmatpush1.msra.mxu0 0.0
          %6459 = vmatprep.subr.mxu0 0.0
          %6460 = vmatpush1.msra.mxu0 0.0
          %6461 = vmatprep.subr.mxu0 0.0
          %6462 = vmatpush1.msra.mxu0 0.0
          %6463 = vmatprep.subr.mxu0 0.0
          %6464 = vmatpush1.msra.mxu0 0.0
          %6465 = vmatprep.subr.mxu0 0.0
          %6466 = vmatpush1.msra.mxu0 0.0
          %6467 = vmatprep.subr.mxu0 0.0
          %6468 = vmatpush1.msra.mxu0 0.0
          %6469 = vmatprep.subr.mxu0 0.0
          %6470 = vmatpush1.msra.mxu0 0.0
          %6471 = vmatprep.subr.mxu0 0.0
          %6472 = vmatpush1.msra.mxu0 0.0
          %6473 = vmatprep.subr.mxu0 0.0
          %6474 = vmatpush1.msra.mxu0 0.0
          %6475 = vmatprep.subr.mxu0 0.0
          %6476 = vmatpush1.msra.mxu0 0.0
          %6477 = vmatprep.subr.mxu0 0.0
          %6478 = vmatpush1.msra.mxu0 0.0
          %6479 = vmatprep.subr.mxu0 0.0
          %6480 = vmatpush1.msra.mxu0 0.0
          %6481 = vmatprep.mubr.f32.mxu0 0.0
          %6482 = vmatmul.mubr.f32.gmra.mrb[0].mxu0 %v6412
          %v6483 = vpop.f32.mrb[0].mxu0
          %v6484 = vadd.f32 %v6326, %v6483
          %v6485 = vpop.f32.mrb[0].mxu0
          %v6486 = vadd.f32 %v6328, %v6485
          %6487 = vmatprep.mubr.f32.mxu0 0.0
          %6488 = vmatmul.mubr.f32.gmra.mrb[0].mxu0 %v6415
          %v6489 = vpop.f32.mrb[0].mxu0
          %v6490 = vadd.f32 %v6332, %v6489
          %v6491 = vpop.f32.mrb[0].mxu0
          %v6492 = vadd.f32 %v6334, %v6491
          %6493 = vdwg.mxu0
          %6494 = vmatprep.subr.mxu0 0.0
          %6495 = vmatpush1.msra.mxu0 %v6241
          %6496 = vmatprep.subr.mxu0 0.0
          %6497 = vmatpush1.msra.mxu0 %v6242
          %6498 = vmatprep.subr.mxu0 0.0
          %6499 = vmatpush1.msra.mxu0 0.0
          %6500 = vmatprep.subr.mxu0 0.0
          %6501 = vmatpush1.msra.mxu0 0.0
          %6502 = vmatprep.subr.mxu0 0.0
          %6503 = vmatpush1.msra.mxu0 0.0
          %6504 = vmatprep.subr.mxu0 0.0
          %6505 = vmatpush1.msra.mxu0 0.0
          %6506 = vmatprep.subr.mxu0 0.0
          %6507 = vmatpush1.msra.mxu0 0.0
          %6508 = vmatprep.subr.mxu0 0.0
          %6509 = vmatpush1.msra.mxu0 0.0
          %6510 = vmatprep.subr.mxu0 0.0
          %6511 = vmatpush1.msra.mxu0 0.0
          %6512 = vmatprep.subr.mxu0 0.0
          %6513 = vmatpush1.msra.mxu0 0.0
          %6514 = vmatprep.subr.mxu0 0.0
          %6515 = vmatpush1.msra.mxu0 0.0
          %6516 = vmatprep.subr.mxu0 0.0
          %6517 = vmatpush1.msra.mxu0 0.0
          %6518 = vmatprep.subr.mxu0 0.0
          %6519 = vmatpush1.msra.mxu0 0.0
          %6520 = vmatprep.subr.mxu0 0.0
          %6521 = vmatpush1.msra.mxu0 0.0
          %6522 = vmatprep.subr.mxu0 0.0
          %6523 = vmatpush1.msra.mxu0 0.0
          %6524 = vmatprep.subr.mxu0 0.0
          %6525 = vmatpush1.msra.mxu0 0.0
          %6526 = vmatprep.subr.mxu0 0.0
          %6527 = vmatpush1.msra.mxu0 0.0
          %6528 = vmatprep.subr.mxu0 0.0
          %6529 = vmatpush1.msra.mxu0 0.0
          %6530 = vmatprep.subr.mxu0 0.0
          %6531 = vmatpush1.msra.mxu0 0.0
          %6532 = vmatprep.subr.mxu0 0.0
          %6533 = vmatpush1.msra.mxu0 0.0
          %6534 = vmatprep.subr.mxu0 0.0
          %6535 = vmatpush1.msra.mxu0 0.0
          %6536 = vmatprep.subr.mxu0 0.0
          %6537 = vmatpush1.msra.mxu0 0.0
          %6538 = vmatprep.subr.mxu0 0.0
          %6539 = vmatpush1.msra.mxu0 0.0
          %6540 = vmatprep.subr.mxu0 0.0
          %6541 = vmatpush1.msra.mxu0 0.0
          %6542 = vmatprep.subr.mxu0 0.0
          %6543 = vmatpush1.msra.mxu0 0.0
          %6544 = vmatprep.subr.mxu0 0.0
          %6545 = vmatpush1.msra.mxu0 0.0
          %6546 = vmatprep.subr.mxu0 0.0
          %6547 = vmatpush1.msra.mxu0 0.0
          %6548 = vmatprep.subr.mxu0 0.0
          %6549 = vmatpush1.msra.mxu0 0.0
          %6550 = vmatprep.subr.mxu0 0.0
          %6551 = vmatpush1.msra.mxu0 0.0
          %6552 = vmatprep.subr.mxu0 0.0
          %6553 = vmatpush1.msra.mxu0 0.0
          %6554 = vmatprep.subr.mxu0 0.0
          %6555 = vmatpush1.msra.mxu0 0.0
          %6556 = vmatprep.subr.mxu0 0.0
          %6557 = vmatpush1.msra.mxu0 0.0
          %6558 = vmatprep.mubr.f32.mxu0 0.0
          %6559 = vmatmul.mubr.f32.gmra.mrb[0].mxu0 %v6412
          %v6560 = vpop.f32.mrb[0].mxu0
          %v6561 = vadd.f32 %v6403, %v6560
          %v6562 = vpop.f32.mrb[0].mxu0
          %6563 = vmatprep.mubr.f32.mxu0 0.0
          %6564 = vmatmul.mubr.f32.gmra.mrb[0].mxu0 %v6415
          %v6565 = vpop.f32.mrb[0].mxu0
          %v6566 = vadd.f32 %v6408, %v6565
          %v6567 = vpop.f32.mrb[0].mxu0
          %6568 = vdwg.mxu0
          %6569 = vrot.lane.b32.xlu0 %v6222, 123
          %v6570 = vpop.permute.xlu0 %6569
          %6571 = vrot.lane.b32.xlu0 %v6225, 123
          %v6572 = vpop.permute.xlu0 %6571
          %6573 = vrot.lane.b32.xlu0 %v6223, 123
          %v6574 = vpop.permute.xlu0 %6573
          %6575 = vrot.lane.b32.xlu0 %v6226, 123
          %v6576 = vpop.permute.xlu0 %6575
          %6577 = vrot.lane.b32.xlu0 %v6224, 123
          %v6578 = vpop.permute.xlu0 %6577
          %6579 = vrot.lane.b32.xlu0 %v6227, 123
          %v6580 = vpop.permute.xlu0 %6579
          %vm6581 = vcmp.lt.s32.totalorder %v3897, 123
          %v6582 = vsel %vm6581, %v6574, %v6578
          %v6583 = vsel %vm6581, %v6576, %v6580
          %v6584 = vsel %vm6581, %v6570, %v6574
          %v6585 = vsel %vm6581, %v6572, %v6576
          %v6586 = vsel %vm6581, %v6578, %v6570
          %v6587 = vsel %vm6581, %v6580, %v6572
          %s6588 = scalar_lea.vmem %s3, 128
          %v6589 = vld [vmem:[%s6588] sm:$0xff]
          %v6590 = vld [vmem:[%s6588 + $0x8] sm:$0xff]
          %v6592 = vsel %vm3967, %v6589, 0
          %v6595 = vsel %vm3967, %v6590, 0
          %6597 = vmatprep.subr.mxu0 %v6582
          %6598 = vmatpush1.msra.mxu0 %v6584
          %6599 = vmatprep.subr.mxu0 %v6583
          %6600 = vmatpush1.msra.mxu0 %v6585
          %6601 = vmatprep.subr.mxu0 0.0
          %6602 = vmatpush1.msra.mxu0 0.0
          %6603 = vmatprep.subr.mxu0 0.0
          %6604 = vmatpush1.msra.mxu0 0.0
          %6605 = vmatprep.subr.mxu0 0.0
          %6606 = vmatpush1.msra.mxu0 0.0
          %6607 = vmatprep.subr.mxu0 0.0
          %6608 = vmatpush1.msra.mxu0 0.0
          %6609 = vmatprep.subr.mxu0 0.0
          %6610 = vmatpush1.msra.mxu0 0.0
          %6611 = vmatprep.subr.mxu0 0.0
          %6612 = vmatpush1.msra.mxu0 0.0
          %6613 = vmatprep.subr.mxu0 0.0
          %6614 = vmatpush1.msra.mxu0 0.0
          %6615 = vmatprep.subr.mxu0 0.0
          %6616 = vmatpush1.msra.mxu0 0.0
          %6617 = vmatprep.subr.mxu0 0.0
          %6618 = vmatpush1.msra.mxu0 0.0
          %6619 = vmatprep.subr.mxu0 0.0
          %6620 = vmatpush1.msra.mxu0 0.0
          %6621 = vmatprep.subr.mxu0 0.0
          %6622 = vmatpush1.msra.mxu0 0.0
          %6623 = vmatprep.subr.mxu0 0.0
          %6624 = vmatpush1.msra.mxu0 0.0
          %6625 = vmatprep.subr.mxu0 0.0
          %6626 = vmatpush1.msra.mxu0 0.0
          %6627 = vmatprep.subr.mxu0 0.0
          %6628 = vmatpush1.msra.mxu0 0.0
          %6629 = vmatprep.subr.mxu0 0.0
          %6630 = vmatpush1.msra.mxu0 0.0
          %6631 = vmatprep.subr.mxu0 0.0
          %6632 = vmatpush1.msra.mxu0 0.0
          %6633 = vmatprep.subr.mxu0 0.0
          %6634 = vmatpush1.msra.mxu0 0.0
          %6635 = vmatprep.subr.mxu0 0.0
          %6636 = vmatpush1.msra.mxu0 0.0
          %6637 = vmatprep.subr.mxu0 0.0
          %6638 = vmatpush1.msra.mxu0 0.0
          %6639 = vmatprep.subr.mxu0 0.0
          %6640 = vmatpush1.msra.mxu0 0.0
          %6641 = vmatprep.subr.mxu0 0.0
          %6642 = vmatpush1.msra.mxu0 0.0
          %6643 = vmatprep.subr.mxu0 0.0
          %6644 = vmatpush1.msra.mxu0 0.0
          %6645 = vmatprep.subr.mxu0 0.0
          %6646 = vmatpush1.msra.mxu0 0.0
          %6647 = vmatprep.subr.mxu0 0.0
          %6648 = vmatpush1.msra.mxu0 0.0
          %6649 = vmatprep.subr.mxu0 0.0
          %6650 = vmatpush1.msra.mxu0 0.0
          %6651 = vmatprep.subr.mxu0 0.0
          %6652 = vmatpush1.msra.mxu0 0.0
          %6653 = vmatprep.subr.mxu0 0.0
          %6654 = vmatpush1.msra.mxu0 0.0
          %6655 = vmatprep.subr.mxu0 0.0
          %6656 = vmatpush1.msra.mxu0 0.0
          %6657 = vmatprep.subr.mxu0 0.0
          %6658 = vmatpush1.msra.mxu0 0.0
          %6659 = vmatprep.subr.mxu0 0.0
          %6660 = vmatpush1.msra.mxu0 0.0
          %6661 = vmatprep.mubr.f32.mxu0 0.0
          %6662 = vmatmul.mubr.f32.gmra.mrb[0].mxu0 %v6592
          %v6663 = vpop.f32.mrb[0].mxu0
          %v6664 = vadd.f32 0.0, %v6663
          %v6665 = vpop.f32.mrb[0].mxu0
          %v6666 = vadd.f32 0.0, %v6665
          %6667 = vmatprep.mubr.f32.mxu0 0.0
          %6668 = vmatmul.mubr.f32.gmra.mrb[0].mxu0 %v6595
          %v6669 = vpop.f32.mrb[0].mxu0
          %v6670 = vadd.f32 0.0, %v6669
          %v6671 = vpop.f32.mrb[0].mxu0
          %v6672 = vadd.f32 0.0, %v6671
          %6673 = vdwg.mxu0
          %6674 = vmatprep.subr.mxu0 0.0
          %6675 = vmatpush1.msra.mxu0 %v6586
          %6676 = vmatprep.subr.mxu0 0.0
          %6677 = vmatpush1.msra.mxu0 %v6587
          %6678 = vmatprep.subr.mxu0 0.0
          %6679 = vmatpush1.msra.mxu0 0.0
          %6680 = vmatprep.subr.mxu0 0.0
          %6681 = vmatpush1.msra.mxu0 0.0
          %6682 = vmatprep.subr.mxu0 0.0
          %6683 = vmatpush1.msra.mxu0 0.0
          %6684 = vmatprep.subr.mxu0 0.0
          %6685 = vmatpush1.msra.mxu0 0.0
          %6686 = vmatprep.subr.mxu0 0.0
          %6687 = vmatpush1.msra.mxu0 0.0
          %6688 = vmatprep.subr.mxu0 0.0
          %6689 = vmatpush1.msra.mxu0 0.0
          %6690 = vmatprep.subr.mxu0 0.0
          %6691 = vmatpush1.msra.mxu0 0.0
          %6692 = vmatprep.subr.mxu0 0.0
          %6693 = vmatpush1.msra.mxu0 0.0
          %6694 = vmatprep.subr.mxu0 0.0
          %6695 = vmatpush1.msra.mxu0 0.0
          %6696 = vmatprep.subr.mxu0 0.0
          %6697 = vmatpush1.msra.mxu0 0.0
          %6698 = vmatprep.subr.mxu0 0.0
          %6699 = vmatpush1.msra.mxu0 0.0
          %6700 = vmatprep.subr.mxu0 0.0
          %6701 = vmatpush1.msra.mxu0 0.0
          %6702 = vmatprep.subr.mxu0 0.0
          %6703 = vmatpush1.msra.mxu0 0.0
          %6704 = vmatprep.subr.mxu0 0.0
          %6705 = vmatpush1.msra.mxu0 0.0
          %6706 = vmatprep.subr.mxu0 0.0
          %6707 = vmatpush1.msra.mxu0 0.0
          %6708 = vmatprep.subr.mxu0 0.0
          %6709 = vmatpush1.msra.mxu0 0.0
          %6710 = vmatprep.subr.mxu0 0.0
          %6711 = vmatpush1.msra.mxu0 0.0
          %6712 = vmatprep.subr.mxu0 0.0
          %6713 = vmatpush1.msra.mxu0 0.0
          %6714 = vmatprep.subr.mxu0 0.0
          %6715 = vmatpush1.msra.mxu0 0.0
          %6716 = vmatprep.subr.mxu0 0.0
          %6717 = vmatpush1.msra.mxu0 0.0
          %6718 = vmatprep.subr.mxu0 0.0
          %6719 = vmatpush1.msra.mxu0 0.0
          %6720 = vmatprep.subr.mxu0 0.0
          %6721 = vmatpush1.msra.mxu0 0.0
          %6722 = vmatprep.subr.mxu0 0.0
          %6723 = vmatpush1.msra.mxu0 0.0
          %6724 = vmatprep.subr.mxu0 0.0
          %6725 = vmatpush1.msra.mxu0 0.0
          %6726 = vmatprep.subr.mxu0 0.0
          %6727 = vmatpush1.msra.mxu0 0.0
          %6728 = vmatprep.subr.mxu0 0.0
          %6729 = vmatpush1.msra.mxu0 0.0
          %6730 = vmatprep.subr.mxu0 0.0
          %6731 = vmatpush1.msra.mxu0 0.0
          %6732 = vmatprep.subr.mxu0 0.0
          %6733 = vmatpush1.msra.mxu0 0.0
          %6734 = vmatprep.subr.mxu0 0.0
          %6735 = vmatpush1.msra.mxu0 0.0
          %6736 = vmatprep.subr.mxu0 0.0
          %6737 = vmatpush1.msra.mxu0 0.0
          %6738 = vmatprep.mubr.f32.mxu0 0.0
          %6739 = vmatmul.mubr.f32.gmra.mrb[0].mxu0 %v6592
          %v6740 = vpop.f32.mrb[0].mxu0
          %v6741 = vadd.f32 0.0, %v6740
          %v6742 = vpop.f32.mrb[0].mxu0
          %6743 = vmatprep.mubr.f32.mxu0 0.0
          %6744 = vmatmul.mubr.f32.gmra.mrb[0].mxu0 %v6595
          %v6745 = vpop.f32.mrb[0].mxu0
          %v6746 = vadd.f32 0.0, %v6745
          %v6747 = vpop.f32.mrb[0].mxu0
          %6748 = vdwg.mxu0
          %v6749 = vadd.f32 %v6484, %v6664
          %v6750 = vadd.f32 %v6486, %v6666
          %v6751 = vadd.f32 %v6561, %v6741
          %v6752 = vadd.f32 %v6490, %v6670
          %v6753 = vadd.f32 %v6492, %v6672
          %v6754 = vadd.f32 %v6566, %v6746
          %s6755 = scalar_lea.vmem %s4, 32
          %v6756 = vld [vmem:[%s6755] sm:$0xff]
          %v6757 = vld [vmem:[%s6755 + $0x8] sm:$0xff]
          %6759 = vset.pattern.permute.xlu0 0
          %6760 = vperm.xlu0 %6759, %v6756
          %v6761 = vpop.permute.xlu0 %6760
          %6764 = vset.pattern.permute.xlu0 0
          %6765 = vperm.xlu0 %6764, %v6757
          %v6766 = vpop.permute.xlu0 %6765
          %v6768 = vadd.f32 %v6749, %v6761
          %v6769 = vadd.f32 %v6750, %v6761
          %v6770 = vadd.f32 %v6751, %v6761
          %v6771 = vadd.f32 %v6752, %v6766
          %v6772 = vadd.f32 %v6753, %v6766
          %v6773 = vadd.f32 %v6754, %v6766
          %v6774 = vmul.f32 %v6768, 0.1
          %v6775 = vmul.f32 %v6769, 0.1
          %v6776 = vmul.f32 %v6770, 0.1
          %v6777 = vmul.f32 %v6771, 0.1
          %v6778 = vmul.f32 %v6772, 0.1
          %v6779 = vmul.f32 %v6773, 0.1
          %v6780 = vmax.f32 %v6768, %v6774
          %v6781 = vmax.f32 %v6769, %v6775
          %v6782 = vmax.f32 %v6770, %v6776
          %v6783 = vmax.f32 %v6771, %v6777
          %v6784 = vmax.f32 %v6772, %v6778
          %v6785 = vmax.f32 %v6773, %v6779
          %v6786 = vsel %vm3934, %v6780, 0.0
          %v6787 = vsel %vm3935, %v6781, 0.0
          %v6788 = vsel %vm3936, %v6782, 0.0
          %v6789 = vsel %vm3934, %v6783, 0.0
          %v6790 = vsel %vm3935, %v6784, 0.0
          %v6791 = vsel %vm3936, %v6785, 0.0
          %6792 = vrot.lane.b32.xlu0 %v6786, 1
          %v6793 = vpop.permute.xlu0 %6792
          %6794 = vrot.lane.b32.xlu0 %v6789, 1
          %v6795 = vpop.permute.xlu0 %6794
          %6796 = vrot.lane.b32.xlu0 %v6787, 1
          %v6797 = vpop.permute.xlu0 %6796
          %6798 = vrot.lane.b32.xlu0 %v6790, 1
          %v6799 = vpop.permute.xlu0 %6798
          %6800 = vrot.lane.b32.xlu0 %v6788, 1
          %v6801 = vpop.permute.xlu0 %6800
          %6802 = vrot.lane.b32.xlu0 %v6791, 1
          %v6803 = vpop.permute.xlu0 %6802
          %v6804 = vsel %vm3955, %v6797, %v6801
          %v6805 = vsel %vm3955, %v6799, %v6803
          %v6806 = vsel %vm3955, %v6793, %v6797
          %v6807 = vsel %vm3955, %v6795, %v6799
          %v6808 = vsel %vm3955, %v6801, %v6793
          %v6809 = vsel %vm3955, %v6803, %v6795
          %s6810 = scalar_lea.vmem %s5, 96
          %v6811 = vld [vmem:[%s6810] sm:$0xff]
          %v6812 = vld [vmem:[%s6810 + $0x8] sm:$0xff]
          %s6813 = scalar_lea.vmem %s5, 112
          %v6814 = vld [vmem:[%s6813] sm:$0xff]
          %v6815 = vld [vmem:[%s6813 + $0x8] sm:$0xff]
          %v6817 = vsel %vm3967, %v6814, 0
          %v6820 = vsel %vm3967, %v6815, 0
          %6822 = vmatprep.subr.mxu0 %v6787
          %6823 = vmatpush1.msra.mxu0 %v6786
          %6824 = vmatprep.subr.mxu0 %v6790
          %6825 = vmatpush1.msra.mxu0 %v6789
          %6826 = vmatprep.subr.mxu0 0.0
          %6827 = vmatpush1.msra.mxu0 0.0
          %6828 = vmatprep.subr.mxu0 0.0
          %6829 = vmatpush1.msra.mxu0 0.0
          %6830 = vmatprep.subr.mxu0 0.0
          %6831 = vmatpush1.msra.mxu0 0.0
          %6832 = vmatprep.subr.mxu0 0.0
          %6833 = vmatpush1.msra.mxu0 0.0
          %6834 = vmatprep.subr.mxu0 0.0
          %6835 = vmatpush1.msra.mxu0 0.0
          %6836 = vmatprep.subr.mxu0 0.0
          %6837 = vmatpush1.msra.mxu0 0.0
          %6838 = vmatprep.subr.mxu0 0.0
          %6839 = vmatpush1.msra.mxu0 0.0
          %6840 = vmatprep.subr.mxu0 0.0
          %6841 = vmatpush1.msra.mxu0 0.0
          %6842 = vmatprep.subr.mxu0 0.0
          %6843 = vmatpush1.msra.mxu0 0.0
          %6844 = vmatprep.subr.mxu0 0.0
          %6845 = vmatpush1.msra.mxu0 0.0
          %6846 = vmatprep.subr.mxu0 0.0
          %6847 = vmatpush1.msra.mxu0 0.0
          %6848 = vmatprep.subr.mxu0 0.0
          %6849 = vmatpush1.msra.mxu0 0.0
          %6850 = vmatprep.subr.mxu0 0.0
          %6851 = vmatpush1.msra.mxu0 0.0
          %6852 = vmatprep.subr.mxu0 0.0
          %6853 = vmatpush1.msra.mxu0 0.0
          %6854 = vmatprep.subr.mxu0 0.0
          %6855 = vmatpush1.msra.mxu0 0.0
          %6856 = vmatprep.subr.mxu0 0.0
          %6857 = vmatpush1.msra.mxu0 0.0
          %6858 = vmatprep.subr.mxu0 0.0
          %6859 = vmatpush1.msra.mxu0 0.0
          %6860 = vmatprep.subr.mxu0 0.0
          %6861 = vmatpush1.msra.mxu0 0.0
          %6862 = vmatprep.subr.mxu0 0.0
          %6863 = vmatpush1.msra.mxu0 0.0
          %6864 = vmatprep.subr.mxu0 0.0
          %6865 = vmatpush1.msra.mxu0 0.0
          %6866 = vmatprep.subr.mxu0 0.0
          %6867 = vmatpush1.msra.mxu0 0.0
          %6868 = vmatprep.subr.mxu0 0.0
          %6869 = vmatpush1.msra.mxu0 0.0
          %6870 = vmatprep.subr.mxu0 0.0
          %6871 = vmatpush1.msra.mxu0 0.0
          %6872 = vmatprep.subr.mxu0 0.0
          %6873 = vmatpush1.msra.mxu0 0.0
          %6874 = vmatprep.subr.mxu0 0.0
          %6875 = vmatpush1.msra.mxu0 0.0
          %6876 = vmatprep.subr.mxu0 0.0
          %6877 = vmatpush1.msra.mxu0 0.0
          %6878 = vmatprep.subr.mxu0 0.0
          %6879 = vmatpush1.msra.mxu0 0.0
          %6880 = vmatprep.subr.mxu0 0.0
          %6881 = vmatpush1.msra.mxu0 0.0
          %6882 = vmatprep.subr.mxu0 0.0
          %6883 = vmatpush1.msra.mxu0 0.0
          %6884 = vmatprep.subr.mxu0 0.0
          %6885 = vmatpush1.msra.mxu0 0.0
          %6886 = vmatprep.mubr.f32.mxu0 0.0
          %6887 = vmatmul.mubr.f32.gmra.mrb[0].mxu0 %v6817
          %v6888 = vpop.f32.mrb[0].mxu0
          %v6889 = vadd.f32 0.0, %v6888
          %v6890 = vpop.f32.mrb[0].mxu0
          %v6891 = vadd.f32 0.0, %v6890
          %6892 = vmatprep.mubr.f32.mxu0 0.0
          %6893 = vmatmul.mubr.f32.gmra.mrb[0].mxu0 %v6820
          %v6894 = vpop.f32.mrb[0].mxu0
          %v6895 = vadd.f32 0.0, %v6894
          %v6896 = vpop.f32.mrb[0].mxu0
          %v6897 = vadd.f32 0.0, %v6896
          %6898 = vdwg.mxu0
          %6899 = vmatprep.subr.mxu0 0.0
          %6900 = vmatpush1.msra.mxu0 %v6788
          %6901 = vmatprep.subr.mxu0 0.0
          %6902 = vmatpush1.msra.mxu0 %v6791
          %6903 = vmatprep.subr.mxu0 0.0
          %6904 = vmatpush1.msra.mxu0 0.0
          %6905 = vmatprep.subr.mxu0 0.0
          %6906 = vmatpush1.msra.mxu0 0.0
          %6907 = vmatprep.subr.mxu0 0.0
          %6908 = vmatpush1.msra.mxu0 0.0
          %6909 = vmatprep.subr.mxu0 0.0
          %6910 = vmatpush1.msra.mxu0 0.0
          %6911 = vmatprep.subr.mxu0 0.0
          %6912 = vmatpush1.msra.mxu0 0.0
          %6913 = vmatprep.subr.mxu0 0.0
          %6914 = vmatpush1.msra.mxu0 0.0
          %6915 = vmatprep.subr.mxu0 0.0
          %6916 = vmatpush1.msra.mxu0 0.0
          %6917 = vmatprep.subr.mxu0 0.0
          %6918 = vmatpush1.msra.mxu0 0.0
          %6919 = vmatprep.subr.mxu0 0.0
          %6920 = vmatpush1.msra.mxu0 0.0
          %6921 = vmatprep.subr.mxu0 0.0
          %6922 = vmatpush1.msra.mxu0 0.0
          %6923 = vmatprep.subr.mxu0 0.0
          %6924 = vmatpush1.msra.mxu0 0.0
          %6925 = vmatprep.subr.mxu0 0.0
          %6926 = vmatpush1.msra.mxu0 0.0
          %6927 = vmatprep.subr.mxu0 0.0
          %6928 = vmatpush1.msra.mxu0 0.0
          %6929 = vmatprep.subr.mxu0 0.0
          %6930 = vmatpush1.msra.mxu0 0.0
          %6931 = vmatprep.subr.mxu0 0.0
          %6932 = vmatpush1.msra.mxu0 0.0
          %6933 = vmatprep.subr.mxu0 0.0
          %6934 = vmatpush1.msra.mxu0 0.0
          %6935 = vmatprep.subr.mxu0 0.0
          %6936 = vmatpush1.msra.mxu0 0.0
          %6937 = vmatprep.subr.mxu0 0.0
          %6938 = vmatpush1.msra.mxu0 0.0
          %6939 = vmatprep.subr.mxu0 0.0
          %6940 = vmatpush1.msra.mxu0 0.0
          %6941 = vmatprep.subr.mxu0 0.0
          %6942 = vmatpush1.msra.mxu0 0.0
          %6943 = vmatprep.subr.mxu0 0.0
          %6944 = vmatpush1.msra.mxu0 0.0
          %6945 = vmatprep.subr.mxu0 0.0
          %6946 = vmatpush1.msra.mxu0 0.0
          %6947 = vmatprep.subr.mxu0 0.0
          %6948 = vmatpush1.msra.mxu0 0.0
          %6949 = vmatprep.subr.mxu0 0.0
          %6950 = vmatpush1.msra.mxu0 0.0
          %6951 = vmatprep.subr.mxu0 0.0
          %6952 = vmatpush1.msra.mxu0 0.0
          %6953 = vmatprep.subr.mxu0 0.0
          %6954 = vmatpush1.msra.mxu0 0.0
          %6955 = vmatprep.subr.mxu0 0.0
          %6956 = vmatpush1.msra.mxu0 0.0
          %6957 = vmatprep.subr.mxu0 0.0
          %6958 = vmatpush1.msra.mxu0 0.0
          %6959 = vmatprep.subr.mxu0 0.0
          %6960 = vmatpush1.msra.mxu0 0.0
          %6961 = vmatprep.subr.mxu0 0.0
          %6962 = vmatpush1.msra.mxu0 0.0
          %6963 = vmatprep.mubr.f32.mxu0 0.0
          %6964 = vmatmul.mubr.f32.gmra.mrb[0].mxu0 %v6817
          %v6965 = vpop.f32.mrb[0].mxu0
          %v6966 = vadd.f32 0.0, %v6965
          %v6967 = vpop.f32.mrb[0].mxu0
          %6968 = vmatprep.mubr.f32.mxu0 0.0
          %6969 = vmatmul.mubr.f32.gmra.mrb[0].mxu0 %v6820
          %v6970 = vpop.f32.mrb[0].mxu0
          %v6971 = vadd.f32 0.0, %v6970
          %v6972 = vpop.f32.mrb[0].mxu0
          %6973 = vdwg.mxu0
          %v6975 = vsel %vm3967, %v6811, 0
          %v6978 = vsel %vm3967, %v6812, 0
          %6980 = vmatprep.subr.mxu0 %v6806
          %6981 = vmatpush1.msra.mxu0 %v6808
          %6982 = vmatprep.subr.mxu0 %v6807
          %6983 = vmatpush1.msra.mxu0 %v6809
          %6984 = vmatprep.subr.mxu0 0.0
          %6985 = vmatpush1.msra.mxu0 0.0
          %6986 = vmatprep.subr.mxu0 0.0
          %6987 = vmatpush1.msra.mxu0 0.0
          %6988 = vmatprep.subr.mxu0 0.0
          %6989 = vmatpush1.msra.mxu0 0.0
          %6990 = vmatprep.subr.mxu0 0.0
          %6991 = vmatpush1.msra.mxu0 0.0
          %6992 = vmatprep.subr.mxu0 0.0
          %6993 = vmatpush1.msra.mxu0 0.0
          %6994 = vmatprep.subr.mxu0 0.0
          %6995 = vmatpush1.msra.mxu0 0.0
          %6996 = vmatprep.subr.mxu0 0.0
          %6997 = vmatpush1.msra.mxu0 0.0
          %6998 = vmatprep.subr.mxu0 0.0
          %6999 = vmatpush1.msra.mxu0 0.0
          %7000 = vmatprep.subr.mxu0 0.0
          %7001 = vmatpush1.msra.mxu0 0.0
          %7002 = vmatprep.subr.mxu0 0.0
          %7003 = vmatpush1.msra.mxu0 0.0
          %7004 = vmatprep.subr.mxu0 0.0
          %7005 = vmatpush1.msra.mxu0 0.0
          %7006 = vmatprep.subr.mxu0 0.0
          %7007 = vmatpush1.msra.mxu0 0.0
          %7008 = vmatprep.subr.mxu0 0.0
          %7009 = vmatpush1.msra.mxu0 0.0
          %7010 = vmatprep.subr.mxu0 0.0
          %7011 = vmatpush1.msra.mxu0 0.0
          %7012 = vmatprep.subr.mxu0 0.0
          %7013 = vmatpush1.msra.mxu0 0.0
          %7014 = vmatprep.subr.mxu0 0.0
          %7015 = vmatpush1.msra.mxu0 0.0
          %7016 = vmatprep.subr.mxu0 0.0
          %7017 = vmatpush1.msra.mxu0 0.0
          %7018 = vmatprep.subr.mxu0 0.0
          %7019 = vmatpush1.msra.mxu0 0.0
          %7020 = vmatprep.subr.mxu0 0.0
          %7021 = vmatpush1.msra.mxu0 0.0
          %7022 = vmatprep.subr.mxu0 0.0
          %7023 = vmatpush1.msra.mxu0 0.0
          %7024 = vmatprep.subr.mxu0 0.0
          %7025 = vmatpush1.msra.mxu0 0.0
          %7026 = vmatprep.subr.mxu0 0.0
          %7027 = vmatpush1.msra.mxu0 0.0
          %7028 = vmatprep.subr.mxu0 0.0
          %7029 = vmatpush1.msra.mxu0 0.0
          %7030 = vmatprep.subr.mxu0 0.0
          %7031 = vmatpush1.msra.mxu0 0.0
          %7032 = vmatprep.subr.mxu0 0.0
          %7033 = vmatpush1.msra.mxu0 0.0
          %7034 = vmatprep.subr.mxu0 0.0
          %7035 = vmatpush1.msra.mxu0 0.0
          %7036 = vmatprep.subr.mxu0 0.0
          %7037 = vmatpush1.msra.mxu0 0.0
          %7038 = vmatprep.subr.mxu0 0.0
          %7039 = vmatpush1.msra.mxu0 0.0
          %7040 = vmatprep.subr.mxu0 0.0
          %7041 = vmatpush1.msra.mxu0 0.0
          %7042 = vmatprep.subr.mxu0 0.0
          %7043 = vmatpush1.msra.mxu0 0.0
          %7044 = vmatprep.mubr.f32.mxu0 0.0
          %7045 = vmatmul.mubr.f32.gmra.mrb[0].mxu0 %v6975
          %v7046 = vpop.f32.mrb[0].mxu0
          %v7047 = vadd.f32 %v6889, %v7046
          %v7048 = vpop.f32.mrb[0].mxu0
          %v7049 = vadd.f32 %v6891, %v7048
          %7050 = vmatprep.mubr.f32.mxu0 0.0
          %7051 = vmatmul.mubr.f32.gmra.mrb[0].mxu0 %v6978
          %v7052 = vpop.f32.mrb[0].mxu0
          %v7053 = vadd.f32 %v6895, %v7052
          %v7054 = vpop.f32.mrb[0].mxu0
          %v7055 = vadd.f32 %v6897, %v7054
          %7056 = vdwg.mxu0
          %7057 = vmatprep.subr.mxu0 0.0
          %7058 = vmatpush1.msra.mxu0 %v6804
          %7059 = vmatprep.subr.mxu0 0.0
          %7060 = vmatpush1.msra.mxu0 %v6805
          %7061 = vmatprep.subr.mxu0 0.0
          %7062 = vmatpush1.msra.mxu0 0.0
          %7063 = vmatprep.subr.mxu0 0.0
          %7064 = vmatpush1.msra.mxu0 0.0
          %7065 = vmatprep.subr.mxu0 0.0
          %7066 = vmatpush1.msra.mxu0 0.0
          %7067 = vmatprep.subr.mxu0 0.0
          %7068 = vmatpush1.msra.mxu0 0.0
          %7069 = vmatprep.subr.mxu0 0.0
          %7070 = vmatpush1.msra.mxu0 0.0
          %7071 = vmatprep.subr.mxu0 0.0
          %7072 = vmatpush1.msra.mxu0 0.0
          %7073 = vmatprep.subr.mxu0 0.0
          %7074 = vmatpush1.msra.mxu0 0.0
          %7075 = vmatprep.subr.mxu0 0.0
          %7076 = vmatpush1.msra.mxu0 0.0
          %7077 = vmatprep.subr.mxu0 0.0
          %7078 = vmatpush1.msra.mxu0 0.0
          %7079 = vmatprep.subr.mxu0 0.0
          %7080 = vmatpush1.msra.mxu0 0.0
          %7081 = vmatprep.subr.mxu0 0.0
          %7082 = vmatpush1.msra.mxu0 0.0
          %7083 = vmatprep.subr.mxu0 0.0
          %7084 = vmatpush1.msra.mxu0 0.0
          %7085 = vmatprep.subr.mxu0 0.0
          %7086 = vmatpush1.msra.mxu0 0.0
          %7087 = vmatprep.subr.mxu0 0.0
          %7088 = vmatpush1.msra.mxu0 0.0
          %7089 = vmatprep.subr.mxu0 0.0
          %7090 = vmatpush1.msra.mxu0 0.0
          %7091 = vmatprep.subr.mxu0 0.0
          %7092 = vmatpush1.msra.mxu0 0.0
          %7093 = vmatprep.subr.mxu0 0.0
          %7094 = vmatpush1.msra.mxu0 0.0
          %7095 = vmatprep.subr.mxu0 0.0
          %7096 = vmatpush1.msra.mxu0 0.0
          %7097 = vmatprep.subr.mxu0 0.0
          %7098 = vmatpush1.msra.mxu0 0.0
          %7099 = vmatprep.subr.mxu0 0.0
          %7100 = vmatpush1.msra.mxu0 0.0
          %7101 = vmatprep.subr.mxu0 0.0
          %7102 = vmatpush1.msra.mxu0 0.0
          %7103 = vmatprep.subr.mxu0 0.0
          %7104 = vmatpush1.msra.mxu0 0.0
          %7105 = vmatprep.subr.mxu0 0.0
          %7106 = vmatpush1.msra.mxu0 0.0
          %7107 = vmatprep.subr.mxu0 0.0
          %7108 = vmatpush1.msra.mxu0 0.0
          %7109 = vmatprep.subr.mxu0 0.0
          %7110 = vmatpush1.msra.mxu0 0.0
          %7111 = vmatprep.subr.mxu0 0.0
          %7112 = vmatpush1.msra.mxu0 0.0
          %7113 = vmatprep.subr.mxu0 0.0
          %7114 = vmatpush1.msra.mxu0 0.0
          %7115 = vmatprep.subr.mxu0 0.0
          %7116 = vmatpush1.msra.mxu0 0.0
          %7117 = vmatprep.subr.mxu0 0.0
          %7118 = vmatpush1.msra.mxu0 0.0
          %7119 = vmatprep.subr.mxu0 0.0
          %7120 = vmatpush1.msra.mxu0 0.0
          %7121 = vmatprep.mubr.f32.mxu0 0.0
          %7122 = vmatmul.mubr.f32.gmra.mrb[0].mxu0 %v6975
          %v7123 = vpop.f32.mrb[0].mxu0
          %v7124 = vadd.f32 %v6966, %v7123
          %v7125 = vpop.f32.mrb[0].mxu0
          %7126 = vmatprep.mubr.f32.mxu0 0.0
          %7127 = vmatmul.mubr.f32.gmra.mrb[0].mxu0 %v6978
          %v7128 = vpop.f32.mrb[0].mxu0
          %v7129 = vadd.f32 %v6971, %v7128
          %v7130 = vpop.f32.mrb[0].mxu0
          %7131 = vdwg.mxu0
          %7132 = vrot.lane.b32.xlu0 %v6786, 127
          %v7133 = vpop.permute.xlu0 %7132
          %7134 = vrot.lane.b32.xlu0 %v6789, 127
          %v7135 = vpop.permute.xlu0 %7134
          %7136 = vrot.lane.b32.xlu0 %v6787, 127
          %v7137 = vpop.permute.xlu0 %7136
          %7138 = vrot.lane.b32.xlu0 %v6790, 127
          %v7139 = vpop.permute.xlu0 %7138
          %7140 = vrot.lane.b32.xlu0 %v6788, 127
          %v7141 = vpop.permute.xlu0 %7140
          %7142 = vrot.lane.b32.xlu0 %v6791, 127
          %v7143 = vpop.permute.xlu0 %7142
          %v7144 = vsel %vm4296, %v7137, %v7141
          %v7145 = vsel %vm4296, %v7139, %v7143
          %v7146 = vsel %vm4296, %v7133, %v7137
          %v7147 = vsel %vm4296, %v7135, %v7139
          %v7148 = vsel %vm4296, %v7141, %v7133
          %v7149 = vsel %vm4296, %v7143, %v7135
          %s7150 = scalar_lea.vmem %s5, 128
          %v7151 = vld [vmem:[%s7150] sm:$0xff]
          %v7152 = vld [vmem:[%s7150 + $0x8] sm:$0xff]
          %v7154 = vsel %vm3967, %v7151, 0
          %v7157 = vsel %vm3967, %v7152, 0
          %7159 = vmatprep.subr.mxu0 %v7144
          %7160 = vmatpush1.msra.mxu0 %v7146
          %7161 = vmatprep.subr.mxu0 %v7145
          %7162 = vmatpush1.msra.mxu0 %v7147
          %7163 = vmatprep.subr.mxu0 0.0
          %7164 = vmatpush1.msra.mxu0 0.0
          %7165 = vmatprep.subr.mxu0 0.0
          %7166 = vmatpush1.msra.mxu0 0.0
          %7167 = vmatprep.subr.mxu0 0.0
          %7168 = vmatpush1.msra.mxu0 0.0
          %7169 = vmatprep.subr.mxu0 0.0
          %7170 = vmatpush1.msra.mxu0 0.0
          %7171 = vmatprep.subr.mxu0 0.0
          %7172 = vmatpush1.msra.mxu0 0.0
          %7173 = vmatprep.subr.mxu0 0.0
          %7174 = vmatpush1.msra.mxu0 0.0
          %7175 = vmatprep.subr.mxu0 0.0
          %7176 = vmatpush1.msra.mxu0 0.0
          %7177 = vmatprep.subr.mxu0 0.0
          %7178 = vmatpush1.msra.mxu0 0.0
          %7179 = vmatprep.subr.mxu0 0.0
          %7180 = vmatpush1.msra.mxu0 0.0
          %7181 = vmatprep.subr.mxu0 0.0
          %7182 = vmatpush1.msra.mxu0 0.0
          %7183 = vmatprep.subr.mxu0 0.0
          %7184 = vmatpush1.msra.mxu0 0.0
          %7185 = vmatprep.subr.mxu0 0.0
          %7186 = vmatpush1.msra.mxu0 0.0
          %7187 = vmatprep.subr.mxu0 0.0
          %7188 = vmatpush1.msra.mxu0 0.0
          %7189 = vmatprep.subr.mxu0 0.0
          %7190 = vmatpush1.msra.mxu0 0.0
          %7191 = vmatprep.subr.mxu0 0.0
          %7192 = vmatpush1.msra.mxu0 0.0
          %7193 = vmatprep.subr.mxu0 0.0
          %7194 = vmatpush1.msra.mxu0 0.0
          %7195 = vmatprep.subr.mxu0 0.0
          %7196 = vmatpush1.msra.mxu0 0.0
          %7197 = vmatprep.subr.mxu0 0.0
          %7198 = vmatpush1.msra.mxu0 0.0
          %7199 = vmatprep.subr.mxu0 0.0
          %7200 = vmatpush1.msra.mxu0 0.0
          %7201 = vmatprep.subr.mxu0 0.0
          %7202 = vmatpush1.msra.mxu0 0.0
          %7203 = vmatprep.subr.mxu0 0.0
          %7204 = vmatpush1.msra.mxu0 0.0
          %7205 = vmatprep.subr.mxu0 0.0
          %7206 = vmatpush1.msra.mxu0 0.0
          %7207 = vmatprep.subr.mxu0 0.0
          %7208 = vmatpush1.msra.mxu0 0.0
          %7209 = vmatprep.subr.mxu0 0.0
          %7210 = vmatpush1.msra.mxu0 0.0
          %7211 = vmatprep.subr.mxu0 0.0
          %7212 = vmatpush1.msra.mxu0 0.0
          %7213 = vmatprep.subr.mxu0 0.0
          %7214 = vmatpush1.msra.mxu0 0.0
          %7215 = vmatprep.subr.mxu0 0.0
          %7216 = vmatpush1.msra.mxu0 0.0
          %7217 = vmatprep.subr.mxu0 0.0
          %7218 = vmatpush1.msra.mxu0 0.0
          %7219 = vmatprep.subr.mxu0 0.0
          %7220 = vmatpush1.msra.mxu0 0.0
          %7221 = vmatprep.subr.mxu0 0.0
          %7222 = vmatpush1.msra.mxu0 0.0
          %7223 = vmatprep.mubr.f32.mxu0 0.0
          %7224 = vmatmul.mubr.f32.gmra.mrb[0].mxu0 %v7154
          %v7225 = vpop.f32.mrb[0].mxu0
          %v7226 = vadd.f32 0.0, %v7225
          %v7227 = vpop.f32.mrb[0].mxu0
          %v7228 = vadd.f32 0.0, %v7227
          %7229 = vmatprep.mubr.f32.mxu0 0.0
          %7230 = vmatmul.mubr.f32.gmra.mrb[0].mxu0 %v7157
          %v7231 = vpop.f32.mrb[0].mxu0
          %v7232 = vadd.f32 0.0, %v7231
          %v7233 = vpop.f32.mrb[0].mxu0
          %v7234 = vadd.f32 0.0, %v7233
          %7235 = vdwg.mxu0
          %7236 = vmatprep.subr.mxu0 0.0
          %7237 = vmatpush1.msra.mxu0 %v7148
          %7238 = vmatprep.subr.mxu0 0.0
          %7239 = vmatpush1.msra.mxu0 %v7149
          %7240 = vmatprep.subr.mxu0 0.0
          %7241 = vmatpush1.msra.mxu0 0.0
          %7242 = vmatprep.subr.mxu0 0.0
          %7243 = vmatpush1.msra.mxu0 0.0
          %7244 = vmatprep.subr.mxu0 0.0
          %7245 = vmatpush1.msra.mxu0 0.0
          %7246 = vmatprep.subr.mxu0 0.0
          %7247 = vmatpush1.msra.mxu0 0.0
          %7248 = vmatprep.subr.mxu0 0.0
          %7249 = vmatpush1.msra.mxu0 0.0
          %7250 = vmatprep.subr.mxu0 0.0
          %7251 = vmatpush1.msra.mxu0 0.0
          %7252 = vmatprep.subr.mxu0 0.0
          %7253 = vmatpush1.msra.mxu0 0.0
          %7254 = vmatprep.subr.mxu0 0.0
          %7255 = vmatpush1.msra.mxu0 0.0
          %7256 = vmatprep.subr.mxu0 0.0
          %7257 = vmatpush1.msra.mxu0 0.0
          %7258 = vmatprep.subr.mxu0 0.0
          %7259 = vmatpush1.msra.mxu0 0.0
          %7260 = vmatprep.subr.mxu0 0.0
          %7261 = vmatpush1.msra.mxu0 0.0
          %7262 = vmatprep.subr.mxu0 0.0
          %7263 = vmatpush1.msra.mxu0 0.0
          %7264 = vmatprep.subr.mxu0 0.0
          %7265 = vmatpush1.msra.mxu0 0.0
          %7266 = vmatprep.subr.mxu0 0.0
          %7267 = vmatpush1.msra.mxu0 0.0
          %7268 = vmatprep.subr.mxu0 0.0
          %7269 = vmatpush1.msra.mxu0 0.0
          %7270 = vmatprep.subr.mxu0 0.0
          %7271 = vmatpush1.msra.mxu0 0.0
          %7272 = vmatprep.subr.mxu0 0.0
          %7273 = vmatpush1.msra.mxu0 0.0
          %7274 = vmatprep.subr.mxu0 0.0
          %7275 = vmatpush1.msra.mxu0 0.0
          %7276 = vmatprep.subr.mxu0 0.0
          %7277 = vmatpush1.msra.mxu0 0.0
          %7278 = vmatprep.subr.mxu0 0.0
          %7279 = vmatpush1.msra.mxu0 0.0
          %7280 = vmatprep.subr.mxu0 0.0
          %7281 = vmatpush1.msra.mxu0 0.0
          %7282 = vmatprep.subr.mxu0 0.0
          %7283 = vmatpush1.msra.mxu0 0.0
          %7284 = vmatprep.subr.mxu0 0.0
          %7285 = vmatpush1.msra.mxu0 0.0
          %7286 = vmatprep.subr.mxu0 0.0
          %7287 = vmatpush1.msra.mxu0 0.0
          %7288 = vmatprep.subr.mxu0 0.0
          %7289 = vmatpush1.msra.mxu0 0.0
          %7290 = vmatprep.subr.mxu0 0.0
          %7291 = vmatpush1.msra.mxu0 0.0
          %7292 = vmatprep.subr.mxu0 0.0
          %7293 = vmatpush1.msra.mxu0 0.0
          %7294 = vmatprep.subr.mxu0 0.0
          %7295 = vmatpush1.msra.mxu0 0.0
          %7296 = vmatprep.subr.mxu0 0.0
          %7297 = vmatpush1.msra.mxu0 0.0
          %7298 = vmatprep.subr.mxu0 0.0
          %7299 = vmatpush1.msra.mxu0 0.0
          %7300 = vmatprep.mubr.f32.mxu0 0.0
          %7301 = vmatmul.mubr.f32.gmra.mrb[0].mxu0 %v7154
          %v7302 = vpop.f32.mrb[0].mxu0
          %v7303 = vadd.f32 0.0, %v7302
          %v7304 = vpop.f32.mrb[0].mxu0
          %7305 = vmatprep.mubr.f32.mxu0 0.0
          %7306 = vmatmul.mubr.f32.gmra.mrb[0].mxu0 %v7157
          %v7307 = vpop.f32.mrb[0].mxu0
          %v7308 = vadd.f32 0.0, %v7307
          %v7309 = vpop.f32.mrb[0].mxu0
          %7310 = vdwg.mxu0
          %v7311 = vadd.f32 %v7047, %v7226
          %v7312 = vadd.f32 %v7049, %v7228
          %v7313 = vadd.f32 %v7124, %v7303
          %v7314 = vadd.f32 %v7053, %v7232
          %v7315 = vadd.f32 %v7055, %v7234
          %v7316 = vadd.f32 %v7129, %v7308
          %s7317 = scalar_lea.vmem %s6, 32
          %v7318 = vld [vmem:[%s7317] sm:$0xff]
          %v7319 = vld [vmem:[%s7317 + $0x8] sm:$0xff]
          %7321 = vset.pattern.permute.xlu0 0
          %7322 = vperm.xlu0 %7321, %v7318
          %v7323 = vpop.permute.xlu0 %7322
          %7326 = vset.pattern.permute.xlu0 0
          %7327 = vperm.xlu0 %7326, %v7319
          %v7328 = vpop.permute.xlu0 %7327
          %v7330 = vadd.f32 %v7311, %v7323
          %v7331 = vadd.f32 %v7312, %v7323
          %v7332 = vadd.f32 %v7313, %v7323
          %v7333 = vadd.f32 %v7314, %v7328
          %v7334 = vadd.f32 %v7315, %v7328
          %v7335 = vadd.f32 %v7316, %v7328
          %v7336 = vadd.f32 %v6204, %v7330
          %v7337 = vadd.f32 %v6205, %v7331
          %v7338 = vadd.f32 %v6206, %v7332
          %v7339 = vadd.f32 %v6207, %v7333
          %v7340 = vadd.f32 %v6208, %v7334
          %v7341 = vadd.f32 %v6209, %v7335
          %7342 = vst [vmem:[#allocation2] sm:$0xff] %v7336
          %7343 = vst [vmem:[#allocation2 + $0x8] sm:$0xff] %v7337
          %7344 = vst [vmem:[#allocation2 + $0x10] sm:$0xff] %v7338
          %7345 = vst [vmem:[#allocation2 + $0x18] sm:$0xff] %v7339
          %7346 = vst [vmem:[#allocation2 + $0x20] sm:$0xff] %v7340
          %7347 = vst [vmem:[#allocation2 + $0x28] sm:$0xff] %v7341
        $region170: #{residual_block.1} parent=149 // pred_fallthru
          _
        %v7348 = vld [vmem:[#allocation2 + $0x8] sm:$0xff]
        %v7349 = vld [vmem:[#allocation2 + $0x20] sm:$0xff]
        %7350 = vst [vmem:[%s470] sm:$0xff] %v7348
        %7351 = vst [vmem:[%s470 + $0x8] sm:$0xff] %v7349
        %s7352 = sand.u32 %s220, 1
        %s7353 = sand.u32 %s220, 1
        %s7354 = smul.addr %s7353, 16
        %s7355 = scalar_lea.vmem [#allocation6], %s7354
        // Predicated region
        $region171: #{residual_block.1} parent=149 // pred_check
          %p7356 = pneg %p230
        $region172: #{residual_block.1} parent=149 // pred_check_branch
          %7358 = sbr.rel (%p7356) target = $region174
        $region173: #{residual_block.1} parent=149 // pred_region
          %s7359 = smul.addr %s22, 10
          %s7360 = sadd.s32 %s23, %s7359
          %s7361 = smul.addr %s7360, 8
          %s7362 = scalar_lea.vmem %s7, %s7361
          // Predicated region
          $region175: #{residual_block.1} parent=173 // pred_check
            _
          $region176: #{residual_block.1} parent=173 // pred_check_branch
            %7364 = sbr.rel (0) target = $region178
          $region177: #{residual_block.1} parent=173 // pred_region
            // Predicated region
            $region179: #{residual_block.1} parent=177 // pred_check
              _
            $region180: #{residual_block.1} parent=177 // pred_check_branch
              %7366 = sbr.rel (0) target = $region182
            $region181: #{residual_block.1} parent=177 // pred_region
              // Predicated region
              $region194: #{residual_block.1} parent=181 // pred_check
                _
              $region195: #{residual_block.1} parent=181 // pred_check_branch
                %7383 = sbr.rel (0) target = $region197
              $region196: #{residual_block.1} parent=181 // pred_region
                loop: start=0, step=1, limit=1
                $region198: #{residual_block.1} parent=196 // loop_pre_header
                  _
                $region199: #{residual_block.1} parent=196 // loop_header
                  %s7385 = sphi 0, %s7389
                  %p7386 = scmp.ge.s32.totalorder %s7385, 1
                  %s7390 = sphi %s7355, %s7355
                  %s7391 = sphi %s7362, %s7362
                $region200: #{residual_block.1} parent=196 // loop_header_branch
                  %7388 = sbr.rel (%p7386) target = $region204
                $region201: #{residual_block.1} parent=196 // loop_body
                  %v7392 = vld [vmem:[%s7390] sm:$0xff]
                  %7393 = vst [vmem:[%s7391] sm:$0xff] %v7392
                  %v7394 = vld [vmem:[%s7390 + $0x8] sm:$0xff]
                  %7395 = vst [vmem:[%s7391 + $0x28] sm:$0xff] %v7394
                $region202: #{residual_block.1} parent=196 // loop_footer
                  %s7389 = sadd.s32 1, %s7385
                $region203: #{residual_block.1} parent=196 // loop_footer_branch
                  %7384 = sbr.rel target = $region199
                $region204: #{residual_block.1} parent=196 // loop_exit
                  _
              $region197: #{residual_block.1} parent=181 // pred_fallthru
                _
              // Predicated region
              $region205: #{residual_block.1} parent=181 // pred_check
                _
              $region206: #{residual_block.1} parent=181 // pred_check_branch
                %7397 = sbr.rel target = $region208
              $region207: #{residual_block.1} parent=181 // pred_region
                _
              $region208: #{residual_block.1} parent=181 // pred_fallthru
                _
            $region182: #{residual_block.1} parent=177 // pred_fallthru
              _
            // Predicated region
            $region183: #{residual_block.1} parent=177 // pred_check
              _
            $region184: #{residual_block.1} parent=177 // pred_check_branch
              %7368 = sbr.rel target = $region186
            $region185: #{residual_block.1} parent=177 // pred_region
              loop: start=0, step=1, limit=1
              $region187: #{residual_block.1} parent=185 // loop_pre_header
                _
              $region188: #{residual_block.1} parent=185 // loop_header
                %s7371 = sphi 0, %s7375
                %p7372 = scmp.ge.s32.totalorder %s7371, 1
                %s7376 = sphi %s7355, %s7355
                %s7377 = sphi %s7362, %s7362
              $region189: #{residual_block.1} parent=185 // loop_header_branch
                %7374 = sbr.rel (%p7372) target = $region193
              $region190: #{residual_block.1} parent=185 // loop_body
                %v7378 = vld [vmem:[%s7376] sm:$0xff]
                %7379 = vst [vmem:[%s7377] sm:$0xff] %v7378
                %v7380 = vld [vmem:[%s7376 + $0x8] sm:$0xff]
                %7381 = vst [vmem:[%s7377 + $0x28] sm:$0xff] %v7380
              $region191: #{residual_block.1} parent=185 // loop_footer
                %s7375 = sadd.s32 1, %s7371
              $region192: #{residual_block.1} parent=185 // loop_footer_branch
                %7370 = sbr.rel target = $region188
              $region193: #{residual_block.1} parent=185 // loop_exit
                _
            $region186: #{residual_block.1} parent=177 // pred_fallthru
              _
          $region178: #{residual_block.1} parent=173 // pred_fallthru
            _
          %7398 = vnop
        $region174: #{residual_block.1} parent=149 // pred_fallthru
          _
      $region150: #{residual_block.1} parent=5 // pred_fallthru
        _
      %p7399 = scmp.le.s32.totalorder 2, %s13
      // Predicated region
      $region209: #{residual_block.1} parent=5 // pred_check
        %p7400 = pneg %p7399
      $region210: #{residual_block.1} parent=5 // pred_check_branch
        %7402 = sbr.rel (%p7400) target = $region212
      $region211: #{residual_block.1} parent=5 // pred_region
        %s7403 = ssub.s32 %s13, 2
        // Predicated region
        $region213: #{residual_block.1} parent=211 // pred_check
          %p7404 = pneg %p236
        $region214: #{residual_block.1} parent=211 // pred_check_branch
          %7406 = sbr.rel (%p7404) target = $region216
        $region215: #{residual_block.1} parent=211 // pred_region
          %s7407 = sand.u32 %s221, 1
          %s7408 = sand.u32 %s221, 1
          %s7409 = smul.addr %s7408, 16
          %s7410 = scalar_lea.vmem [#allocation6], %s7409
        $region216: #{residual_block.1} parent=211 // pred_fallthru
          _
      $region212: #{residual_block.1} parent=5 // pred_fallthru
        _
    $region6: #{residual_block.1} parent=1 // loop_footer
      %s17 = sadd.s32 1, %s13
    $region7: #{residual_block.1} parent=1 // loop_footer_branch
      %12 = sbr.rel target = $region3
    $region8: #{residual_block.1} parent=1 // loop_exit
      _

</llo_original>
